<compile_context>
chip_gen: v7x
topology: tpu7x:2x2x1
jax: 0.10.0
libtpu: 0.0.40
codegen_flags: <defaults>
</compile_context>

<pallas_src>
import jax
import jax.numpy as jnp
import numpy as np
from jax import lax
from jax.experimental import pallas as pl
from jax.experimental.pallas import tpu as pltpu

N_CH = 16              # conv output channels
HW = 1024              # 32*32 pooled spatial positions
TAPS = 9               # 3x3 conv taps
POOL = 4               # 2x2 max-pool offsets (folded onto the lane axis)
N_ALPHA, N_CHAR = 30, 964
HEAD_LANES = 1024      # lane-dense packing of both heads: [wa | wc | zero-pad]


# ---------------------------------------------------------------------------
# Fused kernel: conv -> maxpool -> ELU -> Linear(16384,128) -> both heads
# ---------------------------------------------------------------------------
def _net_fused_kernel(p_ref, cw_ref, cb_ref, w1_ref, b1_ref, wh_ref, bh_ref,
                      o_ref, h_ref):
    # p_ref : (N, 9, 4096)     im2col patches, lanes = pool_offset*1024 + hw (resident)
    # cw_ref: (ck, 1, 9)       conv weight rows for this step's channels (f32)
    # cb_ref: (ck, 1, 1)       conv bias for this step's channels (f32)
    # w1_ref: (ck, 1024, 128)  Linear(16384->128) weight slice (bf16, streamed)
    # b1_ref: (1, 128)         Linear bias (f32)
    # wh_ref: (128, 1024)      [wa | wc | 0] packed head weights (bf16)
    # bh_ref: (1, 1024)        [ba | bc | 0] packed head biases (f32)
    # o_ref : (N, 1024)        packed head outputs (lane-dense, f32)
    # h_ref : (N, 128)         f32 scratch accumulator for the hidden features
    k = pl.program_id(0)
    nb = p_ref.shape[0]

    @pl.when(k == 0)
    def _():
        h_ref[...] = jnp.zeros_like(h_ref)

    w = cw_ref[...][:, 0, :]                  # (ck, 9)  f32
    b = cb_ref[...][:, 0, :]                  # (ck, 1)  f32

    # --- Conv2d(1,16,3,pad=1) + MaxPool2d(2) + ELU, fused per image -----------------
    # One (ck,9)x(9,4096) dot per image covers all 4 pool offsets; the pool is a max
    # over four 1024-lane groups.  Per-channel bias commutes with the max, so it is
    # added after the reduction.  Only the bf16 (ck,1024) activations outlive the loop.
    feats = []
    for n in range(nb):                       # tiny static batch -> unrolled
        conv = jnp.dot(w, p_ref[n], preferred_element_type=jnp.float32)   # (ck, 4096)
        pooled = jnp.maximum(
            jnp.maximum(conv[:, 0 * HW:1 * HW], conv[:, 1 * HW:2 * HW]),
            jnp.maximum(conv[:, 2 * HW:3 * HW], conv[:, 3 * HW:4 * HW]))  # (ck, 1024)
        z = pooled + b
        # ELU(alpha=1): min() keeps the (discarded) exp branch from overflowing.
        # TODO(synk): on v6e/v7x the exp could run in bf16 on the EUP for ~2x
        # transcendental throughput; kept f32 so the identical path stays valid on v5e.
        elu = jnp.where(z > 0.0, z, jnp.exp(jnp.minimum(z, 0.0)) - 1.0)
        feats.append(elu.astype(jnp.bfloat16))                            # (ck, 1024)

    # --- partial Linear(16*32*32 -> 128): ONE bf16 x bf16 contraction per step ------
    # Batched over the ck channels (K = ck*1024 total); no per-channel slicing,
    # no w1 up-cast.  Accumulation stays f32 in the resident h scratch.
    feats_cnh = jnp.stack(feats, axis=1)                      # (ck, nb, 1024) bf16
    partial = jnp.einsum("cnh,cho->cno", feats_cnh, w1_ref[...],
                         preferred_element_type=jnp.float32)   # (ck, nb, 128) f32
    h_ref[...] += jnp.sum(partial, axis=0)

    # --- last step: Linear bias + both classifier heads in one lane-dense matmul ----
    @pl.when(k == pl.num_programs(0) - 1)
    def _():
        h = (h_ref[...] + b1_ref[...]).astype(jnp.bfloat16)               # (nb, 128)
        o_ref[...] = (jnp.dot(h, wh_ref[...], preferred_element_type=jnp.float32)
                      + bh_ref[...])


def net_forward_pallas(patches, kp, *, channels_per_step=8):
    """patches: (N, 9, 4096); kp: kernel-layout params. Returns ((N,30),(N,964)).

    channels_per_step (ck) controls the K-streaming granularity of the bf16 w1 read
    (the HBM floor of this net).  8 is best on v6e/v7x; on v5e's slower HBM pass 4 to
    halve the exposed step-0 prologue (legal now that conv params are blocked along a
    leading axis).  16 is forbidden: a 1-step grid removes all DMA/compute overlap.
    """
    nb = patches.shape[0]
    ck = channels_per_step
    assert 1 <= ck <= 8 and N_CH % ck == 0, "channels_per_step must divide 16 and be <= 8"
    kt = N_CH // ck                      # K-streaming steps
    out = pl.pallas_call(
        _net_fused_kernel,
        out_shape=jax.ShapeDtypeStruct((nb, HEAD_LANES), jnp.float32),
        grid=(kt,),
        in_specs=[
            pl.BlockSpec((nb, TAPS, POOL * HW), lambda k: (0, 0, 0)),   # patches, resident
            pl.BlockSpec((ck, 1, TAPS), lambda k: (k, 0, 0)),           # conv weight chunk
            pl.BlockSpec((ck, 1, 1), lambda k: (k, 0, 0)),              # conv bias chunk
            pl.BlockSpec((ck, HW, 128), lambda k: (k, 0, 0)),           # w1 chunk (bf16)
            pl.BlockSpec((1, 128), lambda k: (0, 0)),                   # b1
            pl.BlockSpec((128, HEAD_LANES), lambda k: (0, 0)),          # packed head weights
            pl.BlockSpec((1, HEAD_LANES), lambda k: (0, 0)),            # packed head biases
        ],
        out_specs=pl.BlockSpec((nb, HEAD_LANES), lambda k: (0, 0)),
        scratch_shapes=[pltpu.VMEM((nb, 128), jnp.float32)],
        compiler_params=pltpu.CompilerParams(
            dimension_semantics=("arbitrary",),          # K-reduction axis
            vmem_limit_bytes=32 * 1024 * 1024,           # headroom; ~5 MB actually used
        ),
    )(patches, kp["conv_w"], kp["conv_b"], kp["w1r"], kp["b1"], kp["wh"], kp["bh"])
    return out[:, :N_ALPHA], out[:, N_ALPHA:N_ALPHA + N_CHAR]


# ---------------------------------------------------------------------------
# Glue (data layout / parameter setup) — plain JAX
# ---------------------------------------------------------------------------
def im2col_pool_patches(x):
    """x: (N,1,64,64) NCHW -> (N, 9, 4096) im2col patches.

    patches[n, 3*dh+dw, (2*a+b)*1024 + 32*i + j] = x_pad[n, 2*i+a+dh, 2*j+b+dw]
    so conv(pad=1) at all 4 pool offsets of every pooled position is one
    (C,9)x(9,4096) matmul; the kernel max-reduces the four 1024-lane groups.
    """
    # TODO(synk): building the patches in-kernel from the padded image would cut
    # conv-stage HBM traffic ~8x, but strided in-kernel gathers are not worth the
    # lowering risk here (patches are 144 KB/img vs the ~4 MB bf16 w1 stream).
    n = x.shape[0]
    xp = jnp.pad(x[:, 0], ((0, 0), (1, 1), (1, 1)))            # padding=1 -> (N, 66, 66)
    taps = []
    for dh in range(3):
        for dw in range(3):
            offs = []
            for a in range(2):
                for b in range(2):
                    sl = xp[:, a + dh:a + dh + 64:2, b + dw:b + dw + 64:2]   # (N,32,32)
                    offs.append(sl.reshape(n, HW))
            taps.append(jnp.concatenate(offs, axis=1))          # (N, 4096)
    return jnp.stack(taps, axis=1).astype(jnp.float32)           # (N, 9, 4096)


def init_params(key):
    ks = jax.random.split(key, 8)

    def nrm(k, shape, scale, dtype=jnp.float32):
        return (scale * jax.random.normal(k, shape)).astype(dtype)

    return dict(
        conv_w=nrm(ks[0], (N_CH, TAPS), 1.0 / 3.0),        # Conv2d(1,16,3) weight, (C_out, 3*3)
        conv_b=nrm(ks[1], (N_CH, 1), 0.1),
        # The 16384x128 weight is the HBM floor of the forward -> stored bf16
        # (f32 accumulation in-kernel; the reference uses the same rounded weights).
        w1=nrm(ks[2], (N_CH * HW, 128), 1.0 / 128.0, jnp.bfloat16),
        b1=nrm(ks[3], (1, 128), 0.1),
        # Head weights also bf16 (256 KB off the exposed prologue DMA).
        wa=nrm(ks[4], (128, N_ALPHA), 1.0 / 12.0, jnp.bfloat16),
        ba=nrm(ks[5], (1, N_ALPHA), 0.1),
        wc=nrm(ks[6], (128, N_CHAR), 1.0 / 12.0, jnp.bfloat16),
        bc=nrm(ks[7], (1, N_CHAR), 0.1),
    )


def prepare_kernel_params(params):
    """One-time re-layout of the parameters for the fused kernel."""
    pad = HEAD_LANES - N_ALPHA - N_CHAR
    wh = jnp.concatenate([params["wa"], params["wc"],
                          jnp.zeros((128, pad), jnp.bfloat16)], axis=1)    # (128, 1024) bf16
    bh = jnp.concatenate([params["ba"], params["bc"],
                          jnp.zeros((1, pad), jnp.float32)], axis=1)       # (1, 1024) f32
    return dict(
        conv_w=params["conv_w"].reshape(N_CH, 1, TAPS),   # leading-axis blocked -> any ck legal
        conv_b=params["conv_b"].reshape(N_CH, 1, 1),
        w1r=params["w1"].reshape(N_CH, HW, 128),          # (16,1024,128) bf16
        b1=params["b1"],
        wh=wh.astype(jnp.bfloat16),
        bh=bh,
    )


@jax.jit
def net_forward(x, kparams):
    patches = im2col_pool_patches(x)           # layout-only glue
    return net_forward_pallas(patches, kparams)


def reference_forward(x, params):
    """Pure-JAX reference mirroring the PyTorch forward (same bf16-rounded weights)."""
    w = params["conv_w"].reshape(N_CH, 1, 3, 3)
    conv = lax.conv_general_dilated(
        x, w, (1, 1), ((1, 1), (1, 1)), dimension_numbers=("NCHW", "OIHW", "NCHW"),
        precision=lax.Precision.HIGHEST)
    conv = conv + params["conv_b"].reshape(1, N_CH, 1, 1)
    pooled = lax.reduce_window(conv, -jnp.inf, lax.max,
                               (1, 1, 2, 2), (1, 1, 2, 2), "VALID")
    act = jnp.where(pooled > 0, pooled, jnp.exp(jnp.minimum(pooled, 0.0)) - 1.0)
    flat = act.reshape(x.shape[0], -1)
    h = jnp.dot(flat, params["w1"].astype(jnp.float32),
                precision=lax.Precision.HIGHEST) + params["b1"]
    out_a = jnp.dot(h, params["wa"].astype(jnp.float32),
                    precision=lax.Precision.HIGHEST) + params["ba"]
    out_c = jnp.dot(h, params["wc"].astype(jnp.float32),
                    precision=lax.Precision.HIGHEST) + params["bc"]
    return out_a, out_c


if __name__ == "__main__":
    key = jax.random.PRNGKey(0)
    # Linear(16*32*32, 128) after MaxPool2d(2) => the module implies (N, 1, 64, 64) input.
    x = jax.random.normal(key, (2, 1, 64, 64), dtype=jnp.float32)
    params = init_params(jax.random.PRNGKey(42))
    kparams = prepare_kernel_params(params)

    out_alpha, out_char = net_forward(x, kparams)
    jax.block_until_ready((out_alpha, out_char))

    assert out_alpha.shape == (2, N_ALPHA) and out_alpha.dtype == jnp.float32
    assert out_char.shape == (2, N_CHAR) and out_char.dtype == jnp.float32

    ref_alpha, ref_char = reference_forward(x, params)
    # Both sides use identical bf16-rounded w1/wa/wc, so the differences are the kernel's
    # bf16 activation/h rounding (adds ~1e-3 abs) and MXU precision paths -> small atol cushion.
    np.testing.assert_allclose(np.asarray(out_alpha), np.asarray(ref_alpha),
                               rtol=1e-2, atol=1.5e-2)
    np.testing.assert_allclose(np.asarray(out_char), np.asarray(ref_char),
                               rtol=1e-2, atol=1.5e-2)

    print("KERNEL_OK")
</pallas_src>

<mosaic_0001>
module attributes {stable_mosaic.version = 11 : i64} {
  func.func @_net_fused_kernel(%arg0: i32, %arg1: memref<2x9x4096xf32, #tpu.memory_space<vmem>>, %arg2: memref<8x1x9xf32, #tpu.memory_space<vmem>>, %arg3: memref<8x1x1xf32, #tpu.memory_space<vmem>>, %arg4: memref<8x1024x128xbf16, #tpu.memory_space<vmem>>, %arg5: memref<1x128xf32, #tpu.memory_space<vmem>>, %arg6: memref<128x1024xbf16, #tpu.memory_space<vmem>>, %arg7: memref<1x1024xf32, #tpu.memory_space<vmem>>, %arg8: memref<2x1024xf32, #tpu.memory_space<vmem>>, %arg9: memref<2x128xf32, #tpu.memory_space<vmem>>) attributes {dimension_semantics = [#tpu.dimension_semantics<arbitrary>], iteration_bounds = array<i64: 2>, scalar_prefetch = 0 : i64, scratch_operands = 1 : i64, tpu.core_type = #tpu.core_type<tc>, window_params = [{pipeline_mode = #tpu.pipeline_mode<synchronous>, transform_indices = @transform_0, window_bounds = array<i64: 2, 9, 4096>}, {transform_indices = @transform_1, window_bounds = array<i64: 8, 1, 9>}, {transform_indices = @transform_2, window_bounds = array<i64: 8, 1, 1>}, {transform_indices = @transform_3, window_bounds = array<i64: 8, 1024, 128>}, {pipeline_mode = #tpu.pipeline_mode<synchronous>, transform_indices = @transform_4, window_bounds = array<i64: 1, 128>}, {pipeline_mode = #tpu.pipeline_mode<synchronous>, transform_indices = @transform_5, window_bounds = array<i64: 128, 1024>}, {pipeline_mode = #tpu.pipeline_mode<synchronous>, transform_indices = @transform_6, window_bounds = array<i64: 1, 1024>}, {pipeline_mode = #tpu.pipeline_mode<synchronous>, transform_indices = @transform_7, window_bounds = array<i64: 2, 1024>}]} {
    %c0_i32 = arith.constant 0 : i32
    %0 = arith.cmpi eq, %arg0, %c0_i32 : i32
    %1 = arith.extui %0 : i1 to i32
    %c0_i32_0 = arith.constant 0 : i32
    %2 = arith.cmpi ne, %1, %c0_i32_0 : i32
    scf.if %2 {
      %cst_28 = arith.constant 0.000000e+00 : f32
      %61 = vector.broadcast %cst_28 : f32 to vector<2x128xf32>
      %c0_29 = arith.constant 0 : index
      %c0_30 = arith.constant 0 : index
      %62 = vector.load %arg9[%c0_29, %c0_30] : memref<2x128xf32, #tpu.memory_space<vmem>>, vector<2x128xf32>
      tpu.vector_store %arg9[%c0_29, %c0_30], %61 {strides = array<i32>} : memref<2x128xf32, #tpu.memory_space<vmem>>, vector<2x128xf32>,
    } else {
    }
    %c0 = arith.constant 0 : index
    %c0_1 = arith.constant 0 : index
    %c0_2 = arith.constant 0 : index
    %3 = vector.load %arg2[%c0, %c0_1, %c0_2] : memref<8x1x9xf32, #tpu.memory_space<vmem>>, vector<8x1x9xf32>
    %4 = vector.shape_cast %3 : vector<8x1x9xf32> to vector<8x9xf32>
    %c0_3 = arith.constant 0 : index
    %c0_4 = arith.constant 0 : index
    %c0_5 = arith.constant 0 : index
    %5 = vector.load %arg3[%c0_3, %c0_4, %c0_5] : memref<8x1x1xf32, #tpu.memory_space<vmem>>, vector<8x1x1xf32>
    %6 = vector.shape_cast %5 : vector<8x1x1xf32> to vector<8x1xf32>
    %c0_6 = arith.constant 0 : index
    %c0_7 = arith.constant 0 : index
    %c0_8 = arith.constant 0 : index
    %7 = vector.load %arg1[%c0_6, %c0_7, %c0_8] : memref<2x9x4096xf32, #tpu.memory_space<vmem>>, vector<1x9x4096xf32>
    %8 = vector.shape_cast %7 : vector<1x9x4096xf32> to vector<9x4096xf32>
    %cst = arith.constant dense<0.000000e+00> : vector<8x4096xf32>
    %9 = tpu.matmul %4, %8, %cst {dimension_numbers = #tpu.dot_dimension_numbers<[1], [0], [0], [1], [0, 0, 1, 1], [], []>} : vector<8x9xf32>, vector<9x4096xf32>, vector<8x4096xf32> -> vector<8x4096xf32>
    %10 = vector.extract_strided_slice %9 {offsets = [0, 0], sizes = [8, 1024], strides = [1, 1]} : vector<8x4096xf32> to vector<8x1024xf32>
    %11 = vector.extract_strided_slice %9 {offsets = [0, 1024], sizes = [8, 1024], strides = [1, 1]} : vector<8x4096xf32> to vector<8x1024xf32>
    %12 = arith.maximumf %10, %11 : vector<8x1024xf32>
    %13 = vector.extract_strided_slice %9 {offsets = [0, 2048], sizes = [8, 1024], strides = [1, 1]} : vector<8x4096xf32> to vector<8x1024xf32>
    %14 = vector.extract_strided_slice %9 {offsets = [0, 3072], sizes = [8, 1024], strides = [1, 1]} : vector<8x4096xf32> to vector<8x1024xf32>
    %15 = arith.maximumf %13, %14 : vector<8x1024xf32>
    %16 = arith.maximumf %12, %15 : vector<8x1024xf32>
    %17 = vector.broadcast %6 : vector<8x1xf32> to vector<8x1024xf32>
    %18 = arith.addf %16, %17 : vector<8x1024xf32>
    %cst_9 = arith.constant 0.000000e+00 : f32
    %19 = vector.broadcast %cst_9 : f32 to vector<8x1024xf32>
    %20 = arith.cmpf ogt, %18, %19 : vector<8x1024xf32>
    %cst_10 = arith.constant 0.000000e+00 : f32
    %21 = vector.broadcast %cst_10 : f32 to vector<8x1024xf32>
    %22 = arith.minimumf %18, %21 : vector<8x1024xf32>
    %23 = math.exp %22 : vector<8x1024xf32>
    %cst_11 = arith.constant 1.000000e+00 : f32
    %24 = vector.broadcast %cst_11 : f32 to vector<8x1024xf32>
    %25 = arith.subf %23, %24 : vector<8x1024xf32>
    %26 = arith.select %20, %18, %25 : vector<8x1024xi1>, vector<8x1024xf32>
    %27 = arith.truncf %26 : vector<8x1024xf32> to vector<8x1024xbf16>
    %c1 = arith.constant 1 : index
    %c0_12 = arith.constant 0 : index
    %c0_13 = arith.constant 0 : index
    %28 = vector.load %arg1[%c1, %c0_12, %c0_13] : memref<2x9x4096xf32, #tpu.memory_space<vmem>>, vector<1x9x4096xf32>
    %29 = vector.shape_cast %28 : vector<1x9x4096xf32> to vector<9x4096xf32>
    %cst_14 = arith.constant dense<0.000000e+00> : vector<8x4096xf32>
    %30 = tpu.matmul %4, %29, %cst_14 {dimension_numbers = #tpu.dot_dimension_numbers<[1], [0], [0], [1], [0, 0, 1, 1], [], []>} : vector<8x9xf32>, vector<9x4096xf32>, vector<8x4096xf32> -> vector<8x4096xf32>
    %31 = vector.extract_strided_slice %30 {offsets = [0, 0], sizes = [8, 1024], strides = [1, 1]} : vector<8x4096xf32> to vector<8x1024xf32>
    %32 = vector.extract_strided_slice %30 {offsets = [0, 1024], sizes = [8, 1024], strides = [1, 1]} : vector<8x4096xf32> to vector<8x1024xf32>
    %33 = arith.maximumf %31, %32 : vector<8x1024xf32>
    %34 = vector.extract_strided_slice %30 {offsets = [0, 2048], sizes = [8, 1024], strides = [1, 1]} : vector<8x4096xf32> to vector<8x1024xf32>
    %35 = vector.extract_strided_slice %30 {offsets = [0, 3072], sizes = [8, 1024], strides = [1, 1]} : vector<8x4096xf32> to vector<8x1024xf32>
    %36 = arith.maximumf %34, %35 : vector<8x1024xf32>
    %37 = arith.maximumf %33, %36 : vector<8x1024xf32>
    %38 = vector.broadcast %6 : vector<8x1xf32> to vector<8x1024xf32>
    %39 = arith.addf %37, %38 : vector<8x1024xf32>
    %cst_15 = arith.constant 0.000000e+00 : f32
    %40 = vector.broadcast %cst_15 : f32 to vector<8x1024xf32>
    %41 = arith.cmpf ogt, %39, %40 : vector<8x1024xf32>
    %cst_16 = arith.constant 0.000000e+00 : f32
    %42 = vector.broadcast %cst_16 : f32 to vector<8x1024xf32>
    %43 = arith.minimumf %39, %42 : vector<8x1024xf32>
    %44 = math.exp %43 : vector<8x1024xf32>
    %cst_17 = arith.constant 1.000000e+00 : f32
    %45 = vector.broadcast %cst_17 : f32 to vector<8x1024xf32>
    %46 = arith.subf %44, %45 : vector<8x1024xf32>
    %47 = arith.select %41, %39, %46 : vector<8x1024xi1>, vector<8x1024xf32>
    %48 = arith.truncf %47 : vector<8x1024xf32> to vector<8x1024xbf16>
    %49 = vector.shape_cast %27 : vector<8x1024xbf16> to vector<8x1x1024xbf16>
    %50 = vector.shape_cast %48 : vector<8x1024xbf16> to vector<8x1x1024xbf16>
    %51 = tpu.concatenate %49, %50 in 1 : vector<8x1x1024xbf16>, vector<8x1x1024xbf16> -> vector<8x2x1024xbf16>
    %c0_18 = arith.constant 0 : index
    %c0_19 = arith.constant 0 : index
    %c0_20 = arith.constant 0 : index
    %52 = vector.load %arg4[%c0_18, %c0_19, %c0_20] : memref<8x1024x128xbf16, #tpu.memory_space<vmem>>, vector<8x1024x128xbf16>
    "tpu.trace_start"() <{level = 10 : i32, message = "cnh,cho->cno"}> : () -> ()
    %cst_21 = arith.constant dense<0.000000e+00> : vector<8x2x128xf32>
    %53 = tpu.matmul %51, %52, %cst_21 {dimension_numbers = #tpu.dot_dimension_numbers<[2], [1], [1], [2], [0, 0, 0, 1, 1, 2], [0], [0]>} : vector<8x2x1024xbf16>, vector<8x1024x128xbf16>, vector<8x2x128xf32> -> vector<8x2x128xf32>
    "tpu.trace_stop"() : () -> ()
    %c0_22 = arith.constant 0 : index
    %c0_23 = arith.constant 0 : index
    %54 = vector.load %arg9[%c0_22, %c0_23] : memref<2x128xf32, #tpu.memory_space<vmem>>, vector<2x128xf32>
    %cst_24 = arith.constant dense<0.000000e+00> : vector<2x128xf32>
    %55 = vector.multi_reduction <add>, %53, %cst_24 [0] : vector<8x2x128xf32> to vector<2x128xf32>
    %56 = arith.addf %54, %55 : vector<2x128xf32>
    %c0_25 = arith.constant 0 : index
    %c0_26 = arith.constant 0 : index
    %57 = vector.load %arg9[%c0_25, %c0_26] : memref<2x128xf32, #tpu.memory_space<vmem>>, vector<2x128xf32>
    tpu.vector_store %arg9[%c0_25, %c0_26], %56 {strides = array<i32>} : memref<2x128xf32, #tpu.memory_space<vmem>>, vector<2x128xf32>,
    %c1_i32 = arith.constant 1 : i32
    %58 = arith.cmpi eq, %arg0, %c1_i32 : i32
    %59 = arith.extui %58 : i1 to i32
    %c0_i32_27 = arith.constant 0 : i32
    %60 = arith.cmpi ne, %59, %c0_i32_27 : i32
    scf.if %60 {
      %c0_28 = arith.constant 0 : index
      %c0_29 = arith.constant 0 : index
      %61 = vector.load %arg9[%c0_28, %c0_29] : memref<2x128xf32, #tpu.memory_space<vmem>>, vector<2x128xf32>
      %c0_30 = arith.constant 0 : index
      %c0_31 = arith.constant 0 : index
      %62 = vector.load %arg5[%c0_30, %c0_31] : memref<1x128xf32, #tpu.memory_space<vmem>>, vector<1x128xf32>
      %63 = vector.broadcast %62 : vector<1x128xf32> to vector<2x128xf32>
      %64 = arith.addf %61, %63 : vector<2x128xf32>
      %65 = arith.truncf %64 : vector<2x128xf32> to vector<2x128xbf16>
      %c0_32 = arith.constant 0 : index
      %c0_33 = arith.constant 0 : index
      %66 = vector.load %arg6[%c0_32, %c0_33] : memref<128x1024xbf16, #tpu.memory_space<vmem>>, vector<128x1024xbf16>
      %cst_34 = arith.constant dense<0.000000e+00> : vector<2x1024xf32>
      %67 = tpu.matmul %65, %66, %cst_34 {dimension_numbers = #tpu.dot_dimension_numbers<[1], [0], [0], [1], [0, 0, 1, 1], [], []>} : vector<2x128xbf16>, vector<128x1024xbf16>, vector<2x1024xf32> -> vector<2x1024xf32>
      %c0_35 = arith.constant 0 : index
      %c0_36 = arith.constant 0 : index
      %68 = vector.load %arg7[%c0_35, %c0_36] : memref<1x1024xf32, #tpu.memory_space<vmem>>, vector<1x1024xf32>
      %69 = vector.broadcast %68 : vector<1x1024xf32> to vector<2x1024xf32>
      %70 = arith.addf %67, %69 : vector<2x1024xf32>
      %c0_37 = arith.constant 0 : index
      %c0_38 = arith.constant 0 : index
      %71 = vector.load %arg8[%c0_37, %c0_38] : memref<2x1024xf32, #tpu.memory_space<vmem>>, vector<2x1024xf32>
      tpu.vector_store %arg8[%c0_37, %c0_38], %70 {strides = array<i32>} : memref<2x1024xf32, #tpu.memory_space<vmem>>, vector<2x1024xf32>,
    } else {
    }
    return
  }
  func.func @transform_0(%arg0: i32) -> (i32, i32, i32) {
    %c0_i32 = arith.constant 0 : i32
    %c0_i32_0 = arith.constant 0 : i32
    %c0_i32_1 = arith.constant 0 : i32
    %c0_i32_2 = arith.constant 0 : i32
    return %c0_i32, %c0_i32_0, %c0_i32_1 : i32, i32, i32
  }
  func.func @transform_1(%arg0: i32) -> (i32, i32, i32) {
    %c0_i32 = arith.constant 0 : i32
    %c0_i32_0 = arith.constant 0 : i32
    %c0_i32_1 = arith.constant 0 : i32
    return %arg0, %c0_i32, %c0_i32_0 : i32, i32, i32
  }
  func.func @transform_2(%arg0: i32) -> (i32, i32, i32) {
    %c0_i32 = arith.constant 0 : i32
    %c0_i32_0 = arith.constant 0 : i32
    %c0_i32_1 = arith.constant 0 : i32
    return %arg0, %c0_i32, %c0_i32_0 : i32, i32, i32
  }
  func.func @transform_3(%arg0: i32) -> (i32, i32, i32) {
    %c0_i32 = arith.constant 0 : i32
    %c0_i32_0 = arith.constant 0 : i32
    %c0_i32_1 = arith.constant 0 : i32
    return %arg0, %c0_i32, %c0_i32_0 : i32, i32, i32
  }
  func.func @transform_4(%arg0: i32) -> (i32, i32) {
    %c0_i32 = arith.constant 0 : i32
    %c0_i32_0 = arith.constant 0 : i32
    %c0_i32_1 = arith.constant 0 : i32
    return %c0_i32, %c0_i32_0 : i32, i32
  }
  func.func @transform_5(%arg0: i32) -> (i32, i32) {
    %c0_i32 = arith.constant 0 : i32
    %c0_i32_0 = arith.constant 0 : i32
    %c0_i32_1 = arith.constant 0 : i32
    return %c0_i32, %c0_i32_0 : i32, i32
  }
  func.func @transform_6(%arg0: i32) -> (i32, i32) {
    %c0_i32 = arith.constant 0 : i32
    %c0_i32_0 = arith.constant 0 : i32
    %c0_i32_1 = arith.constant 0 : i32
    return %c0_i32, %c0_i32_0 : i32, i32
  }
  func.func @transform_7(%arg0: i32) -> (i32, i32) {
    %c0_i32 = arith.constant 0 : i32
    %c0_i32_0 = arith.constant 0 : i32
    %c0_i32_1 = arith.constant 0 : i32
    return %c0_i32, %c0_i32_0 : i32, i32
  }
}

</mosaic_0001>

<llo_original>
// kernel: net_forward.1
$region0: #{net_forward.1}
  #allocation0 [shape = 'u32[]', space=smem, size = 0x4, offset = 0x4, fixed_abs, tag = 'smem constant byte address 0x4 - core index']
  #allocation1 [shape = 'u32[144,128]{1,0:T(1,128)}', space=vmem, size = 0x12000, scoped, tag = 'internal scratch']
  #allocation2 [shape = 'f32[2,128]{1,0:T(2,128)}', space=vmem, size = 0x400, scoped, tag = 'scratch operand']
  %s0 = inlined_call_operand.vmem [shape: f32[2,9,4096], index: 0, kind: input, shape index: {}]
  %s1 = inlined_call_operand.vmem [shape: f32[16,1,9], index: 1, kind: input, shape index: {}]
  %s2 = inlined_call_operand.vmem [shape: f32[16,1,1], index: 2, kind: input, shape index: {}]
  %s3 = inlined_call_operand.hbm [shape: bf16[16,1024,128], index: 3, kind: input, shape index: {}]
  %s4 = inlined_call_operand.hbm [shape: f32[1,128], index: 4, kind: input, shape index: {}]
  %s5 = inlined_call_operand.hbm [shape: bf16[128,1024], index: 5, kind: input, shape index: {}]
  %s6 = inlined_call_operand.hbm [shape: f32[1,1024], index: 6, kind: input, shape index: {}]
  %s7 = inlined_call_operand.vmem [shape: f32[2,1024], index: 7, kind: output, shape index: {}]
  %s8 = sld [smem:[#allocation0]]
  $region85: #{net_forward.1} parent=0
    _
  %s10 = ssub.s32 1, %s8
  %s11 = scalar_select 0, %s10, %s8
  $region1: #{net_forward.1} parent=0
    #allocation3 [shape = 'u8[4194304]{0}', space=vmem, size = 0x400000, scoped, tag = 'input window, operand 3']
    #allocation4 [shape = 's32[2]{0}', space=sflag, size = 0x8, scoped, tag = 'scoped memory for net_forward.1']
    #allocation5 [shape = 'u8[512]{0}', space=vmem, size = 0x400, scoped, tag = 'input window, operand 4, single buffered']
    #allocation6 [shape = 's32[1]{0}', space=sflag, size = 0x4, scoped, tag = 'scoped memory for net_forward.1']
    #allocation7 [shape = 'u8[262144]{0}', space=vmem, size = 0x40000, scoped, tag = 'input window, operand 5, single buffered']
    #allocation8 [shape = 'u8[4096]{0}', space=vmem, size = 0x1000, scoped, tag = 'input window, operand 6, single buffered']
    #allocation9 [shape = 's32[1]{0}', space=sflag, size = 0x4, scoped, tag = 'scoped memory for net_forward.1']
    %12 = vsyncpa [#allocation4], 0
    %s13 = scalar_lea.sflag [#allocation4], 1
    %14 = vsyncpa %s13, 0
    %15 = vsyncpa [#allocation6], 0
    %16 = vsyncpa [#allocation9], 0
    loop: start=0, step=1, limit=4
    $region2: #{net_forward.1} parent=1 // loop_pre_header
      _
    $region3: #{net_forward.1} parent=1 // loop_header
      %s18 = sphi 0, %s22
      %p19 = scmp.ge.s32.totalorder %s18, 4
      %s26 = sphi 0, %s26
      %s28 = sphi 0, %s26
      %s29 = sphi 0, %s28
      %s43 = sphi 0, %s29
      %s49 = sphi 0, %s51
      %s52 = sphi 0, %s49
      %s53 = sphi 0, %s52
      %s69 = sphi 0, %s53
      %s75 = sphi 0, %s77
      %s78 = sphi 0, %s75
      %s79 = sphi 0, %s78
      %s95 = sphi 0, %s79
      %s101 = sphi 0, %s103
      %s104 = sphi 0, %s101
      %s105 = sphi 0, %s104
      %s121 = sphi 0, %s105
      %s125 = sphi 0, %s125
      %s127 = sphi 0, %s125
      %s128 = sphi 0, %s127
      %s142 = sphi 0, %s128
      %s146 = sphi 0, %s146
      %s148 = sphi 0, %s146
      %s149 = sphi 0, %s148
      %s163 = sphi 0, %s149
      %s167 = sphi 0, %s167
      %s169 = sphi 0, %s167
      %s170 = sphi 0, %s169
      %s184 = sphi 0, %s170
      %s188 = sphi 0, %s188
      %s190 = sphi 0, %s188
      %s191 = sphi 0, %s190
      %s205 = sphi 0, %s191
    $region4: #{net_forward.1} parent=1 // loop_header_branch
      %21 = sbr.rel (%p19) target = $region8
    $region5: #{net_forward.1} parent=1 // loop_body
      %s23 = ssub.s32 %s18, 1
      %s24 = ssub.s32 %s18, 2
      %s25 = sadd.s32 %s18, 1
      %s27 = sadd.s32 %s26, 1
      %p30 = scmp.eq.s32.totalorder %s18, 1
      %p31 = scmp.ne.s32.totalorder %s26, %s28
      %p32 = scmp.eq.s32.totalorder %s18, 0
      %p33 = por %p31, %p32
      %p34 = scmp.ne.s32.totalorder %s26, %s28
      %p35 = scmp.eq.s32.totalorder %s23, 1
      %p36 = por %p34, %p35
      %p37 = scmp.ne.s32.totalorder %s28, %s29
      %p38 = scmp.eq.s32.totalorder %s23, 0
      %p39 = por %p37, %p38
      %p40 = scmp.ne.s32.totalorder %s28, %s29
      %p41 = scmp.eq.s32.totalorder %s24, 1
      %p42 = por %p40, %p41
      %p44 = scmp.ne.s32.totalorder %s29, %s43
      %p45 = scmp.eq.s32.totalorder %s24, 0
      %p46 = por %p44, %p45
      %s47 = ssub.s32 %s18, %s25
      %p48 = scmp.eq.s32.totalorder %s47, 0
      %s50 = sadd.s32 %s49, 1
      %s51 = scalar_select %p48, %s49, %s50
      %p54 = pneg %p48
      %p55 = scmp.eq.s32.totalorder %s18, 1
      %p56 = por %p54, %p55
      %p57 = scmp.ne.s32.totalorder %s49, %s52
      %p58 = scmp.eq.s32.totalorder %s18, 0
      %p59 = por %p57, %p58
      %p60 = scmp.ne.s32.totalorder %s49, %s52
      %p61 = scmp.eq.s32.totalorder %s23, 1
      %p62 = por %p60, %p61
      %p63 = scmp.ne.s32.totalorder %s52, %s53
      %p64 = scmp.eq.s32.totalorder %s23, 0
      %p65 = por %p63, %p64
      %p66 = scmp.ne.s32.totalorder %s52, %s53
      %p67 = scmp.eq.s32.totalorder %s24, 1
      %p68 = por %p66, %p67
      %p70 = scmp.ne.s32.totalorder %s53, %s69
      %p71 = scmp.eq.s32.totalorder %s24, 0
      %p72 = por %p70, %p71
      %s73 = ssub.s32 %s18, %s25
      %p74 = scmp.eq.s32.totalorder %s73, 0
      %s76 = sadd.s32 %s75, 1
      %s77 = scalar_select %p74, %s75, %s76
      %p80 = pneg %p74
      %p81 = scmp.eq.s32.totalorder %s18, 1
      %p82 = por %p80, %p81
      %p83 = scmp.ne.s32.totalorder %s75, %s78
      %p84 = scmp.eq.s32.totalorder %s18, 0
      %p85 = por %p83, %p84
      %p86 = scmp.ne.s32.totalorder %s75, %s78
      %p87 = scmp.eq.s32.totalorder %s23, 1
      %p88 = por %p86, %p87
      %p89 = scmp.ne.s32.totalorder %s78, %s79
      %p90 = scmp.eq.s32.totalorder %s23, 0
      %p91 = por %p89, %p90
      %p92 = scmp.ne.s32.totalorder %s78, %s79
      %p93 = scmp.eq.s32.totalorder %s24, 1
      %p94 = por %p92, %p93
      %p96 = scmp.ne.s32.totalorder %s79, %s95
      %p97 = scmp.eq.s32.totalorder %s24, 0
      %p98 = por %p96, %p97
      %s99 = ssub.s32 %s18, %s25
      %p100 = scmp.eq.s32.totalorder %s99, 0
      %s102 = sadd.s32 %s101, 1
      %s103 = scalar_select %p100, %s101, %s102
      %p106 = pneg %p100
      %p107 = scmp.eq.s32.totalorder %s18, 1
      %p108 = por %p106, %p107
      %p109 = scmp.ne.s32.totalorder %s101, %s104
      %p110 = scmp.eq.s32.totalorder %s18, 0
      %p111 = por %p109, %p110
      %p112 = scmp.ne.s32.totalorder %s101, %s104
      %p113 = scmp.eq.s32.totalorder %s23, 1
      %p114 = por %p112, %p113
      %p115 = scmp.ne.s32.totalorder %s104, %s105
      %p116 = scmp.eq.s32.totalorder %s23, 0
      %p117 = por %p115, %p116
      %p118 = scmp.ne.s32.totalorder %s104, %s105
      %p119 = scmp.eq.s32.totalorder %s24, 1
      %p120 = por %p118, %p119
      %p122 = scmp.ne.s32.totalorder %s105, %s121
      %p123 = scmp.eq.s32.totalorder %s24, 0
      %p124 = por %p122, %p123
      %s126 = sadd.s32 %s125, 1
      %p129 = scmp.eq.s32.totalorder %s18, 1
      %p130 = scmp.ne.s32.totalorder %s125, %s127
      %p131 = scmp.eq.s32.totalorder %s18, 0
      %p132 = por %p130, %p131
      %p133 = scmp.ne.s32.totalorder %s125, %s127
      %p134 = scmp.eq.s32.totalorder %s23, 1
      %p135 = por %p133, %p134
      %p136 = scmp.ne.s32.totalorder %s127, %s128
      %p137 = scmp.eq.s32.totalorder %s23, 0
      %p138 = por %p136, %p137
      %p139 = scmp.ne.s32.totalorder %s127, %s128
      %p140 = scmp.eq.s32.totalorder %s24, 1
      %p141 = por %p139, %p140
      %p143 = scmp.ne.s32.totalorder %s128, %s142
      %p144 = scmp.eq.s32.totalorder %s24, 0
      %p145 = por %p143, %p144
      %s147 = sadd.s32 %s146, 1
      %p150 = scmp.eq.s32.totalorder %s18, 1
      %p151 = scmp.ne.s32.totalorder %s146, %s148
      %p152 = scmp.eq.s32.totalorder %s18, 0
      %p153 = por %p151, %p152
      %p154 = scmp.ne.s32.totalorder %s146, %s148
      %p155 = scmp.eq.s32.totalorder %s23, 1
      %p156 = por %p154, %p155
      %p157 = scmp.ne.s32.totalorder %s148, %s149
      %p158 = scmp.eq.s32.totalorder %s23, 0
      %p159 = por %p157, %p158
      %p160 = scmp.ne.s32.totalorder %s148, %s149
      %p161 = scmp.eq.s32.totalorder %s24, 1
      %p162 = por %p160, %p161
      %p164 = scmp.ne.s32.totalorder %s149, %s163
      %p165 = scmp.eq.s32.totalorder %s24, 0
      %p166 = por %p164, %p165
      %s168 = sadd.s32 %s167, 1
      %p171 = scmp.eq.s32.totalorder %s18, 1
      %p172 = scmp.ne.s32.totalorder %s167, %s169
      %p173 = scmp.eq.s32.totalorder %s18, 0
      %p174 = por %p172, %p173
      %p175 = scmp.ne.s32.totalorder %s167, %s169
      %p176 = scmp.eq.s32.totalorder %s23, 1
      %p177 = por %p175, %p176
      %p178 = scmp.ne.s32.totalorder %s169, %s170
      %p179 = scmp.eq.s32.totalorder %s23, 0
      %p180 = por %p178, %p179
      %p181 = scmp.ne.s32.totalorder %s169, %s170
      %p182 = scmp.eq.s32.totalorder %s24, 1
      %p183 = por %p181, %p182
      %p185 = scmp.ne.s32.totalorder %s170, %s184
      %p186 = scmp.eq.s32.totalorder %s24, 0
      %p187 = por %p185, %p186
      %s189 = sadd.s32 %s188, 1
      %p192 = scmp.eq.s32.totalorder %s18, 1
      %p193 = scmp.ne.s32.totalorder %s188, %s190
      %p194 = scmp.eq.s32.totalorder %s18, 0
      %p195 = por %p193, %p194
      %p196 = scmp.ne.s32.totalorder %s188, %s190
      %p197 = scmp.eq.s32.totalorder %s23, 1
      %p198 = por %p196, %p197
      %p199 = scmp.ne.s32.totalorder %s190, %s191
      %p200 = scmp.eq.s32.totalorder %s23, 0
      %p201 = por %p199, %p200
      %p202 = scmp.ne.s32.totalorder %s190, %s191
      %p203 = scmp.eq.s32.totalorder %s24, 1
      %p204 = por %p202, %p203
      %p206 = scmp.ne.s32.totalorder %s191, %s205
      %p207 = scmp.eq.s32.totalorder %s24, 0
      %p208 = por %p206, %p207
      %p209 = scmp.le.s32.totalorder 1, %s18
      %p210 = scmp.lt.s32.totalorder %s18, 3
      %p211 = pnand %p209, %p210
      %p212 = pneg %p211
      // Predicated region
      $region9: #{net_forward.1} parent=5 // pred_check
        _
      $region10: #{net_forward.1} parent=5 // pred_check_branch
        %214 = sbr.rel (%p211) target = $region12
      $region11: #{net_forward.1} parent=5 // pred_region
        %s215 = ssub.s32 %s18, 1
        // Predicated region
        $region13: #{net_forward.1} parent=11 // pred_check
          %p216 = pneg %p39
        $region14: #{net_forward.1} parent=11 // pred_check_branch
          %218 = sbr.rel (%p216) target = $region16
        $region15: #{net_forward.1} parent=11 // pred_region
          _
        $region16: #{net_forward.1} parent=11 // pred_fallthru
          _
        // Predicated region
        $region17: #{net_forward.1} parent=11 // pred_check
          %p219 = pneg %p138
        $region18: #{net_forward.1} parent=11 // pred_check_branch
          %221 = sbr.rel (%p219) target = $region20
        $region19: #{net_forward.1} parent=11 // pred_region
          %s223 = ssub.s32 16, 16
          %224 = vsyncadd [#allocation6], %s223
          %s226 = sshll.u32 [#allocation5], 4
          %s227 = int_to_ptr.vmem [resolvable:$true] %s226
          %229 = dma.hbm_to_vmem [thread:$0]  %s4, 16, %s227, [#allocation6]
        $region20: #{net_forward.1} parent=11 // pred_fallthru
          _
        // Predicated region
        $region21: #{net_forward.1} parent=11 // pred_check
          %p230 = pneg %p159
        $region22: #{net_forward.1} parent=11 // pred_check_branch
          %232 = sbr.rel (%p230) target = $region24
        $region23: #{net_forward.1} parent=11 // pred_region
          %s234 = ssub.s32 8192, 8192
          %235 = vsyncadd [#allocation6], %s234
          %s236 = sshll.u32 [#allocation7], 4
          %s237 = int_to_ptr.vmem [resolvable:$true] %s236
          %242 = dma.hbm_to_vmem [thread:$0]  %s5, 8192, %s237, [#allocation6], 512, 512, 32
        $region24: #{net_forward.1} parent=11 // pred_fallthru
          _
        // Predicated region
        $region25: #{net_forward.1} parent=11 // pred_check
          %p243 = pneg %p180
        $region26: #{net_forward.1} parent=11 // pred_check_branch
          %245 = sbr.rel (%p243) target = $region28
        $region27: #{net_forward.1} parent=11 // pred_region
          %s247 = ssub.s32 128, 128
          %248 = vsyncadd [#allocation9], %s247
          %s250 = sshll.u32 [#allocation8], 4
          %s251 = int_to_ptr.vmem [resolvable:$true] %s250
          %253 = dma.hbm_to_vmem [thread:$0]  %s6, 128, %s251, [#allocation9]
        $region28: #{net_forward.1} parent=11 // pred_fallthru
          _
      $region12: #{net_forward.1} parent=5 // pred_fallthru
        _
      %p254 = scmp.lt.s32.totalorder %s18, 2
      // Predicated region
      $region29: #{net_forward.1} parent=5 // pred_check
        %p255 = pneg %p254
      $region30: #{net_forward.1} parent=5 // pred_check_branch
        %257 = sbr.rel (%p255) target = $region32
      $region31: #{net_forward.1} parent=5 // pred_region
        // Predicated region
        $region33: #{net_forward.1} parent=31 // pred_check
          %p258 = pneg %p59
        $region34: #{net_forward.1} parent=31 // pred_check_branch
          %260 = sbr.rel (%p258) target = $region36
        $region35: #{net_forward.1} parent=31 // pred_region
          %s261 = smul.u32 8, %s18
          %p262 = scmp.lt.s32.totalorder %s261, 15
          %s263 = scalar_select %p262, %s261, 15
          %s264 = scalar_lea.vmem %s1, %s263
          %s265 = smul.u32 8, %s18
        $region36: #{net_forward.1} parent=31 // pred_fallthru
          _
        // Predicated region
        $region37: #{net_forward.1} parent=31 // pred_check
          %p266 = pneg %p85
        $region38: #{net_forward.1} parent=31 // pred_check_branch
          %268 = sbr.rel (%p266) target = $region40
        $region39: #{net_forward.1} parent=31 // pred_region
          %s269 = smul.u32 8, %s18
          %p270 = scmp.lt.s32.totalorder %s269, 15
          %s271 = scalar_select %p270, %s269, 15
          %s272 = scalar_lea.vmem %s2, %s271
          %s273 = smul.u32 8, %s18
        $region40: #{net_forward.1} parent=31 // pred_fallthru
          _
        // Predicated region
        $region41: #{net_forward.1} parent=31 // pred_check
          %p274 = pneg %p111
        $region42: #{net_forward.1} parent=31 // pred_check_branch
          %276 = sbr.rel (%p274) target = $region44
        $region43: #{net_forward.1} parent=31 // pred_region
          %s277 = sand.u32 %s101, 1
          %s278 = scalar_lea.sflag [#allocation4], %s277
          %s279 = sand.u32 %s101, 1
          %s280 = smul.addr %s279, 4096
          %s281 = scalar_lea.vmem [#allocation3], %s280
          %s282 = smul.u32 8, %s18
          %s284 = ssub.s32 65536, 65536
          %285 = vsyncadd %s278, %s284
          %s286 = smul.addr %s282, 128
          %s287 = smul.addr %s286, 64
          %s288 = scalar_lea.hbm %s3, %s287
          %s289 = sshll.u32 %s281, 4
          %s290 = int_to_ptr.vmem [resolvable:$true] %s289
          %295 = dma.hbm_to_vmem [thread:$0]  %s288, 65536, %s290, %s278, 64, 64, 4
        $region44: #{net_forward.1} parent=31 // pred_fallthru
          _
      $region32: #{net_forward.1} parent=5 // pred_fallthru
        _
      %p296 = scmp.le.s32.totalorder 1, %s18
      %p297 = scmp.lt.s32.totalorder %s18, 3
      %p298 = pnand %p296, %p297
      %p299 = pneg %p298
      // Predicated region
      $region45: #{net_forward.1} parent=5 // pred_check
        _
      $region46: #{net_forward.1} parent=5 // pred_check_branch
        %301 = sbr.rel (%p298) target = $region48
      $region47: #{net_forward.1} parent=5 // pred_region
        %s302 = ssub.s32 %s18, 1
        %s303 = sand.u32 %s104, 1
        %s304 = scalar_lea.sflag [#allocation4], %s303
        %s305 = sand.u32 %s104, 1
        %s306 = smul.addr %s305, 4096
        %s307 = scalar_lea.vmem [#allocation3], %s306
        // Predicated region
        $region49: #{net_forward.1} parent=47 // pred_check
          %p308 = pneg %p117
        $region50: #{net_forward.1} parent=47 // pred_check_branch
          %310 = sbr.rel (%p308) target = $region52
        $region51: #{net_forward.1} parent=47 // pred_region
          %311 = dma.done %s304, 65536
        $region52: #{net_forward.1} parent=47 // pred_fallthru
          _
        // Predicated region
        $region53: #{net_forward.1} parent=47 // pred_check
          %p312 = pneg %p138
        $region54: #{net_forward.1} parent=47 // pred_check_branch
          %314 = sbr.rel (%p312) target = $region56
        $region55: #{net_forward.1} parent=47 // pred_region
          %315 = dma.done [#allocation6], 16
        $region56: #{net_forward.1} parent=47 // pred_fallthru
          _
        // Predicated region
        $region57: #{net_forward.1} parent=47 // pred_check
          %p316 = pneg %p159
        $region58: #{net_forward.1} parent=47 // pred_check_branch
          %318 = sbr.rel (%p316) target = $region60
        $region59: #{net_forward.1} parent=47 // pred_region
          %319 = dma.done [#allocation6], 8192
        $region60: #{net_forward.1} parent=47 // pred_fallthru
          _
        // Predicated region
        $region61: #{net_forward.1} parent=47 // pred_check
          %p320 = pneg %p180
        $region62: #{net_forward.1} parent=47 // pred_check_branch
          %322 = sbr.rel (%p320) target = $region64
        $region63: #{net_forward.1} parent=47 // pred_region
          %323 = dma.done [#allocation9], 128
        $region64: #{net_forward.1} parent=47 // pred_fallthru
          _
        %p324 = pneg %p39
        %p325 = pneg %p36
        %s326 = smul.u32 8, %s23
        %p327 = scmp.lt.s32.totalorder %s326, 15
        %s328 = scalar_select %p327, %s326, 15
        %s329 = scalar_lea.vmem %s1, %s328
        %p330 = pneg %p65
        %p331 = pneg %p62
        %s332 = smul.u32 8, %s23
        %p333 = scmp.lt.s32.totalorder %s332, 15
        %s334 = scalar_select %p333, %s332, 15
        %s335 = scalar_lea.vmem %s2, %s334
        %p336 = pneg %p91
        %p337 = pneg %p88
        %s338 = sand.u32 %s104, 1
        %s339 = scalar_lea.sflag [#allocation4], %s338
        %s340 = sand.u32 %s104, 1
        %s341 = smul.addr %s340, 4096
        %s342 = scalar_lea.vmem [#allocation3], %s341
        %p343 = pneg %p117
        %p344 = pneg %p114
        %p345 = pneg %p138
        %p346 = pneg %p135
        %p347 = pneg %p159
        %p348 = pneg %p156
        %p349 = pneg %p180
        %p350 = pneg %p177
        %p351 = pneg %p201
        %p352 = pneg %p198
        %s353 = smul.u32 8, %s23
        %p354 = scmp.lt.s32.totalorder %s353, 15
        %s355 = scalar_select %p354, %s353, 15
        %s356 = scalar_lea.vmem %s1, %s355
        %s357 = smul.u32 8, %s23
        %s358 = smul.u32 8, %s23
        %p359 = scmp.lt.s32.totalorder %s358, 15
        %s360 = scalar_select %p359, %s358, 15
        %s361 = scalar_lea.vmem %s2, %s360
        %s362 = smul.u32 8, %s23
        %s363 = smul.u32 8, %s23
        %p365 = scmp.eq.s32.totalorder %s23, 0
        // Predicated region
        $region65: #{net_forward.1} parent=47 // pred_check
          %p366 = pneg %p365
        $region66: #{net_forward.1} parent=47 // pred_check_branch
          %368 = sbr.rel (%p366) target = $region68
        $region67: #{net_forward.1} parent=47 // pred_region
          %369 = vst [vmem:[#allocation2] sm:$0x3] 0.0
        $region68: #{net_forward.1} parent=47 // pred_fallthru
          _
        %v370 = vld [vmem:[%s356] sm:$0x1]
        %v371 = vld [vmem:[%s356 + $0x1] sm:$0x1]
        %v372 = vld [vmem:[%s356 + $0x2] sm:$0x1]
        %v373 = vld [vmem:[%s356 + $0x3] sm:$0x1]
        %v374 = vld [vmem:[%s356 + $0x4] sm:$0x1]
        %v375 = vld [vmem:[%s356 + $0x5] sm:$0x1]
        %v376 = vld [vmem:[%s356 + $0x6] sm:$0x1]
        %v377 = vld [vmem:[%s356 + $0x7] sm:$0x1]
        %v378 = vld [vmem:[%s361] sm:$0x1]
        %v379 = vld [vmem:[%s361 + $0x1] sm:$0x1]
        %v380 = vld [vmem:[%s361 + $0x2] sm:$0x1]
        %v381 = vld [vmem:[%s361 + $0x3] sm:$0x1]
        %v382 = vld [vmem:[%s361 + $0x4] sm:$0x1]
        %v383 = vld [vmem:[%s361 + $0x5] sm:$0x1]
        %v384 = vld [vmem:[%s361 + $0x6] sm:$0x1]
        %v385 = vld [vmem:[%s361 + $0x7] sm:$0x1]
        %v386 = vld [vmem:[%s0] sm:$0xff]
        %v387 = vld [vmem:[%s0 + $0x8] sm:$0xff]
        %v388 = vld [vmem:[%s0 + $0x10] sm:$0xff]
        %v389 = vld [vmem:[%s0 + $0x18] sm:$0xff]
        %v390 = vld [vmem:[%s0 + $0x20] sm:$0xff]
        %v391 = vld [vmem:[%s0 + $0x28] sm:$0xff]
        %v392 = vld [vmem:[%s0 + $0x30] sm:$0xff]
        %v393 = vld [vmem:[%s0 + $0x38] sm:$0xff]
        %v394 = vld [vmem:[%s0 + $0x40] sm:$0xff]
        %v395 = vld [vmem:[%s0 + $0x48] sm:$0xff]
        %v396 = vld [vmem:[%s0 + $0x50] sm:$0xff]
        %v397 = vld [vmem:[%s0 + $0x58] sm:$0xff]
        %v398 = vld [vmem:[%s0 + $0x60] sm:$0xff]
        %v399 = vld [vmem:[%s0 + $0x68] sm:$0xff]
        %v400 = vld [vmem:[%s0 + $0x70] sm:$0xff]
        %v401 = vld [vmem:[%s0 + $0x78] sm:$0xff]
        %v402 = vld [vmem:[%s0 + $0x80] sm:$0xff]
        %v403 = vld [vmem:[%s0 + $0x88] sm:$0xff]
        %v404 = vld [vmem:[%s0 + $0x90] sm:$0xff]
        %v405 = vld [vmem:[%s0 + $0x98] sm:$0xff]
        %v406 = vld [vmem:[%s0 + $0xa0] sm:$0xff]
        %v407 = vld [vmem:[%s0 + $0xa8] sm:$0xff]
        %v408 = vld [vmem:[%s0 + $0xb0] sm:$0xff]
        %v409 = vld [vmem:[%s0 + $0xb8] sm:$0xff]
        %v410 = vld [vmem:[%s0 + $0xc0] sm:$0xff]
        %v411 = vld [vmem:[%s0 + $0xc8] sm:$0xff]
        %v412 = vld [vmem:[%s0 + $0xd0] sm:$0xff]
        %v413 = vld [vmem:[%s0 + $0xd8] sm:$0xff]
        %v414 = vld [vmem:[%s0 + $0xe0] sm:$0xff]
        %v415 = vld [vmem:[%s0 + $0xe8] sm:$0xff]
        %v416 = vld [vmem:[%s0 + $0xf0] sm:$0xff]
        %v417 = vld [vmem:[%s0 + $0xf8] sm:$0xff]
        %v418 = vld [vmem:[%s0 + $0x100] sm:$0x1]
        %v419 = vld [vmem:[%s0 + $0x108] sm:$0x1]
        %v420 = vld [vmem:[%s0 + $0x110] sm:$0x1]
        %v421 = vld [vmem:[%s0 + $0x118] sm:$0x1]
        %v422 = vld [vmem:[%s0 + $0x120] sm:$0x1]
        %v423 = vld [vmem:[%s0 + $0x128] sm:$0x1]
        %v424 = vld [vmem:[%s0 + $0x130] sm:$0x1]
        %v425 = vld [vmem:[%s0 + $0x138] sm:$0x1]
        %v426 = vld [vmem:[%s0 + $0x140] sm:$0x1]
        %v427 = vld [vmem:[%s0 + $0x148] sm:$0x1]
        %v428 = vld [vmem:[%s0 + $0x150] sm:$0x1]
        %v429 = vld [vmem:[%s0 + $0x158] sm:$0x1]
        %v430 = vld [vmem:[%s0 + $0x160] sm:$0x1]
        %v431 = vld [vmem:[%s0 + $0x168] sm:$0x1]
        %v432 = vld [vmem:[%s0 + $0x170] sm:$0x1]
        %v433 = vld [vmem:[%s0 + $0x178] sm:$0x1]
        %v434 = vld [vmem:[%s0 + $0x180] sm:$0x1]
        %v435 = vld [vmem:[%s0 + $0x188] sm:$0x1]
        %v436 = vld [vmem:[%s0 + $0x190] sm:$0x1]
        %v437 = vld [vmem:[%s0 + $0x198] sm:$0x1]
        %v438 = vld [vmem:[%s0 + $0x1a0] sm:$0x1]
        %v439 = vld [vmem:[%s0 + $0x1a8] sm:$0x1]
        %v440 = vld [vmem:[%s0 + $0x1b0] sm:$0x1]
        %v441 = vld [vmem:[%s0 + $0x1b8] sm:$0x1]
        %v442 = vld [vmem:[%s0 + $0x1c0] sm:$0x1]
        %v443 = vld [vmem:[%s0 + $0x1c8] sm:$0x1]
        %v444 = vld [vmem:[%s0 + $0x1d0] sm:$0x1]
        %v445 = vld [vmem:[%s0 + $0x1d8] sm:$0x1]
        %v446 = vld [vmem:[%s0 + $0x1e0] sm:$0x1]
        %v447 = vld [vmem:[%s0 + $0x1e8] sm:$0x1]
        %v448 = vld [vmem:[%s0 + $0x1f0] sm:$0x1]
        %v449 = vld [vmem:[%s0 + $0x1f8] sm:$0x1]
        %v458 = vcombine.low %v370, %v371
        %v459 = vcombine.low %v372, %v373
        %v460 = vcombine.low %v374, %v375
        %v461 = vcombine.low %v376, %v377
        %v463 = vunpack.c.l.s4 1966171168
        %v464 = vunpack.c.0.s8 %v463
        %v465 = vlaneseq
        %v466 = vshrl.u32 %v465, 7
        %v467 = vsub.s32 %v464, %v466
        %v468 = vrot.slane %v458, %v467
        %v470 = vunpack.c.l.s4 1966171168
        %v471 = vunpack.c.0.s8 %v470
        %v472 = vlaneseq
        %v473 = vshrl.u32 %v472, 7
        %v474 = vsub.s32 %v471, %v473
        %v475 = vrot.slane %v459, %v474
        %v477 = vunpack.c.l.s4 1966171168
        %v478 = vunpack.c.0.s8 %v477
        %v479 = vlaneseq
        %v480 = vshrl.u32 %v479, 7
        %v481 = vsub.s32 %v478, %v480
        %v482 = vrot.slane %v460, %v481
        %v484 = vunpack.c.l.s4 1966171168
        %v485 = vunpack.c.0.s8 %v484
        %v486 = vlaneseq
        %v487 = vshrl.u32 %v486, 7
        %v488 = vsub.s32 %v485, %v487
        %v489 = vrot.slane %v461, %v488
        %v490 = vcombine.low %v468, %v475
        %v491 = vcombine.low %v482, %v489
        %v493 = vunpack.c.l.s4 1966171168
        %v494 = vunpack.c.0.s8 %v493
        %v495 = vlaneseq
        %v496 = vshrl.u32 %v495, 7
        %v497 = vsub.s32 %v494, %v496
        %v498 = vrot.slane %v490, %v497
        %v500 = vunpack.c.l.s4 1966171168
        %v501 = vunpack.c.0.s8 %v500
        %v502 = vlaneseq
        %v503 = vshrl.u32 %v502, 7
        %v504 = vsub.s32 %v501, %v503
        %v505 = vrot.slane %v491, %v504
        %v506 = vcombine.low %v498, %v505
        %vm507 = vcmask 72704
        %v508 = vsel %vm507, %v506, 0
        %vm510 = vcmask 1040384
        %v512 = vsel %vm510, %v418, 0
        %v515 = vsel %vm510, %v419, 0
        %v518 = vsel %vm510, %v420, 0
        %v521 = vsel %vm510, %v421, 0
        %v524 = vsel %vm510, %v422, 0
        %v527 = vsel %vm510, %v423, 0
        %v530 = vsel %vm510, %v424, 0
        %v533 = vsel %vm510, %v425, 0
        %v536 = vsel %vm510, %v426, 0
        %v539 = vsel %vm510, %v427, 0
        %v542 = vsel %vm510, %v428, 0
        %v545 = vsel %vm510, %v429, 0
        %v548 = vsel %vm510, %v430, 0
        %v551 = vsel %vm510, %v431, 0
        %v554 = vsel %vm510, %v432, 0
        %v557 = vsel %vm510, %v433, 0
        %v560 = vsel %vm510, %v434, 0
        %v563 = vsel %vm510, %v435, 0
        %v566 = vsel %vm510, %v436, 0
        %v569 = vsel %vm510, %v437, 0
        %v572 = vsel %vm510, %v438, 0
        %v575 = vsel %vm510, %v439, 0
        %v578 = vsel %vm510, %v440, 0
        %v581 = vsel %vm510, %v441, 0
        %v584 = vsel %vm510, %v442, 0
        %v587 = vsel %vm510, %v443, 0
        %v590 = vsel %vm510, %v444, 0
        %v593 = vsel %vm510, %v445, 0
        %v596 = vsel %vm510, %v446, 0
        %v599 = vsel %vm510, %v447, 0
        %v602 = vsel %vm510, %v448, 0
        %v605 = vsel %vm510, %v449, 0
        %607 = vmatprep.subr.mxu0 %v387
        %608 = vmatpush1.msra.mxu0 %v386
        %609 = vmatprep.subr.mxu0 %v515
        %610 = vmatpush1.msra.mxu0 %v512
        %611 = vmatprep.subr.mxu0 0.0
        %612 = vmatpush1.msra.mxu0 0.0
        %613 = vmatprep.subr.mxu0 0.0
        %614 = vmatpush1.msra.mxu0 0.0
        %615 = vmatprep.subr.mxu0 0.0
        %616 = vmatpush1.msra.mxu0 0.0
        %617 = vmatprep.subr.mxu0 0.0
        %618 = vmatpush1.msra.mxu0 0.0
        %619 = vmatprep.subr.mxu0 0.0
        %620 = vmatpush1.msra.mxu0 0.0
        %621 = vmatprep.subr.mxu0 0.0
        %622 = vmatpush1.msra.mxu0 0.0
        %623 = vmatprep.subr.mxu0 0.0
        %624 = vmatpush1.msra.mxu0 0.0
        %625 = vmatprep.subr.mxu0 0.0
        %626 = vmatpush1.msra.mxu0 0.0
        %627 = vmatprep.subr.mxu0 0.0
        %628 = vmatpush1.msra.mxu0 0.0
        %629 = vmatprep.subr.mxu0 0.0
        %630 = vmatpush1.msra.mxu0 0.0
        %631 = vmatprep.subr.mxu0 0.0
        %632 = vmatpush1.msra.mxu0 0.0
        %633 = vmatprep.subr.mxu0 0.0
        %634 = vmatpush1.msra.mxu0 0.0
        %635 = vmatprep.subr.mxu0 0.0
        %636 = vmatpush1.msra.mxu0 0.0
        %637 = vmatprep.subr.mxu0 0.0
        %638 = vmatpush1.msra.mxu0 0.0
        %639 = vmatprep.subr.mxu0 0.0
        %640 = vmatpush1.msra.mxu0 0.0
        %641 = vmatprep.subr.mxu0 0.0
        %642 = vmatpush1.msra.mxu0 0.0
        %643 = vmatprep.subr.mxu0 0.0
        %644 = vmatpush1.msra.mxu0 0.0
        %645 = vmatprep.subr.mxu0 0.0
        %646 = vmatpush1.msra.mxu0 0.0
        %647 = vmatprep.subr.mxu0 0.0
        %648 = vmatpush1.msra.mxu0 0.0
        %649 = vmatprep.subr.mxu0 0.0
        %650 = vmatpush1.msra.mxu0 0.0
        %651 = vmatprep.subr.mxu0 0.0
        %652 = vmatpush1.msra.mxu0 0.0
        %653 = vmatprep.subr.mxu0 0.0
        %654 = vmatpush1.msra.mxu0 0.0
        %655 = vmatprep.subr.mxu0 0.0
        %656 = vmatpush1.msra.mxu0 0.0
        %657 = vmatprep.subr.mxu0 0.0
        %658 = vmatpush1.msra.mxu0 0.0
        %659 = vmatprep.subr.mxu0 0.0
        %660 = vmatpush1.msra.mxu0 0.0
        %661 = vmatprep.subr.mxu0 0.0
        %662 = vmatpush1.msra.mxu0 0.0
        %663 = vmatprep.subr.mxu0 0.0
        %664 = vmatpush1.msra.mxu0 0.0
        %665 = vmatprep.subr.mxu0 0.0
        %666 = vmatpush1.msra.mxu0 0.0
        %667 = vmatprep.subr.mxu0 0.0
        %668 = vmatpush1.msra.mxu0 0.0
        %669 = vmatprep.subr.mxu0 0.0
        %670 = vmatpush1.msra.mxu0 0.0
        %671 = vmatprep.mubr.f32.mxu0 0.0
        %672 = vmatmul.mubr.f32.gmra.mrb[0].mxu0 %v508
        %v673 = vpop.f32.mrb[0].mxu0
        %v674 = vadd.f32 0.0, %v673
        %v675 = vpop.f32.mrb[0].mxu0
        %v676 = vadd.f32 0.0, %v675
        %677 = vdwg.mxu0
        %678 = vmatprep.subr.mxu0 %v389
        %679 = vmatpush1.msra.mxu0 %v388
        %680 = vmatprep.subr.mxu0 %v521
        %681 = vmatpush1.msra.mxu0 %v518
        %682 = vmatprep.subr.mxu0 0.0
        %683 = vmatpush1.msra.mxu0 0.0
        %684 = vmatprep.subr.mxu0 0.0
        %685 = vmatpush1.msra.mxu0 0.0
        %686 = vmatprep.subr.mxu0 0.0
        %687 = vmatpush1.msra.mxu0 0.0
        %688 = vmatprep.subr.mxu0 0.0
        %689 = vmatpush1.msra.mxu0 0.0
        %690 = vmatprep.subr.mxu0 0.0
        %691 = vmatpush1.msra.mxu0 0.0
        %692 = vmatprep.subr.mxu0 0.0
        %693 = vmatpush1.msra.mxu0 0.0
        %694 = vmatprep.subr.mxu0 0.0
        %695 = vmatpush1.msra.mxu0 0.0
        %696 = vmatprep.subr.mxu0 0.0
        %697 = vmatpush1.msra.mxu0 0.0
        %698 = vmatprep.subr.mxu0 0.0
        %699 = vmatpush1.msra.mxu0 0.0
        %700 = vmatprep.subr.mxu0 0.0
        %701 = vmatpush1.msra.mxu0 0.0
        %702 = vmatprep.subr.mxu0 0.0
        %703 = vmatpush1.msra.mxu0 0.0
        %704 = vmatprep.subr.mxu0 0.0
        %705 = vmatpush1.msra.mxu0 0.0
        %706 = vmatprep.subr.mxu0 0.0
        %707 = vmatpush1.msra.mxu0 0.0
        %708 = vmatprep.subr.mxu0 0.0
        %709 = vmatpush1.msra.mxu0 0.0
        %710 = vmatprep.subr.mxu0 0.0
        %711 = vmatpush1.msra.mxu0 0.0
        %712 = vmatprep.subr.mxu0 0.0
        %713 = vmatpush1.msra.mxu0 0.0
        %714 = vmatprep.subr.mxu0 0.0
        %715 = vmatpush1.msra.mxu0 0.0
        %716 = vmatprep.subr.mxu0 0.0
        %717 = vmatpush1.msra.mxu0 0.0
        %718 = vmatprep.subr.mxu0 0.0
        %719 = vmatpush1.msra.mxu0 0.0
        %720 = vmatprep.subr.mxu0 0.0
        %721 = vmatpush1.msra.mxu0 0.0
        %722 = vmatprep.subr.mxu0 0.0
        %723 = vmatpush1.msra.mxu0 0.0
        %724 = vmatprep.subr.mxu0 0.0
        %725 = vmatpush1.msra.mxu0 0.0
        %726 = vmatprep.subr.mxu0 0.0
        %727 = vmatpush1.msra.mxu0 0.0
        %728 = vmatprep.subr.mxu0 0.0
        %729 = vmatpush1.msra.mxu0 0.0
        %730 = vmatprep.subr.mxu0 0.0
        %731 = vmatpush1.msra.mxu0 0.0
        %732 = vmatprep.subr.mxu0 0.0
        %733 = vmatpush1.msra.mxu0 0.0
        %734 = vmatprep.subr.mxu0 0.0
        %735 = vmatpush1.msra.mxu0 0.0
        %736 = vmatprep.subr.mxu0 0.0
        %737 = vmatpush1.msra.mxu0 0.0
        %738 = vmatprep.subr.mxu0 0.0
        %739 = vmatpush1.msra.mxu0 0.0
        %740 = vmatprep.subr.mxu0 0.0
        %741 = vmatpush1.msra.mxu0 0.0
        %742 = vmatprep.mubr.f32.mxu0 0.0
        %743 = vmatmul.mubr.f32.gmra.mrb[0].mxu0 %v508
        %v744 = vpop.f32.mrb[0].mxu0
        %v745 = vadd.f32 0.0, %v744
        %v746 = vpop.f32.mrb[0].mxu0
        %v747 = vadd.f32 0.0, %v746
        %748 = vdwg.mxu0
        %749 = vmatprep.subr.mxu0 %v391
        %750 = vmatpush1.msra.mxu0 %v390
        %751 = vmatprep.subr.mxu0 %v527
        %752 = vmatpush1.msra.mxu0 %v524
        %753 = vmatprep.subr.mxu0 0.0
        %754 = vmatpush1.msra.mxu0 0.0
        %755 = vmatprep.subr.mxu0 0.0
        %756 = vmatpush1.msra.mxu0 0.0
        %757 = vmatprep.subr.mxu0 0.0
        %758 = vmatpush1.msra.mxu0 0.0
        %759 = vmatprep.subr.mxu0 0.0
        %760 = vmatpush1.msra.mxu0 0.0
        %761 = vmatprep.subr.mxu0 0.0
        %762 = vmatpush1.msra.mxu0 0.0
        %763 = vmatprep.subr.mxu0 0.0
        %764 = vmatpush1.msra.mxu0 0.0
        %765 = vmatprep.subr.mxu0 0.0
        %766 = vmatpush1.msra.mxu0 0.0
        %767 = vmatprep.subr.mxu0 0.0
        %768 = vmatpush1.msra.mxu0 0.0
        %769 = vmatprep.subr.mxu0 0.0
        %770 = vmatpush1.msra.mxu0 0.0
        %771 = vmatprep.subr.mxu0 0.0
        %772 = vmatpush1.msra.mxu0 0.0
        %773 = vmatprep.subr.mxu0 0.0
        %774 = vmatpush1.msra.mxu0 0.0
        %775 = vmatprep.subr.mxu0 0.0
        %776 = vmatpush1.msra.mxu0 0.0
        %777 = vmatprep.subr.mxu0 0.0
        %778 = vmatpush1.msra.mxu0 0.0
        %779 = vmatprep.subr.mxu0 0.0
        %780 = vmatpush1.msra.mxu0 0.0
        %781 = vmatprep.subr.mxu0 0.0
        %782 = vmatpush1.msra.mxu0 0.0
        %783 = vmatprep.subr.mxu0 0.0
        %784 = vmatpush1.msra.mxu0 0.0
        %785 = vmatprep.subr.mxu0 0.0
        %786 = vmatpush1.msra.mxu0 0.0
        %787 = vmatprep.subr.mxu0 0.0
        %788 = vmatpush1.msra.mxu0 0.0
        %789 = vmatprep.subr.mxu0 0.0
        %790 = vmatpush1.msra.mxu0 0.0
        %791 = vmatprep.subr.mxu0 0.0
        %792 = vmatpush1.msra.mxu0 0.0
        %793 = vmatprep.subr.mxu0 0.0
        %794 = vmatpush1.msra.mxu0 0.0
        %795 = vmatprep.subr.mxu0 0.0
        %796 = vmatpush1.msra.mxu0 0.0
        %797 = vmatprep.subr.mxu0 0.0
        %798 = vmatpush1.msra.mxu0 0.0
        %799 = vmatprep.subr.mxu0 0.0
        %800 = vmatpush1.msra.mxu0 0.0
        %801 = vmatprep.subr.mxu0 0.0
        %802 = vmatpush1.msra.mxu0 0.0
        %803 = vmatprep.subr.mxu0 0.0
        %804 = vmatpush1.msra.mxu0 0.0
        %805 = vmatprep.subr.mxu0 0.0
        %806 = vmatpush1.msra.mxu0 0.0
        %807 = vmatprep.subr.mxu0 0.0
        %808 = vmatpush1.msra.mxu0 0.0
        %809 = vmatprep.subr.mxu0 0.0
        %810 = vmatpush1.msra.mxu0 0.0
        %811 = vmatprep.subr.mxu0 0.0
        %812 = vmatpush1.msra.mxu0 0.0
        %813 = vmatprep.mubr.f32.mxu0 0.0
        %814 = vmatmul.mubr.f32.gmra.mrb[0].mxu0 %v508
        %v815 = vpop.f32.mrb[0].mxu0
        %v816 = vadd.f32 0.0, %v815
        %v817 = vpop.f32.mrb[0].mxu0
        %v818 = vadd.f32 0.0, %v817
        %819 = vdwg.mxu0
        %820 = vmatprep.subr.mxu0 %v393
        %821 = vmatpush1.msra.mxu0 %v392
        %822 = vmatprep.subr.mxu0 %v533
        %823 = vmatpush1.msra.mxu0 %v530
        %824 = vmatprep.subr.mxu0 0.0
        %825 = vmatpush1.msra.mxu0 0.0
        %826 = vmatprep.subr.mxu0 0.0
        %827 = vmatpush1.msra.mxu0 0.0
        %828 = vmatprep.subr.mxu0 0.0
        %829 = vmatpush1.msra.mxu0 0.0
        %830 = vmatprep.subr.mxu0 0.0
        %831 = vmatpush1.msra.mxu0 0.0
        %832 = vmatprep.subr.mxu0 0.0
        %833 = vmatpush1.msra.mxu0 0.0
        %834 = vmatprep.subr.mxu0 0.0
        %835 = vmatpush1.msra.mxu0 0.0
        %836 = vmatprep.subr.mxu0 0.0
        %837 = vmatpush1.msra.mxu0 0.0
        %838 = vmatprep.subr.mxu0 0.0
        %839 = vmatpush1.msra.mxu0 0.0
        %840 = vmatprep.subr.mxu0 0.0
        %841 = vmatpush1.msra.mxu0 0.0
        %842 = vmatprep.subr.mxu0 0.0
        %843 = vmatpush1.msra.mxu0 0.0
        %844 = vmatprep.subr.mxu0 0.0
        %845 = vmatpush1.msra.mxu0 0.0
        %846 = vmatprep.subr.mxu0 0.0
        %847 = vmatpush1.msra.mxu0 0.0
        %848 = vmatprep.subr.mxu0 0.0
        %849 = vmatpush1.msra.mxu0 0.0
        %850 = vmatprep.subr.mxu0 0.0
        %851 = vmatpush1.msra.mxu0 0.0
        %852 = vmatprep.subr.mxu0 0.0
        %853 = vmatpush1.msra.mxu0 0.0
        %854 = vmatprep.subr.mxu0 0.0
        %855 = vmatpush1.msra.mxu0 0.0
        %856 = vmatprep.subr.mxu0 0.0
        %857 = vmatpush1.msra.mxu0 0.0
        %858 = vmatprep.subr.mxu0 0.0
        %859 = vmatpush1.msra.mxu0 0.0
        %860 = vmatprep.subr.mxu0 0.0
        %861 = vmatpush1.msra.mxu0 0.0
        %862 = vmatprep.subr.mxu0 0.0
        %863 = vmatpush1.msra.mxu0 0.0
        %864 = vmatprep.subr.mxu0 0.0
        %865 = vmatpush1.msra.mxu0 0.0
        %866 = vmatprep.subr.mxu0 0.0
        %867 = vmatpush1.msra.mxu0 0.0
        %868 = vmatprep.subr.mxu0 0.0
        %869 = vmatpush1.msra.mxu0 0.0
        %870 = vmatprep.subr.mxu0 0.0
        %871 = vmatpush1.msra.mxu0 0.0
        %872 = vmatprep.subr.mxu0 0.0
        %873 = vmatpush1.msra.mxu0 0.0
        %874 = vmatprep.subr.mxu0 0.0
        %875 = vmatpush1.msra.mxu0 0.0
        %876 = vmatprep.subr.mxu0 0.0
        %877 = vmatpush1.msra.mxu0 0.0
        %878 = vmatprep.subr.mxu0 0.0
        %879 = vmatpush1.msra.mxu0 0.0
        %880 = vmatprep.subr.mxu0 0.0
        %881 = vmatpush1.msra.mxu0 0.0
        %882 = vmatprep.subr.mxu0 0.0
        %883 = vmatpush1.msra.mxu0 0.0
        %884 = vmatprep.mubr.f32.mxu0 0.0
        %885 = vmatmul.mubr.f32.gmra.mrb[0].mxu0 %v508
        %v886 = vpop.f32.mrb[0].mxu0
        %v887 = vadd.f32 0.0, %v886
        %v888 = vpop.f32.mrb[0].mxu0
        %v889 = vadd.f32 0.0, %v888
        %890 = vdwg.mxu0
        %891 = vmatprep.subr.mxu0 %v395
        %892 = vmatpush1.msra.mxu0 %v394
        %893 = vmatprep.subr.mxu0 %v539
        %894 = vmatpush1.msra.mxu0 %v536
        %895 = vmatprep.subr.mxu0 0.0
        %896 = vmatpush1.msra.mxu0 0.0
        %897 = vmatprep.subr.mxu0 0.0
        %898 = vmatpush1.msra.mxu0 0.0
        %899 = vmatprep.subr.mxu0 0.0
        %900 = vmatpush1.msra.mxu0 0.0
        %901 = vmatprep.subr.mxu0 0.0
        %902 = vmatpush1.msra.mxu0 0.0
        %903 = vmatprep.subr.mxu0 0.0
        %904 = vmatpush1.msra.mxu0 0.0
        %905 = vmatprep.subr.mxu0 0.0
        %906 = vmatpush1.msra.mxu0 0.0
        %907 = vmatprep.subr.mxu0 0.0
        %908 = vmatpush1.msra.mxu0 0.0
        %909 = vmatprep.subr.mxu0 0.0
        %910 = vmatpush1.msra.mxu0 0.0
        %911 = vmatprep.subr.mxu0 0.0
        %912 = vmatpush1.msra.mxu0 0.0
        %913 = vmatprep.subr.mxu0 0.0
        %914 = vmatpush1.msra.mxu0 0.0
        %915 = vmatprep.subr.mxu0 0.0
        %916 = vmatpush1.msra.mxu0 0.0
        %917 = vmatprep.subr.mxu0 0.0
        %918 = vmatpush1.msra.mxu0 0.0
        %919 = vmatprep.subr.mxu0 0.0
        %920 = vmatpush1.msra.mxu0 0.0
        %921 = vmatprep.subr.mxu0 0.0
        %922 = vmatpush1.msra.mxu0 0.0
        %923 = vmatprep.subr.mxu0 0.0
        %924 = vmatpush1.msra.mxu0 0.0
        %925 = vmatprep.subr.mxu0 0.0
        %926 = vmatpush1.msra.mxu0 0.0
        %927 = vmatprep.subr.mxu0 0.0
        %928 = vmatpush1.msra.mxu0 0.0
        %929 = vmatprep.subr.mxu0 0.0
        %930 = vmatpush1.msra.mxu0 0.0
        %931 = vmatprep.subr.mxu0 0.0
        %932 = vmatpush1.msra.mxu0 0.0
        %933 = vmatprep.subr.mxu0 0.0
        %934 = vmatpush1.msra.mxu0 0.0
        %935 = vmatprep.subr.mxu0 0.0
        %936 = vmatpush1.msra.mxu0 0.0
        %937 = vmatprep.subr.mxu0 0.0
        %938 = vmatpush1.msra.mxu0 0.0
        %939 = vmatprep.subr.mxu0 0.0
        %940 = vmatpush1.msra.mxu0 0.0
        %941 = vmatprep.subr.mxu0 0.0
        %942 = vmatpush1.msra.mxu0 0.0
        %943 = vmatprep.subr.mxu0 0.0
        %944 = vmatpush1.msra.mxu0 0.0
        %945 = vmatprep.subr.mxu0 0.0
        %946 = vmatpush1.msra.mxu0 0.0
        %947 = vmatprep.subr.mxu0 0.0
        %948 = vmatpush1.msra.mxu0 0.0
        %949 = vmatprep.subr.mxu0 0.0
        %950 = vmatpush1.msra.mxu0 0.0
        %951 = vmatprep.subr.mxu0 0.0
        %952 = vmatpush1.msra.mxu0 0.0
        %953 = vmatprep.subr.mxu0 0.0
        %954 = vmatpush1.msra.mxu0 0.0
        %955 = vmatprep.mubr.f32.mxu0 0.0
        %956 = vmatmul.mubr.f32.gmra.mrb[0].mxu0 %v508
        %v957 = vpop.f32.mrb[0].mxu0
        %v958 = vadd.f32 0.0, %v957
        %v959 = vpop.f32.mrb[0].mxu0
        %v960 = vadd.f32 0.0, %v959
        %961 = vdwg.mxu0
        %962 = vmatprep.subr.mxu0 %v397
        %963 = vmatpush1.msra.mxu0 %v396
        %964 = vmatprep.subr.mxu0 %v545
        %965 = vmatpush1.msra.mxu0 %v542
        %966 = vmatprep.subr.mxu0 0.0
        %967 = vmatpush1.msra.mxu0 0.0
        %968 = vmatprep.subr.mxu0 0.0
        %969 = vmatpush1.msra.mxu0 0.0
        %970 = vmatprep.subr.mxu0 0.0
        %971 = vmatpush1.msra.mxu0 0.0
        %972 = vmatprep.subr.mxu0 0.0
        %973 = vmatpush1.msra.mxu0 0.0
        %974 = vmatprep.subr.mxu0 0.0
        %975 = vmatpush1.msra.mxu0 0.0
        %976 = vmatprep.subr.mxu0 0.0
        %977 = vmatpush1.msra.mxu0 0.0
        %978 = vmatprep.subr.mxu0 0.0
        %979 = vmatpush1.msra.mxu0 0.0
        %980 = vmatprep.subr.mxu0 0.0
        %981 = vmatpush1.msra.mxu0 0.0
        %982 = vmatprep.subr.mxu0 0.0
        %983 = vmatpush1.msra.mxu0 0.0
        %984 = vmatprep.subr.mxu0 0.0
        %985 = vmatpush1.msra.mxu0 0.0
        %986 = vmatprep.subr.mxu0 0.0
        %987 = vmatpush1.msra.mxu0 0.0
        %988 = vmatprep.subr.mxu0 0.0
        %989 = vmatpush1.msra.mxu0 0.0
        %990 = vmatprep.subr.mxu0 0.0
        %991 = vmatpush1.msra.mxu0 0.0
        %992 = vmatprep.subr.mxu0 0.0
        %993 = vmatpush1.msra.mxu0 0.0
        %994 = vmatprep.subr.mxu0 0.0
        %995 = vmatpush1.msra.mxu0 0.0
        %996 = vmatprep.subr.mxu0 0.0
        %997 = vmatpush1.msra.mxu0 0.0
        %998 = vmatprep.subr.mxu0 0.0
        %999 = vmatpush1.msra.mxu0 0.0
        %1000 = vmatprep.subr.mxu0 0.0
        %1001 = vmatpush1.msra.mxu0 0.0
        %1002 = vmatprep.subr.mxu0 0.0
        %1003 = vmatpush1.msra.mxu0 0.0
        %1004 = vmatprep.subr.mxu0 0.0
        %1005 = vmatpush1.msra.mxu0 0.0
        %1006 = vmatprep.subr.mxu0 0.0
        %1007 = vmatpush1.msra.mxu0 0.0
        %1008 = vmatprep.subr.mxu0 0.0
        %1009 = vmatpush1.msra.mxu0 0.0
        %1010 = vmatprep.subr.mxu0 0.0
        %1011 = vmatpush1.msra.mxu0 0.0
        %1012 = vmatprep.subr.mxu0 0.0
        %1013 = vmatpush1.msra.mxu0 0.0
        %1014 = vmatprep.subr.mxu0 0.0
        %1015 = vmatpush1.msra.mxu0 0.0
        %1016 = vmatprep.subr.mxu0 0.0
        %1017 = vmatpush1.msra.mxu0 0.0
        %1018 = vmatprep.subr.mxu0 0.0
        %1019 = vmatpush1.msra.mxu0 0.0
        %1020 = vmatprep.subr.mxu0 0.0
        %1021 = vmatpush1.msra.mxu0 0.0
        %1022 = vmatprep.subr.mxu0 0.0
        %1023 = vmatpush1.msra.mxu0 0.0
        %1024 = vmatprep.subr.mxu0 0.0
        %1025 = vmatpush1.msra.mxu0 0.0
        %1026 = vmatprep.mubr.f32.mxu0 0.0
        %1027 = vmatmul.mubr.f32.gmra.mrb[0].mxu0 %v508
        %v1028 = vpop.f32.mrb[0].mxu0
        %v1029 = vadd.f32 0.0, %v1028
        %v1030 = vpop.f32.mrb[0].mxu0
        %v1031 = vadd.f32 0.0, %v1030
        %1032 = vdwg.mxu0
        %1033 = vmatprep.subr.mxu0 %v399
        %1034 = vmatpush1.msra.mxu0 %v398
        %1035 = vmatprep.subr.mxu0 %v551
        %1036 = vmatpush1.msra.mxu0 %v548
        %1037 = vmatprep.subr.mxu0 0.0
        %1038 = vmatpush1.msra.mxu0 0.0
        %1039 = vmatprep.subr.mxu0 0.0
        %1040 = vmatpush1.msra.mxu0 0.0
        %1041 = vmatprep.subr.mxu0 0.0
        %1042 = vmatpush1.msra.mxu0 0.0
        %1043 = vmatprep.subr.mxu0 0.0
        %1044 = vmatpush1.msra.mxu0 0.0
        %1045 = vmatprep.subr.mxu0 0.0
        %1046 = vmatpush1.msra.mxu0 0.0
        %1047 = vmatprep.subr.mxu0 0.0
        %1048 = vmatpush1.msra.mxu0 0.0
        %1049 = vmatprep.subr.mxu0 0.0
        %1050 = vmatpush1.msra.mxu0 0.0
        %1051 = vmatprep.subr.mxu0 0.0
        %1052 = vmatpush1.msra.mxu0 0.0
        %1053 = vmatprep.subr.mxu0 0.0
        %1054 = vmatpush1.msra.mxu0 0.0
        %1055 = vmatprep.subr.mxu0 0.0
        %1056 = vmatpush1.msra.mxu0 0.0
        %1057 = vmatprep.subr.mxu0 0.0
        %1058 = vmatpush1.msra.mxu0 0.0
        %1059 = vmatprep.subr.mxu0 0.0
        %1060 = vmatpush1.msra.mxu0 0.0
        %1061 = vmatprep.subr.mxu0 0.0
        %1062 = vmatpush1.msra.mxu0 0.0
        %1063 = vmatprep.subr.mxu0 0.0
        %1064 = vmatpush1.msra.mxu0 0.0
        %1065 = vmatprep.subr.mxu0 0.0
        %1066 = vmatpush1.msra.mxu0 0.0
        %1067 = vmatprep.subr.mxu0 0.0
        %1068 = vmatpush1.msra.mxu0 0.0
        %1069 = vmatprep.subr.mxu0 0.0
        %1070 = vmatpush1.msra.mxu0 0.0
        %1071 = vmatprep.subr.mxu0 0.0
        %1072 = vmatpush1.msra.mxu0 0.0
        %1073 = vmatprep.subr.mxu0 0.0
        %1074 = vmatpush1.msra.mxu0 0.0
        %1075 = vmatprep.subr.mxu0 0.0
        %1076 = vmatpush1.msra.mxu0 0.0
        %1077 = vmatprep.subr.mxu0 0.0
        %1078 = vmatpush1.msra.mxu0 0.0
        %1079 = vmatprep.subr.mxu0 0.0
        %1080 = vmatpush1.msra.mxu0 0.0
        %1081 = vmatprep.subr.mxu0 0.0
        %1082 = vmatpush1.msra.mxu0 0.0
        %1083 = vmatprep.subr.mxu0 0.0
        %1084 = vmatpush1.msra.mxu0 0.0
        %1085 = vmatprep.subr.mxu0 0.0
        %1086 = vmatpush1.msra.mxu0 0.0
        %1087 = vmatprep.subr.mxu0 0.0
        %1088 = vmatpush1.msra.mxu0 0.0
        %1089 = vmatprep.subr.mxu0 0.0
        %1090 = vmatpush1.msra.mxu0 0.0
        %1091 = vmatprep.subr.mxu0 0.0
        %1092 = vmatpush1.msra.mxu0 0.0
        %1093 = vmatprep.subr.mxu0 0.0
        %1094 = vmatpush1.msra.mxu0 0.0
        %1095 = vmatprep.subr.mxu0 0.0
        %1096 = vmatpush1.msra.mxu0 0.0
        %1097 = vmatprep.mubr.f32.mxu0 0.0
        %1098 = vmatmul.mubr.f32.gmra.mrb[0].mxu0 %v508
        %v1099 = vpop.f32.mrb[0].mxu0
        %v1100 = vadd.f32 0.0, %v1099
        %v1101 = vpop.f32.mrb[0].mxu0
        %v1102 = vadd.f32 0.0, %v1101
        %1103 = vdwg.mxu0
        %1104 = vmatprep.subr.mxu0 %v401
        %1105 = vmatpush1.msra.mxu0 %v400
        %1106 = vmatprep.subr.mxu0 %v557
        %1107 = vmatpush1.msra.mxu0 %v554
        %1108 = vmatprep.subr.mxu0 0.0
        %1109 = vmatpush1.msra.mxu0 0.0
        %1110 = vmatprep.subr.mxu0 0.0
        %1111 = vmatpush1.msra.mxu0 0.0
        %1112 = vmatprep.subr.mxu0 0.0
        %1113 = vmatpush1.msra.mxu0 0.0
        %1114 = vmatprep.subr.mxu0 0.0
        %1115 = vmatpush1.msra.mxu0 0.0
        %1116 = vmatprep.subr.mxu0 0.0
        %1117 = vmatpush1.msra.mxu0 0.0
        %1118 = vmatprep.subr.mxu0 0.0
        %1119 = vmatpush1.msra.mxu0 0.0
        %1120 = vmatprep.subr.mxu0 0.0
        %1121 = vmatpush1.msra.mxu0 0.0
        %1122 = vmatprep.subr.mxu0 0.0
        %1123 = vmatpush1.msra.mxu0 0.0
        %1124 = vmatprep.subr.mxu0 0.0
        %1125 = vmatpush1.msra.mxu0 0.0
        %1126 = vmatprep.subr.mxu0 0.0
        %1127 = vmatpush1.msra.mxu0 0.0
        %1128 = vmatprep.subr.mxu0 0.0
        %1129 = vmatpush1.msra.mxu0 0.0
        %1130 = vmatprep.subr.mxu0 0.0
        %1131 = vmatpush1.msra.mxu0 0.0
        %1132 = vmatprep.subr.mxu0 0.0
        %1133 = vmatpush1.msra.mxu0 0.0
        %1134 = vmatprep.subr.mxu0 0.0
        %1135 = vmatpush1.msra.mxu0 0.0
        %1136 = vmatprep.subr.mxu0 0.0
        %1137 = vmatpush1.msra.mxu0 0.0
        %1138 = vmatprep.subr.mxu0 0.0
        %1139 = vmatpush1.msra.mxu0 0.0
        %1140 = vmatprep.subr.mxu0 0.0
        %1141 = vmatpush1.msra.mxu0 0.0
        %1142 = vmatprep.subr.mxu0 0.0
        %1143 = vmatpush1.msra.mxu0 0.0
        %1144 = vmatprep.subr.mxu0 0.0
        %1145 = vmatpush1.msra.mxu0 0.0
        %1146 = vmatprep.subr.mxu0 0.0
        %1147 = vmatpush1.msra.mxu0 0.0
        %1148 = vmatprep.subr.mxu0 0.0
        %1149 = vmatpush1.msra.mxu0 0.0
        %1150 = vmatprep.subr.mxu0 0.0
        %1151 = vmatpush1.msra.mxu0 0.0
        %1152 = vmatprep.subr.mxu0 0.0
        %1153 = vmatpush1.msra.mxu0 0.0
        %1154 = vmatprep.subr.mxu0 0.0
        %1155 = vmatpush1.msra.mxu0 0.0
        %1156 = vmatprep.subr.mxu0 0.0
        %1157 = vmatpush1.msra.mxu0 0.0
        %1158 = vmatprep.subr.mxu0 0.0
        %1159 = vmatpush1.msra.mxu0 0.0
        %1160 = vmatprep.subr.mxu0 0.0
        %1161 = vmatpush1.msra.mxu0 0.0
        %1162 = vmatprep.subr.mxu0 0.0
        %1163 = vmatpush1.msra.mxu0 0.0
        %1164 = vmatprep.subr.mxu0 0.0
        %1165 = vmatpush1.msra.mxu0 0.0
        %1166 = vmatprep.subr.mxu0 0.0
        %1167 = vmatpush1.msra.mxu0 0.0
        %1168 = vmatprep.mubr.f32.mxu0 0.0
        %1169 = vmatmul.mubr.f32.gmra.mrb[0].mxu0 %v508
        %v1170 = vpop.f32.mrb[0].mxu0
        %v1171 = vadd.f32 0.0, %v1170
        %v1172 = vpop.f32.mrb[0].mxu0
        %v1173 = vadd.f32 0.0, %v1172
        %1174 = vdwg.mxu0
        %1175 = vmatprep.subr.mxu0 %v403
        %1176 = vmatpush1.msra.mxu0 %v402
        %1177 = vmatprep.subr.mxu0 %v563
        %1178 = vmatpush1.msra.mxu0 %v560
        %1179 = vmatprep.subr.mxu0 0.0
        %1180 = vmatpush1.msra.mxu0 0.0
        %1181 = vmatprep.subr.mxu0 0.0
        %1182 = vmatpush1.msra.mxu0 0.0
        %1183 = vmatprep.subr.mxu0 0.0
        %1184 = vmatpush1.msra.mxu0 0.0
        %1185 = vmatprep.subr.mxu0 0.0
        %1186 = vmatpush1.msra.mxu0 0.0
        %1187 = vmatprep.subr.mxu0 0.0
        %1188 = vmatpush1.msra.mxu0 0.0
        %1189 = vmatprep.subr.mxu0 0.0
        %1190 = vmatpush1.msra.mxu0 0.0
        %1191 = vmatprep.subr.mxu0 0.0
        %1192 = vmatpush1.msra.mxu0 0.0
        %1193 = vmatprep.subr.mxu0 0.0
        %1194 = vmatpush1.msra.mxu0 0.0
        %1195 = vmatprep.subr.mxu0 0.0
        %1196 = vmatpush1.msra.mxu0 0.0
        %1197 = vmatprep.subr.mxu0 0.0
        %1198 = vmatpush1.msra.mxu0 0.0
        %1199 = vmatprep.subr.mxu0 0.0
        %1200 = vmatpush1.msra.mxu0 0.0
        %1201 = vmatprep.subr.mxu0 0.0
        %1202 = vmatpush1.msra.mxu0 0.0
        %1203 = vmatprep.subr.mxu0 0.0
        %1204 = vmatpush1.msra.mxu0 0.0
        %1205 = vmatprep.subr.mxu0 0.0
        %1206 = vmatpush1.msra.mxu0 0.0
        %1207 = vmatprep.subr.mxu0 0.0
        %1208 = vmatpush1.msra.mxu0 0.0
        %1209 = vmatprep.subr.mxu0 0.0
        %1210 = vmatpush1.msra.mxu0 0.0
        %1211 = vmatprep.subr.mxu0 0.0
        %1212 = vmatpush1.msra.mxu0 0.0
        %1213 = vmatprep.subr.mxu0 0.0
        %1214 = vmatpush1.msra.mxu0 0.0
        %1215 = vmatprep.subr.mxu0 0.0
        %1216 = vmatpush1.msra.mxu0 0.0
        %1217 = vmatprep.subr.mxu0 0.0
        %1218 = vmatpush1.msra.mxu0 0.0
        %1219 = vmatprep.subr.mxu0 0.0
        %1220 = vmatpush1.msra.mxu0 0.0
        %1221 = vmatprep.subr.mxu0 0.0
        %1222 = vmatpush1.msra.mxu0 0.0
        %1223 = vmatprep.subr.mxu0 0.0
        %1224 = vmatpush1.msra.mxu0 0.0
        %1225 = vmatprep.subr.mxu0 0.0
        %1226 = vmatpush1.msra.mxu0 0.0
        %1227 = vmatprep.subr.mxu0 0.0
        %1228 = vmatpush1.msra.mxu0 0.0
        %1229 = vmatprep.subr.mxu0 0.0
        %1230 = vmatpush1.msra.mxu0 0.0
        %1231 = vmatprep.subr.mxu0 0.0
        %1232 = vmatpush1.msra.mxu0 0.0
        %1233 = vmatprep.subr.mxu0 0.0
        %1234 = vmatpush1.msra.mxu0 0.0
        %1235 = vmatprep.subr.mxu0 0.0
        %1236 = vmatpush1.msra.mxu0 0.0
        %1237 = vmatprep.subr.mxu0 0.0
        %1238 = vmatpush1.msra.mxu0 0.0
        %1239 = vmatprep.mubr.f32.mxu0 0.0
        %1240 = vmatmul.mubr.f32.gmra.mrb[0].mxu0 %v508
        %v1241 = vpop.f32.mrb[0].mxu0
        %v1242 = vadd.f32 0.0, %v1241
        %v1243 = vpop.f32.mrb[0].mxu0
        %v1244 = vadd.f32 0.0, %v1243
        %1245 = vdwg.mxu0
        %1246 = vmatprep.subr.mxu0 %v405
        %1247 = vmatpush1.msra.mxu0 %v404
        %1248 = vmatprep.subr.mxu0 %v569
        %1249 = vmatpush1.msra.mxu0 %v566
        %1250 = vmatprep.subr.mxu0 0.0
        %1251 = vmatpush1.msra.mxu0 0.0
        %1252 = vmatprep.subr.mxu0 0.0
        %1253 = vmatpush1.msra.mxu0 0.0
        %1254 = vmatprep.subr.mxu0 0.0
        %1255 = vmatpush1.msra.mxu0 0.0
        %1256 = vmatprep.subr.mxu0 0.0
        %1257 = vmatpush1.msra.mxu0 0.0
        %1258 = vmatprep.subr.mxu0 0.0
        %1259 = vmatpush1.msra.mxu0 0.0
        %1260 = vmatprep.subr.mxu0 0.0
        %1261 = vmatpush1.msra.mxu0 0.0
        %1262 = vmatprep.subr.mxu0 0.0
        %1263 = vmatpush1.msra.mxu0 0.0
        %1264 = vmatprep.subr.mxu0 0.0
        %1265 = vmatpush1.msra.mxu0 0.0
        %1266 = vmatprep.subr.mxu0 0.0
        %1267 = vmatpush1.msra.mxu0 0.0
        %1268 = vmatprep.subr.mxu0 0.0
        %1269 = vmatpush1.msra.mxu0 0.0
        %1270 = vmatprep.subr.mxu0 0.0
        %1271 = vmatpush1.msra.mxu0 0.0
        %1272 = vmatprep.subr.mxu0 0.0
        %1273 = vmatpush1.msra.mxu0 0.0
        %1274 = vmatprep.subr.mxu0 0.0
        %1275 = vmatpush1.msra.mxu0 0.0
        %1276 = vmatprep.subr.mxu0 0.0
        %1277 = vmatpush1.msra.mxu0 0.0
        %1278 = vmatprep.subr.mxu0 0.0
        %1279 = vmatpush1.msra.mxu0 0.0
        %1280 = vmatprep.subr.mxu0 0.0
        %1281 = vmatpush1.msra.mxu0 0.0
        %1282 = vmatprep.subr.mxu0 0.0
        %1283 = vmatpush1.msra.mxu0 0.0
        %1284 = vmatprep.subr.mxu0 0.0
        %1285 = vmatpush1.msra.mxu0 0.0
        %1286 = vmatprep.subr.mxu0 0.0
        %1287 = vmatpush1.msra.mxu0 0.0
        %1288 = vmatprep.subr.mxu0 0.0
        %1289 = vmatpush1.msra.mxu0 0.0
        %1290 = vmatprep.subr.mxu0 0.0
        %1291 = vmatpush1.msra.mxu0 0.0
        %1292 = vmatprep.subr.mxu0 0.0
        %1293 = vmatpush1.msra.mxu0 0.0
        %1294 = vmatprep.subr.mxu0 0.0
        %1295 = vmatpush1.msra.mxu0 0.0
        %1296 = vmatprep.subr.mxu0 0.0
        %1297 = vmatpush1.msra.mxu0 0.0
        %1298 = vmatprep.subr.mxu0 0.0
        %1299 = vmatpush1.msra.mxu0 0.0
        %1300 = vmatprep.subr.mxu0 0.0
        %1301 = vmatpush1.msra.mxu0 0.0
        %1302 = vmatprep.subr.mxu0 0.0
        %1303 = vmatpush1.msra.mxu0 0.0
        %1304 = vmatprep.subr.mxu0 0.0
        %1305 = vmatpush1.msra.mxu0 0.0
        %1306 = vmatprep.subr.mxu0 0.0
        %1307 = vmatpush1.msra.mxu0 0.0
        %1308 = vmatprep.subr.mxu0 0.0
        %1309 = vmatpush1.msra.mxu0 0.0
        %1310 = vmatprep.mubr.f32.mxu0 0.0
        %1311 = vmatmul.mubr.f32.gmra.mrb[0].mxu0 %v508
        %v1312 = vpop.f32.mrb[0].mxu0
        %v1313 = vadd.f32 0.0, %v1312
        %v1314 = vpop.f32.mrb[0].mxu0
        %v1315 = vadd.f32 0.0, %v1314
        %1316 = vdwg.mxu0
        %1317 = vmatprep.subr.mxu0 %v407
        %1318 = vmatpush1.msra.mxu0 %v406
        %1319 = vmatprep.subr.mxu0 %v575
        %1320 = vmatpush1.msra.mxu0 %v572
        %1321 = vmatprep.subr.mxu0 0.0
        %1322 = vmatpush1.msra.mxu0 0.0
        %1323 = vmatprep.subr.mxu0 0.0
        %1324 = vmatpush1.msra.mxu0 0.0
        %1325 = vmatprep.subr.mxu0 0.0
        %1326 = vmatpush1.msra.mxu0 0.0
        %1327 = vmatprep.subr.mxu0 0.0
        %1328 = vmatpush1.msra.mxu0 0.0
        %1329 = vmatprep.subr.mxu0 0.0
        %1330 = vmatpush1.msra.mxu0 0.0
        %1331 = vmatprep.subr.mxu0 0.0
        %1332 = vmatpush1.msra.mxu0 0.0
        %1333 = vmatprep.subr.mxu0 0.0
        %1334 = vmatpush1.msra.mxu0 0.0
        %1335 = vmatprep.subr.mxu0 0.0
        %1336 = vmatpush1.msra.mxu0 0.0
        %1337 = vmatprep.subr.mxu0 0.0
        %1338 = vmatpush1.msra.mxu0 0.0
        %1339 = vmatprep.subr.mxu0 0.0
        %1340 = vmatpush1.msra.mxu0 0.0
        %1341 = vmatprep.subr.mxu0 0.0
        %1342 = vmatpush1.msra.mxu0 0.0
        %1343 = vmatprep.subr.mxu0 0.0
        %1344 = vmatpush1.msra.mxu0 0.0
        %1345 = vmatprep.subr.mxu0 0.0
        %1346 = vmatpush1.msra.mxu0 0.0
        %1347 = vmatprep.subr.mxu0 0.0
        %1348 = vmatpush1.msra.mxu0 0.0
        %1349 = vmatprep.subr.mxu0 0.0
        %1350 = vmatpush1.msra.mxu0 0.0
        %1351 = vmatprep.subr.mxu0 0.0
        %1352 = vmatpush1.msra.mxu0 0.0
        %1353 = vmatprep.subr.mxu0 0.0
        %1354 = vmatpush1.msra.mxu0 0.0
        %1355 = vmatprep.subr.mxu0 0.0
        %1356 = vmatpush1.msra.mxu0 0.0
        %1357 = vmatprep.subr.mxu0 0.0
        %1358 = vmatpush1.msra.mxu0 0.0
        %1359 = vmatprep.subr.mxu0 0.0
        %1360 = vmatpush1.msra.mxu0 0.0
        %1361 = vmatprep.subr.mxu0 0.0
        %1362 = vmatpush1.msra.mxu0 0.0
        %1363 = vmatprep.subr.mxu0 0.0
        %1364 = vmatpush1.msra.mxu0 0.0
        %1365 = vmatprep.subr.mxu0 0.0
        %1366 = vmatpush1.msra.mxu0 0.0
        %1367 = vmatprep.subr.mxu0 0.0
        %1368 = vmatpush1.msra.mxu0 0.0
        %1369 = vmatprep.subr.mxu0 0.0
        %1370 = vmatpush1.msra.mxu0 0.0
        %1371 = vmatprep.subr.mxu0 0.0
        %1372 = vmatpush1.msra.mxu0 0.0
        %1373 = vmatprep.subr.mxu0 0.0
        %1374 = vmatpush1.msra.mxu0 0.0
        %1375 = vmatprep.subr.mxu0 0.0
        %1376 = vmatpush1.msra.mxu0 0.0
        %1377 = vmatprep.subr.mxu0 0.0
        %1378 = vmatpush1.msra.mxu0 0.0
        %1379 = vmatprep.subr.mxu0 0.0
        %1380 = vmatpush1.msra.mxu0 0.0
        %1381 = vmatprep.mubr.f32.mxu0 0.0
        %1382 = vmatmul.mubr.f32.gmra.mrb[0].mxu0 %v508
        %v1383 = vpop.f32.mrb[0].mxu0
        %v1384 = vadd.f32 0.0, %v1383
        %v1385 = vpop.f32.mrb[0].mxu0
        %v1386 = vadd.f32 0.0, %v1385
        %1387 = vdwg.mxu0
        %1388 = vmatprep.subr.mxu0 %v409
        %1389 = vmatpush1.msra.mxu0 %v408
        %1390 = vmatprep.subr.mxu0 %v581
        %1391 = vmatpush1.msra.mxu0 %v578
        %1392 = vmatprep.subr.mxu0 0.0
        %1393 = vmatpush1.msra.mxu0 0.0
        %1394 = vmatprep.subr.mxu0 0.0
        %1395 = vmatpush1.msra.mxu0 0.0
        %1396 = vmatprep.subr.mxu0 0.0
        %1397 = vmatpush1.msra.mxu0 0.0
        %1398 = vmatprep.subr.mxu0 0.0
        %1399 = vmatpush1.msra.mxu0 0.0
        %1400 = vmatprep.subr.mxu0 0.0
        %1401 = vmatpush1.msra.mxu0 0.0
        %1402 = vmatprep.subr.mxu0 0.0
        %1403 = vmatpush1.msra.mxu0 0.0
        %1404 = vmatprep.subr.mxu0 0.0
        %1405 = vmatpush1.msra.mxu0 0.0
        %1406 = vmatprep.subr.mxu0 0.0
        %1407 = vmatpush1.msra.mxu0 0.0
        %1408 = vmatprep.subr.mxu0 0.0
        %1409 = vmatpush1.msra.mxu0 0.0
        %1410 = vmatprep.subr.mxu0 0.0
        %1411 = vmatpush1.msra.mxu0 0.0
        %1412 = vmatprep.subr.mxu0 0.0
        %1413 = vmatpush1.msra.mxu0 0.0
        %1414 = vmatprep.subr.mxu0 0.0
        %1415 = vmatpush1.msra.mxu0 0.0
        %1416 = vmatprep.subr.mxu0 0.0
        %1417 = vmatpush1.msra.mxu0 0.0
        %1418 = vmatprep.subr.mxu0 0.0
        %1419 = vmatpush1.msra.mxu0 0.0
        %1420 = vmatprep.subr.mxu0 0.0
        %1421 = vmatpush1.msra.mxu0 0.0
        %1422 = vmatprep.subr.mxu0 0.0
        %1423 = vmatpush1.msra.mxu0 0.0
        %1424 = vmatprep.subr.mxu0 0.0
        %1425 = vmatpush1.msra.mxu0 0.0
        %1426 = vmatprep.subr.mxu0 0.0
        %1427 = vmatpush1.msra.mxu0 0.0
        %1428 = vmatprep.subr.mxu0 0.0
        %1429 = vmatpush1.msra.mxu0 0.0
        %1430 = vmatprep.subr.mxu0 0.0
        %1431 = vmatpush1.msra.mxu0 0.0
        %1432 = vmatprep.subr.mxu0 0.0
        %1433 = vmatpush1.msra.mxu0 0.0
        %1434 = vmatprep.subr.mxu0 0.0
        %1435 = vmatpush1.msra.mxu0 0.0
        %1436 = vmatprep.subr.mxu0 0.0
        %1437 = vmatpush1.msra.mxu0 0.0
        %1438 = vmatprep.subr.mxu0 0.0
        %1439 = vmatpush1.msra.mxu0 0.0
        %1440 = vmatprep.subr.mxu0 0.0
        %1441 = vmatpush1.msra.mxu0 0.0
        %1442 = vmatprep.subr.mxu0 0.0
        %1443 = vmatpush1.msra.mxu0 0.0
        %1444 = vmatprep.subr.mxu0 0.0
        %1445 = vmatpush1.msra.mxu0 0.0
        %1446 = vmatprep.subr.mxu0 0.0
        %1447 = vmatpush1.msra.mxu0 0.0
        %1448 = vmatprep.subr.mxu0 0.0
        %1449 = vmatpush1.msra.mxu0 0.0
        %1450 = vmatprep.subr.mxu0 0.0
        %1451 = vmatpush1.msra.mxu0 0.0
        %1452 = vmatprep.mubr.f32.mxu0 0.0
        %1453 = vmatmul.mubr.f32.gmra.mrb[0].mxu0 %v508
        %v1454 = vpop.f32.mrb[0].mxu0
        %v1455 = vadd.f32 0.0, %v1454
        %v1456 = vpop.f32.mrb[0].mxu0
        %v1457 = vadd.f32 0.0, %v1456
        %1458 = vdwg.mxu0
        %1459 = vmatprep.subr.mxu0 %v411
        %1460 = vmatpush1.msra.mxu0 %v410
        %1461 = vmatprep.subr.mxu0 %v587
        %1462 = vmatpush1.msra.mxu0 %v584
        %1463 = vmatprep.subr.mxu0 0.0
        %1464 = vmatpush1.msra.mxu0 0.0
        %1465 = vmatprep.subr.mxu0 0.0
        %1466 = vmatpush1.msra.mxu0 0.0
        %1467 = vmatprep.subr.mxu0 0.0
        %1468 = vmatpush1.msra.mxu0 0.0
        %1469 = vmatprep.subr.mxu0 0.0
        %1470 = vmatpush1.msra.mxu0 0.0
        %1471 = vmatprep.subr.mxu0 0.0
        %1472 = vmatpush1.msra.mxu0 0.0
        %1473 = vmatprep.subr.mxu0 0.0
        %1474 = vmatpush1.msra.mxu0 0.0
        %1475 = vmatprep.subr.mxu0 0.0
        %1476 = vmatpush1.msra.mxu0 0.0
        %1477 = vmatprep.subr.mxu0 0.0
        %1478 = vmatpush1.msra.mxu0 0.0
        %1479 = vmatprep.subr.mxu0 0.0
        %1480 = vmatpush1.msra.mxu0 0.0
        %1481 = vmatprep.subr.mxu0 0.0
        %1482 = vmatpush1.msra.mxu0 0.0
        %1483 = vmatprep.subr.mxu0 0.0
        %1484 = vmatpush1.msra.mxu0 0.0
        %1485 = vmatprep.subr.mxu0 0.0
        %1486 = vmatpush1.msra.mxu0 0.0
        %1487 = vmatprep.subr.mxu0 0.0
        %1488 = vmatpush1.msra.mxu0 0.0
        %1489 = vmatprep.subr.mxu0 0.0
        %1490 = vmatpush1.msra.mxu0 0.0
        %1491 = vmatprep.subr.mxu0 0.0
        %1492 = vmatpush1.msra.mxu0 0.0
        %1493 = vmatprep.subr.mxu0 0.0
        %1494 = vmatpush1.msra.mxu0 0.0
        %1495 = vmatprep.subr.mxu0 0.0
        %1496 = vmatpush1.msra.mxu0 0.0
        %1497 = vmatprep.subr.mxu0 0.0
        %1498 = vmatpush1.msra.mxu0 0.0
        %1499 = vmatprep.subr.mxu0 0.0
        %1500 = vmatpush1.msra.mxu0 0.0
        %1501 = vmatprep.subr.mxu0 0.0
        %1502 = vmatpush1.msra.mxu0 0.0
        %1503 = vmatprep.subr.mxu0 0.0
        %1504 = vmatpush1.msra.mxu0 0.0
        %1505 = vmatprep.subr.mxu0 0.0
        %1506 = vmatpush1.msra.mxu0 0.0
        %1507 = vmatprep.subr.mxu0 0.0
        %1508 = vmatpush1.msra.mxu0 0.0
        %1509 = vmatprep.subr.mxu0 0.0
        %1510 = vmatpush1.msra.mxu0 0.0
        %1511 = vmatprep.subr.mxu0 0.0
        %1512 = vmatpush1.msra.mxu0 0.0
        %1513 = vmatprep.subr.mxu0 0.0
        %1514 = vmatpush1.msra.mxu0 0.0
        %1515 = vmatprep.subr.mxu0 0.0
        %1516 = vmatpush1.msra.mxu0 0.0
        %1517 = vmatprep.subr.mxu0 0.0
        %1518 = vmatpush1.msra.mxu0 0.0
        %1519 = vmatprep.subr.mxu0 0.0
        %1520 = vmatpush1.msra.mxu0 0.0
        %1521 = vmatprep.subr.mxu0 0.0
        %1522 = vmatpush1.msra.mxu0 0.0
        %1523 = vmatprep.mubr.f32.mxu0 0.0
        %1524 = vmatmul.mubr.f32.gmra.mrb[0].mxu0 %v508
        %v1525 = vpop.f32.mrb[0].mxu0
        %v1526 = vadd.f32 0.0, %v1525
        %v1527 = vpop.f32.mrb[0].mxu0
        %v1528 = vadd.f32 0.0, %v1527
        %1529 = vdwg.mxu0
        %1530 = vmatprep.subr.mxu0 %v413
        %1531 = vmatpush1.msra.mxu0 %v412
        %1532 = vmatprep.subr.mxu0 %v593
        %1533 = vmatpush1.msra.mxu0 %v590
        %1534 = vmatprep.subr.mxu0 0.0
        %1535 = vmatpush1.msra.mxu0 0.0
        %1536 = vmatprep.subr.mxu0 0.0
        %1537 = vmatpush1.msra.mxu0 0.0
        %1538 = vmatprep.subr.mxu0 0.0
        %1539 = vmatpush1.msra.mxu0 0.0
        %1540 = vmatprep.subr.mxu0 0.0
        %1541 = vmatpush1.msra.mxu0 0.0
        %1542 = vmatprep.subr.mxu0 0.0
        %1543 = vmatpush1.msra.mxu0 0.0
        %1544 = vmatprep.subr.mxu0 0.0
        %1545 = vmatpush1.msra.mxu0 0.0
        %1546 = vmatprep.subr.mxu0 0.0
        %1547 = vmatpush1.msra.mxu0 0.0
        %1548 = vmatprep.subr.mxu0 0.0
        %1549 = vmatpush1.msra.mxu0 0.0
        %1550 = vmatprep.subr.mxu0 0.0
        %1551 = vmatpush1.msra.mxu0 0.0
        %1552 = vmatprep.subr.mxu0 0.0
        %1553 = vmatpush1.msra.mxu0 0.0
        %1554 = vmatprep.subr.mxu0 0.0
        %1555 = vmatpush1.msra.mxu0 0.0
        %1556 = vmatprep.subr.mxu0 0.0
        %1557 = vmatpush1.msra.mxu0 0.0
        %1558 = vmatprep.subr.mxu0 0.0
        %1559 = vmatpush1.msra.mxu0 0.0
        %1560 = vmatprep.subr.mxu0 0.0
        %1561 = vmatpush1.msra.mxu0 0.0
        %1562 = vmatprep.subr.mxu0 0.0
        %1563 = vmatpush1.msra.mxu0 0.0
        %1564 = vmatprep.subr.mxu0 0.0
        %1565 = vmatpush1.msra.mxu0 0.0
        %1566 = vmatprep.subr.mxu0 0.0
        %1567 = vmatpush1.msra.mxu0 0.0
        %1568 = vmatprep.subr.mxu0 0.0
        %1569 = vmatpush1.msra.mxu0 0.0
        %1570 = vmatprep.subr.mxu0 0.0
        %1571 = vmatpush1.msra.mxu0 0.0
        %1572 = vmatprep.subr.mxu0 0.0
        %1573 = vmatpush1.msra.mxu0 0.0
        %1574 = vmatprep.subr.mxu0 0.0
        %1575 = vmatpush1.msra.mxu0 0.0
        %1576 = vmatprep.subr.mxu0 0.0
        %1577 = vmatpush1.msra.mxu0 0.0
        %1578 = vmatprep.subr.mxu0 0.0
        %1579 = vmatpush1.msra.mxu0 0.0
        %1580 = vmatprep.subr.mxu0 0.0
        %1581 = vmatpush1.msra.mxu0 0.0
        %1582 = vmatprep.subr.mxu0 0.0
        %1583 = vmatpush1.msra.mxu0 0.0
        %1584 = vmatprep.subr.mxu0 0.0
        %1585 = vmatpush1.msra.mxu0 0.0
        %1586 = vmatprep.subr.mxu0 0.0
        %1587 = vmatpush1.msra.mxu0 0.0
        %1588 = vmatprep.subr.mxu0 0.0
        %1589 = vmatpush1.msra.mxu0 0.0
        %1590 = vmatprep.subr.mxu0 0.0
        %1591 = vmatpush1.msra.mxu0 0.0
        %1592 = vmatprep.subr.mxu0 0.0
        %1593 = vmatpush1.msra.mxu0 0.0
        %1594 = vmatprep.mubr.f32.mxu0 0.0
        %1595 = vmatmul.mubr.f32.gmra.mrb[0].mxu0 %v508
        %v1596 = vpop.f32.mrb[0].mxu0
        %v1597 = vadd.f32 0.0, %v1596
        %v1598 = vpop.f32.mrb[0].mxu0
        %v1599 = vadd.f32 0.0, %v1598
        %1600 = vdwg.mxu0
        %1601 = vmatprep.subr.mxu0 %v415
        %1602 = vmatpush1.msra.mxu0 %v414
        %1603 = vmatprep.subr.mxu0 %v599
        %1604 = vmatpush1.msra.mxu0 %v596
        %1605 = vmatprep.subr.mxu0 0.0
        %1606 = vmatpush1.msra.mxu0 0.0
        %1607 = vmatprep.subr.mxu0 0.0
        %1608 = vmatpush1.msra.mxu0 0.0
        %1609 = vmatprep.subr.mxu0 0.0
        %1610 = vmatpush1.msra.mxu0 0.0
        %1611 = vmatprep.subr.mxu0 0.0
        %1612 = vmatpush1.msra.mxu0 0.0
        %1613 = vmatprep.subr.mxu0 0.0
        %1614 = vmatpush1.msra.mxu0 0.0
        %1615 = vmatprep.subr.mxu0 0.0
        %1616 = vmatpush1.msra.mxu0 0.0
        %1617 = vmatprep.subr.mxu0 0.0
        %1618 = vmatpush1.msra.mxu0 0.0
        %1619 = vmatprep.subr.mxu0 0.0
        %1620 = vmatpush1.msra.mxu0 0.0
        %1621 = vmatprep.subr.mxu0 0.0
        %1622 = vmatpush1.msra.mxu0 0.0
        %1623 = vmatprep.subr.mxu0 0.0
        %1624 = vmatpush1.msra.mxu0 0.0
        %1625 = vmatprep.subr.mxu0 0.0
        %1626 = vmatpush1.msra.mxu0 0.0
        %1627 = vmatprep.subr.mxu0 0.0
        %1628 = vmatpush1.msra.mxu0 0.0
        %1629 = vmatprep.subr.mxu0 0.0
        %1630 = vmatpush1.msra.mxu0 0.0
        %1631 = vmatprep.subr.mxu0 0.0
        %1632 = vmatpush1.msra.mxu0 0.0
        %1633 = vmatprep.subr.mxu0 0.0
        %1634 = vmatpush1.msra.mxu0 0.0
        %1635 = vmatprep.subr.mxu0 0.0
        %1636 = vmatpush1.msra.mxu0 0.0
        %1637 = vmatprep.subr.mxu0 0.0
        %1638 = vmatpush1.msra.mxu0 0.0
        %1639 = vmatprep.subr.mxu0 0.0
        %1640 = vmatpush1.msra.mxu0 0.0
        %1641 = vmatprep.subr.mxu0 0.0
        %1642 = vmatpush1.msra.mxu0 0.0
        %1643 = vmatprep.subr.mxu0 0.0
        %1644 = vmatpush1.msra.mxu0 0.0
        %1645 = vmatprep.subr.mxu0 0.0
        %1646 = vmatpush1.msra.mxu0 0.0
        %1647 = vmatprep.subr.mxu0 0.0
        %1648 = vmatpush1.msra.mxu0 0.0
        %1649 = vmatprep.subr.mxu0 0.0
        %1650 = vmatpush1.msra.mxu0 0.0
        %1651 = vmatprep.subr.mxu0 0.0
        %1652 = vmatpush1.msra.mxu0 0.0
        %1653 = vmatprep.subr.mxu0 0.0
        %1654 = vmatpush1.msra.mxu0 0.0
        %1655 = vmatprep.subr.mxu0 0.0
        %1656 = vmatpush1.msra.mxu0 0.0
        %1657 = vmatprep.subr.mxu0 0.0
        %1658 = vmatpush1.msra.mxu0 0.0
        %1659 = vmatprep.subr.mxu0 0.0
        %1660 = vmatpush1.msra.mxu0 0.0
        %1661 = vmatprep.subr.mxu0 0.0
        %1662 = vmatpush1.msra.mxu0 0.0
        %1663 = vmatprep.subr.mxu0 0.0
        %1664 = vmatpush1.msra.mxu0 0.0
        %1665 = vmatprep.mubr.f32.mxu0 0.0
        %1666 = vmatmul.mubr.f32.gmra.mrb[0].mxu0 %v508
        %v1667 = vpop.f32.mrb[0].mxu0
        %v1668 = vadd.f32 0.0, %v1667
        %v1669 = vpop.f32.mrb[0].mxu0
        %v1670 = vadd.f32 0.0, %v1669
        %1671 = vdwg.mxu0
        %1672 = vmatprep.subr.mxu0 %v417
        %1673 = vmatpush1.msra.mxu0 %v416
        %1674 = vmatprep.subr.mxu0 %v605
        %1675 = vmatpush1.msra.mxu0 %v602
        %1676 = vmatprep.subr.mxu0 0.0
        %1677 = vmatpush1.msra.mxu0 0.0
        %1678 = vmatprep.subr.mxu0 0.0
        %1679 = vmatpush1.msra.mxu0 0.0
        %1680 = vmatprep.subr.mxu0 0.0
        %1681 = vmatpush1.msra.mxu0 0.0
        %1682 = vmatprep.subr.mxu0 0.0
        %1683 = vmatpush1.msra.mxu0 0.0
        %1684 = vmatprep.subr.mxu0 0.0
        %1685 = vmatpush1.msra.mxu0 0.0
        %1686 = vmatprep.subr.mxu0 0.0
        %1687 = vmatpush1.msra.mxu0 0.0
        %1688 = vmatprep.subr.mxu0 0.0
        %1689 = vmatpush1.msra.mxu0 0.0
        %1690 = vmatprep.subr.mxu0 0.0
        %1691 = vmatpush1.msra.mxu0 0.0
        %1692 = vmatprep.subr.mxu0 0.0
        %1693 = vmatpush1.msra.mxu0 0.0
        %1694 = vmatprep.subr.mxu0 0.0
        %1695 = vmatpush1.msra.mxu0 0.0
        %1696 = vmatprep.subr.mxu0 0.0
        %1697 = vmatpush1.msra.mxu0 0.0
        %1698 = vmatprep.subr.mxu0 0.0
        %1699 = vmatpush1.msra.mxu0 0.0
        %1700 = vmatprep.subr.mxu0 0.0
        %1701 = vmatpush1.msra.mxu0 0.0
        %1702 = vmatprep.subr.mxu0 0.0
        %1703 = vmatpush1.msra.mxu0 0.0
        %1704 = vmatprep.subr.mxu0 0.0
        %1705 = vmatpush1.msra.mxu0 0.0
        %1706 = vmatprep.subr.mxu0 0.0
        %1707 = vmatpush1.msra.mxu0 0.0
        %1708 = vmatprep.subr.mxu0 0.0
        %1709 = vmatpush1.msra.mxu0 0.0
        %1710 = vmatprep.subr.mxu0 0.0
        %1711 = vmatpush1.msra.mxu0 0.0
        %1712 = vmatprep.subr.mxu0 0.0
        %1713 = vmatpush1.msra.mxu0 0.0
        %1714 = vmatprep.subr.mxu0 0.0
        %1715 = vmatpush1.msra.mxu0 0.0
        %1716 = vmatprep.subr.mxu0 0.0
        %1717 = vmatpush1.msra.mxu0 0.0
        %1718 = vmatprep.subr.mxu0 0.0
        %1719 = vmatpush1.msra.mxu0 0.0
        %1720 = vmatprep.subr.mxu0 0.0
        %1721 = vmatpush1.msra.mxu0 0.0
        %1722 = vmatprep.subr.mxu0 0.0
        %1723 = vmatpush1.msra.mxu0 0.0
        %1724 = vmatprep.subr.mxu0 0.0
        %1725 = vmatpush1.msra.mxu0 0.0
        %1726 = vmatprep.subr.mxu0 0.0
        %1727 = vmatpush1.msra.mxu0 0.0
        %1728 = vmatprep.subr.mxu0 0.0
        %1729 = vmatpush1.msra.mxu0 0.0
        %1730 = vmatprep.subr.mxu0 0.0
        %1731 = vmatpush1.msra.mxu0 0.0
        %1732 = vmatprep.subr.mxu0 0.0
        %1733 = vmatpush1.msra.mxu0 0.0
        %1734 = vmatprep.subr.mxu0 0.0
        %1735 = vmatpush1.msra.mxu0 0.0
        %1736 = vmatprep.mubr.f32.mxu0 0.0
        %1737 = vmatmul.mubr.f32.gmra.mrb[0].mxu0 %v508
        %v1738 = vpop.f32.mrb[0].mxu0
        %v1739 = vadd.f32 0.0, %v1738
        %v1740 = vpop.f32.mrb[0].mxu0
        %v1741 = vadd.f32 0.0, %v1740
        %1742 = vdwg.mxu0
        %v1743 = vmax.f32 %v674, %v958
        %v1744 = vmax.f32 %v676, %v960
        %v1745 = vmax.f32 %v745, %v1029
        %v1746 = vmax.f32 %v747, %v1031
        %v1747 = vmax.f32 %v816, %v1100
        %v1748 = vmax.f32 %v818, %v1102
        %v1749 = vmax.f32 %v887, %v1171
        %v1750 = vmax.f32 %v889, %v1173
        %v1751 = vmax.f32 %v1242, %v1526
        %v1752 = vmax.f32 %v1244, %v1528
        %v1753 = vmax.f32 %v1313, %v1597
        %v1754 = vmax.f32 %v1315, %v1599
        %v1755 = vmax.f32 %v1384, %v1668
        %v1756 = vmax.f32 %v1386, %v1670
        %v1757 = vmax.f32 %v1455, %v1739
        %v1758 = vmax.f32 %v1457, %v1741
        %v1759 = vmax.f32 %v1743, %v1751
        %v1760 = vmax.f32 %v1744, %v1752
        %v1761 = vmax.f32 %v1745, %v1753
        %v1762 = vmax.f32 %v1746, %v1754
        %v1763 = vmax.f32 %v1747, %v1755
        %v1764 = vmax.f32 %v1748, %v1756
        %v1765 = vmax.f32 %v1749, %v1757
        %v1766 = vmax.f32 %v1750, %v1758
        %1768 = vset.pattern.permute.xlu0 0
        %1769 = vperm.xlu0 %1768, %v378
        %v1770 = vpop.permute.xlu0 %1769
        %v1772 = vlaneseq
        %v1773 = vshrl.u32 %v1772, 7
        %v1774 = vsub.s32 0, %v1773
        %v1775 = vrot.slane %v1770, %v1774
        %1777 = vset.pattern.permute.xlu0 0
        %1778 = vperm.xlu0 %1777, %v379
        %v1779 = vpop.permute.xlu0 %1778
        %v1781 = vlaneseq
        %v1782 = vshrl.u32 %v1781, 7
        %v1783 = vsub.s32 0, %v1782
        %v1784 = vrot.slane %v1779, %v1783
        %1786 = vset.pattern.permute.xlu0 0
        %1787 = vperm.xlu0 %1786, %v380
        %v1788 = vpop.permute.xlu0 %1787
        %v1790 = vlaneseq
        %v1791 = vshrl.u32 %v1790, 7
        %v1792 = vsub.s32 0, %v1791
        %v1793 = vrot.slane %v1788, %v1792
        %1795 = vset.pattern.permute.xlu0 0
        %1796 = vperm.xlu0 %1795, %v381
        %v1797 = vpop.permute.xlu0 %1796
        %v1799 = vlaneseq
        %v1800 = vshrl.u32 %v1799, 7
        %v1801 = vsub.s32 0, %v1800
        %v1802 = vrot.slane %v1797, %v1801
        %1804 = vset.pattern.permute.xlu0 0
        %1805 = vperm.xlu0 %1804, %v382
        %v1806 = vpop.permute.xlu0 %1805
        %v1808 = vlaneseq
        %v1809 = vshrl.u32 %v1808, 7
        %v1810 = vsub.s32 0, %v1809
        %v1811 = vrot.slane %v1806, %v1810
        %1813 = vset.pattern.permute.xlu0 0
        %1814 = vperm.xlu0 %1813, %v383
        %v1815 = vpop.permute.xlu0 %1814
        %v1817 = vlaneseq
        %v1818 = vshrl.u32 %v1817, 7
        %v1819 = vsub.s32 0, %v1818
        %v1820 = vrot.slane %v1815, %v1819
        %1822 = vset.pattern.permute.xlu0 0
        %1823 = vperm.xlu0 %1822, %v384
        %v1824 = vpop.permute.xlu0 %1823
        %v1826 = vlaneseq
        %v1827 = vshrl.u32 %v1826, 7
        %v1828 = vsub.s32 0, %v1827
        %v1829 = vrot.slane %v1824, %v1828
        %1831 = vset.pattern.permute.xlu0 0
        %1832 = vperm.xlu0 %1831, %v385
        %v1833 = vpop.permute.xlu0 %1832
        %v1835 = vlaneseq
        %v1836 = vshrl.u32 %v1835, 7
        %v1837 = vsub.s32 0, %v1836
        %v1838 = vrot.slane %v1833, %v1837
        %v1847 = vcombine.low %v1775, %v1784
        %v1848 = vcombine.high %v1775, %v1784
        %v1849 = vcombine.low %v1793, %v1802
        %v1850 = vcombine.high %v1793, %v1802
        %v1851 = vcombine.low %v1811, %v1820
        %v1852 = vcombine.high %v1811, %v1820
        %v1853 = vcombine.low %v1829, %v1838
        %v1854 = vcombine.high %v1829, %v1838
        %v1856 = vunpack.c.l.s4 1966171168
        %v1857 = vunpack.c.0.s8 %v1856
        %v1858 = vlaneseq
        %v1859 = vshrl.u32 %v1858, 7
        %v1860 = vsub.s32 %v1857, %v1859
        %v1861 = vrot.slane %v1847, %v1860
        %v1863 = vunpack.c.l.s4 1966171168
        %v1864 = vunpack.c.0.s8 %v1863
        %v1865 = vlaneseq
        %v1866 = vshrl.u32 %v1865, 7
        %v1867 = vsub.s32 %v1864, %v1866
        %v1868 = vrot.slane %v1848, %v1867
        %v1870 = vunpack.c.l.s4 1966171168
        %v1871 = vunpack.c.0.s8 %v1870
        %v1872 = vlaneseq
        %v1873 = vshrl.u32 %v1872, 7
        %v1874 = vsub.s32 %v1871, %v1873
        %v1875 = vrot.slane %v1849, %v1874
        %v1877 = vunpack.c.l.s4 1966171168
        %v1878 = vunpack.c.0.s8 %v1877
        %v1879 = vlaneseq
        %v1880 = vshrl.u32 %v1879, 7
        %v1881 = vsub.s32 %v1878, %v1880
        %v1882 = vrot.slane %v1850, %v1881
        %v1884 = vunpack.c.l.s4 1966171168
        %v1885 = vunpack.c.0.s8 %v1884
        %v1886 = vlaneseq
        %v1887 = vshrl.u32 %v1886, 7
        %v1888 = vsub.s32 %v1885, %v1887
        %v1889 = vrot.slane %v1851, %v1888
        %v1891 = vunpack.c.l.s4 1966171168
        %v1892 = vunpack.c.0.s8 %v1891
        %v1893 = vlaneseq
        %v1894 = vshrl.u32 %v1893, 7
        %v1895 = vsub.s32 %v1892, %v1894
        %v1896 = vrot.slane %v1852, %v1895
        %v1898 = vunpack.c.l.s4 1966171168
        %v1899 = vunpack.c.0.s8 %v1898
        %v1900 = vlaneseq
        %v1901 = vshrl.u32 %v1900, 7
        %v1902 = vsub.s32 %v1899, %v1901
        %v1903 = vrot.slane %v1853, %v1902
        %v1905 = vunpack.c.l.s4 1966171168
        %v1906 = vunpack.c.0.s8 %v1905
        %v1907 = vlaneseq
        %v1908 = vshrl.u32 %v1907, 7
        %v1909 = vsub.s32 %v1906, %v1908
        %v1910 = vrot.slane %v1854, %v1909
        %v1911 = vcombine.low %v1861, %v1875
        %v1912 = vcombine.high %v1861, %v1875
        %v1913 = vcombine.low %v1868, %v1882
        %v1914 = vcombine.high %v1868, %v1882
        %v1915 = vcombine.low %v1889, %v1903
        %v1916 = vcombine.high %v1889, %v1903
        %v1917 = vcombine.low %v1896, %v1910
        %v1918 = vcombine.high %v1896, %v1910
        %v1920 = vunpack.c.l.s4 1966171168
        %v1921 = vunpack.c.0.s8 %v1920
        %v1922 = vlaneseq
        %v1923 = vshrl.u32 %v1922, 7
        %v1924 = vsub.s32 %v1921, %v1923
        %v1925 = vrot.slane %v1911, %v1924
        %v1927 = vunpack.c.l.s4 1966171168
        %v1928 = vunpack.c.0.s8 %v1927
        %v1929 = vlaneseq
        %v1930 = vshrl.u32 %v1929, 7
        %v1931 = vsub.s32 %v1928, %v1930
        %v1932 = vrot.slane %v1913, %v1931
        %v1934 = vunpack.c.l.s4 1966171168
        %v1935 = vunpack.c.0.s8 %v1934
        %v1936 = vlaneseq
        %v1937 = vshrl.u32 %v1936, 7
        %v1938 = vsub.s32 %v1935, %v1937
        %v1939 = vrot.slane %v1912, %v1938
        %v1941 = vunpack.c.l.s4 1966171168
        %v1942 = vunpack.c.0.s8 %v1941
        %v1943 = vlaneseq
        %v1944 = vshrl.u32 %v1943, 7
        %v1945 = vsub.s32 %v1942, %v1944
        %v1946 = vrot.slane %v1914, %v1945
        %v1948 = vunpack.c.l.s4 1966171168
        %v1949 = vunpack.c.0.s8 %v1948
        %v1950 = vlaneseq
        %v1951 = vshrl.u32 %v1950, 7
        %v1952 = vsub.s32 %v1949, %v1951
        %v1953 = vrot.slane %v1915, %v1952
        %v1955 = vunpack.c.l.s4 1966171168
        %v1956 = vunpack.c.0.s8 %v1955
        %v1957 = vlaneseq
        %v1958 = vshrl.u32 %v1957, 7
        %v1959 = vsub.s32 %v1956, %v1958
        %v1960 = vrot.slane %v1917, %v1959
        %v1962 = vunpack.c.l.s4 1966171168
        %v1963 = vunpack.c.0.s8 %v1962
        %v1964 = vlaneseq
        %v1965 = vshrl.u32 %v1964, 7
        %v1966 = vsub.s32 %v1963, %v1965
        %v1967 = vrot.slane %v1916, %v1966
        %v1969 = vunpack.c.l.s4 1966171168
        %v1970 = vunpack.c.0.s8 %v1969
        %v1971 = vlaneseq
        %v1972 = vshrl.u32 %v1971, 7
        %v1973 = vsub.s32 %v1970, %v1972
        %v1974 = vrot.slane %v1918, %v1973
        %v1975 = vcombine.low %v1925, %v1953
        %v1976 = vcombine.high %v1925, %v1953
        %v1977 = vcombine.low %v1932, %v1960
        %v1978 = vcombine.high %v1932, %v1960
        %v1979 = vcombine.low %v1939, %v1967
        %v1980 = vcombine.high %v1939, %v1967
        %v1981 = vcombine.low %v1946, %v1974
        %v1982 = vcombine.high %v1946, %v1974
        %v1991 = vadd.f32 %v1759, %v1975
        %v1992 = vadd.f32 %v1760, %v1979
        %v1993 = vadd.f32 %v1761, %v1976
        %v1994 = vadd.f32 %v1762, %v1980
        %v1995 = vadd.f32 %v1763, %v1977
        %v1996 = vadd.f32 %v1764, %v1981
        %v1997 = vadd.f32 %v1765, %v1978
        %v1998 = vadd.f32 %v1766, %v1982
        %vm1999 = vcmp.gt.f32.partialorder %v1991, 0.0
        %vm2000 = vcmp.gt.f32.partialorder %v1992, 0.0
        %vm2001 = vcmp.gt.f32.partialorder %v1993, 0.0
        %vm2002 = vcmp.gt.f32.partialorder %v1994, 0.0
        %vm2003 = vcmp.gt.f32.partialorder %v1995, 0.0
        %vm2004 = vcmp.gt.f32.partialorder %v1996, 0.0
        %vm2005 = vcmp.gt.f32.partialorder %v1997, 0.0
        %vm2006 = vcmp.gt.f32.partialorder %v1998, 0.0
        %v2007 = vmin.f32 %v1991, 0.0
        %v2008 = vmin.f32 %v1992, 0.0
        %v2009 = vmin.f32 %v1993, 0.0
        %v2010 = vmin.f32 %v1994, 0.0
        %v2011 = vmin.f32 %v1995, 0.0
        %v2012 = vmin.f32 %v1996, 0.0
        %v2013 = vmin.f32 %v1997, 0.0
        %v2014 = vmin.f32 %v1998, 0.0
        %v2015 = vmul.f32 %v2007, 1.442695
        %v2016 = vpow.pop %v2015
        %v2017 = vmul.f32 %v2008, 1.442695
        %v2018 = vpow.pop %v2017
        %v2019 = vmul.f32 %v2009, 1.442695
        %v2020 = vpow.pop %v2019
        %v2021 = vmul.f32 %v2010, 1.442695
        %v2022 = vpow.pop %v2021
        %v2023 = vmul.f32 %v2011, 1.442695
        %v2024 = vpow.pop %v2023
        %v2025 = vmul.f32 %v2012, 1.442695
        %v2026 = vpow.pop %v2025
        %v2027 = vmul.f32 %v2013, 1.442695
        %v2028 = vpow.pop %v2027
        %v2029 = vmul.f32 %v2014, 1.442695
        %v2030 = vpow.pop %v2029
        %v2031 = vsub.f32 %v2016, 1.0
        %v2032 = vsub.f32 %v2018, 1.0
        %v2033 = vsub.f32 %v2020, 1.0
        %v2034 = vsub.f32 %v2022, 1.0
        %v2035 = vsub.f32 %v2024, 1.0
        %v2036 = vsub.f32 %v2026, 1.0
        %v2037 = vsub.f32 %v2028, 1.0
        %v2038 = vsub.f32 %v2030, 1.0
        %v2039 = vsel %vm1999, %v1991, %v2031
        %v2040 = vsel %vm2000, %v1992, %v2032
        %v2041 = vsel %vm2001, %v1993, %v2033
        %v2042 = vsel %vm2002, %v1994, %v2034
        %v2043 = vsel %vm2003, %v1995, %v2035
        %v2044 = vsel %vm2004, %v1996, %v2036
        %v2045 = vsel %vm2005, %v1997, %v2037
        %v2046 = vsel %vm2006, %v1998, %v2038
        %v2047 = vpack.c.bf16 %v2039, %v2039
        %v2048 = vpack.c.bf16 %v2040, %v2040
        %v2049 = vpack.c.bf16 %v2041, %v2041
        %v2050 = vpack.c.bf16 %v2042, %v2042
        %v2051 = vpack.c.bf16 %v2043, %v2043
        %v2052 = vpack.c.bf16 %v2044, %v2044
        %v2053 = vpack.c.bf16 %v2045, %v2045
        %v2054 = vpack.c.bf16 %v2046, %v2046
        %s2055 = scalar_lea.vmem %s0, 512
        %v2056 = vld [vmem:[%s2055] sm:$0xff]
        %v2057 = vld [vmem:[%s2055 + $0x8] sm:$0xff]
        %v2058 = vld [vmem:[%s2055 + $0x10] sm:$0xff]
        %v2059 = vld [vmem:[%s2055 + $0x18] sm:$0xff]
        %v2060 = vld [vmem:[%s2055 + $0x20] sm:$0xff]
        %v2061 = vld [vmem:[%s2055 + $0x28] sm:$0xff]
        %v2062 = vld [vmem:[%s2055 + $0x30] sm:$0xff]
        %v2063 = vld [vmem:[%s2055 + $0x38] sm:$0xff]
        %v2064 = vld [vmem:[%s2055 + $0x40] sm:$0xff]
        %v2065 = vld [vmem:[%s2055 + $0x48] sm:$0xff]
        %v2066 = vld [vmem:[%s2055 + $0x50] sm:$0xff]
        %v2067 = vld [vmem:[%s2055 + $0x58] sm:$0xff]
        %v2068 = vld [vmem:[%s2055 + $0x60] sm:$0xff]
        %v2069 = vld [vmem:[%s2055 + $0x68] sm:$0xff]
        %v2070 = vld [vmem:[%s2055 + $0x70] sm:$0xff]
        %v2071 = vld [vmem:[%s2055 + $0x78] sm:$0xff]
        %v2072 = vld [vmem:[%s2055 + $0x80] sm:$0xff]
        %v2073 = vld [vmem:[%s2055 + $0x88] sm:$0xff]
        %v2074 = vld [vmem:[%s2055 + $0x90] sm:$0xff]
        %v2075 = vld [vmem:[%s2055 + $0x98] sm:$0xff]
        %v2076 = vld [vmem:[%s2055 + $0xa0] sm:$0xff]
        %v2077 = vld [vmem:[%s2055 + $0xa8] sm:$0xff]
        %v2078 = vld [vmem:[%s2055 + $0xb0] sm:$0xff]
        %v2079 = vld [vmem:[%s2055 + $0xb8] sm:$0xff]
        %v2080 = vld [vmem:[%s2055 + $0xc0] sm:$0xff]
        %v2081 = vld [vmem:[%s2055 + $0xc8] sm:$0xff]
        %v2082 = vld [vmem:[%s2055 + $0xd0] sm:$0xff]
        %v2083 = vld [vmem:[%s2055 + $0xd8] sm:$0xff]
        %v2084 = vld [vmem:[%s2055 + $0xe0] sm:$0xff]
        %v2085 = vld [vmem:[%s2055 + $0xe8] sm:$0xff]
        %v2086 = vld [vmem:[%s2055 + $0xf0] sm:$0xff]
        %v2087 = vld [vmem:[%s2055 + $0xf8] sm:$0xff]
        %v2088 = vld [vmem:[%s2055 + $0x100] sm:$0x1]
        %v2089 = vld [vmem:[%s2055 + $0x108] sm:$0x1]
        %v2090 = vld [vmem:[%s2055 + $0x110] sm:$0x1]
        %v2091 = vld [vmem:[%s2055 + $0x118] sm:$0x1]
        %v2092 = vld [vmem:[%s2055 + $0x120] sm:$0x1]
        %v2093 = vld [vmem:[%s2055 + $0x128] sm:$0x1]
        %v2094 = vld [vmem:[%s2055 + $0x130] sm:$0x1]
        %v2095 = vld [vmem:[%s2055 + $0x138] sm:$0x1]
        %v2096 = vld [vmem:[%s2055 + $0x140] sm:$0x1]
        %v2097 = vld [vmem:[%s2055 + $0x148] sm:$0x1]
        %v2098 = vld [vmem:[%s2055 + $0x150] sm:$0x1]
        %v2099 = vld [vmem:[%s2055 + $0x158] sm:$0x1]
        %v2100 = vld [vmem:[%s2055 + $0x160] sm:$0x1]
        %v2101 = vld [vmem:[%s2055 + $0x168] sm:$0x1]
        %v2102 = vld [vmem:[%s2055 + $0x170] sm:$0x1]
        %v2103 = vld [vmem:[%s2055 + $0x178] sm:$0x1]
        %v2104 = vld [vmem:[%s2055 + $0x180] sm:$0x1]
        %v2105 = vld [vmem:[%s2055 + $0x188] sm:$0x1]
        %v2106 = vld [vmem:[%s2055 + $0x190] sm:$0x1]
        %v2107 = vld [vmem:[%s2055 + $0x198] sm:$0x1]
        %v2108 = vld [vmem:[%s2055 + $0x1a0] sm:$0x1]
        %v2109 = vld [vmem:[%s2055 + $0x1a8] sm:$0x1]
        %v2110 = vld [vmem:[%s2055 + $0x1b0] sm:$0x1]
        %v2111 = vld [vmem:[%s2055 + $0x1b8] sm:$0x1]
        %v2112 = vld [vmem:[%s2055 + $0x1c0] sm:$0x1]
        %v2113 = vld [vmem:[%s2055 + $0x1c8] sm:$0x1]
        %v2114 = vld [vmem:[%s2055 + $0x1d0] sm:$0x1]
        %v2115 = vld [vmem:[%s2055 + $0x1d8] sm:$0x1]
        %v2116 = vld [vmem:[%s2055 + $0x1e0] sm:$0x1]
        %v2117 = vld [vmem:[%s2055 + $0x1e8] sm:$0x1]
        %v2118 = vld [vmem:[%s2055 + $0x1f0] sm:$0x1]
        %v2119 = vld [vmem:[%s2055 + $0x1f8] sm:$0x1]
        %v2121 = vsel %vm510, %v2088, 0
        %v2124 = vsel %vm510, %v2089, 0
        %v2127 = vsel %vm510, %v2090, 0
        %v2130 = vsel %vm510, %v2091, 0
        %v2133 = vsel %vm510, %v2092, 0
        %v2136 = vsel %vm510, %v2093, 0
        %v2139 = vsel %vm510, %v2094, 0
        %v2142 = vsel %vm510, %v2095, 0
        %v2145 = vsel %vm510, %v2096, 0
        %v2148 = vsel %vm510, %v2097, 0
        %v2151 = vsel %vm510, %v2098, 0
        %v2154 = vsel %vm510, %v2099, 0
        %v2157 = vsel %vm510, %v2100, 0
        %v2160 = vsel %vm510, %v2101, 0
        %v2163 = vsel %vm510, %v2102, 0
        %v2166 = vsel %vm510, %v2103, 0
        %v2169 = vsel %vm510, %v2104, 0
        %v2172 = vsel %vm510, %v2105, 0
        %v2175 = vsel %vm510, %v2106, 0
        %v2178 = vsel %vm510, %v2107, 0
        %v2181 = vsel %vm510, %v2108, 0
        %v2184 = vsel %vm510, %v2109, 0
        %v2187 = vsel %vm510, %v2110, 0
        %v2190 = vsel %vm510, %v2111, 0
        %v2193 = vsel %vm510, %v2112, 0
        %v2196 = vsel %vm510, %v2113, 0
        %v2199 = vsel %vm510, %v2114, 0
        %v2202 = vsel %vm510, %v2115, 0
        %v2205 = vsel %vm510, %v2116, 0
        %v2208 = vsel %vm510, %v2117, 0
        %v2211 = vsel %vm510, %v2118, 0
        %v2214 = vsel %vm510, %v2119, 0
        %2216 = vmatprep.subr.mxu0 %v2057
        %2217 = vmatpush1.msra.mxu0 %v2056
        %2218 = vmatprep.subr.mxu0 %v2124
        %2219 = vmatpush1.msra.mxu0 %v2121
        %2220 = vmatprep.subr.mxu0 0.0
        %2221 = vmatpush1.msra.mxu0 0.0
        %2222 = vmatprep.subr.mxu0 0.0
        %2223 = vmatpush1.msra.mxu0 0.0
        %2224 = vmatprep.subr.mxu0 0.0
        %2225 = vmatpush1.msra.mxu0 0.0
        %2226 = vmatprep.subr.mxu0 0.0
        %2227 = vmatpush1.msra.mxu0 0.0
        %2228 = vmatprep.subr.mxu0 0.0
        %2229 = vmatpush1.msra.mxu0 0.0
        %2230 = vmatprep.subr.mxu0 0.0
        %2231 = vmatpush1.msra.mxu0 0.0
        %2232 = vmatprep.subr.mxu0 0.0
        %2233 = vmatpush1.msra.mxu0 0.0
        %2234 = vmatprep.subr.mxu0 0.0
        %2235 = vmatpush1.msra.mxu0 0.0
        %2236 = vmatprep.subr.mxu0 0.0
        %2237 = vmatpush1.msra.mxu0 0.0
        %2238 = vmatprep.subr.mxu0 0.0
        %2239 = vmatpush1.msra.mxu0 0.0
        %2240 = vmatprep.subr.mxu0 0.0
        %2241 = vmatpush1.msra.mxu0 0.0
        %2242 = vmatprep.subr.mxu0 0.0
        %2243 = vmatpush1.msra.mxu0 0.0
        %2244 = vmatprep.subr.mxu0 0.0
        %2245 = vmatpush1.msra.mxu0 0.0
        %2246 = vmatprep.subr.mxu0 0.0
        %2247 = vmatpush1.msra.mxu0 0.0
        %2248 = vmatprep.subr.mxu0 0.0
        %2249 = vmatpush1.msra.mxu0 0.0
        %2250 = vmatprep.subr.mxu0 0.0
        %2251 = vmatpush1.msra.mxu0 0.0
        %2252 = vmatprep.subr.mxu0 0.0
        %2253 = vmatpush1.msra.mxu0 0.0
        %2254 = vmatprep.subr.mxu0 0.0
        %2255 = vmatpush1.msra.mxu0 0.0
        %2256 = vmatprep.subr.mxu0 0.0
        %2257 = vmatpush1.msra.mxu0 0.0
        %2258 = vmatprep.subr.mxu0 0.0
        %2259 = vmatpush1.msra.mxu0 0.0
        %2260 = vmatprep.subr.mxu0 0.0
        %2261 = vmatpush1.msra.mxu0 0.0
        %2262 = vmatprep.subr.mxu0 0.0
        %2263 = vmatpush1.msra.mxu0 0.0
        %2264 = vmatprep.subr.mxu0 0.0
        %2265 = vmatpush1.msra.mxu0 0.0
        %2266 = vmatprep.subr.mxu0 0.0
        %2267 = vmatpush1.msra.mxu0 0.0
        %2268 = vmatprep.subr.mxu0 0.0
        %2269 = vmatpush1.msra.mxu0 0.0
        %2270 = vmatprep.subr.mxu0 0.0
        %2271 = vmatpush1.msra.mxu0 0.0
        %2272 = vmatprep.subr.mxu0 0.0
        %2273 = vmatpush1.msra.mxu0 0.0
        %2274 = vmatprep.subr.mxu0 0.0
        %2275 = vmatpush1.msra.mxu0 0.0
        %2276 = vmatprep.subr.mxu0 0.0
        %2277 = vmatpush1.msra.mxu0 0.0
        %2278 = vmatprep.subr.mxu0 0.0
        %2279 = vmatpush1.msra.mxu0 0.0
        %2280 = vmatprep.mubr.f32.mxu0 0.0
        %2281 = vmatmul.mubr.f32.gmra.mrb[0].mxu0 %v508
        %v2282 = vpop.f32.mrb[0].mxu0
        %v2283 = vadd.f32 0.0, %v2282
        %v2284 = vpop.f32.mrb[0].mxu0
        %v2285 = vadd.f32 0.0, %v2284
        %2286 = vdwg.mxu0
        %2287 = vmatprep.subr.mxu0 %v2059
        %2288 = vmatpush1.msra.mxu0 %v2058
        %2289 = vmatprep.subr.mxu0 %v2130
        %2290 = vmatpush1.msra.mxu0 %v2127
        %2291 = vmatprep.subr.mxu0 0.0
        %2292 = vmatpush1.msra.mxu0 0.0
        %2293 = vmatprep.subr.mxu0 0.0
        %2294 = vmatpush1.msra.mxu0 0.0
        %2295 = vmatprep.subr.mxu0 0.0
        %2296 = vmatpush1.msra.mxu0 0.0
        %2297 = vmatprep.subr.mxu0 0.0
        %2298 = vmatpush1.msra.mxu0 0.0
        %2299 = vmatprep.subr.mxu0 0.0
        %2300 = vmatpush1.msra.mxu0 0.0
        %2301 = vmatprep.subr.mxu0 0.0
        %2302 = vmatpush1.msra.mxu0 0.0
        %2303 = vmatprep.subr.mxu0 0.0
        %2304 = vmatpush1.msra.mxu0 0.0
        %2305 = vmatprep.subr.mxu0 0.0
        %2306 = vmatpush1.msra.mxu0 0.0
        %2307 = vmatprep.subr.mxu0 0.0
        %2308 = vmatpush1.msra.mxu0 0.0
        %2309 = vmatprep.subr.mxu0 0.0
        %2310 = vmatpush1.msra.mxu0 0.0
        %2311 = vmatprep.subr.mxu0 0.0
        %2312 = vmatpush1.msra.mxu0 0.0
        %2313 = vmatprep.subr.mxu0 0.0
        %2314 = vmatpush1.msra.mxu0 0.0
        %2315 = vmatprep.subr.mxu0 0.0
        %2316 = vmatpush1.msra.mxu0 0.0
        %2317 = vmatprep.subr.mxu0 0.0
        %2318 = vmatpush1.msra.mxu0 0.0
        %2319 = vmatprep.subr.mxu0 0.0
        %2320 = vmatpush1.msra.mxu0 0.0
        %2321 = vmatprep.subr.mxu0 0.0
        %2322 = vmatpush1.msra.mxu0 0.0
        %2323 = vmatprep.subr.mxu0 0.0
        %2324 = vmatpush1.msra.mxu0 0.0
        %2325 = vmatprep.subr.mxu0 0.0
        %2326 = vmatpush1.msra.mxu0 0.0
        %2327 = vmatprep.subr.mxu0 0.0
        %2328 = vmatpush1.msra.mxu0 0.0
        %2329 = vmatprep.subr.mxu0 0.0
        %2330 = vmatpush1.msra.mxu0 0.0
        %2331 = vmatprep.subr.mxu0 0.0
        %2332 = vmatpush1.msra.mxu0 0.0
        %2333 = vmatprep.subr.mxu0 0.0
        %2334 = vmatpush1.msra.mxu0 0.0
        %2335 = vmatprep.subr.mxu0 0.0
        %2336 = vmatpush1.msra.mxu0 0.0
        %2337 = vmatprep.subr.mxu0 0.0
        %2338 = vmatpush1.msra.mxu0 0.0
        %2339 = vmatprep.subr.mxu0 0.0
        %2340 = vmatpush1.msra.mxu0 0.0
        %2341 = vmatprep.subr.mxu0 0.0
        %2342 = vmatpush1.msra.mxu0 0.0
        %2343 = vmatprep.subr.mxu0 0.0
        %2344 = vmatpush1.msra.mxu0 0.0
        %2345 = vmatprep.subr.mxu0 0.0
        %2346 = vmatpush1.msra.mxu0 0.0
        %2347 = vmatprep.subr.mxu0 0.0
        %2348 = vmatpush1.msra.mxu0 0.0
        %2349 = vmatprep.subr.mxu0 0.0
        %2350 = vmatpush1.msra.mxu0 0.0
        %2351 = vmatprep.mubr.f32.mxu0 0.0
        %2352 = vmatmul.mubr.f32.gmra.mrb[0].mxu0 %v508
        %v2353 = vpop.f32.mrb[0].mxu0
        %v2354 = vadd.f32 0.0, %v2353
        %v2355 = vpop.f32.mrb[0].mxu0
        %v2356 = vadd.f32 0.0, %v2355
        %2357 = vdwg.mxu0
        %2358 = vmatprep.subr.mxu0 %v2061
        %2359 = vmatpush1.msra.mxu0 %v2060
        %2360 = vmatprep.subr.mxu0 %v2136
        %2361 = vmatpush1.msra.mxu0 %v2133
        %2362 = vmatprep.subr.mxu0 0.0
        %2363 = vmatpush1.msra.mxu0 0.0
        %2364 = vmatprep.subr.mxu0 0.0
        %2365 = vmatpush1.msra.mxu0 0.0
        %2366 = vmatprep.subr.mxu0 0.0
        %2367 = vmatpush1.msra.mxu0 0.0
        %2368 = vmatprep.subr.mxu0 0.0
        %2369 = vmatpush1.msra.mxu0 0.0
        %2370 = vmatprep.subr.mxu0 0.0
        %2371 = vmatpush1.msra.mxu0 0.0
        %2372 = vmatprep.subr.mxu0 0.0
        %2373 = vmatpush1.msra.mxu0 0.0
        %2374 = vmatprep.subr.mxu0 0.0
        %2375 = vmatpush1.msra.mxu0 0.0
        %2376 = vmatprep.subr.mxu0 0.0
        %2377 = vmatpush1.msra.mxu0 0.0
        %2378 = vmatprep.subr.mxu0 0.0
        %2379 = vmatpush1.msra.mxu0 0.0
        %2380 = vmatprep.subr.mxu0 0.0
        %2381 = vmatpush1.msra.mxu0 0.0
        %2382 = vmatprep.subr.mxu0 0.0
        %2383 = vmatpush1.msra.mxu0 0.0
        %2384 = vmatprep.subr.mxu0 0.0
        %2385 = vmatpush1.msra.mxu0 0.0
        %2386 = vmatprep.subr.mxu0 0.0
        %2387 = vmatpush1.msra.mxu0 0.0
        %2388 = vmatprep.subr.mxu0 0.0
        %2389 = vmatpush1.msra.mxu0 0.0
        %2390 = vmatprep.subr.mxu0 0.0
        %2391 = vmatpush1.msra.mxu0 0.0
        %2392 = vmatprep.subr.mxu0 0.0
        %2393 = vmatpush1.msra.mxu0 0.0
        %2394 = vmatprep.subr.mxu0 0.0
        %2395 = vmatpush1.msra.mxu0 0.0
        %2396 = vmatprep.subr.mxu0 0.0
        %2397 = vmatpush1.msra.mxu0 0.0
        %2398 = vmatprep.subr.mxu0 0.0
        %2399 = vmatpush1.msra.mxu0 0.0
        %2400 = vmatprep.subr.mxu0 0.0
        %2401 = vmatpush1.msra.mxu0 0.0
        %2402 = vmatprep.subr.mxu0 0.0
        %2403 = vmatpush1.msra.mxu0 0.0
        %2404 = vmatprep.subr.mxu0 0.0
        %2405 = vmatpush1.msra.mxu0 0.0
        %2406 = vmatprep.subr.mxu0 0.0
        %2407 = vmatpush1.msra.mxu0 0.0
        %2408 = vmatprep.subr.mxu0 0.0
        %2409 = vmatpush1.msra.mxu0 0.0
        %2410 = vmatprep.subr.mxu0 0.0
        %2411 = vmatpush1.msra.mxu0 0.0
        %2412 = vmatprep.subr.mxu0 0.0
        %2413 = vmatpush1.msra.mxu0 0.0
        %2414 = vmatprep.subr.mxu0 0.0
        %2415 = vmatpush1.msra.mxu0 0.0
        %2416 = vmatprep.subr.mxu0 0.0
        %2417 = vmatpush1.msra.mxu0 0.0
        %2418 = vmatprep.subr.mxu0 0.0
        %2419 = vmatpush1.msra.mxu0 0.0
        %2420 = vmatprep.subr.mxu0 0.0
        %2421 = vmatpush1.msra.mxu0 0.0
        %2422 = vmatprep.mubr.f32.mxu0 0.0
        %2423 = vmatmul.mubr.f32.gmra.mrb[0].mxu0 %v508
        %v2424 = vpop.f32.mrb[0].mxu0
        %v2425 = vadd.f32 0.0, %v2424
        %v2426 = vpop.f32.mrb[0].mxu0
        %v2427 = vadd.f32 0.0, %v2426
        %2428 = vdwg.mxu0
        %2429 = vmatprep.subr.mxu0 %v2063
        %2430 = vmatpush1.msra.mxu0 %v2062
        %2431 = vmatprep.subr.mxu0 %v2142
        %2432 = vmatpush1.msra.mxu0 %v2139
        %2433 = vmatprep.subr.mxu0 0.0
        %2434 = vmatpush1.msra.mxu0 0.0
        %2435 = vmatprep.subr.mxu0 0.0
        %2436 = vmatpush1.msra.mxu0 0.0
        %2437 = vmatprep.subr.mxu0 0.0
        %2438 = vmatpush1.msra.mxu0 0.0
        %2439 = vmatprep.subr.mxu0 0.0
        %2440 = vmatpush1.msra.mxu0 0.0
        %2441 = vmatprep.subr.mxu0 0.0
        %2442 = vmatpush1.msra.mxu0 0.0
        %2443 = vmatprep.subr.mxu0 0.0
        %2444 = vmatpush1.msra.mxu0 0.0
        %2445 = vmatprep.subr.mxu0 0.0
        %2446 = vmatpush1.msra.mxu0 0.0
        %2447 = vmatprep.subr.mxu0 0.0
        %2448 = vmatpush1.msra.mxu0 0.0
        %2449 = vmatprep.subr.mxu0 0.0
        %2450 = vmatpush1.msra.mxu0 0.0
        %2451 = vmatprep.subr.mxu0 0.0
        %2452 = vmatpush1.msra.mxu0 0.0
        %2453 = vmatprep.subr.mxu0 0.0
        %2454 = vmatpush1.msra.mxu0 0.0
        %2455 = vmatprep.subr.mxu0 0.0
        %2456 = vmatpush1.msra.mxu0 0.0
        %2457 = vmatprep.subr.mxu0 0.0
        %2458 = vmatpush1.msra.mxu0 0.0
        %2459 = vmatprep.subr.mxu0 0.0
        %2460 = vmatpush1.msra.mxu0 0.0
        %2461 = vmatprep.subr.mxu0 0.0
        %2462 = vmatpush1.msra.mxu0 0.0
        %2463 = vmatprep.subr.mxu0 0.0
        %2464 = vmatpush1.msra.mxu0 0.0
        %2465 = vmatprep.subr.mxu0 0.0
        %2466 = vmatpush1.msra.mxu0 0.0
        %2467 = vmatprep.subr.mxu0 0.0
        %2468 = vmatpush1.msra.mxu0 0.0
        %2469 = vmatprep.subr.mxu0 0.0
        %2470 = vmatpush1.msra.mxu0 0.0
        %2471 = vmatprep.subr.mxu0 0.0
        %2472 = vmatpush1.msra.mxu0 0.0
        %2473 = vmatprep.subr.mxu0 0.0
        %2474 = vmatpush1.msra.mxu0 0.0
        %2475 = vmatprep.subr.mxu0 0.0
        %2476 = vmatpush1.msra.mxu0 0.0
        %2477 = vmatprep.subr.mxu0 0.0
        %2478 = vmatpush1.msra.mxu0 0.0
        %2479 = vmatprep.subr.mxu0 0.0
        %2480 = vmatpush1.msra.mxu0 0.0
        %2481 = vmatprep.subr.mxu0 0.0
        %2482 = vmatpush1.msra.mxu0 0.0
        %2483 = vmatprep.subr.mxu0 0.0
        %2484 = vmatpush1.msra.mxu0 0.0
        %2485 = vmatprep.subr.mxu0 0.0
        %2486 = vmatpush1.msra.mxu0 0.0
        %2487 = vmatprep.subr.mxu0 0.0
        %2488 = vmatpush1.msra.mxu0 0.0
        %2489 = vmatprep.subr.mxu0 0.0
        %2490 = vmatpush1.msra.mxu0 0.0
        %2491 = vmatprep.subr.mxu0 0.0
        %2492 = vmatpush1.msra.mxu0 0.0
        %2493 = vmatprep.mubr.f32.mxu0 0.0
        %2494 = vmatmul.mubr.f32.gmra.mrb[0].mxu0 %v508
        %v2495 = vpop.f32.mrb[0].mxu0
        %v2496 = vadd.f32 0.0, %v2495
        %v2497 = vpop.f32.mrb[0].mxu0
        %v2498 = vadd.f32 0.0, %v2497
        %2499 = vdwg.mxu0
        %2500 = vmatprep.subr.mxu0 %v2065
        %2501 = vmatpush1.msra.mxu0 %v2064
        %2502 = vmatprep.subr.mxu0 %v2148
        %2503 = vmatpush1.msra.mxu0 %v2145
        %2504 = vmatprep.subr.mxu0 0.0
        %2505 = vmatpush1.msra.mxu0 0.0
        %2506 = vmatprep.subr.mxu0 0.0
        %2507 = vmatpush1.msra.mxu0 0.0
        %2508 = vmatprep.subr.mxu0 0.0
        %2509 = vmatpush1.msra.mxu0 0.0
        %2510 = vmatprep.subr.mxu0 0.0
        %2511 = vmatpush1.msra.mxu0 0.0
        %2512 = vmatprep.subr.mxu0 0.0
        %2513 = vmatpush1.msra.mxu0 0.0
        %2514 = vmatprep.subr.mxu0 0.0
        %2515 = vmatpush1.msra.mxu0 0.0
        %2516 = vmatprep.subr.mxu0 0.0
        %2517 = vmatpush1.msra.mxu0 0.0
        %2518 = vmatprep.subr.mxu0 0.0
        %2519 = vmatpush1.msra.mxu0 0.0
        %2520 = vmatprep.subr.mxu0 0.0
        %2521 = vmatpush1.msra.mxu0 0.0
        %2522 = vmatprep.subr.mxu0 0.0
        %2523 = vmatpush1.msra.mxu0 0.0
        %2524 = vmatprep.subr.mxu0 0.0
        %2525 = vmatpush1.msra.mxu0 0.0
        %2526 = vmatprep.subr.mxu0 0.0
        %2527 = vmatpush1.msra.mxu0 0.0
        %2528 = vmatprep.subr.mxu0 0.0
        %2529 = vmatpush1.msra.mxu0 0.0
        %2530 = vmatprep.subr.mxu0 0.0
        %2531 = vmatpush1.msra.mxu0 0.0
        %2532 = vmatprep.subr.mxu0 0.0
        %2533 = vmatpush1.msra.mxu0 0.0
        %2534 = vmatprep.subr.mxu0 0.0
        %2535 = vmatpush1.msra.mxu0 0.0
        %2536 = vmatprep.subr.mxu0 0.0
        %2537 = vmatpush1.msra.mxu0 0.0
        %2538 = vmatprep.subr.mxu0 0.0
        %2539 = vmatpush1.msra.mxu0 0.0
        %2540 = vmatprep.subr.mxu0 0.0
        %2541 = vmatpush1.msra.mxu0 0.0
        %2542 = vmatprep.subr.mxu0 0.0
        %2543 = vmatpush1.msra.mxu0 0.0
        %2544 = vmatprep.subr.mxu0 0.0
        %2545 = vmatpush1.msra.mxu0 0.0
        %2546 = vmatprep.subr.mxu0 0.0
        %2547 = vmatpush1.msra.mxu0 0.0
        %2548 = vmatprep.subr.mxu0 0.0
        %2549 = vmatpush1.msra.mxu0 0.0
        %2550 = vmatprep.subr.mxu0 0.0
        %2551 = vmatpush1.msra.mxu0 0.0
        %2552 = vmatprep.subr.mxu0 0.0
        %2553 = vmatpush1.msra.mxu0 0.0
        %2554 = vmatprep.subr.mxu0 0.0
        %2555 = vmatpush1.msra.mxu0 0.0
        %2556 = vmatprep.subr.mxu0 0.0
        %2557 = vmatpush1.msra.mxu0 0.0
        %2558 = vmatprep.subr.mxu0 0.0
        %2559 = vmatpush1.msra.mxu0 0.0
        %2560 = vmatprep.subr.mxu0 0.0
        %2561 = vmatpush1.msra.mxu0 0.0
        %2562 = vmatprep.subr.mxu0 0.0
        %2563 = vmatpush1.msra.mxu0 0.0
        %2564 = vmatprep.mubr.f32.mxu0 0.0
        %2565 = vmatmul.mubr.f32.gmra.mrb[0].mxu0 %v508
        %v2566 = vpop.f32.mrb[0].mxu0
        %v2567 = vadd.f32 0.0, %v2566
        %v2568 = vpop.f32.mrb[0].mxu0
        %v2569 = vadd.f32 0.0, %v2568
        %2570 = vdwg.mxu0
        %2571 = vmatprep.subr.mxu0 %v2067
        %2572 = vmatpush1.msra.mxu0 %v2066
        %2573 = vmatprep.subr.mxu0 %v2154
        %2574 = vmatpush1.msra.mxu0 %v2151
        %2575 = vmatprep.subr.mxu0 0.0
        %2576 = vmatpush1.msra.mxu0 0.0
        %2577 = vmatprep.subr.mxu0 0.0
        %2578 = vmatpush1.msra.mxu0 0.0
        %2579 = vmatprep.subr.mxu0 0.0
        %2580 = vmatpush1.msra.mxu0 0.0
        %2581 = vmatprep.subr.mxu0 0.0
        %2582 = vmatpush1.msra.mxu0 0.0
        %2583 = vmatprep.subr.mxu0 0.0
        %2584 = vmatpush1.msra.mxu0 0.0
        %2585 = vmatprep.subr.mxu0 0.0
        %2586 = vmatpush1.msra.mxu0 0.0
        %2587 = vmatprep.subr.mxu0 0.0
        %2588 = vmatpush1.msra.mxu0 0.0
        %2589 = vmatprep.subr.mxu0 0.0
        %2590 = vmatpush1.msra.mxu0 0.0
        %2591 = vmatprep.subr.mxu0 0.0
        %2592 = vmatpush1.msra.mxu0 0.0
        %2593 = vmatprep.subr.mxu0 0.0
        %2594 = vmatpush1.msra.mxu0 0.0
        %2595 = vmatprep.subr.mxu0 0.0
        %2596 = vmatpush1.msra.mxu0 0.0
        %2597 = vmatprep.subr.mxu0 0.0
        %2598 = vmatpush1.msra.mxu0 0.0
        %2599 = vmatprep.subr.mxu0 0.0
        %2600 = vmatpush1.msra.mxu0 0.0
        %2601 = vmatprep.subr.mxu0 0.0
        %2602 = vmatpush1.msra.mxu0 0.0
        %2603 = vmatprep.subr.mxu0 0.0
        %2604 = vmatpush1.msra.mxu0 0.0
        %2605 = vmatprep.subr.mxu0 0.0
        %2606 = vmatpush1.msra.mxu0 0.0
        %2607 = vmatprep.subr.mxu0 0.0
        %2608 = vmatpush1.msra.mxu0 0.0
        %2609 = vmatprep.subr.mxu0 0.0
        %2610 = vmatpush1.msra.mxu0 0.0
        %2611 = vmatprep.subr.mxu0 0.0
        %2612 = vmatpush1.msra.mxu0 0.0
        %2613 = vmatprep.subr.mxu0 0.0
        %2614 = vmatpush1.msra.mxu0 0.0
        %2615 = vmatprep.subr.mxu0 0.0
        %2616 = vmatpush1.msra.mxu0 0.0
        %2617 = vmatprep.subr.mxu0 0.0
        %2618 = vmatpush1.msra.mxu0 0.0
        %2619 = vmatprep.subr.mxu0 0.0
        %2620 = vmatpush1.msra.mxu0 0.0
        %2621 = vmatprep.subr.mxu0 0.0
        %2622 = vmatpush1.msra.mxu0 0.0
        %2623 = vmatprep.subr.mxu0 0.0
        %2624 = vmatpush1.msra.mxu0 0.0
        %2625 = vmatprep.subr.mxu0 0.0
        %2626 = vmatpush1.msra.mxu0 0.0
        %2627 = vmatprep.subr.mxu0 0.0
        %2628 = vmatpush1.msra.mxu0 0.0
        %2629 = vmatprep.subr.mxu0 0.0
        %2630 = vmatpush1.msra.mxu0 0.0
        %2631 = vmatprep.subr.mxu0 0.0
        %2632 = vmatpush1.msra.mxu0 0.0
        %2633 = vmatprep.subr.mxu0 0.0
        %2634 = vmatpush1.msra.mxu0 0.0
        %2635 = vmatprep.mubr.f32.mxu0 0.0
        %2636 = vmatmul.mubr.f32.gmra.mrb[0].mxu0 %v508
        %v2637 = vpop.f32.mrb[0].mxu0
        %v2638 = vadd.f32 0.0, %v2637
        %v2639 = vpop.f32.mrb[0].mxu0
        %v2640 = vadd.f32 0.0, %v2639
        %2641 = vdwg.mxu0
        %2642 = vmatprep.subr.mxu0 %v2069
        %2643 = vmatpush1.msra.mxu0 %v2068
        %2644 = vmatprep.subr.mxu0 %v2160
        %2645 = vmatpush1.msra.mxu0 %v2157
        %2646 = vmatprep.subr.mxu0 0.0
        %2647 = vmatpush1.msra.mxu0 0.0
        %2648 = vmatprep.subr.mxu0 0.0
        %2649 = vmatpush1.msra.mxu0 0.0
        %2650 = vmatprep.subr.mxu0 0.0
        %2651 = vmatpush1.msra.mxu0 0.0
        %2652 = vmatprep.subr.mxu0 0.0
        %2653 = vmatpush1.msra.mxu0 0.0
        %2654 = vmatprep.subr.mxu0 0.0
        %2655 = vmatpush1.msra.mxu0 0.0
        %2656 = vmatprep.subr.mxu0 0.0
        %2657 = vmatpush1.msra.mxu0 0.0
        %2658 = vmatprep.subr.mxu0 0.0
        %2659 = vmatpush1.msra.mxu0 0.0
        %2660 = vmatprep.subr.mxu0 0.0
        %2661 = vmatpush1.msra.mxu0 0.0
        %2662 = vmatprep.subr.mxu0 0.0
        %2663 = vmatpush1.msra.mxu0 0.0
        %2664 = vmatprep.subr.mxu0 0.0
        %2665 = vmatpush1.msra.mxu0 0.0
        %2666 = vmatprep.subr.mxu0 0.0
        %2667 = vmatpush1.msra.mxu0 0.0
        %2668 = vmatprep.subr.mxu0 0.0
        %2669 = vmatpush1.msra.mxu0 0.0
        %2670 = vmatprep.subr.mxu0 0.0
        %2671 = vmatpush1.msra.mxu0 0.0
        %2672 = vmatprep.subr.mxu0 0.0
        %2673 = vmatpush1.msra.mxu0 0.0
        %2674 = vmatprep.subr.mxu0 0.0
        %2675 = vmatpush1.msra.mxu0 0.0
        %2676 = vmatprep.subr.mxu0 0.0
        %2677 = vmatpush1.msra.mxu0 0.0
        %2678 = vmatprep.subr.mxu0 0.0
        %2679 = vmatpush1.msra.mxu0 0.0
        %2680 = vmatprep.subr.mxu0 0.0
        %2681 = vmatpush1.msra.mxu0 0.0
        %2682 = vmatprep.subr.mxu0 0.0
        %2683 = vmatpush1.msra.mxu0 0.0
        %2684 = vmatprep.subr.mxu0 0.0
        %2685 = vmatpush1.msra.mxu0 0.0
        %2686 = vmatprep.subr.mxu0 0.0
        %2687 = vmatpush1.msra.mxu0 0.0
        %2688 = vmatprep.subr.mxu0 0.0
        %2689 = vmatpush1.msra.mxu0 0.0
        %2690 = vmatprep.subr.mxu0 0.0
        %2691 = vmatpush1.msra.mxu0 0.0
        %2692 = vmatprep.subr.mxu0 0.0
        %2693 = vmatpush1.msra.mxu0 0.0
        %2694 = vmatprep.subr.mxu0 0.0
        %2695 = vmatpush1.msra.mxu0 0.0
        %2696 = vmatprep.subr.mxu0 0.0
        %2697 = vmatpush1.msra.mxu0 0.0
        %2698 = vmatprep.subr.mxu0 0.0
        %2699 = vmatpush1.msra.mxu0 0.0
        %2700 = vmatprep.subr.mxu0 0.0
        %2701 = vmatpush1.msra.mxu0 0.0
        %2702 = vmatprep.subr.mxu0 0.0
        %2703 = vmatpush1.msra.mxu0 0.0
        %2704 = vmatprep.subr.mxu0 0.0
        %2705 = vmatpush1.msra.mxu0 0.0
        %2706 = vmatprep.mubr.f32.mxu0 0.0
        %2707 = vmatmul.mubr.f32.gmra.mrb[0].mxu0 %v508
        %v2708 = vpop.f32.mrb[0].mxu0
        %v2709 = vadd.f32 0.0, %v2708
        %v2710 = vpop.f32.mrb[0].mxu0
        %v2711 = vadd.f32 0.0, %v2710
        %2712 = vdwg.mxu0
        %2713 = vmatprep.subr.mxu0 %v2071
        %2714 = vmatpush1.msra.mxu0 %v2070
        %2715 = vmatprep.subr.mxu0 %v2166
        %2716 = vmatpush1.msra.mxu0 %v2163
        %2717 = vmatprep.subr.mxu0 0.0
        %2718 = vmatpush1.msra.mxu0 0.0
        %2719 = vmatprep.subr.mxu0 0.0
        %2720 = vmatpush1.msra.mxu0 0.0
        %2721 = vmatprep.subr.mxu0 0.0
        %2722 = vmatpush1.msra.mxu0 0.0
        %2723 = vmatprep.subr.mxu0 0.0
        %2724 = vmatpush1.msra.mxu0 0.0
        %2725 = vmatprep.subr.mxu0 0.0
        %2726 = vmatpush1.msra.mxu0 0.0
        %2727 = vmatprep.subr.mxu0 0.0
        %2728 = vmatpush1.msra.mxu0 0.0
        %2729 = vmatprep.subr.mxu0 0.0
        %2730 = vmatpush1.msra.mxu0 0.0
        %2731 = vmatprep.subr.mxu0 0.0
        %2732 = vmatpush1.msra.mxu0 0.0
        %2733 = vmatprep.subr.mxu0 0.0
        %2734 = vmatpush1.msra.mxu0 0.0
        %2735 = vmatprep.subr.mxu0 0.0
        %2736 = vmatpush1.msra.mxu0 0.0
        %2737 = vmatprep.subr.mxu0 0.0
        %2738 = vmatpush1.msra.mxu0 0.0
        %2739 = vmatprep.subr.mxu0 0.0
        %2740 = vmatpush1.msra.mxu0 0.0
        %2741 = vmatprep.subr.mxu0 0.0
        %2742 = vmatpush1.msra.mxu0 0.0
        %2743 = vmatprep.subr.mxu0 0.0
        %2744 = vmatpush1.msra.mxu0 0.0
        %2745 = vmatprep.subr.mxu0 0.0
        %2746 = vmatpush1.msra.mxu0 0.0
        %2747 = vmatprep.subr.mxu0 0.0
        %2748 = vmatpush1.msra.mxu0 0.0
        %2749 = vmatprep.subr.mxu0 0.0
        %2750 = vmatpush1.msra.mxu0 0.0
        %2751 = vmatprep.subr.mxu0 0.0
        %2752 = vmatpush1.msra.mxu0 0.0
        %2753 = vmatprep.subr.mxu0 0.0
        %2754 = vmatpush1.msra.mxu0 0.0
        %2755 = vmatprep.subr.mxu0 0.0
        %2756 = vmatpush1.msra.mxu0 0.0
        %2757 = vmatprep.subr.mxu0 0.0
        %2758 = vmatpush1.msra.mxu0 0.0
        %2759 = vmatprep.subr.mxu0 0.0
        %2760 = vmatpush1.msra.mxu0 0.0
        %2761 = vmatprep.subr.mxu0 0.0
        %2762 = vmatpush1.msra.mxu0 0.0
        %2763 = vmatprep.subr.mxu0 0.0
        %2764 = vmatpush1.msra.mxu0 0.0
        %2765 = vmatprep.subr.mxu0 0.0
        %2766 = vmatpush1.msra.mxu0 0.0
        %2767 = vmatprep.subr.mxu0 0.0
        %2768 = vmatpush1.msra.mxu0 0.0
        %2769 = vmatprep.subr.mxu0 0.0
        %2770 = vmatpush1.msra.mxu0 0.0
        %2771 = vmatprep.subr.mxu0 0.0
        %2772 = vmatpush1.msra.mxu0 0.0
        %2773 = vmatprep.subr.mxu0 0.0
        %2774 = vmatpush1.msra.mxu0 0.0
        %2775 = vmatprep.subr.mxu0 0.0
        %2776 = vmatpush1.msra.mxu0 0.0
        %2777 = vmatprep.mubr.f32.mxu0 0.0
        %2778 = vmatmul.mubr.f32.gmra.mrb[0].mxu0 %v508
        %v2779 = vpop.f32.mrb[0].mxu0
        %v2780 = vadd.f32 0.0, %v2779
        %v2781 = vpop.f32.mrb[0].mxu0
        %v2782 = vadd.f32 0.0, %v2781
        %2783 = vdwg.mxu0
        %2784 = vmatprep.subr.mxu0 %v2073
        %2785 = vmatpush1.msra.mxu0 %v2072
        %2786 = vmatprep.subr.mxu0 %v2172
        %2787 = vmatpush1.msra.mxu0 %v2169
        %2788 = vmatprep.subr.mxu0 0.0
        %2789 = vmatpush1.msra.mxu0 0.0
        %2790 = vmatprep.subr.mxu0 0.0
        %2791 = vmatpush1.msra.mxu0 0.0
        %2792 = vmatprep.subr.mxu0 0.0
        %2793 = vmatpush1.msra.mxu0 0.0
        %2794 = vmatprep.subr.mxu0 0.0
        %2795 = vmatpush1.msra.mxu0 0.0
        %2796 = vmatprep.subr.mxu0 0.0
        %2797 = vmatpush1.msra.mxu0 0.0
        %2798 = vmatprep.subr.mxu0 0.0
        %2799 = vmatpush1.msra.mxu0 0.0
        %2800 = vmatprep.subr.mxu0 0.0
        %2801 = vmatpush1.msra.mxu0 0.0
        %2802 = vmatprep.subr.mxu0 0.0
        %2803 = vmatpush1.msra.mxu0 0.0
        %2804 = vmatprep.subr.mxu0 0.0
        %2805 = vmatpush1.msra.mxu0 0.0
        %2806 = vmatprep.subr.mxu0 0.0
        %2807 = vmatpush1.msra.mxu0 0.0
        %2808 = vmatprep.subr.mxu0 0.0
        %2809 = vmatpush1.msra.mxu0 0.0
        %2810 = vmatprep.subr.mxu0 0.0
        %2811 = vmatpush1.msra.mxu0 0.0
        %2812 = vmatprep.subr.mxu0 0.0
        %2813 = vmatpush1.msra.mxu0 0.0
        %2814 = vmatprep.subr.mxu0 0.0
        %2815 = vmatpush1.msra.mxu0 0.0
        %2816 = vmatprep.subr.mxu0 0.0
        %2817 = vmatpush1.msra.mxu0 0.0
        %2818 = vmatprep.subr.mxu0 0.0
        %2819 = vmatpush1.msra.mxu0 0.0
        %2820 = vmatprep.subr.mxu0 0.0
        %2821 = vmatpush1.msra.mxu0 0.0
        %2822 = vmatprep.subr.mxu0 0.0
        %2823 = vmatpush1.msra.mxu0 0.0
        %2824 = vmatprep.subr.mxu0 0.0
        %2825 = vmatpush1.msra.mxu0 0.0
        %2826 = vmatprep.subr.mxu0 0.0
        %2827 = vmatpush1.msra.mxu0 0.0
        %2828 = vmatprep.subr.mxu0 0.0
        %2829 = vmatpush1.msra.mxu0 0.0
        %2830 = vmatprep.subr.mxu0 0.0
        %2831 = vmatpush1.msra.mxu0 0.0
        %2832 = vmatprep.subr.mxu0 0.0
        %2833 = vmatpush1.msra.mxu0 0.0
        %2834 = vmatprep.subr.mxu0 0.0
        %2835 = vmatpush1.msra.mxu0 0.0
        %2836 = vmatprep.subr.mxu0 0.0
        %2837 = vmatpush1.msra.mxu0 0.0
        %2838 = vmatprep.subr.mxu0 0.0
        %2839 = vmatpush1.msra.mxu0 0.0
        %2840 = vmatprep.subr.mxu0 0.0
        %2841 = vmatpush1.msra.mxu0 0.0
        %2842 = vmatprep.subr.mxu0 0.0
        %2843 = vmatpush1.msra.mxu0 0.0
        %2844 = vmatprep.subr.mxu0 0.0
        %2845 = vmatpush1.msra.mxu0 0.0
        %2846 = vmatprep.subr.mxu0 0.0
        %2847 = vmatpush1.msra.mxu0 0.0
        %2848 = vmatprep.mubr.f32.mxu0 0.0
        %2849 = vmatmul.mubr.f32.gmra.mrb[0].mxu0 %v508
        %v2850 = vpop.f32.mrb[0].mxu0
        %v2851 = vadd.f32 0.0, %v2850
        %v2852 = vpop.f32.mrb[0].mxu0
        %v2853 = vadd.f32 0.0, %v2852
        %2854 = vdwg.mxu0
        %2855 = vmatprep.subr.mxu0 %v2075
        %2856 = vmatpush1.msra.mxu0 %v2074
        %2857 = vmatprep.subr.mxu0 %v2178
        %2858 = vmatpush1.msra.mxu0 %v2175
        %2859 = vmatprep.subr.mxu0 0.0
        %2860 = vmatpush1.msra.mxu0 0.0
        %2861 = vmatprep.subr.mxu0 0.0
        %2862 = vmatpush1.msra.mxu0 0.0
        %2863 = vmatprep.subr.mxu0 0.0
        %2864 = vmatpush1.msra.mxu0 0.0
        %2865 = vmatprep.subr.mxu0 0.0
        %2866 = vmatpush1.msra.mxu0 0.0
        %2867 = vmatprep.subr.mxu0 0.0
        %2868 = vmatpush1.msra.mxu0 0.0
        %2869 = vmatprep.subr.mxu0 0.0
        %2870 = vmatpush1.msra.mxu0 0.0
        %2871 = vmatprep.subr.mxu0 0.0
        %2872 = vmatpush1.msra.mxu0 0.0
        %2873 = vmatprep.subr.mxu0 0.0
        %2874 = vmatpush1.msra.mxu0 0.0
        %2875 = vmatprep.subr.mxu0 0.0
        %2876 = vmatpush1.msra.mxu0 0.0
        %2877 = vmatprep.subr.mxu0 0.0
        %2878 = vmatpush1.msra.mxu0 0.0
        %2879 = vmatprep.subr.mxu0 0.0
        %2880 = vmatpush1.msra.mxu0 0.0
        %2881 = vmatprep.subr.mxu0 0.0
        %2882 = vmatpush1.msra.mxu0 0.0
        %2883 = vmatprep.subr.mxu0 0.0
        %2884 = vmatpush1.msra.mxu0 0.0
        %2885 = vmatprep.subr.mxu0 0.0
        %2886 = vmatpush1.msra.mxu0 0.0
        %2887 = vmatprep.subr.mxu0 0.0
        %2888 = vmatpush1.msra.mxu0 0.0
        %2889 = vmatprep.subr.mxu0 0.0
        %2890 = vmatpush1.msra.mxu0 0.0
        %2891 = vmatprep.subr.mxu0 0.0
        %2892 = vmatpush1.msra.mxu0 0.0
        %2893 = vmatprep.subr.mxu0 0.0
        %2894 = vmatpush1.msra.mxu0 0.0
        %2895 = vmatprep.subr.mxu0 0.0
        %2896 = vmatpush1.msra.mxu0 0.0
        %2897 = vmatprep.subr.mxu0 0.0
        %2898 = vmatpush1.msra.mxu0 0.0
        %2899 = vmatprep.subr.mxu0 0.0
        %2900 = vmatpush1.msra.mxu0 0.0
        %2901 = vmatprep.subr.mxu0 0.0
        %2902 = vmatpush1.msra.mxu0 0.0
        %2903 = vmatprep.subr.mxu0 0.0
        %2904 = vmatpush1.msra.mxu0 0.0
        %2905 = vmatprep.subr.mxu0 0.0
        %2906 = vmatpush1.msra.mxu0 0.0
        %2907 = vmatprep.subr.mxu0 0.0
        %2908 = vmatpush1.msra.mxu0 0.0
        %2909 = vmatprep.subr.mxu0 0.0
        %2910 = vmatpush1.msra.mxu0 0.0
        %2911 = vmatprep.subr.mxu0 0.0
        %2912 = vmatpush1.msra.mxu0 0.0
        %2913 = vmatprep.subr.mxu0 0.0
        %2914 = vmatpush1.msra.mxu0 0.0
        %2915 = vmatprep.subr.mxu0 0.0
        %2916 = vmatpush1.msra.mxu0 0.0
        %2917 = vmatprep.subr.mxu0 0.0
        %2918 = vmatpush1.msra.mxu0 0.0
        %2919 = vmatprep.mubr.f32.mxu0 0.0
        %2920 = vmatmul.mubr.f32.gmra.mrb[0].mxu0 %v508
        %v2921 = vpop.f32.mrb[0].mxu0
        %v2922 = vadd.f32 0.0, %v2921
        %v2923 = vpop.f32.mrb[0].mxu0
        %v2924 = vadd.f32 0.0, %v2923
        %2925 = vdwg.mxu0
        %2926 = vmatprep.subr.mxu0 %v2077
        %2927 = vmatpush1.msra.mxu0 %v2076
        %2928 = vmatprep.subr.mxu0 %v2184
        %2929 = vmatpush1.msra.mxu0 %v2181
        %2930 = vmatprep.subr.mxu0 0.0
        %2931 = vmatpush1.msra.mxu0 0.0
        %2932 = vmatprep.subr.mxu0 0.0
        %2933 = vmatpush1.msra.mxu0 0.0
        %2934 = vmatprep.subr.mxu0 0.0
        %2935 = vmatpush1.msra.mxu0 0.0
        %2936 = vmatprep.subr.mxu0 0.0
        %2937 = vmatpush1.msra.mxu0 0.0
        %2938 = vmatprep.subr.mxu0 0.0
        %2939 = vmatpush1.msra.mxu0 0.0
        %2940 = vmatprep.subr.mxu0 0.0
        %2941 = vmatpush1.msra.mxu0 0.0
        %2942 = vmatprep.subr.mxu0 0.0
        %2943 = vmatpush1.msra.mxu0 0.0
        %2944 = vmatprep.subr.mxu0 0.0
        %2945 = vmatpush1.msra.mxu0 0.0
        %2946 = vmatprep.subr.mxu0 0.0
        %2947 = vmatpush1.msra.mxu0 0.0
        %2948 = vmatprep.subr.mxu0 0.0
        %2949 = vmatpush1.msra.mxu0 0.0
        %2950 = vmatprep.subr.mxu0 0.0
        %2951 = vmatpush1.msra.mxu0 0.0
        %2952 = vmatprep.subr.mxu0 0.0
        %2953 = vmatpush1.msra.mxu0 0.0
        %2954 = vmatprep.subr.mxu0 0.0
        %2955 = vmatpush1.msra.mxu0 0.0
        %2956 = vmatprep.subr.mxu0 0.0
        %2957 = vmatpush1.msra.mxu0 0.0
        %2958 = vmatprep.subr.mxu0 0.0
        %2959 = vmatpush1.msra.mxu0 0.0
        %2960 = vmatprep.subr.mxu0 0.0
        %2961 = vmatpush1.msra.mxu0 0.0
        %2962 = vmatprep.subr.mxu0 0.0
        %2963 = vmatpush1.msra.mxu0 0.0
        %2964 = vmatprep.subr.mxu0 0.0
        %2965 = vmatpush1.msra.mxu0 0.0
        %2966 = vmatprep.subr.mxu0 0.0
        %2967 = vmatpush1.msra.mxu0 0.0
        %2968 = vmatprep.subr.mxu0 0.0
        %2969 = vmatpush1.msra.mxu0 0.0
        %2970 = vmatprep.subr.mxu0 0.0
        %2971 = vmatpush1.msra.mxu0 0.0
        %2972 = vmatprep.subr.mxu0 0.0
        %2973 = vmatpush1.msra.mxu0 0.0
        %2974 = vmatprep.subr.mxu0 0.0
        %2975 = vmatpush1.msra.mxu0 0.0
        %2976 = vmatprep.subr.mxu0 0.0
        %2977 = vmatpush1.msra.mxu0 0.0
        %2978 = vmatprep.subr.mxu0 0.0
        %2979 = vmatpush1.msra.mxu0 0.0
        %2980 = vmatprep.subr.mxu0 0.0
        %2981 = vmatpush1.msra.mxu0 0.0
        %2982 = vmatprep.subr.mxu0 0.0
        %2983 = vmatpush1.msra.mxu0 0.0
        %2984 = vmatprep.subr.mxu0 0.0
        %2985 = vmatpush1.msra.mxu0 0.0
        %2986 = vmatprep.subr.mxu0 0.0
        %2987 = vmatpush1.msra.mxu0 0.0
        %2988 = vmatprep.subr.mxu0 0.0
        %2989 = vmatpush1.msra.mxu0 0.0
        %2990 = vmatprep.mubr.f32.mxu0 0.0
        %2991 = vmatmul.mubr.f32.gmra.mrb[0].mxu0 %v508
        %v2992 = vpop.f32.mrb[0].mxu0
        %v2993 = vadd.f32 0.0, %v2992
        %v2994 = vpop.f32.mrb[0].mxu0
        %v2995 = vadd.f32 0.0, %v2994
        %2996 = vdwg.mxu0
        %2997 = vmatprep.subr.mxu0 %v2079
        %2998 = vmatpush1.msra.mxu0 %v2078
        %2999 = vmatprep.subr.mxu0 %v2190
        %3000 = vmatpush1.msra.mxu0 %v2187
        %3001 = vmatprep.subr.mxu0 0.0
        %3002 = vmatpush1.msra.mxu0 0.0
        %3003 = vmatprep.subr.mxu0 0.0
        %3004 = vmatpush1.msra.mxu0 0.0
        %3005 = vmatprep.subr.mxu0 0.0
        %3006 = vmatpush1.msra.mxu0 0.0
        %3007 = vmatprep.subr.mxu0 0.0
        %3008 = vmatpush1.msra.mxu0 0.0
        %3009 = vmatprep.subr.mxu0 0.0
        %3010 = vmatpush1.msra.mxu0 0.0
        %3011 = vmatprep.subr.mxu0 0.0
        %3012 = vmatpush1.msra.mxu0 0.0
        %3013 = vmatprep.subr.mxu0 0.0
        %3014 = vmatpush1.msra.mxu0 0.0
        %3015 = vmatprep.subr.mxu0 0.0
        %3016 = vmatpush1.msra.mxu0 0.0
        %3017 = vmatprep.subr.mxu0 0.0
        %3018 = vmatpush1.msra.mxu0 0.0
        %3019 = vmatprep.subr.mxu0 0.0
        %3020 = vmatpush1.msra.mxu0 0.0
        %3021 = vmatprep.subr.mxu0 0.0
        %3022 = vmatpush1.msra.mxu0 0.0
        %3023 = vmatprep.subr.mxu0 0.0
        %3024 = vmatpush1.msra.mxu0 0.0
        %3025 = vmatprep.subr.mxu0 0.0
        %3026 = vmatpush1.msra.mxu0 0.0
        %3027 = vmatprep.subr.mxu0 0.0
        %3028 = vmatpush1.msra.mxu0 0.0
        %3029 = vmatprep.subr.mxu0 0.0
        %3030 = vmatpush1.msra.mxu0 0.0
        %3031 = vmatprep.subr.mxu0 0.0
        %3032 = vmatpush1.msra.mxu0 0.0
        %3033 = vmatprep.subr.mxu0 0.0
        %3034 = vmatpush1.msra.mxu0 0.0
        %3035 = vmatprep.subr.mxu0 0.0
        %3036 = vmatpush1.msra.mxu0 0.0
        %3037 = vmatprep.subr.mxu0 0.0
        %3038 = vmatpush1.msra.mxu0 0.0
        %3039 = vmatprep.subr.mxu0 0.0
        %3040 = vmatpush1.msra.mxu0 0.0
        %3041 = vmatprep.subr.mxu0 0.0
        %3042 = vmatpush1.msra.mxu0 0.0
        %3043 = vmatprep.subr.mxu0 0.0
        %3044 = vmatpush1.msra.mxu0 0.0
        %3045 = vmatprep.subr.mxu0 0.0
        %3046 = vmatpush1.msra.mxu0 0.0
        %3047 = vmatprep.subr.mxu0 0.0
        %3048 = vmatpush1.msra.mxu0 0.0
        %3049 = vmatprep.subr.mxu0 0.0
        %3050 = vmatpush1.msra.mxu0 0.0
        %3051 = vmatprep.subr.mxu0 0.0
        %3052 = vmatpush1.msra.mxu0 0.0
        %3053 = vmatprep.subr.mxu0 0.0
        %3054 = vmatpush1.msra.mxu0 0.0
        %3055 = vmatprep.subr.mxu0 0.0
        %3056 = vmatpush1.msra.mxu0 0.0
        %3057 = vmatprep.subr.mxu0 0.0
        %3058 = vmatpush1.msra.mxu0 0.0
        %3059 = vmatprep.subr.mxu0 0.0
        %3060 = vmatpush1.msra.mxu0 0.0
        %3061 = vmatprep.mubr.f32.mxu0 0.0
        %3062 = vmatmul.mubr.f32.gmra.mrb[0].mxu0 %v508
        %v3063 = vpop.f32.mrb[0].mxu0
        %v3064 = vadd.f32 0.0, %v3063
        %v3065 = vpop.f32.mrb[0].mxu0
        %v3066 = vadd.f32 0.0, %v3065
        %3067 = vdwg.mxu0
        %3068 = vmatprep.subr.mxu0 %v2081
        %3069 = vmatpush1.msra.mxu0 %v2080
        %3070 = vmatprep.subr.mxu0 %v2196
        %3071 = vmatpush1.msra.mxu0 %v2193
        %3072 = vmatprep.subr.mxu0 0.0
        %3073 = vmatpush1.msra.mxu0 0.0
        %3074 = vmatprep.subr.mxu0 0.0
        %3075 = vmatpush1.msra.mxu0 0.0
        %3076 = vmatprep.subr.mxu0 0.0
        %3077 = vmatpush1.msra.mxu0 0.0
        %3078 = vmatprep.subr.mxu0 0.0
        %3079 = vmatpush1.msra.mxu0 0.0
        %3080 = vmatprep.subr.mxu0 0.0
        %3081 = vmatpush1.msra.mxu0 0.0
        %3082 = vmatprep.subr.mxu0 0.0
        %3083 = vmatpush1.msra.mxu0 0.0
        %3084 = vmatprep.subr.mxu0 0.0
        %3085 = vmatpush1.msra.mxu0 0.0
        %3086 = vmatprep.subr.mxu0 0.0
        %3087 = vmatpush1.msra.mxu0 0.0
        %3088 = vmatprep.subr.mxu0 0.0
        %3089 = vmatpush1.msra.mxu0 0.0
        %3090 = vmatprep.subr.mxu0 0.0
        %3091 = vmatpush1.msra.mxu0 0.0
        %3092 = vmatprep.subr.mxu0 0.0
        %3093 = vmatpush1.msra.mxu0 0.0
        %3094 = vmatprep.subr.mxu0 0.0
        %3095 = vmatpush1.msra.mxu0 0.0
        %3096 = vmatprep.subr.mxu0 0.0
        %3097 = vmatpush1.msra.mxu0 0.0
        %3098 = vmatprep.subr.mxu0 0.0
        %3099 = vmatpush1.msra.mxu0 0.0
        %3100 = vmatprep.subr.mxu0 0.0
        %3101 = vmatpush1.msra.mxu0 0.0
        %3102 = vmatprep.subr.mxu0 0.0
        %3103 = vmatpush1.msra.mxu0 0.0
        %3104 = vmatprep.subr.mxu0 0.0
        %3105 = vmatpush1.msra.mxu0 0.0
        %3106 = vmatprep.subr.mxu0 0.0
        %3107 = vmatpush1.msra.mxu0 0.0
        %3108 = vmatprep.subr.mxu0 0.0
        %3109 = vmatpush1.msra.mxu0 0.0
        %3110 = vmatprep.subr.mxu0 0.0
        %3111 = vmatpush1.msra.mxu0 0.0
        %3112 = vmatprep.subr.mxu0 0.0
        %3113 = vmatpush1.msra.mxu0 0.0
        %3114 = vmatprep.subr.mxu0 0.0
        %3115 = vmatpush1.msra.mxu0 0.0
        %3116 = vmatprep.subr.mxu0 0.0
        %3117 = vmatpush1.msra.mxu0 0.0
        %3118 = vmatprep.subr.mxu0 0.0
        %3119 = vmatpush1.msra.mxu0 0.0
        %3120 = vmatprep.subr.mxu0 0.0
        %3121 = vmatpush1.msra.mxu0 0.0
        %3122 = vmatprep.subr.mxu0 0.0
        %3123 = vmatpush1.msra.mxu0 0.0
        %3124 = vmatprep.subr.mxu0 0.0
        %3125 = vmatpush1.msra.mxu0 0.0
        %3126 = vmatprep.subr.mxu0 0.0
        %3127 = vmatpush1.msra.mxu0 0.0
        %3128 = vmatprep.subr.mxu0 0.0
        %3129 = vmatpush1.msra.mxu0 0.0
        %3130 = vmatprep.subr.mxu0 0.0
        %3131 = vmatpush1.msra.mxu0 0.0
        %3132 = vmatprep.mubr.f32.mxu0 0.0
        %3133 = vmatmul.mubr.f32.gmra.mrb[0].mxu0 %v508
        %v3134 = vpop.f32.mrb[0].mxu0
        %v3135 = vadd.f32 0.0, %v3134
        %v3136 = vpop.f32.mrb[0].mxu0
        %v3137 = vadd.f32 0.0, %v3136
        %3138 = vdwg.mxu0
        %3139 = vmatprep.subr.mxu0 %v2083
        %3140 = vmatpush1.msra.mxu0 %v2082
        %3141 = vmatprep.subr.mxu0 %v2202
        %3142 = vmatpush1.msra.mxu0 %v2199
        %3143 = vmatprep.subr.mxu0 0.0
        %3144 = vmatpush1.msra.mxu0 0.0
        %3145 = vmatprep.subr.mxu0 0.0
        %3146 = vmatpush1.msra.mxu0 0.0
        %3147 = vmatprep.subr.mxu0 0.0
        %3148 = vmatpush1.msra.mxu0 0.0
        %3149 = vmatprep.subr.mxu0 0.0
        %3150 = vmatpush1.msra.mxu0 0.0
        %3151 = vmatprep.subr.mxu0 0.0
        %3152 = vmatpush1.msra.mxu0 0.0
        %3153 = vmatprep.subr.mxu0 0.0
        %3154 = vmatpush1.msra.mxu0 0.0
        %3155 = vmatprep.subr.mxu0 0.0
        %3156 = vmatpush1.msra.mxu0 0.0
        %3157 = vmatprep.subr.mxu0 0.0
        %3158 = vmatpush1.msra.mxu0 0.0
        %3159 = vmatprep.subr.mxu0 0.0
        %3160 = vmatpush1.msra.mxu0 0.0
        %3161 = vmatprep.subr.mxu0 0.0
        %3162 = vmatpush1.msra.mxu0 0.0
        %3163 = vmatprep.subr.mxu0 0.0
        %3164 = vmatpush1.msra.mxu0 0.0
        %3165 = vmatprep.subr.mxu0 0.0
        %3166 = vmatpush1.msra.mxu0 0.0
        %3167 = vmatprep.subr.mxu0 0.0
        %3168 = vmatpush1.msra.mxu0 0.0
        %3169 = vmatprep.subr.mxu0 0.0
        %3170 = vmatpush1.msra.mxu0 0.0
        %3171 = vmatprep.subr.mxu0 0.0
        %3172 = vmatpush1.msra.mxu0 0.0
        %3173 = vmatprep.subr.mxu0 0.0
        %3174 = vmatpush1.msra.mxu0 0.0
        %3175 = vmatprep.subr.mxu0 0.0
        %3176 = vmatpush1.msra.mxu0 0.0
        %3177 = vmatprep.subr.mxu0 0.0
        %3178 = vmatpush1.msra.mxu0 0.0
        %3179 = vmatprep.subr.mxu0 0.0
        %3180 = vmatpush1.msra.mxu0 0.0
        %3181 = vmatprep.subr.mxu0 0.0
        %3182 = vmatpush1.msra.mxu0 0.0
        %3183 = vmatprep.subr.mxu0 0.0
        %3184 = vmatpush1.msra.mxu0 0.0
        %3185 = vmatprep.subr.mxu0 0.0
        %3186 = vmatpush1.msra.mxu0 0.0
        %3187 = vmatprep.subr.mxu0 0.0
        %3188 = vmatpush1.msra.mxu0 0.0
        %3189 = vmatprep.subr.mxu0 0.0
        %3190 = vmatpush1.msra.mxu0 0.0
        %3191 = vmatprep.subr.mxu0 0.0
        %3192 = vmatpush1.msra.mxu0 0.0
        %3193 = vmatprep.subr.mxu0 0.0
        %3194 = vmatpush1.msra.mxu0 0.0
        %3195 = vmatprep.subr.mxu0 0.0
        %3196 = vmatpush1.msra.mxu0 0.0
        %3197 = vmatprep.subr.mxu0 0.0
        %3198 = vmatpush1.msra.mxu0 0.0
        %3199 = vmatprep.subr.mxu0 0.0
        %3200 = vmatpush1.msra.mxu0 0.0
        %3201 = vmatprep.subr.mxu0 0.0
        %3202 = vmatpush1.msra.mxu0 0.0
        %3203 = vmatprep.mubr.f32.mxu0 0.0
        %3204 = vmatmul.mubr.f32.gmra.mrb[0].mxu0 %v508
        %v3205 = vpop.f32.mrb[0].mxu0
        %v3206 = vadd.f32 0.0, %v3205
        %v3207 = vpop.f32.mrb[0].mxu0
        %v3208 = vadd.f32 0.0, %v3207
        %3209 = vdwg.mxu0
        %3210 = vmatprep.subr.mxu0 %v2085
        %3211 = vmatpush1.msra.mxu0 %v2084
        %3212 = vmatprep.subr.mxu0 %v2208
        %3213 = vmatpush1.msra.mxu0 %v2205
        %3214 = vmatprep.subr.mxu0 0.0
        %3215 = vmatpush1.msra.mxu0 0.0
        %3216 = vmatprep.subr.mxu0 0.0
        %3217 = vmatpush1.msra.mxu0 0.0
        %3218 = vmatprep.subr.mxu0 0.0
        %3219 = vmatpush1.msra.mxu0 0.0
        %3220 = vmatprep.subr.mxu0 0.0
        %3221 = vmatpush1.msra.mxu0 0.0
        %3222 = vmatprep.subr.mxu0 0.0
        %3223 = vmatpush1.msra.mxu0 0.0
        %3224 = vmatprep.subr.mxu0 0.0
        %3225 = vmatpush1.msra.mxu0 0.0
        %3226 = vmatprep.subr.mxu0 0.0
        %3227 = vmatpush1.msra.mxu0 0.0
        %3228 = vmatprep.subr.mxu0 0.0
        %3229 = vmatpush1.msra.mxu0 0.0
        %3230 = vmatprep.subr.mxu0 0.0
        %3231 = vmatpush1.msra.mxu0 0.0
        %3232 = vmatprep.subr.mxu0 0.0
        %3233 = vmatpush1.msra.mxu0 0.0
        %3234 = vmatprep.subr.mxu0 0.0
        %3235 = vmatpush1.msra.mxu0 0.0
        %3236 = vmatprep.subr.mxu0 0.0
        %3237 = vmatpush1.msra.mxu0 0.0
        %3238 = vmatprep.subr.mxu0 0.0
        %3239 = vmatpush1.msra.mxu0 0.0
        %3240 = vmatprep.subr.mxu0 0.0
        %3241 = vmatpush1.msra.mxu0 0.0
        %3242 = vmatprep.subr.mxu0 0.0
        %3243 = vmatpush1.msra.mxu0 0.0
        %3244 = vmatprep.subr.mxu0 0.0
        %3245 = vmatpush1.msra.mxu0 0.0
        %3246 = vmatprep.subr.mxu0 0.0
        %3247 = vmatpush1.msra.mxu0 0.0
        %3248 = vmatprep.subr.mxu0 0.0
        %3249 = vmatpush1.msra.mxu0 0.0
        %3250 = vmatprep.subr.mxu0 0.0
        %3251 = vmatpush1.msra.mxu0 0.0
        %3252 = vmatprep.subr.mxu0 0.0
        %3253 = vmatpush1.msra.mxu0 0.0
        %3254 = vmatprep.subr.mxu0 0.0
        %3255 = vmatpush1.msra.mxu0 0.0
        %3256 = vmatprep.subr.mxu0 0.0
        %3257 = vmatpush1.msra.mxu0 0.0
        %3258 = vmatprep.subr.mxu0 0.0
        %3259 = vmatpush1.msra.mxu0 0.0
        %3260 = vmatprep.subr.mxu0 0.0
        %3261 = vmatpush1.msra.mxu0 0.0
        %3262 = vmatprep.subr.mxu0 0.0
        %3263 = vmatpush1.msra.mxu0 0.0
        %3264 = vmatprep.subr.mxu0 0.0
        %3265 = vmatpush1.msra.mxu0 0.0
        %3266 = vmatprep.subr.mxu0 0.0
        %3267 = vmatpush1.msra.mxu0 0.0
        %3268 = vmatprep.subr.mxu0 0.0
        %3269 = vmatpush1.msra.mxu0 0.0
        %3270 = vmatprep.subr.mxu0 0.0
        %3271 = vmatpush1.msra.mxu0 0.0
        %3272 = vmatprep.subr.mxu0 0.0
        %3273 = vmatpush1.msra.mxu0 0.0
        %3274 = vmatprep.mubr.f32.mxu0 0.0
        %3275 = vmatmul.mubr.f32.gmra.mrb[0].mxu0 %v508
        %v3276 = vpop.f32.mrb[0].mxu0
        %v3277 = vadd.f32 0.0, %v3276
        %v3278 = vpop.f32.mrb[0].mxu0
        %v3279 = vadd.f32 0.0, %v3278
        %3280 = vdwg.mxu0
        %3281 = vmatprep.subr.mxu0 %v2087
        %3282 = vmatpush1.msra.mxu0 %v2086
        %3283 = vmatprep.subr.mxu0 %v2214
        %3284 = vmatpush1.msra.mxu0 %v2211
        %3285 = vmatprep.subr.mxu0 0.0
        %3286 = vmatpush1.msra.mxu0 0.0
        %3287 = vmatprep.subr.mxu0 0.0
        %3288 = vmatpush1.msra.mxu0 0.0
        %3289 = vmatprep.subr.mxu0 0.0
        %3290 = vmatpush1.msra.mxu0 0.0
        %3291 = vmatprep.subr.mxu0 0.0
        %3292 = vmatpush1.msra.mxu0 0.0
        %3293 = vmatprep.subr.mxu0 0.0
        %3294 = vmatpush1.msra.mxu0 0.0
        %3295 = vmatprep.subr.mxu0 0.0
        %3296 = vmatpush1.msra.mxu0 0.0
        %3297 = vmatprep.subr.mxu0 0.0
        %3298 = vmatpush1.msra.mxu0 0.0
        %3299 = vmatprep.subr.mxu0 0.0
        %3300 = vmatpush1.msra.mxu0 0.0
        %3301 = vmatprep.subr.mxu0 0.0
        %3302 = vmatpush1.msra.mxu0 0.0
        %3303 = vmatprep.subr.mxu0 0.0
        %3304 = vmatpush1.msra.mxu0 0.0
        %3305 = vmatprep.subr.mxu0 0.0
        %3306 = vmatpush1.msra.mxu0 0.0
        %3307 = vmatprep.subr.mxu0 0.0
        %3308 = vmatpush1.msra.mxu0 0.0
        %3309 = vmatprep.subr.mxu0 0.0
        %3310 = vmatpush1.msra.mxu0 0.0
        %3311 = vmatprep.subr.mxu0 0.0
        %3312 = vmatpush1.msra.mxu0 0.0
        %3313 = vmatprep.subr.mxu0 0.0
        %3314 = vmatpush1.msra.mxu0 0.0
        %3315 = vmatprep.subr.mxu0 0.0
        %3316 = vmatpush1.msra.mxu0 0.0
        %3317 = vmatprep.subr.mxu0 0.0
        %3318 = vmatpush1.msra.mxu0 0.0
        %3319 = vmatprep.subr.mxu0 0.0
        %3320 = vmatpush1.msra.mxu0 0.0
        %3321 = vmatprep.subr.mxu0 0.0
        %3322 = vmatpush1.msra.mxu0 0.0
        %3323 = vmatprep.subr.mxu0 0.0
        %3324 = vmatpush1.msra.mxu0 0.0
        %3325 = vmatprep.subr.mxu0 0.0
        %3326 = vmatpush1.msra.mxu0 0.0
        %3327 = vmatprep.subr.mxu0 0.0
        %3328 = vmatpush1.msra.mxu0 0.0
        %3329 = vmatprep.subr.mxu0 0.0
        %3330 = vmatpush1.msra.mxu0 0.0
        %3331 = vmatprep.subr.mxu0 0.0
        %3332 = vmatpush1.msra.mxu0 0.0
        %3333 = vmatprep.subr.mxu0 0.0
        %3334 = vmatpush1.msra.mxu0 0.0
        %3335 = vmatprep.subr.mxu0 0.0
        %3336 = vmatpush1.msra.mxu0 0.0
        %3337 = vmatprep.subr.mxu0 0.0
        %3338 = vmatpush1.msra.mxu0 0.0
        %3339 = vmatprep.subr.mxu0 0.0
        %3340 = vmatpush1.msra.mxu0 0.0
        %3341 = vmatprep.subr.mxu0 0.0
        %3342 = vmatpush1.msra.mxu0 0.0
        %3343 = vmatprep.subr.mxu0 0.0
        %3344 = vmatpush1.msra.mxu0 0.0
        %3345 = vmatprep.mubr.f32.mxu0 0.0
        %3346 = vmatmul.mubr.f32.gmra.mrb[0].mxu0 %v508
        %v3347 = vpop.f32.mrb[0].mxu0
        %v3348 = vadd.f32 0.0, %v3347
        %v3349 = vpop.f32.mrb[0].mxu0
        %v3350 = vadd.f32 0.0, %v3349
        %3351 = vdwg.mxu0
        %v3352 = vmax.f32 %v2283, %v2567
        %v3353 = vmax.f32 %v2285, %v2569
        %v3354 = vmax.f32 %v2354, %v2638
        %v3355 = vmax.f32 %v2356, %v2640
        %v3356 = vmax.f32 %v2425, %v2709
        %v3357 = vmax.f32 %v2427, %v2711
        %v3358 = vmax.f32 %v2496, %v2780
        %v3359 = vmax.f32 %v2498, %v2782
        %v3360 = vmax.f32 %v2851, %v3135
        %v3361 = vmax.f32 %v2853, %v3137
        %v3362 = vmax.f32 %v2922, %v3206
        %v3363 = vmax.f32 %v2924, %v3208
        %v3364 = vmax.f32 %v2993, %v3277
        %v3365 = vmax.f32 %v2995, %v3279
        %v3366 = vmax.f32 %v3064, %v3348
        %v3367 = vmax.f32 %v3066, %v3350
        %v3368 = vmax.f32 %v3352, %v3360
        %v3369 = vmax.f32 %v3353, %v3361
        %v3370 = vmax.f32 %v3354, %v3362
        %v3371 = vmax.f32 %v3355, %v3363
        %v3372 = vmax.f32 %v3356, %v3364
        %v3373 = vmax.f32 %v3357, %v3365
        %v3374 = vmax.f32 %v3358, %v3366
        %v3375 = vmax.f32 %v3359, %v3367
        %v3376 = vadd.f32 %v3368, %v1975
        %v3377 = vadd.f32 %v3369, %v1979
        %v3378 = vadd.f32 %v3370, %v1976
        %v3379 = vadd.f32 %v3371, %v1980
        %v3380 = vadd.f32 %v3372, %v1977
        %v3381 = vadd.f32 %v3373, %v1981
        %v3382 = vadd.f32 %v3374, %v1978
        %v3383 = vadd.f32 %v3375, %v1982
        %vm3384 = vcmp.gt.f32.partialorder %v3376, 0.0
        %vm3385 = vcmp.gt.f32.partialorder %v3377, 0.0
        %vm3386 = vcmp.gt.f32.partialorder %v3378, 0.0
        %vm3387 = vcmp.gt.f32.partialorder %v3379, 0.0
        %vm3388 = vcmp.gt.f32.partialorder %v3380, 0.0
        %vm3389 = vcmp.gt.f32.partialorder %v3381, 0.0
        %vm3390 = vcmp.gt.f32.partialorder %v3382, 0.0
        %vm3391 = vcmp.gt.f32.partialorder %v3383, 0.0
        %v3392 = vmin.f32 %v3376, 0.0
        %v3393 = vmin.f32 %v3377, 0.0
        %v3394 = vmin.f32 %v3378, 0.0
        %v3395 = vmin.f32 %v3379, 0.0
        %v3396 = vmin.f32 %v3380, 0.0
        %v3397 = vmin.f32 %v3381, 0.0
        %v3398 = vmin.f32 %v3382, 0.0
        %v3399 = vmin.f32 %v3383, 0.0
        %v3400 = vmul.f32 %v3392, 1.442695
        %v3401 = vpow.pop %v3400
        %v3402 = vmul.f32 %v3393, 1.442695
        %v3403 = vpow.pop %v3402
        %v3404 = vmul.f32 %v3394, 1.442695
        %v3405 = vpow.pop %v3404
        %v3406 = vmul.f32 %v3395, 1.442695
        %v3407 = vpow.pop %v3406
        %v3408 = vmul.f32 %v3396, 1.442695
        %v3409 = vpow.pop %v3408
        %v3410 = vmul.f32 %v3397, 1.442695
        %v3411 = vpow.pop %v3410
        %v3412 = vmul.f32 %v3398, 1.442695
        %v3413 = vpow.pop %v3412
        %v3414 = vmul.f32 %v3399, 1.442695
        %v3415 = vpow.pop %v3414
        %v3416 = vsub.f32 %v3401, 1.0
        %v3417 = vsub.f32 %v3403, 1.0
        %v3418 = vsub.f32 %v3405, 1.0
        %v3419 = vsub.f32 %v3407, 1.0
        %v3420 = vsub.f32 %v3409, 1.0
        %v3421 = vsub.f32 %v3411, 1.0
        %v3422 = vsub.f32 %v3413, 1.0
        %v3423 = vsub.f32 %v3415, 1.0
        %v3424 = vsel %vm3384, %v3376, %v3416
        %v3425 = vsel %vm3385, %v3377, %v3417
        %v3426 = vsel %vm3386, %v3378, %v3418
        %v3427 = vsel %vm3387, %v3379, %v3419
        %v3428 = vsel %vm3388, %v3380, %v3420
        %v3429 = vsel %vm3389, %v3381, %v3421
        %v3430 = vsel %vm3390, %v3382, %v3422
        %v3431 = vsel %vm3391, %v3383, %v3423
        %v3432 = vpack.c.bf16 %v3424, %v3424
        %v3433 = vpack.c.bf16 %v3425, %v3425
        %v3434 = vpack.c.bf16 %v3426, %v3426
        %v3435 = vpack.c.bf16 %v3427, %v3427
        %v3436 = vpack.c.bf16 %v3428, %v3428
        %v3437 = vpack.c.bf16 %v3429, %v3429
        %v3438 = vpack.c.bf16 %v3430, %v3430
        %v3439 = vpack.c.bf16 %v3431, %v3431
        %v3448 = vcombine.low %v2047, %v2048
        %v3449 = vcombine.low %v2049, %v2050
        %v3450 = vcombine.low %v2051, %v2052
        %v3451 = vcombine.low %v2053, %v2054
        %v3453 = vunpack.c.l.s4 1966171168
        %v3454 = vunpack.c.0.s8 %v3453
        %v3455 = vlaneseq
        %v3456 = vshrl.u32 %v3455, 7
        %v3457 = vsub.s32 %v3454, %v3456
        %v3458 = vrot.slane %v3448, %v3457
        %v3460 = vunpack.c.l.s4 1966171168
        %v3461 = vunpack.c.0.s8 %v3460
        %v3462 = vlaneseq
        %v3463 = vshrl.u32 %v3462, 7
        %v3464 = vsub.s32 %v3461, %v3463
        %v3465 = vrot.slane %v3449, %v3464
        %v3467 = vunpack.c.l.s4 1966171168
        %v3468 = vunpack.c.0.s8 %v3467
        %v3469 = vlaneseq
        %v3470 = vshrl.u32 %v3469, 7
        %v3471 = vsub.s32 %v3468, %v3470
        %v3472 = vrot.slane %v3450, %v3471
        %v3474 = vunpack.c.l.s4 1966171168
        %v3475 = vunpack.c.0.s8 %v3474
        %v3476 = vlaneseq
        %v3477 = vshrl.u32 %v3476, 7
        %v3478 = vsub.s32 %v3475, %v3477
        %v3479 = vrot.slane %v3451, %v3478
        %v3480 = vcombine.low %v3458, %v3465
        %v3481 = vcombine.high %v3458, %v3465
        %v3482 = vcombine.low %v3472, %v3479
        %v3483 = vcombine.high %v3472, %v3479
        %v3485 = vunpack.c.l.s4 1966171168
        %v3486 = vunpack.c.0.s8 %v3485
        %v3487 = vlaneseq
        %v3488 = vshrl.u32 %v3487, 7
        %v3489 = vsub.s32 %v3486, %v3488
        %v3490 = vrot.slane %v3480, %v3489
        %v3492 = vunpack.c.l.s4 1966171168
        %v3493 = vunpack.c.0.s8 %v3492
        %v3494 = vlaneseq
        %v3495 = vshrl.u32 %v3494, 7
        %v3496 = vsub.s32 %v3493, %v3495
        %v3497 = vrot.slane %v3481, %v3496
        %v3499 = vunpack.c.l.s4 1966171168
        %v3500 = vunpack.c.0.s8 %v3499
        %v3501 = vlaneseq
        %v3502 = vshrl.u32 %v3501, 7
        %v3503 = vsub.s32 %v3500, %v3502
        %v3504 = vrot.slane %v3482, %v3503
        %v3506 = vunpack.c.l.s4 1966171168
        %v3507 = vunpack.c.0.s8 %v3506
        %v3508 = vlaneseq
        %v3509 = vshrl.u32 %v3508, 7
        %v3510 = vsub.s32 %v3507, %v3509
        %v3511 = vrot.slane %v3483, %v3510
        %v3512 = vcombine.low %v3490, %v3504
        %v3513 = vcombine.high %v3490, %v3504
        %v3514 = vcombine.low %v3497, %v3511
        %v3515 = vcombine.high %v3497, %v3511
        %v3516 = vunpack.i.l.s16 %v3512
        %v3517 = vunpack.i.h.s16 %v3512
        %v3518 = vunpack.i.l.s16 %v3514
        %v3519 = vunpack.i.h.s16 %v3514
        %v3520 = vunpack.i.l.s16 %v3513
        %v3521 = vunpack.i.h.s16 %v3513
        %v3522 = vunpack.i.l.s16 %v3515
        %v3523 = vunpack.i.h.s16 %v3515
        %v3532 = vcombine.low %v3432, %v3433
        %v3533 = vcombine.low %v3434, %v3435
        %v3534 = vcombine.low %v3436, %v3437
        %v3535 = vcombine.low %v3438, %v3439
        %v3537 = vunpack.c.l.s4 1966171168
        %v3538 = vunpack.c.0.s8 %v3537
        %v3539 = vlaneseq
        %v3540 = vshrl.u32 %v3539, 7
        %v3541 = vsub.s32 %v3538, %v3540
        %v3542 = vrot.slane %v3532, %v3541
        %v3544 = vunpack.c.l.s4 1966171168
        %v3545 = vunpack.c.0.s8 %v3544
        %v3546 = vlaneseq
        %v3547 = vshrl.u32 %v3546, 7
        %v3548 = vsub.s32 %v3545, %v3547
        %v3549 = vrot.slane %v3533, %v3548
        %v3551 = vunpack.c.l.s4 1966171168
        %v3552 = vunpack.c.0.s8 %v3551
        %v3553 = vlaneseq
        %v3554 = vshrl.u32 %v3553, 7
        %v3555 = vsub.s32 %v3552, %v3554
        %v3556 = vrot.slane %v3534, %v3555
        %v3558 = vunpack.c.l.s4 1966171168
        %v3559 = vunpack.c.0.s8 %v3558
        %v3560 = vlaneseq
        %v3561 = vshrl.u32 %v3560, 7
        %v3562 = vsub.s32 %v3559, %v3561
        %v3563 = vrot.slane %v3535, %v3562
        %v3564 = vcombine.low %v3542, %v3549
        %v3565 = vcombine.high %v3542, %v3549
        %v3566 = vcombine.low %v3556, %v3563
        %v3567 = vcombine.high %v3556, %v3563
        %v3569 = vunpack.c.l.s4 1966171168
        %v3570 = vunpack.c.0.s8 %v3569
        %v3571 = vlaneseq
        %v3572 = vshrl.u32 %v3571, 7
        %v3573 = vsub.s32 %v3570, %v3572
        %v3574 = vrot.slane %v3564, %v3573
        %v3576 = vunpack.c.l.s4 1966171168
        %v3577 = vunpack.c.0.s8 %v3576
        %v3578 = vlaneseq
        %v3579 = vshrl.u32 %v3578, 7
        %v3580 = vsub.s32 %v3577, %v3579
        %v3581 = vrot.slane %v3565, %v3580
        %v3583 = vunpack.c.l.s4 1966171168
        %v3584 = vunpack.c.0.s8 %v3583
        %v3585 = vlaneseq
        %v3586 = vshrl.u32 %v3585, 7
        %v3587 = vsub.s32 %v3584, %v3586
        %v3588 = vrot.slane %v3566, %v3587
        %v3590 = vunpack.c.l.s4 1966171168
        %v3591 = vunpack.c.0.s8 %v3590
        %v3592 = vlaneseq
        %v3593 = vshrl.u32 %v3592, 7
        %v3594 = vsub.s32 %v3591, %v3593
        %v3595 = vrot.slane %v3567, %v3594
        %v3596 = vcombine.low %v3574, %v3588
        %v3597 = vcombine.high %v3574, %v3588
        %v3598 = vcombine.low %v3581, %v3595
        %v3599 = vcombine.high %v3581, %v3595
        %v3600 = vunpack.i.l.s16 %v3596
        %v3601 = vunpack.i.h.s16 %v3596
        %v3602 = vunpack.i.l.s16 %v3598
        %v3603 = vunpack.i.h.s16 %v3598
        %v3604 = vunpack.i.l.s16 %v3597
        %v3605 = vunpack.i.h.s16 %v3597
        %v3606 = vunpack.i.l.s16 %v3599
        %v3607 = vunpack.i.h.s16 %v3599
        %v3608 = vpack.i.b16 %v3516, %v3516
        %v3609 = vpack.i.b16 %v3517, %v3517
        %v3610 = vpack.i.b16 %v3518, %v3518
        %v3611 = vpack.i.b16 %v3519, %v3519
        %v3612 = vpack.i.b16 %v3520, %v3520
        %v3613 = vpack.i.b16 %v3521, %v3521
        %v3614 = vpack.i.b16 %v3522, %v3522
        %v3615 = vpack.i.b16 %v3523, %v3523
        %v3616 = vlaneseq
        %v3617 = vshrl.u32 %v3616, 7
        %v3618 = vsub.s32 0, %v3617
        %v3619 = vrot.slane %v3608, %v3618
        %v3620 = vlaneseq
        %v3621 = vshrl.u32 %v3620, 7
        %v3622 = vsub.s32 1, %v3621
        %v3623 = vrot.slane %v3608, %v3622
        %v3624 = vlaneseq
        %v3625 = vshrl.u32 %v3624, 7
        %v3626 = vsub.s32 2, %v3625
        %v3627 = vrot.slane %v3608, %v3626
        %v3628 = vlaneseq
        %v3629 = vshrl.u32 %v3628, 7
        %v3630 = vsub.s32 3, %v3629
        %v3631 = vrot.slane %v3608, %v3630
        %v3632 = vlaneseq
        %v3633 = vshrl.u32 %v3632, 7
        %v3634 = vsub.s32 4, %v3633
        %v3635 = vrot.slane %v3608, %v3634
        %v3636 = vlaneseq
        %v3637 = vshrl.u32 %v3636, 7
        %v3638 = vsub.s32 5, %v3637
        %v3639 = vrot.slane %v3608, %v3638
        %v3640 = vlaneseq
        %v3641 = vshrl.u32 %v3640, 7
        %v3642 = vsub.s32 6, %v3641
        %v3643 = vrot.slane %v3608, %v3642
        %v3644 = vlaneseq
        %v3645 = vshrl.u32 %v3644, 7
        %v3646 = vsub.s32 7, %v3645
        %v3647 = vrot.slane %v3608, %v3646
        %v3648 = vlaneseq
        %v3649 = vshrl.u32 %v3648, 7
        %v3650 = vsub.s32 0, %v3649
        %v3651 = vrot.slane %v3609, %v3650
        %v3652 = vlaneseq
        %v3653 = vshrl.u32 %v3652, 7
        %v3654 = vsub.s32 1, %v3653
        %v3655 = vrot.slane %v3609, %v3654
        %v3656 = vlaneseq
        %v3657 = vshrl.u32 %v3656, 7
        %v3658 = vsub.s32 2, %v3657
        %v3659 = vrot.slane %v3609, %v3658
        %v3660 = vlaneseq
        %v3661 = vshrl.u32 %v3660, 7
        %v3662 = vsub.s32 3, %v3661
        %v3663 = vrot.slane %v3609, %v3662
        %v3664 = vlaneseq
        %v3665 = vshrl.u32 %v3664, 7
        %v3666 = vsub.s32 4, %v3665
        %v3667 = vrot.slane %v3609, %v3666
        %v3668 = vlaneseq
        %v3669 = vshrl.u32 %v3668, 7
        %v3670 = vsub.s32 5, %v3669
        %v3671 = vrot.slane %v3609, %v3670
        %v3672 = vlaneseq
        %v3673 = vshrl.u32 %v3672, 7
        %v3674 = vsub.s32 6, %v3673
        %v3675 = vrot.slane %v3609, %v3674
        %v3676 = vlaneseq
        %v3677 = vshrl.u32 %v3676, 7
        %v3678 = vsub.s32 7, %v3677
        %v3679 = vrot.slane %v3609, %v3678
        %v3680 = vlaneseq
        %v3681 = vshrl.u32 %v3680, 7
        %v3682 = vsub.s32 0, %v3681
        %v3683 = vrot.slane %v3610, %v3682
        %v3684 = vlaneseq
        %v3685 = vshrl.u32 %v3684, 7
        %v3686 = vsub.s32 1, %v3685
        %v3687 = vrot.slane %v3610, %v3686
        %v3688 = vlaneseq
        %v3689 = vshrl.u32 %v3688, 7
        %v3690 = vsub.s32 2, %v3689
        %v3691 = vrot.slane %v3610, %v3690
        %v3692 = vlaneseq
        %v3693 = vshrl.u32 %v3692, 7
        %v3694 = vsub.s32 3, %v3693
        %v3695 = vrot.slane %v3610, %v3694
        %v3696 = vlaneseq
        %v3697 = vshrl.u32 %v3696, 7
        %v3698 = vsub.s32 4, %v3697
        %v3699 = vrot.slane %v3610, %v3698
        %v3700 = vlaneseq
        %v3701 = vshrl.u32 %v3700, 7
        %v3702 = vsub.s32 5, %v3701
        %v3703 = vrot.slane %v3610, %v3702
        %v3704 = vlaneseq
        %v3705 = vshrl.u32 %v3704, 7
        %v3706 = vsub.s32 6, %v3705
        %v3707 = vrot.slane %v3610, %v3706
        %v3708 = vlaneseq
        %v3709 = vshrl.u32 %v3708, 7
        %v3710 = vsub.s32 7, %v3709
        %v3711 = vrot.slane %v3610, %v3710
        %v3712 = vlaneseq
        %v3713 = vshrl.u32 %v3712, 7
        %v3714 = vsub.s32 0, %v3713
        %v3715 = vrot.slane %v3611, %v3714
        %v3716 = vlaneseq
        %v3717 = vshrl.u32 %v3716, 7
        %v3718 = vsub.s32 1, %v3717
        %v3719 = vrot.slane %v3611, %v3718
        %v3720 = vlaneseq
        %v3721 = vshrl.u32 %v3720, 7
        %v3722 = vsub.s32 2, %v3721
        %v3723 = vrot.slane %v3611, %v3722
        %v3724 = vlaneseq
        %v3725 = vshrl.u32 %v3724, 7
        %v3726 = vsub.s32 3, %v3725
        %v3727 = vrot.slane %v3611, %v3726
        %v3728 = vlaneseq
        %v3729 = vshrl.u32 %v3728, 7
        %v3730 = vsub.s32 4, %v3729
        %v3731 = vrot.slane %v3611, %v3730
        %v3732 = vlaneseq
        %v3733 = vshrl.u32 %v3732, 7
        %v3734 = vsub.s32 5, %v3733
        %v3735 = vrot.slane %v3611, %v3734
        %v3736 = vlaneseq
        %v3737 = vshrl.u32 %v3736, 7
        %v3738 = vsub.s32 6, %v3737
        %v3739 = vrot.slane %v3611, %v3738
        %v3740 = vlaneseq
        %v3741 = vshrl.u32 %v3740, 7
        %v3742 = vsub.s32 7, %v3741
        %v3743 = vrot.slane %v3611, %v3742
        %v3744 = vlaneseq
        %v3745 = vshrl.u32 %v3744, 7
        %v3746 = vsub.s32 0, %v3745
        %v3747 = vrot.slane %v3612, %v3746
        %v3748 = vlaneseq
        %v3749 = vshrl.u32 %v3748, 7
        %v3750 = vsub.s32 1, %v3749
        %v3751 = vrot.slane %v3612, %v3750
        %v3752 = vlaneseq
        %v3753 = vshrl.u32 %v3752, 7
        %v3754 = vsub.s32 2, %v3753
        %v3755 = vrot.slane %v3612, %v3754
        %v3756 = vlaneseq
        %v3757 = vshrl.u32 %v3756, 7
        %v3758 = vsub.s32 3, %v3757
        %v3759 = vrot.slane %v3612, %v3758
        %v3760 = vlaneseq
        %v3761 = vshrl.u32 %v3760, 7
        %v3762 = vsub.s32 4, %v3761
        %v3763 = vrot.slane %v3612, %v3762
        %v3764 = vlaneseq
        %v3765 = vshrl.u32 %v3764, 7
        %v3766 = vsub.s32 5, %v3765
        %v3767 = vrot.slane %v3612, %v3766
        %v3768 = vlaneseq
        %v3769 = vshrl.u32 %v3768, 7
        %v3770 = vsub.s32 6, %v3769
        %v3771 = vrot.slane %v3612, %v3770
        %v3772 = vlaneseq
        %v3773 = vshrl.u32 %v3772, 7
        %v3774 = vsub.s32 7, %v3773
        %v3775 = vrot.slane %v3612, %v3774
        %v3776 = vlaneseq
        %v3777 = vshrl.u32 %v3776, 7
        %v3778 = vsub.s32 0, %v3777
        %v3779 = vrot.slane %v3613, %v3778
        %v3780 = vlaneseq
        %v3781 = vshrl.u32 %v3780, 7
        %v3782 = vsub.s32 1, %v3781
        %v3783 = vrot.slane %v3613, %v3782
        %v3784 = vlaneseq
        %v3785 = vshrl.u32 %v3784, 7
        %v3786 = vsub.s32 2, %v3785
        %v3787 = vrot.slane %v3613, %v3786
        %v3788 = vlaneseq
        %v3789 = vshrl.u32 %v3788, 7
        %v3790 = vsub.s32 3, %v3789
        %v3791 = vrot.slane %v3613, %v3790
        %v3792 = vlaneseq
        %v3793 = vshrl.u32 %v3792, 7
        %v3794 = vsub.s32 4, %v3793
        %v3795 = vrot.slane %v3613, %v3794
        %v3796 = vlaneseq
        %v3797 = vshrl.u32 %v3796, 7
        %v3798 = vsub.s32 5, %v3797
        %v3799 = vrot.slane %v3613, %v3798
        %v3800 = vlaneseq
        %v3801 = vshrl.u32 %v3800, 7
        %v3802 = vsub.s32 6, %v3801
        %v3803 = vrot.slane %v3613, %v3802
        %v3804 = vlaneseq
        %v3805 = vshrl.u32 %v3804, 7
        %v3806 = vsub.s32 7, %v3805
        %v3807 = vrot.slane %v3613, %v3806
        %v3808 = vlaneseq
        %v3809 = vshrl.u32 %v3808, 7
        %v3810 = vsub.s32 0, %v3809
        %v3811 = vrot.slane %v3614, %v3810
        %v3812 = vlaneseq
        %v3813 = vshrl.u32 %v3812, 7
        %v3814 = vsub.s32 1, %v3813
        %v3815 = vrot.slane %v3614, %v3814
        %v3816 = vlaneseq
        %v3817 = vshrl.u32 %v3816, 7
        %v3818 = vsub.s32 2, %v3817
        %v3819 = vrot.slane %v3614, %v3818
        %v3820 = vlaneseq
        %v3821 = vshrl.u32 %v3820, 7
        %v3822 = vsub.s32 3, %v3821
        %v3823 = vrot.slane %v3614, %v3822
        %v3824 = vlaneseq
        %v3825 = vshrl.u32 %v3824, 7
        %v3826 = vsub.s32 4, %v3825
        %v3827 = vrot.slane %v3614, %v3826
        %v3828 = vlaneseq
        %v3829 = vshrl.u32 %v3828, 7
        %v3830 = vsub.s32 5, %v3829
        %v3831 = vrot.slane %v3614, %v3830
        %v3832 = vlaneseq
        %v3833 = vshrl.u32 %v3832, 7
        %v3834 = vsub.s32 6, %v3833
        %v3835 = vrot.slane %v3614, %v3834
        %v3836 = vlaneseq
        %v3837 = vshrl.u32 %v3836, 7
        %v3838 = vsub.s32 7, %v3837
        %v3839 = vrot.slane %v3614, %v3838
        %v3840 = vlaneseq
        %v3841 = vshrl.u32 %v3840, 7
        %v3842 = vsub.s32 0, %v3841
        %v3843 = vrot.slane %v3615, %v3842
        %v3844 = vlaneseq
        %v3845 = vshrl.u32 %v3844, 7
        %v3846 = vsub.s32 1, %v3845
        %v3847 = vrot.slane %v3615, %v3846
        %v3848 = vlaneseq
        %v3849 = vshrl.u32 %v3848, 7
        %v3850 = vsub.s32 2, %v3849
        %v3851 = vrot.slane %v3615, %v3850
        %v3852 = vlaneseq
        %v3853 = vshrl.u32 %v3852, 7
        %v3854 = vsub.s32 3, %v3853
        %v3855 = vrot.slane %v3615, %v3854
        %v3856 = vlaneseq
        %v3857 = vshrl.u32 %v3856, 7
        %v3858 = vsub.s32 4, %v3857
        %v3859 = vrot.slane %v3615, %v3858
        %v3860 = vlaneseq
        %v3861 = vshrl.u32 %v3860, 7
        %v3862 = vsub.s32 5, %v3861
        %v3863 = vrot.slane %v3615, %v3862
        %v3864 = vlaneseq
        %v3865 = vshrl.u32 %v3864, 7
        %v3866 = vsub.s32 6, %v3865
        %v3867 = vrot.slane %v3615, %v3866
        %v3868 = vlaneseq
        %v3869 = vshrl.u32 %v3868, 7
        %v3870 = vsub.s32 7, %v3869
        %v3871 = vrot.slane %v3615, %v3870
        %v3936 = vpack.i.b16 %v3600, %v3600
        %v3937 = vpack.i.b16 %v3601, %v3601
        %v3938 = vpack.i.b16 %v3602, %v3602
        %v3939 = vpack.i.b16 %v3603, %v3603
        %v3940 = vpack.i.b16 %v3604, %v3604
        %v3941 = vpack.i.b16 %v3605, %v3605
        %v3942 = vpack.i.b16 %v3606, %v3606
        %v3943 = vpack.i.b16 %v3607, %v3607
        %v3944 = vlaneseq
        %v3945 = vshrl.u32 %v3944, 7
        %v3946 = vsub.s32 0, %v3945
        %v3947 = vrot.slane %v3936, %v3946
        %v3948 = vlaneseq
        %v3949 = vshrl.u32 %v3948, 7
        %v3950 = vsub.s32 1, %v3949
        %v3951 = vrot.slane %v3936, %v3950
        %v3952 = vlaneseq
        %v3953 = vshrl.u32 %v3952, 7
        %v3954 = vsub.s32 2, %v3953
        %v3955 = vrot.slane %v3936, %v3954
        %v3956 = vlaneseq
        %v3957 = vshrl.u32 %v3956, 7
        %v3958 = vsub.s32 3, %v3957
        %v3959 = vrot.slane %v3936, %v3958
        %v3960 = vlaneseq
        %v3961 = vshrl.u32 %v3960, 7
        %v3962 = vsub.s32 4, %v3961
        %v3963 = vrot.slane %v3936, %v3962
        %v3964 = vlaneseq
        %v3965 = vshrl.u32 %v3964, 7
        %v3966 = vsub.s32 5, %v3965
        %v3967 = vrot.slane %v3936, %v3966
        %v3968 = vlaneseq
        %v3969 = vshrl.u32 %v3968, 7
        %v3970 = vsub.s32 6, %v3969
        %v3971 = vrot.slane %v3936, %v3970
        %v3972 = vlaneseq
        %v3973 = vshrl.u32 %v3972, 7
        %v3974 = vsub.s32 7, %v3973
        %v3975 = vrot.slane %v3936, %v3974
        %v3976 = vlaneseq
        %v3977 = vshrl.u32 %v3976, 7
        %v3978 = vsub.s32 0, %v3977
        %v3979 = vrot.slane %v3937, %v3978
        %v3980 = vlaneseq
        %v3981 = vshrl.u32 %v3980, 7
        %v3982 = vsub.s32 1, %v3981
        %v3983 = vrot.slane %v3937, %v3982
        %v3984 = vlaneseq
        %v3985 = vshrl.u32 %v3984, 7
        %v3986 = vsub.s32 2, %v3985
        %v3987 = vrot.slane %v3937, %v3986
        %v3988 = vlaneseq
        %v3989 = vshrl.u32 %v3988, 7
        %v3990 = vsub.s32 3, %v3989
        %v3991 = vrot.slane %v3937, %v3990
        %v3992 = vlaneseq
        %v3993 = vshrl.u32 %v3992, 7
        %v3994 = vsub.s32 4, %v3993
        %v3995 = vrot.slane %v3937, %v3994
        %v3996 = vlaneseq
        %v3997 = vshrl.u32 %v3996, 7
        %v3998 = vsub.s32 5, %v3997
        %v3999 = vrot.slane %v3937, %v3998
        %v4000 = vlaneseq
        %v4001 = vshrl.u32 %v4000, 7
        %v4002 = vsub.s32 6, %v4001
        %v4003 = vrot.slane %v3937, %v4002
        %v4004 = vlaneseq
        %v4005 = vshrl.u32 %v4004, 7
        %v4006 = vsub.s32 7, %v4005
        %v4007 = vrot.slane %v3937, %v4006
        %v4008 = vlaneseq
        %v4009 = vshrl.u32 %v4008, 7
        %v4010 = vsub.s32 0, %v4009
        %v4011 = vrot.slane %v3938, %v4010
        %v4012 = vlaneseq
        %v4013 = vshrl.u32 %v4012, 7
        %v4014 = vsub.s32 1, %v4013
        %v4015 = vrot.slane %v3938, %v4014
        %v4016 = vlaneseq
        %v4017 = vshrl.u32 %v4016, 7
        %v4018 = vsub.s32 2, %v4017
        %v4019 = vrot.slane %v3938, %v4018
        %v4020 = vlaneseq
        %v4021 = vshrl.u32 %v4020, 7
        %v4022 = vsub.s32 3, %v4021
        %v4023 = vrot.slane %v3938, %v4022
        %v4024 = vlaneseq
        %v4025 = vshrl.u32 %v4024, 7
        %v4026 = vsub.s32 4, %v4025
        %v4027 = vrot.slane %v3938, %v4026
        %v4028 = vlaneseq
        %v4029 = vshrl.u32 %v4028, 7
        %v4030 = vsub.s32 5, %v4029
        %v4031 = vrot.slane %v3938, %v4030
        %v4032 = vlaneseq
        %v4033 = vshrl.u32 %v4032, 7
        %v4034 = vsub.s32 6, %v4033
        %v4035 = vrot.slane %v3938, %v4034
        %v4036 = vlaneseq
        %v4037 = vshrl.u32 %v4036, 7
        %v4038 = vsub.s32 7, %v4037
        %v4039 = vrot.slane %v3938, %v4038
        %v4040 = vlaneseq
        %v4041 = vshrl.u32 %v4040, 7
        %v4042 = vsub.s32 0, %v4041
        %v4043 = vrot.slane %v3939, %v4042
        %v4044 = vlaneseq
        %v4045 = vshrl.u32 %v4044, 7
        %v4046 = vsub.s32 1, %v4045
        %v4047 = vrot.slane %v3939, %v4046
        %v4048 = vlaneseq
        %v4049 = vshrl.u32 %v4048, 7
        %v4050 = vsub.s32 2, %v4049
        %v4051 = vrot.slane %v3939, %v4050
        %v4052 = vlaneseq
        %v4053 = vshrl.u32 %v4052, 7
        %v4054 = vsub.s32 3, %v4053
        %v4055 = vrot.slane %v3939, %v4054
        %v4056 = vlaneseq
        %v4057 = vshrl.u32 %v4056, 7
        %v4058 = vsub.s32 4, %v4057
        %v4059 = vrot.slane %v3939, %v4058
        %v4060 = vlaneseq
        %v4061 = vshrl.u32 %v4060, 7
        %v4062 = vsub.s32 5, %v4061
        %v4063 = vrot.slane %v3939, %v4062
        %v4064 = vlaneseq
        %v4065 = vshrl.u32 %v4064, 7
        %v4066 = vsub.s32 6, %v4065
        %v4067 = vrot.slane %v3939, %v4066
        %v4068 = vlaneseq
        %v4069 = vshrl.u32 %v4068, 7
        %v4070 = vsub.s32 7, %v4069
        %v4071 = vrot.slane %v3939, %v4070
        %v4072 = vlaneseq
        %v4073 = vshrl.u32 %v4072, 7
        %v4074 = vsub.s32 0, %v4073
        %v4075 = vrot.slane %v3940, %v4074
        %v4076 = vlaneseq
        %v4077 = vshrl.u32 %v4076, 7
        %v4078 = vsub.s32 1, %v4077
        %v4079 = vrot.slane %v3940, %v4078
        %v4080 = vlaneseq
        %v4081 = vshrl.u32 %v4080, 7
        %v4082 = vsub.s32 2, %v4081
        %v4083 = vrot.slane %v3940, %v4082
        %v4084 = vlaneseq
        %v4085 = vshrl.u32 %v4084, 7
        %v4086 = vsub.s32 3, %v4085
        %v4087 = vrot.slane %v3940, %v4086
        %v4088 = vlaneseq
        %v4089 = vshrl.u32 %v4088, 7
        %v4090 = vsub.s32 4, %v4089
        %v4091 = vrot.slane %v3940, %v4090
        %v4092 = vlaneseq
        %v4093 = vshrl.u32 %v4092, 7
        %v4094 = vsub.s32 5, %v4093
        %v4095 = vrot.slane %v3940, %v4094
        %v4096 = vlaneseq
        %v4097 = vshrl.u32 %v4096, 7
        %v4098 = vsub.s32 6, %v4097
        %v4099 = vrot.slane %v3940, %v4098
        %v4100 = vlaneseq
        %v4101 = vshrl.u32 %v4100, 7
        %v4102 = vsub.s32 7, %v4101
        %v4103 = vrot.slane %v3940, %v4102
        %v4104 = vlaneseq
        %v4105 = vshrl.u32 %v4104, 7
        %v4106 = vsub.s32 0, %v4105
        %v4107 = vrot.slane %v3941, %v4106
        %v4108 = vlaneseq
        %v4109 = vshrl.u32 %v4108, 7
        %v4110 = vsub.s32 1, %v4109
        %v4111 = vrot.slane %v3941, %v4110
        %v4112 = vlaneseq
        %v4113 = vshrl.u32 %v4112, 7
        %v4114 = vsub.s32 2, %v4113
        %v4115 = vrot.slane %v3941, %v4114
        %v4116 = vlaneseq
        %v4117 = vshrl.u32 %v4116, 7
        %v4118 = vsub.s32 3, %v4117
        %v4119 = vrot.slane %v3941, %v4118
        %v4120 = vlaneseq
        %v4121 = vshrl.u32 %v4120, 7
        %v4122 = vsub.s32 4, %v4121
        %v4123 = vrot.slane %v3941, %v4122
        %v4124 = vlaneseq
        %v4125 = vshrl.u32 %v4124, 7
        %v4126 = vsub.s32 5, %v4125
        %v4127 = vrot.slane %v3941, %v4126
        %v4128 = vlaneseq
        %v4129 = vshrl.u32 %v4128, 7
        %v4130 = vsub.s32 6, %v4129
        %v4131 = vrot.slane %v3941, %v4130
        %v4132 = vlaneseq
        %v4133 = vshrl.u32 %v4132, 7
        %v4134 = vsub.s32 7, %v4133
        %v4135 = vrot.slane %v3941, %v4134
        %v4136 = vlaneseq
        %v4137 = vshrl.u32 %v4136, 7
        %v4138 = vsub.s32 0, %v4137
        %v4139 = vrot.slane %v3942, %v4138
        %v4140 = vlaneseq
        %v4141 = vshrl.u32 %v4140, 7
        %v4142 = vsub.s32 1, %v4141
        %v4143 = vrot.slane %v3942, %v4142
        %v4144 = vlaneseq
        %v4145 = vshrl.u32 %v4144, 7
        %v4146 = vsub.s32 2, %v4145
        %v4147 = vrot.slane %v3942, %v4146
        %v4148 = vlaneseq
        %v4149 = vshrl.u32 %v4148, 7
        %v4150 = vsub.s32 3, %v4149
        %v4151 = vrot.slane %v3942, %v4150
        %v4152 = vlaneseq
        %v4153 = vshrl.u32 %v4152, 7
        %v4154 = vsub.s32 4, %v4153
        %v4155 = vrot.slane %v3942, %v4154
        %v4156 = vlaneseq
        %v4157 = vshrl.u32 %v4156, 7
        %v4158 = vsub.s32 5, %v4157
        %v4159 = vrot.slane %v3942, %v4158
        %v4160 = vlaneseq
        %v4161 = vshrl.u32 %v4160, 7
        %v4162 = vsub.s32 6, %v4161
        %v4163 = vrot.slane %v3942, %v4162
        %v4164 = vlaneseq
        %v4165 = vshrl.u32 %v4164, 7
        %v4166 = vsub.s32 7, %v4165
        %v4167 = vrot.slane %v3942, %v4166
        %v4168 = vlaneseq
        %v4169 = vshrl.u32 %v4168, 7
        %v4170 = vsub.s32 0, %v4169
        %v4171 = vrot.slane %v3943, %v4170
        %v4172 = vlaneseq
        %v4173 = vshrl.u32 %v4172, 7
        %v4174 = vsub.s32 1, %v4173
        %v4175 = vrot.slane %v3943, %v4174
        %v4176 = vlaneseq
        %v4177 = vshrl.u32 %v4176, 7
        %v4178 = vsub.s32 2, %v4177
        %v4179 = vrot.slane %v3943, %v4178
        %v4180 = vlaneseq
        %v4181 = vshrl.u32 %v4180, 7
        %v4182 = vsub.s32 3, %v4181
        %v4183 = vrot.slane %v3943, %v4182
        %v4184 = vlaneseq
        %v4185 = vshrl.u32 %v4184, 7
        %v4186 = vsub.s32 4, %v4185
        %v4187 = vrot.slane %v3943, %v4186
        %v4188 = vlaneseq
        %v4189 = vshrl.u32 %v4188, 7
        %v4190 = vsub.s32 5, %v4189
        %v4191 = vrot.slane %v3943, %v4190
        %v4192 = vlaneseq
        %v4193 = vshrl.u32 %v4192, 7
        %v4194 = vsub.s32 6, %v4193
        %v4195 = vrot.slane %v3943, %v4194
        %v4196 = vlaneseq
        %v4197 = vshrl.u32 %v4196, 7
        %v4198 = vsub.s32 7, %v4197
        %v4199 = vrot.slane %v3943, %v4198
        %vm4264 = vcmask 1040384
        %vm4265 = vsmask.f32 256
        %vm4266 = vmand %vm4264, %vm4265
        %v4267 = vsel %vm4266, %v3619, %v3947
        %v4268 = vsel %vm4266, %v3623, %v3951
        %v4269 = vsel %vm4266, %v3627, %v3955
        %v4270 = vsel %vm4266, %v3631, %v3959
        %v4271 = vsel %vm4266, %v3635, %v3963
        %v4272 = vsel %vm4266, %v3639, %v3967
        %v4273 = vsel %vm4266, %v3643, %v3971
        %v4274 = vsel %vm4266, %v3647, %v3975
        %v4275 = vsel %vm4266, %v3651, %v3979
        %v4276 = vsel %vm4266, %v3655, %v3983
        %v4277 = vsel %vm4266, %v3659, %v3987
        %v4278 = vsel %vm4266, %v3663, %v3991
        %v4279 = vsel %vm4266, %v3667, %v3995
        %v4280 = vsel %vm4266, %v3671, %v3999
        %v4281 = vsel %vm4266, %v3675, %v4003
        %v4282 = vsel %vm4266, %v3679, %v4007
        %v4283 = vsel %vm4266, %v3683, %v4011
        %v4284 = vsel %vm4266, %v3687, %v4015
        %v4285 = vsel %vm4266, %v3691, %v4019
        %v4286 = vsel %vm4266, %v3695, %v4023
        %v4287 = vsel %vm4266, %v3699, %v4027
        %v4288 = vsel %vm4266, %v3703, %v4031
        %v4289 = vsel %vm4266, %v3707, %v4035
        %v4290 = vsel %vm4266, %v3711, %v4039
        %v4291 = vsel %vm4266, %v3715, %v4043
        %v4292 = vsel %vm4266, %v3719, %v4047
        %v4293 = vsel %vm4266, %v3723, %v4051
        %v4294 = vsel %vm4266, %v3727, %v4055
        %v4295 = vsel %vm4266, %v3731, %v4059
        %v4296 = vsel %vm4266, %v3735, %v4063
        %v4297 = vsel %vm4266, %v3739, %v4067
        %v4298 = vsel %vm4266, %v3743, %v4071
        %v4299 = vsel %vm4266, %v3747, %v4075
        %v4300 = vsel %vm4266, %v3751, %v4079
        %v4301 = vsel %vm4266, %v3755, %v4083
        %v4302 = vsel %vm4266, %v3759, %v4087
        %v4303 = vsel %vm4266, %v3763, %v4091
        %v4304 = vsel %vm4266, %v3767, %v4095
        %v4305 = vsel %vm4266, %v3771, %v4099
        %v4306 = vsel %vm4266, %v3775, %v4103
        %v4307 = vsel %vm4266, %v3779, %v4107
        %v4308 = vsel %vm4266, %v3783, %v4111
        %v4309 = vsel %vm4266, %v3787, %v4115
        %v4310 = vsel %vm4266, %v3791, %v4119
        %v4311 = vsel %vm4266, %v3795, %v4123
        %v4312 = vsel %vm4266, %v3799, %v4127
        %v4313 = vsel %vm4266, %v3803, %v4131
        %v4314 = vsel %vm4266, %v3807, %v4135
        %v4315 = vsel %vm4266, %v3811, %v4139
        %v4316 = vsel %vm4266, %v3815, %v4143
        %v4317 = vsel %vm4266, %v3819, %v4147
        %v4318 = vsel %vm4266, %v3823, %v4151
        %v4319 = vsel %vm4266, %v3827, %v4155
        %v4320 = vsel %vm4266, %v3831, %v4159
        %v4321 = vsel %vm4266, %v3835, %v4163
        %v4322 = vsel %vm4266, %v3839, %v4167
        %v4323 = vsel %vm4266, %v3843, %v4171
        %v4324 = vsel %vm4266, %v3847, %v4175
        %v4325 = vsel %vm4266, %v3851, %v4179
        %v4326 = vsel %vm4266, %v3855, %v4183
        %v4327 = vsel %vm4266, %v3859, %v4187
        %v4328 = vsel %vm4266, %v3863, %v4191
        %v4329 = vsel %vm4266, %v3867, %v4195
        %v4330 = vsel %vm4266, %v3871, %v4199
        %v4331 = vld [vmem:[%s307] sm:$0xf]
        %v4332 = vld [vmem:[%s307 + $0x4] sm:$0xf]
        %v4333 = vld [vmem:[%s307 + $0x8] sm:$0xf]
        %v4334 = vld [vmem:[%s307 + $0xc] sm:$0xf]
        %v4335 = vld [vmem:[%s307 + $0x10] sm:$0xf]
        %v4336 = vld [vmem:[%s307 + $0x14] sm:$0xf]
        %v4337 = vld [vmem:[%s307 + $0x18] sm:$0xf]
        %v4338 = vld [vmem:[%s307 + $0x1c] sm:$0xf]
        %v4339 = vld [vmem:[%s307 + $0x20] sm:$0xf]
        %v4340 = vld [vmem:[%s307 + $0x24] sm:$0xf]
        %v4341 = vld [vmem:[%s307 + $0x28] sm:$0xf]
        %v4342 = vld [vmem:[%s307 + $0x2c] sm:$0xf]
        %v4343 = vld [vmem:[%s307 + $0x30] sm:$0xf]
        %v4344 = vld [vmem:[%s307 + $0x34] sm:$0xf]
        %v4345 = vld [vmem:[%s307 + $0x38] sm:$0xf]
        %v4346 = vld [vmem:[%s307 + $0x3c] sm:$0xf]
        %v4347 = vld [vmem:[%s307 + $0x40] sm:$0xf]
        %v4348 = vld [vmem:[%s307 + $0x44] sm:$0xf]
        %v4349 = vld [vmem:[%s307 + $0x48] sm:$0xf]
        %v4350 = vld [vmem:[%s307 + $0x4c] sm:$0xf]
        %v4351 = vld [vmem:[%s307 + $0x50] sm:$0xf]
        %v4352 = vld [vmem:[%s307 + $0x54] sm:$0xf]
        %v4353 = vld [vmem:[%s307 + $0x58] sm:$0xf]
        %v4354 = vld [vmem:[%s307 + $0x5c] sm:$0xf]
        %v4355 = vld [vmem:[%s307 + $0x60] sm:$0xf]
        %v4356 = vld [vmem:[%s307 + $0x64] sm:$0xf]
        %v4357 = vld [vmem:[%s307 + $0x68] sm:$0xf]
        %v4358 = vld [vmem:[%s307 + $0x6c] sm:$0xf]
        %v4359 = vld [vmem:[%s307 + $0x70] sm:$0xf]
        %v4360 = vld [vmem:[%s307 + $0x74] sm:$0xf]
        %v4361 = vld [vmem:[%s307 + $0x78] sm:$0xf]
        %v4362 = vld [vmem:[%s307 + $0x7c] sm:$0xf]
        %v4363 = vld [vmem:[%s307 + $0x80] sm:$0xf]
        %v4364 = vld [vmem:[%s307 + $0x84] sm:$0xf]
        %v4365 = vld [vmem:[%s307 + $0x88] sm:$0xf]
        %v4366 = vld [vmem:[%s307 + $0x8c] sm:$0xf]
        %v4367 = vld [vmem:[%s307 + $0x90] sm:$0xf]
        %v4368 = vld [vmem:[%s307 + $0x94] sm:$0xf]
        %v4369 = vld [vmem:[%s307 + $0x98] sm:$0xf]
        %v4370 = vld [vmem:[%s307 + $0x9c] sm:$0xf]
        %v4371 = vld [vmem:[%s307 + $0xa0] sm:$0xf]
        %v4372 = vld [vmem:[%s307 + $0xa4] sm:$0xf]
        %v4373 = vld [vmem:[%s307 + $0xa8] sm:$0xf]
        %v4374 = vld [vmem:[%s307 + $0xac] sm:$0xf]
        %v4375 = vld [vmem:[%s307 + $0xb0] sm:$0xf]
        %v4376 = vld [vmem:[%s307 + $0xb4] sm:$0xf]
        %v4377 = vld [vmem:[%s307 + $0xb8] sm:$0xf]
        %v4378 = vld [vmem:[%s307 + $0xbc] sm:$0xf]
        %v4379 = vld [vmem:[%s307 + $0xc0] sm:$0xf]
        %v4380 = vld [vmem:[%s307 + $0xc4] sm:$0xf]
        %v4381 = vld [vmem:[%s307 + $0xc8] sm:$0xf]
        %v4382 = vld [vmem:[%s307 + $0xcc] sm:$0xf]
        %v4383 = vld [vmem:[%s307 + $0xd0] sm:$0xf]
        %v4384 = vld [vmem:[%s307 + $0xd4] sm:$0xf]
        %v4385 = vld [vmem:[%s307 + $0xd8] sm:$0xf]
        %v4386 = vld [vmem:[%s307 + $0xdc] sm:$0xf]
        %v4387 = vld [vmem:[%s307 + $0xe0] sm:$0xf]
        %v4388 = vld [vmem:[%s307 + $0xe4] sm:$0xf]
        %v4389 = vld [vmem:[%s307 + $0xe8] sm:$0xf]
        %v4390 = vld [vmem:[%s307 + $0xec] sm:$0xf]
        %v4391 = vld [vmem:[%s307 + $0xf0] sm:$0xf]
        %v4392 = vld [vmem:[%s307 + $0xf4] sm:$0xf]
        %v4393 = vld [vmem:[%s307 + $0xf8] sm:$0xf]
        %v4394 = vld [vmem:[%s307 + $0xfc] sm:$0xf]
        %v4395 = vld [vmem:[%s307 + $0x100] sm:$0xf]
        %v4396 = vld [vmem:[%s307 + $0x104] sm:$0xf]
        %v4397 = vld [vmem:[%s307 + $0x108] sm:$0xf]
        %v4398 = vld [vmem:[%s307 + $0x10c] sm:$0xf]
        %v4399 = vld [vmem:[%s307 + $0x110] sm:$0xf]
        %v4400 = vld [vmem:[%s307 + $0x114] sm:$0xf]
        %v4401 = vld [vmem:[%s307 + $0x118] sm:$0xf]
        %v4402 = vld [vmem:[%s307 + $0x11c] sm:$0xf]
        %v4403 = vld [vmem:[%s307 + $0x120] sm:$0xf]
        %v4404 = vld [vmem:[%s307 + $0x124] sm:$0xf]
        %v4405 = vld [vmem:[%s307 + $0x128] sm:$0xf]
        %v4406 = vld [vmem:[%s307 + $0x12c] sm:$0xf]
        %v4407 = vld [vmem:[%s307 + $0x130] sm:$0xf]
        %v4408 = vld [vmem:[%s307 + $0x134] sm:$0xf]
        %v4409 = vld [vmem:[%s307 + $0x138] sm:$0xf]
        %v4410 = vld [vmem:[%s307 + $0x13c] sm:$0xf]
        %v4411 = vld [vmem:[%s307 + $0x140] sm:$0xf]
        %v4412 = vld [vmem:[%s307 + $0x144] sm:$0xf]
        %v4413 = vld [vmem:[%s307 + $0x148] sm:$0xf]
        %v4414 = vld [vmem:[%s307 + $0x14c] sm:$0xf]
        %v4415 = vld [vmem:[%s307 + $0x150] sm:$0xf]
        %v4416 = vld [vmem:[%s307 + $0x154] sm:$0xf]
        %v4417 = vld [vmem:[%s307 + $0x158] sm:$0xf]
        %v4418 = vld [vmem:[%s307 + $0x15c] sm:$0xf]
        %v4419 = vld [vmem:[%s307 + $0x160] sm:$0xf]
        %v4420 = vld [vmem:[%s307 + $0x164] sm:$0xf]
        %v4421 = vld [vmem:[%s307 + $0x168] sm:$0xf]
        %v4422 = vld [vmem:[%s307 + $0x16c] sm:$0xf]
        %v4423 = vld [vmem:[%s307 + $0x170] sm:$0xf]
        %v4424 = vld [vmem:[%s307 + $0x174] sm:$0xf]
        %v4425 = vld [vmem:[%s307 + $0x178] sm:$0xf]
        %v4426 = vld [vmem:[%s307 + $0x17c] sm:$0xf]
        %v4427 = vld [vmem:[%s307 + $0x180] sm:$0xf]
        %v4428 = vld [vmem:[%s307 + $0x184] sm:$0xf]
        %v4429 = vld [vmem:[%s307 + $0x188] sm:$0xf]
        %v4430 = vld [vmem:[%s307 + $0x18c] sm:$0xf]
        %v4431 = vld [vmem:[%s307 + $0x190] sm:$0xf]
        %v4432 = vld [vmem:[%s307 + $0x194] sm:$0xf]
        %v4433 = vld [vmem:[%s307 + $0x198] sm:$0xf]
        %v4434 = vld [vmem:[%s307 + $0x19c] sm:$0xf]
        %v4435 = vld [vmem:[%s307 + $0x1a0] sm:$0xf]
        %v4436 = vld [vmem:[%s307 + $0x1a4] sm:$0xf]
        %v4437 = vld [vmem:[%s307 + $0x1a8] sm:$0xf]
        %v4438 = vld [vmem:[%s307 + $0x1ac] sm:$0xf]
        %v4439 = vld [vmem:[%s307 + $0x1b0] sm:$0xf]
        %v4440 = vld [vmem:[%s307 + $0x1b4] sm:$0xf]
        %v4441 = vld [vmem:[%s307 + $0x1b8] sm:$0xf]
        %v4442 = vld [vmem:[%s307 + $0x1bc] sm:$0xf]
        %v4443 = vld [vmem:[%s307 + $0x1c0] sm:$0xf]
        %v4444 = vld [vmem:[%s307 + $0x1c4] sm:$0xf]
        %v4445 = vld [vmem:[%s307 + $0x1c8] sm:$0xf]
        %v4446 = vld [vmem:[%s307 + $0x1cc] sm:$0xf]
        %v4447 = vld [vmem:[%s307 + $0x1d0] sm:$0xf]
        %v4448 = vld [vmem:[%s307 + $0x1d4] sm:$0xf]
        %v4449 = vld [vmem:[%s307 + $0x1d8] sm:$0xf]
        %v4450 = vld [vmem:[%s307 + $0x1dc] sm:$0xf]
        %v4451 = vld [vmem:[%s307 + $0x1e0] sm:$0xf]
        %v4452 = vld [vmem:[%s307 + $0x1e4] sm:$0xf]
        %v4453 = vld [vmem:[%s307 + $0x1e8] sm:$0xf]
        %v4454 = vld [vmem:[%s307 + $0x1ec] sm:$0xf]
        %v4455 = vld [vmem:[%s307 + $0x1f0] sm:$0xf]
        %v4456 = vld [vmem:[%s307 + $0x1f4] sm:$0xf]
        %v4457 = vld [vmem:[%s307 + $0x1f8] sm:$0xf]
        %v4458 = vld [vmem:[%s307 + $0x1fc] sm:$0xf]
        %v4459 = vld [vmem:[%s307 + $0x200] sm:$0xf]
        %v4460 = vld [vmem:[%s307 + $0x204] sm:$0xf]
        %v4461 = vld [vmem:[%s307 + $0x208] sm:$0xf]
        %v4462 = vld [vmem:[%s307 + $0x20c] sm:$0xf]
        %v4463 = vld [vmem:[%s307 + $0x210] sm:$0xf]
        %v4464 = vld [vmem:[%s307 + $0x214] sm:$0xf]
        %v4465 = vld [vmem:[%s307 + $0x218] sm:$0xf]
        %v4466 = vld [vmem:[%s307 + $0x21c] sm:$0xf]
        %v4467 = vld [vmem:[%s307 + $0x220] sm:$0xf]
        %v4468 = vld [vmem:[%s307 + $0x224] sm:$0xf]
        %v4469 = vld [vmem:[%s307 + $0x228] sm:$0xf]
        %v4470 = vld [vmem:[%s307 + $0x22c] sm:$0xf]
        %v4471 = vld [vmem:[%s307 + $0x230] sm:$0xf]
        %v4472 = vld [vmem:[%s307 + $0x234] sm:$0xf]
        %v4473 = vld [vmem:[%s307 + $0x238] sm:$0xf]
        %v4474 = vld [vmem:[%s307 + $0x23c] sm:$0xf]
        %v4475 = vld [vmem:[%s307 + $0x240] sm:$0xf]
        %v4476 = vld [vmem:[%s307 + $0x244] sm:$0xf]
        %v4477 = vld [vmem:[%s307 + $0x248] sm:$0xf]
        %v4478 = vld [vmem:[%s307 + $0x24c] sm:$0xf]
        %v4479 = vld [vmem:[%s307 + $0x250] sm:$0xf]
        %v4480 = vld [vmem:[%s307 + $0x254] sm:$0xf]
        %v4481 = vld [vmem:[%s307 + $0x258] sm:$0xf]
        %v4482 = vld [vmem:[%s307 + $0x25c] sm:$0xf]
        %v4483 = vld [vmem:[%s307 + $0x260] sm:$0xf]
        %v4484 = vld [vmem:[%s307 + $0x264] sm:$0xf]
        %v4485 = vld [vmem:[%s307 + $0x268] sm:$0xf]
        %v4486 = vld [vmem:[%s307 + $0x26c] sm:$0xf]
        %v4487 = vld [vmem:[%s307 + $0x270] sm:$0xf]
        %v4488 = vld [vmem:[%s307 + $0x274] sm:$0xf]
        %v4489 = vld [vmem:[%s307 + $0x278] sm:$0xf]
        %v4490 = vld [vmem:[%s307 + $0x27c] sm:$0xf]
        %v4491 = vld [vmem:[%s307 + $0x280] sm:$0xf]
        %v4492 = vld [vmem:[%s307 + $0x284] sm:$0xf]
        %v4493 = vld [vmem:[%s307 + $0x288] sm:$0xf]
        %v4494 = vld [vmem:[%s307 + $0x28c] sm:$0xf]
        %v4495 = vld [vmem:[%s307 + $0x290] sm:$0xf]
        %v4496 = vld [vmem:[%s307 + $0x294] sm:$0xf]
        %v4497 = vld [vmem:[%s307 + $0x298] sm:$0xf]
        %v4498 = vld [vmem:[%s307 + $0x29c] sm:$0xf]
        %v4499 = vld [vmem:[%s307 + $0x2a0] sm:$0xf]
        %v4500 = vld [vmem:[%s307 + $0x2a4] sm:$0xf]
        %v4501 = vld [vmem:[%s307 + $0x2a8] sm:$0xf]
        %v4502 = vld [vmem:[%s307 + $0x2ac] sm:$0xf]
        %v4503 = vld [vmem:[%s307 + $0x2b0] sm:$0xf]
        %v4504 = vld [vmem:[%s307 + $0x2b4] sm:$0xf]
        %v4505 = vld [vmem:[%s307 + $0x2b8] sm:$0xf]
        %v4506 = vld [vmem:[%s307 + $0x2bc] sm:$0xf]
        %v4507 = vld [vmem:[%s307 + $0x2c0] sm:$0xf]
        %v4508 = vld [vmem:[%s307 + $0x2c4] sm:$0xf]
        %v4509 = vld [vmem:[%s307 + $0x2c8] sm:$0xf]
        %v4510 = vld [vmem:[%s307 + $0x2cc] sm:$0xf]
        %v4511 = vld [vmem:[%s307 + $0x2d0] sm:$0xf]
        %v4512 = vld [vmem:[%s307 + $0x2d4] sm:$0xf]
        %v4513 = vld [vmem:[%s307 + $0x2d8] sm:$0xf]
        %v4514 = vld [vmem:[%s307 + $0x2dc] sm:$0xf]
        %v4515 = vld [vmem:[%s307 + $0x2e0] sm:$0xf]
        %v4516 = vld [vmem:[%s307 + $0x2e4] sm:$0xf]
        %v4517 = vld [vmem:[%s307 + $0x2e8] sm:$0xf]
        %v4518 = vld [vmem:[%s307 + $0x2ec] sm:$0xf]
        %v4519 = vld [vmem:[%s307 + $0x2f0] sm:$0xf]
        %v4520 = vld [vmem:[%s307 + $0x2f4] sm:$0xf]
        %v4521 = vld [vmem:[%s307 + $0x2f8] sm:$0xf]
        %v4522 = vld [vmem:[%s307 + $0x2fc] sm:$0xf]
        %v4523 = vld [vmem:[%s307 + $0x300] sm:$0xf]
        %v4524 = vld [vmem:[%s307 + $0x304] sm:$0xf]
        %v4525 = vld [vmem:[%s307 + $0x308] sm:$0xf]
        %v4526 = vld [vmem:[%s307 + $0x30c] sm:$0xf]
        %v4527 = vld [vmem:[%s307 + $0x310] sm:$0xf]
        %v4528 = vld [vmem:[%s307 + $0x314] sm:$0xf]
        %v4529 = vld [vmem:[%s307 + $0x318] sm:$0xf]
        %v4530 = vld [vmem:[%s307 + $0x31c] sm:$0xf]
        %v4531 = vld [vmem:[%s307 + $0x320] sm:$0xf]
        %v4532 = vld [vmem:[%s307 + $0x324] sm:$0xf]
        %v4533 = vld [vmem:[%s307 + $0x328] sm:$0xf]
        %v4534 = vld [vmem:[%s307 + $0x32c] sm:$0xf]
        %v4535 = vld [vmem:[%s307 + $0x330] sm:$0xf]
        %v4536 = vld [vmem:[%s307 + $0x334] sm:$0xf]
        %v4537 = vld [vmem:[%s307 + $0x338] sm:$0xf]
        %v4538 = vld [vmem:[%s307 + $0x33c] sm:$0xf]
        %v4539 = vld [vmem:[%s307 + $0x340] sm:$0xf]
        %v4540 = vld [vmem:[%s307 + $0x344] sm:$0xf]
        %v4541 = vld [vmem:[%s307 + $0x348] sm:$0xf]
        %v4542 = vld [vmem:[%s307 + $0x34c] sm:$0xf]
        %v4543 = vld [vmem:[%s307 + $0x350] sm:$0xf]
        %v4544 = vld [vmem:[%s307 + $0x354] sm:$0xf]
        %v4545 = vld [vmem:[%s307 + $0x358] sm:$0xf]
        %v4546 = vld [vmem:[%s307 + $0x35c] sm:$0xf]
        %v4547 = vld [vmem:[%s307 + $0x360] sm:$0xf]
        %v4548 = vld [vmem:[%s307 + $0x364] sm:$0xf]
        %v4549 = vld [vmem:[%s307 + $0x368] sm:$0xf]
        %v4550 = vld [vmem:[%s307 + $0x36c] sm:$0xf]
        %v4551 = vld [vmem:[%s307 + $0x370] sm:$0xf]
        %v4552 = vld [vmem:[%s307 + $0x374] sm:$0xf]
        %v4553 = vld [vmem:[%s307 + $0x378] sm:$0xf]
        %v4554 = vld [vmem:[%s307 + $0x37c] sm:$0xf]
        %v4555 = vld [vmem:[%s307 + $0x380] sm:$0xf]
        %v4556 = vld [vmem:[%s307 + $0x384] sm:$0xf]
        %v4557 = vld [vmem:[%s307 + $0x388] sm:$0xf]
        %v4558 = vld [vmem:[%s307 + $0x38c] sm:$0xf]
        %v4559 = vld [vmem:[%s307 + $0x390] sm:$0xf]
        %v4560 = vld [vmem:[%s307 + $0x394] sm:$0xf]
        %v4561 = vld [vmem:[%s307 + $0x398] sm:$0xf]
        %v4562 = vld [vmem:[%s307 + $0x39c] sm:$0xf]
        %v4563 = vld [vmem:[%s307 + $0x3a0] sm:$0xf]
        %v4564 = vld [vmem:[%s307 + $0x3a4] sm:$0xf]
        %v4565 = vld [vmem:[%s307 + $0x3a8] sm:$0xf]
        %v4566 = vld [vmem:[%s307 + $0x3ac] sm:$0xf]
        %v4567 = vld [vmem:[%s307 + $0x3b0] sm:$0xf]
        %v4568 = vld [vmem:[%s307 + $0x3b4] sm:$0xf]
        %v4569 = vld [vmem:[%s307 + $0x3b8] sm:$0xf]
        %v4570 = vld [vmem:[%s307 + $0x3bc] sm:$0xf]
        %v4571 = vld [vmem:[%s307 + $0x3c0] sm:$0xf]
        %v4572 = vld [vmem:[%s307 + $0x3c4] sm:$0xf]
        %v4573 = vld [vmem:[%s307 + $0x3c8] sm:$0xf]
        %v4574 = vld [vmem:[%s307 + $0x3cc] sm:$0xf]
        %v4575 = vld [vmem:[%s307 + $0x3d0] sm:$0xf]
        %v4576 = vld [vmem:[%s307 + $0x3d4] sm:$0xf]
        %v4577 = vld [vmem:[%s307 + $0x3d8] sm:$0xf]
        %v4578 = vld [vmem:[%s307 + $0x3dc] sm:$0xf]
        %v4579 = vld [vmem:[%s307 + $0x3e0] sm:$0xf]
        %v4580 = vld [vmem:[%s307 + $0x3e4] sm:$0xf]
        %v4581 = vld [vmem:[%s307 + $0x3e8] sm:$0xf]
        %v4582 = vld [vmem:[%s307 + $0x3ec] sm:$0xf]
        %v4583 = vld [vmem:[%s307 + $0x3f0] sm:$0xf]
        %v4584 = vld [vmem:[%s307 + $0x3f4] sm:$0xf]
        %v4585 = vld [vmem:[%s307 + $0x3f8] sm:$0xf]
        %v4586 = vld [vmem:[%s307 + $0x3fc] sm:$0xf]
        %v4587 = vld [vmem:[%s307 + $0x400] sm:$0xf]
        %v4588 = vld [vmem:[%s307 + $0x404] sm:$0xf]
        %v4589 = vld [vmem:[%s307 + $0x408] sm:$0xf]
        %v4590 = vld [vmem:[%s307 + $0x40c] sm:$0xf]
        %v4591 = vld [vmem:[%s307 + $0x410] sm:$0xf]
        %v4592 = vld [vmem:[%s307 + $0x414] sm:$0xf]
        %v4593 = vld [vmem:[%s307 + $0x418] sm:$0xf]
        %v4594 = vld [vmem:[%s307 + $0x41c] sm:$0xf]
        %v4595 = vld [vmem:[%s307 + $0x420] sm:$0xf]
        %v4596 = vld [vmem:[%s307 + $0x424] sm:$0xf]
        %v4597 = vld [vmem:[%s307 + $0x428] sm:$0xf]
        %v4598 = vld [vmem:[%s307 + $0x42c] sm:$0xf]
        %v4599 = vld [vmem:[%s307 + $0x430] sm:$0xf]
        %v4600 = vld [vmem:[%s307 + $0x434] sm:$0xf]
        %v4601 = vld [vmem:[%s307 + $0x438] sm:$0xf]
        %v4602 = vld [vmem:[%s307 + $0x43c] sm:$0xf]
        %v4603 = vld [vmem:[%s307 + $0x440] sm:$0xf]
        %v4604 = vld [vmem:[%s307 + $0x444] sm:$0xf]
        %v4605 = vld [vmem:[%s307 + $0x448] sm:$0xf]
        %v4606 = vld [vmem:[%s307 + $0x44c] sm:$0xf]
        %v4607 = vld [vmem:[%s307 + $0x450] sm:$0xf]
        %v4608 = vld [vmem:[%s307 + $0x454] sm:$0xf]
        %v4609 = vld [vmem:[%s307 + $0x458] sm:$0xf]
        %v4610 = vld [vmem:[%s307 + $0x45c] sm:$0xf]
        %v4611 = vld [vmem:[%s307 + $0x460] sm:$0xf]
        %v4612 = vld [vmem:[%s307 + $0x464] sm:$0xf]
        %v4613 = vld [vmem:[%s307 + $0x468] sm:$0xf]
        %v4614 = vld [vmem:[%s307 + $0x46c] sm:$0xf]
        %v4615 = vld [vmem:[%s307 + $0x470] sm:$0xf]
        %v4616 = vld [vmem:[%s307 + $0x474] sm:$0xf]
        %v4617 = vld [vmem:[%s307 + $0x478] sm:$0xf]
        %v4618 = vld [vmem:[%s307 + $0x47c] sm:$0xf]
        %v4619 = vld [vmem:[%s307 + $0x480] sm:$0xf]
        %v4620 = vld [vmem:[%s307 + $0x484] sm:$0xf]
        %v4621 = vld [vmem:[%s307 + $0x488] sm:$0xf]
        %v4622 = vld [vmem:[%s307 + $0x48c] sm:$0xf]
        %v4623 = vld [vmem:[%s307 + $0x490] sm:$0xf]
        %v4624 = vld [vmem:[%s307 + $0x494] sm:$0xf]
        %v4625 = vld [vmem:[%s307 + $0x498] sm:$0xf]
        %v4626 = vld [vmem:[%s307 + $0x49c] sm:$0xf]
        %v4627 = vld [vmem:[%s307 + $0x4a0] sm:$0xf]
        %v4628 = vld [vmem:[%s307 + $0x4a4] sm:$0xf]
        %v4629 = vld [vmem:[%s307 + $0x4a8] sm:$0xf]
        %v4630 = vld [vmem:[%s307 + $0x4ac] sm:$0xf]
        %v4631 = vld [vmem:[%s307 + $0x4b0] sm:$0xf]
        %v4632 = vld [vmem:[%s307 + $0x4b4] sm:$0xf]
        %v4633 = vld [vmem:[%s307 + $0x4b8] sm:$0xf]
        %v4634 = vld [vmem:[%s307 + $0x4bc] sm:$0xf]
        %v4635 = vld [vmem:[%s307 + $0x4c0] sm:$0xf]
        %v4636 = vld [vmem:[%s307 + $0x4c4] sm:$0xf]
        %v4637 = vld [vmem:[%s307 + $0x4c8] sm:$0xf]
        %v4638 = vld [vmem:[%s307 + $0x4cc] sm:$0xf]
        %v4639 = vld [vmem:[%s307 + $0x4d0] sm:$0xf]
        %v4640 = vld [vmem:[%s307 + $0x4d4] sm:$0xf]
        %v4641 = vld [vmem:[%s307 + $0x4d8] sm:$0xf]
        %v4642 = vld [vmem:[%s307 + $0x4dc] sm:$0xf]
        %v4643 = vld [vmem:[%s307 + $0x4e0] sm:$0xf]
        %v4644 = vld [vmem:[%s307 + $0x4e4] sm:$0xf]
        %v4645 = vld [vmem:[%s307 + $0x4e8] sm:$0xf]
        %v4646 = vld [vmem:[%s307 + $0x4ec] sm:$0xf]
        %v4647 = vld [vmem:[%s307 + $0x4f0] sm:$0xf]
        %v4648 = vld [vmem:[%s307 + $0x4f4] sm:$0xf]
        %v4649 = vld [vmem:[%s307 + $0x4f8] sm:$0xf]
        %v4650 = vld [vmem:[%s307 + $0x4fc] sm:$0xf]
        %v4651 = vld [vmem:[%s307 + $0x500] sm:$0xf]
        %v4652 = vld [vmem:[%s307 + $0x504] sm:$0xf]
        %v4653 = vld [vmem:[%s307 + $0x508] sm:$0xf]
        %v4654 = vld [vmem:[%s307 + $0x50c] sm:$0xf]
        %v4655 = vld [vmem:[%s307 + $0x510] sm:$0xf]
        %v4656 = vld [vmem:[%s307 + $0x514] sm:$0xf]
        %v4657 = vld [vmem:[%s307 + $0x518] sm:$0xf]
        %v4658 = vld [vmem:[%s307 + $0x51c] sm:$0xf]
        %v4659 = vld [vmem:[%s307 + $0x520] sm:$0xf]
        %v4660 = vld [vmem:[%s307 + $0x524] sm:$0xf]
        %v4661 = vld [vmem:[%s307 + $0x528] sm:$0xf]
        %v4662 = vld [vmem:[%s307 + $0x52c] sm:$0xf]
        %v4663 = vld [vmem:[%s307 + $0x530] sm:$0xf]
        %v4664 = vld [vmem:[%s307 + $0x534] sm:$0xf]
        %v4665 = vld [vmem:[%s307 + $0x538] sm:$0xf]
        %v4666 = vld [vmem:[%s307 + $0x53c] sm:$0xf]
        %v4667 = vld [vmem:[%s307 + $0x540] sm:$0xf]
        %v4668 = vld [vmem:[%s307 + $0x544] sm:$0xf]
        %v4669 = vld [vmem:[%s307 + $0x548] sm:$0xf]
        %v4670 = vld [vmem:[%s307 + $0x54c] sm:$0xf]
        %v4671 = vld [vmem:[%s307 + $0x550] sm:$0xf]
        %v4672 = vld [vmem:[%s307 + $0x554] sm:$0xf]
        %v4673 = vld [vmem:[%s307 + $0x558] sm:$0xf]
        %v4674 = vld [vmem:[%s307 + $0x55c] sm:$0xf]
        %v4675 = vld [vmem:[%s307 + $0x560] sm:$0xf]
        %v4676 = vld [vmem:[%s307 + $0x564] sm:$0xf]
        %v4677 = vld [vmem:[%s307 + $0x568] sm:$0xf]
        %v4678 = vld [vmem:[%s307 + $0x56c] sm:$0xf]
        %v4679 = vld [vmem:[%s307 + $0x570] sm:$0xf]
        %v4680 = vld [vmem:[%s307 + $0x574] sm:$0xf]
        %v4681 = vld [vmem:[%s307 + $0x578] sm:$0xf]
        %v4682 = vld [vmem:[%s307 + $0x57c] sm:$0xf]
        %v4683 = vld [vmem:[%s307 + $0x580] sm:$0xf]
        %v4684 = vld [vmem:[%s307 + $0x584] sm:$0xf]
        %v4685 = vld [vmem:[%s307 + $0x588] sm:$0xf]
        %v4686 = vld [vmem:[%s307 + $0x58c] sm:$0xf]
        %v4687 = vld [vmem:[%s307 + $0x590] sm:$0xf]
        %v4688 = vld [vmem:[%s307 + $0x594] sm:$0xf]
        %v4689 = vld [vmem:[%s307 + $0x598] sm:$0xf]
        %v4690 = vld [vmem:[%s307 + $0x59c] sm:$0xf]
        %v4691 = vld [vmem:[%s307 + $0x5a0] sm:$0xf]
        %v4692 = vld [vmem:[%s307 + $0x5a4] sm:$0xf]
        %v4693 = vld [vmem:[%s307 + $0x5a8] sm:$0xf]
        %v4694 = vld [vmem:[%s307 + $0x5ac] sm:$0xf]
        %v4695 = vld [vmem:[%s307 + $0x5b0] sm:$0xf]
        %v4696 = vld [vmem:[%s307 + $0x5b4] sm:$0xf]
        %v4697 = vld [vmem:[%s307 + $0x5b8] sm:$0xf]
        %v4698 = vld [vmem:[%s307 + $0x5bc] sm:$0xf]
        %v4699 = vld [vmem:[%s307 + $0x5c0] sm:$0xf]
        %v4700 = vld [vmem:[%s307 + $0x5c4] sm:$0xf]
        %v4701 = vld [vmem:[%s307 + $0x5c8] sm:$0xf]
        %v4702 = vld [vmem:[%s307 + $0x5cc] sm:$0xf]
        %v4703 = vld [vmem:[%s307 + $0x5d0] sm:$0xf]
        %v4704 = vld [vmem:[%s307 + $0x5d4] sm:$0xf]
        %v4705 = vld [vmem:[%s307 + $0x5d8] sm:$0xf]
        %v4706 = vld [vmem:[%s307 + $0x5dc] sm:$0xf]
        %v4707 = vld [vmem:[%s307 + $0x5e0] sm:$0xf]
        %v4708 = vld [vmem:[%s307 + $0x5e4] sm:$0xf]
        %v4709 = vld [vmem:[%s307 + $0x5e8] sm:$0xf]
        %v4710 = vld [vmem:[%s307 + $0x5ec] sm:$0xf]
        %v4711 = vld [vmem:[%s307 + $0x5f0] sm:$0xf]
        %v4712 = vld [vmem:[%s307 + $0x5f4] sm:$0xf]
        %v4713 = vld [vmem:[%s307 + $0x5f8] sm:$0xf]
        %v4714 = vld [vmem:[%s307 + $0x5fc] sm:$0xf]
        %v4715 = vld [vmem:[%s307 + $0x600] sm:$0xf]
        %v4716 = vld [vmem:[%s307 + $0x604] sm:$0xf]
        %v4717 = vld [vmem:[%s307 + $0x608] sm:$0xf]
        %v4718 = vld [vmem:[%s307 + $0x60c] sm:$0xf]
        %v4719 = vld [vmem:[%s307 + $0x610] sm:$0xf]
        %v4720 = vld [vmem:[%s307 + $0x614] sm:$0xf]
        %v4721 = vld [vmem:[%s307 + $0x618] sm:$0xf]
        %v4722 = vld [vmem:[%s307 + $0x61c] sm:$0xf]
        %v4723 = vld [vmem:[%s307 + $0x620] sm:$0xf]
        %v4724 = vld [vmem:[%s307 + $0x624] sm:$0xf]
        %v4725 = vld [vmem:[%s307 + $0x628] sm:$0xf]
        %v4726 = vld [vmem:[%s307 + $0x62c] sm:$0xf]
        %v4727 = vld [vmem:[%s307 + $0x630] sm:$0xf]
        %v4728 = vld [vmem:[%s307 + $0x634] sm:$0xf]
        %v4729 = vld [vmem:[%s307 + $0x638] sm:$0xf]
        %v4730 = vld [vmem:[%s307 + $0x63c] sm:$0xf]
        %v4731 = vld [vmem:[%s307 + $0x640] sm:$0xf]
        %v4732 = vld [vmem:[%s307 + $0x644] sm:$0xf]
        %v4733 = vld [vmem:[%s307 + $0x648] sm:$0xf]
        %v4734 = vld [vmem:[%s307 + $0x64c] sm:$0xf]
        %v4735 = vld [vmem:[%s307 + $0x650] sm:$0xf]
        %v4736 = vld [vmem:[%s307 + $0x654] sm:$0xf]
        %v4737 = vld [vmem:[%s307 + $0x658] sm:$0xf]
        %v4738 = vld [vmem:[%s307 + $0x65c] sm:$0xf]
        %v4739 = vld [vmem:[%s307 + $0x660] sm:$0xf]
        %v4740 = vld [vmem:[%s307 + $0x664] sm:$0xf]
        %v4741 = vld [vmem:[%s307 + $0x668] sm:$0xf]
        %v4742 = vld [vmem:[%s307 + $0x66c] sm:$0xf]
        %v4743 = vld [vmem:[%s307 + $0x670] sm:$0xf]
        %v4744 = vld [vmem:[%s307 + $0x674] sm:$0xf]
        %v4745 = vld [vmem:[%s307 + $0x678] sm:$0xf]
        %v4746 = vld [vmem:[%s307 + $0x67c] sm:$0xf]
        %v4747 = vld [vmem:[%s307 + $0x680] sm:$0xf]
        %v4748 = vld [vmem:[%s307 + $0x684] sm:$0xf]
        %v4749 = vld [vmem:[%s307 + $0x688] sm:$0xf]
        %v4750 = vld [vmem:[%s307 + $0x68c] sm:$0xf]
        %v4751 = vld [vmem:[%s307 + $0x690] sm:$0xf]
        %v4752 = vld [vmem:[%s307 + $0x694] sm:$0xf]
        %v4753 = vld [vmem:[%s307 + $0x698] sm:$0xf]
        %v4754 = vld [vmem:[%s307 + $0x69c] sm:$0xf]
        %v4755 = vld [vmem:[%s307 + $0x6a0] sm:$0xf]
        %v4756 = vld [vmem:[%s307 + $0x6a4] sm:$0xf]
        %v4757 = vld [vmem:[%s307 + $0x6a8] sm:$0xf]
        %v4758 = vld [vmem:[%s307 + $0x6ac] sm:$0xf]
        %v4759 = vld [vmem:[%s307 + $0x6b0] sm:$0xf]
        %v4760 = vld [vmem:[%s307 + $0x6b4] sm:$0xf]
        %v4761 = vld [vmem:[%s307 + $0x6b8] sm:$0xf]
        %v4762 = vld [vmem:[%s307 + $0x6bc] sm:$0xf]
        %v4763 = vld [vmem:[%s307 + $0x6c0] sm:$0xf]
        %v4764 = vld [vmem:[%s307 + $0x6c4] sm:$0xf]
        %v4765 = vld [vmem:[%s307 + $0x6c8] sm:$0xf]
        %v4766 = vld [vmem:[%s307 + $0x6cc] sm:$0xf]
        %v4767 = vld [vmem:[%s307 + $0x6d0] sm:$0xf]
        %v4768 = vld [vmem:[%s307 + $0x6d4] sm:$0xf]
        %v4769 = vld [vmem:[%s307 + $0x6d8] sm:$0xf]
        %v4770 = vld [vmem:[%s307 + $0x6dc] sm:$0xf]
        %v4771 = vld [vmem:[%s307 + $0x6e0] sm:$0xf]
        %v4772 = vld [vmem:[%s307 + $0x6e4] sm:$0xf]
        %v4773 = vld [vmem:[%s307 + $0x6e8] sm:$0xf]
        %v4774 = vld [vmem:[%s307 + $0x6ec] sm:$0xf]
        %v4775 = vld [vmem:[%s307 + $0x6f0] sm:$0xf]
        %v4776 = vld [vmem:[%s307 + $0x6f4] sm:$0xf]
        %v4777 = vld [vmem:[%s307 + $0x6f8] sm:$0xf]
        %v4778 = vld [vmem:[%s307 + $0x6fc] sm:$0xf]
        %v4779 = vld [vmem:[%s307 + $0x700] sm:$0xf]
        %v4780 = vld [vmem:[%s307 + $0x704] sm:$0xf]
        %v4781 = vld [vmem:[%s307 + $0x708] sm:$0xf]
        %v4782 = vld [vmem:[%s307 + $0x70c] sm:$0xf]
        %v4783 = vld [vmem:[%s307 + $0x710] sm:$0xf]
        %v4784 = vld [vmem:[%s307 + $0x714] sm:$0xf]
        %v4785 = vld [vmem:[%s307 + $0x718] sm:$0xf]
        %v4786 = vld [vmem:[%s307 + $0x71c] sm:$0xf]
        %v4787 = vld [vmem:[%s307 + $0x720] sm:$0xf]
        %v4788 = vld [vmem:[%s307 + $0x724] sm:$0xf]
        %v4789 = vld [vmem:[%s307 + $0x728] sm:$0xf]
        %v4790 = vld [vmem:[%s307 + $0x72c] sm:$0xf]
        %v4791 = vld [vmem:[%s307 + $0x730] sm:$0xf]
        %v4792 = vld [vmem:[%s307 + $0x734] sm:$0xf]
        %v4793 = vld [vmem:[%s307 + $0x738] sm:$0xf]
        %v4794 = vld [vmem:[%s307 + $0x73c] sm:$0xf]
        %v4795 = vld [vmem:[%s307 + $0x740] sm:$0xf]
        %v4796 = vld [vmem:[%s307 + $0x744] sm:$0xf]
        %v4797 = vld [vmem:[%s307 + $0x748] sm:$0xf]
        %v4798 = vld [vmem:[%s307 + $0x74c] sm:$0xf]
        %v4799 = vld [vmem:[%s307 + $0x750] sm:$0xf]
        %v4800 = vld [vmem:[%s307 + $0x754] sm:$0xf]
        %v4801 = vld [vmem:[%s307 + $0x758] sm:$0xf]
        %v4802 = vld [vmem:[%s307 + $0x75c] sm:$0xf]
        %v4803 = vld [vmem:[%s307 + $0x760] sm:$0xf]
        %v4804 = vld [vmem:[%s307 + $0x764] sm:$0xf]
        %v4805 = vld [vmem:[%s307 + $0x768] sm:$0xf]
        %v4806 = vld [vmem:[%s307 + $0x76c] sm:$0xf]
        %v4807 = vld [vmem:[%s307 + $0x770] sm:$0xf]
        %v4808 = vld [vmem:[%s307 + $0x774] sm:$0xf]
        %v4809 = vld [vmem:[%s307 + $0x778] sm:$0xf]
        %v4810 = vld [vmem:[%s307 + $0x77c] sm:$0xf]
        %v4811 = vld [vmem:[%s307 + $0x780] sm:$0xf]
        %v4812 = vld [vmem:[%s307 + $0x784] sm:$0xf]
        %v4813 = vld [vmem:[%s307 + $0x788] sm:$0xf]
        %v4814 = vld [vmem:[%s307 + $0x78c] sm:$0xf]
        %v4815 = vld [vmem:[%s307 + $0x790] sm:$0xf]
        %v4816 = vld [vmem:[%s307 + $0x794] sm:$0xf]
        %v4817 = vld [vmem:[%s307 + $0x798] sm:$0xf]
        %v4818 = vld [vmem:[%s307 + $0x79c] sm:$0xf]
        %v4819 = vld [vmem:[%s307 + $0x7a0] sm:$0xf]
        %v4820 = vld [vmem:[%s307 + $0x7a4] sm:$0xf]
        %v4821 = vld [vmem:[%s307 + $0x7a8] sm:$0xf]
        %v4822 = vld [vmem:[%s307 + $0x7ac] sm:$0xf]
        %v4823 = vld [vmem:[%s307 + $0x7b0] sm:$0xf]
        %v4824 = vld [vmem:[%s307 + $0x7b4] sm:$0xf]
        %v4825 = vld [vmem:[%s307 + $0x7b8] sm:$0xf]
        %v4826 = vld [vmem:[%s307 + $0x7bc] sm:$0xf]
        %v4827 = vld [vmem:[%s307 + $0x7c0] sm:$0xf]
        %v4828 = vld [vmem:[%s307 + $0x7c4] sm:$0xf]
        %v4829 = vld [vmem:[%s307 + $0x7c8] sm:$0xf]
        %v4830 = vld [vmem:[%s307 + $0x7cc] sm:$0xf]
        %v4831 = vld [vmem:[%s307 + $0x7d0] sm:$0xf]
        %v4832 = vld [vmem:[%s307 + $0x7d4] sm:$0xf]
        %v4833 = vld [vmem:[%s307 + $0x7d8] sm:$0xf]
        %v4834 = vld [vmem:[%s307 + $0x7dc] sm:$0xf]
        %v4835 = vld [vmem:[%s307 + $0x7e0] sm:$0xf]
        %v4836 = vld [vmem:[%s307 + $0x7e4] sm:$0xf]
        %v4837 = vld [vmem:[%s307 + $0x7e8] sm:$0xf]
        %v4838 = vld [vmem:[%s307 + $0x7ec] sm:$0xf]
        %v4839 = vld [vmem:[%s307 + $0x7f0] sm:$0xf]
        %v4840 = vld [vmem:[%s307 + $0x7f4] sm:$0xf]
        %v4841 = vld [vmem:[%s307 + $0x7f8] sm:$0xf]
        %v4842 = vld [vmem:[%s307 + $0x7fc] sm:$0xf]
        %v4843 = vld [vmem:[%s307 + $0x800] sm:$0xf]
        %v4844 = vld [vmem:[%s307 + $0x804] sm:$0xf]
        %v4845 = vld [vmem:[%s307 + $0x808] sm:$0xf]
        %v4846 = vld [vmem:[%s307 + $0x80c] sm:$0xf]
        %v4847 = vld [vmem:[%s307 + $0x810] sm:$0xf]
        %v4848 = vld [vmem:[%s307 + $0x814] sm:$0xf]
        %v4849 = vld [vmem:[%s307 + $0x818] sm:$0xf]
        %v4850 = vld [vmem:[%s307 + $0x81c] sm:$0xf]
        %v4851 = vld [vmem:[%s307 + $0x820] sm:$0xf]
        %v4852 = vld [vmem:[%s307 + $0x824] sm:$0xf]
        %v4853 = vld [vmem:[%s307 + $0x828] sm:$0xf]
        %v4854 = vld [vmem:[%s307 + $0x82c] sm:$0xf]
        %v4855 = vld [vmem:[%s307 + $0x830] sm:$0xf]
        %v4856 = vld [vmem:[%s307 + $0x834] sm:$0xf]
        %v4857 = vld [vmem:[%s307 + $0x838] sm:$0xf]
        %v4858 = vld [vmem:[%s307 + $0x83c] sm:$0xf]
        %v4859 = vld [vmem:[%s307 + $0x840] sm:$0xf]
        %v4860 = vld [vmem:[%s307 + $0x844] sm:$0xf]
        %v4861 = vld [vmem:[%s307 + $0x848] sm:$0xf]
        %v4862 = vld [vmem:[%s307 + $0x84c] sm:$0xf]
        %v4863 = vld [vmem:[%s307 + $0x850] sm:$0xf]
        %v4864 = vld [vmem:[%s307 + $0x854] sm:$0xf]
        %v4865 = vld [vmem:[%s307 + $0x858] sm:$0xf]
        %v4866 = vld [vmem:[%s307 + $0x85c] sm:$0xf]
        %v4867 = vld [vmem:[%s307 + $0x860] sm:$0xf]
        %v4868 = vld [vmem:[%s307 + $0x864] sm:$0xf]
        %v4869 = vld [vmem:[%s307 + $0x868] sm:$0xf]
        %v4870 = vld [vmem:[%s307 + $0x86c] sm:$0xf]
        %v4871 = vld [vmem:[%s307 + $0x870] sm:$0xf]
        %v4872 = vld [vmem:[%s307 + $0x874] sm:$0xf]
        %v4873 = vld [vmem:[%s307 + $0x878] sm:$0xf]
        %v4874 = vld [vmem:[%s307 + $0x87c] sm:$0xf]
        %v4875 = vld [vmem:[%s307 + $0x880] sm:$0xf]
        %v4876 = vld [vmem:[%s307 + $0x884] sm:$0xf]
        %v4877 = vld [vmem:[%s307 + $0x888] sm:$0xf]
        %v4878 = vld [vmem:[%s307 + $0x88c] sm:$0xf]
        %v4879 = vld [vmem:[%s307 + $0x890] sm:$0xf]
        %v4880 = vld [vmem:[%s307 + $0x894] sm:$0xf]
        %v4881 = vld [vmem:[%s307 + $0x898] sm:$0xf]
        %v4882 = vld [vmem:[%s307 + $0x89c] sm:$0xf]
        %v4883 = vld [vmem:[%s307 + $0x8a0] sm:$0xf]
        %v4884 = vld [vmem:[%s307 + $0x8a4] sm:$0xf]
        %v4885 = vld [vmem:[%s307 + $0x8a8] sm:$0xf]
        %v4886 = vld [vmem:[%s307 + $0x8ac] sm:$0xf]
        %v4887 = vld [vmem:[%s307 + $0x8b0] sm:$0xf]
        %v4888 = vld [vmem:[%s307 + $0x8b4] sm:$0xf]
        %v4889 = vld [vmem:[%s307 + $0x8b8] sm:$0xf]
        %v4890 = vld [vmem:[%s307 + $0x8bc] sm:$0xf]
        %v4891 = vld [vmem:[%s307 + $0x8c0] sm:$0xf]
        %v4892 = vld [vmem:[%s307 + $0x8c4] sm:$0xf]
        %v4893 = vld [vmem:[%s307 + $0x8c8] sm:$0xf]
        %v4894 = vld [vmem:[%s307 + $0x8cc] sm:$0xf]
        %v4895 = vld [vmem:[%s307 + $0x8d0] sm:$0xf]
        %v4896 = vld [vmem:[%s307 + $0x8d4] sm:$0xf]
        %v4897 = vld [vmem:[%s307 + $0x8d8] sm:$0xf]
        %v4898 = vld [vmem:[%s307 + $0x8dc] sm:$0xf]
        %v4899 = vld [vmem:[%s307 + $0x8e0] sm:$0xf]
        %v4900 = vld [vmem:[%s307 + $0x8e4] sm:$0xf]
        %v4901 = vld [vmem:[%s307 + $0x8e8] sm:$0xf]
        %v4902 = vld [vmem:[%s307 + $0x8ec] sm:$0xf]
        %v4903 = vld [vmem:[%s307 + $0x8f0] sm:$0xf]
        %v4904 = vld [vmem:[%s307 + $0x8f4] sm:$0xf]
        %v4905 = vld [vmem:[%s307 + $0x8f8] sm:$0xf]
        %v4906 = vld [vmem:[%s307 + $0x8fc] sm:$0xf]
        %v4907 = vld [vmem:[%s307 + $0x900] sm:$0xf]
        %v4908 = vld [vmem:[%s307 + $0x904] sm:$0xf]
        %v4909 = vld [vmem:[%s307 + $0x908] sm:$0xf]
        %v4910 = vld [vmem:[%s307 + $0x90c] sm:$0xf]
        %v4911 = vld [vmem:[%s307 + $0x910] sm:$0xf]
        %v4912 = vld [vmem:[%s307 + $0x914] sm:$0xf]
        %v4913 = vld [vmem:[%s307 + $0x918] sm:$0xf]
        %v4914 = vld [vmem:[%s307 + $0x91c] sm:$0xf]
        %v4915 = vld [vmem:[%s307 + $0x920] sm:$0xf]
        %v4916 = vld [vmem:[%s307 + $0x924] sm:$0xf]
        %v4917 = vld [vmem:[%s307 + $0x928] sm:$0xf]
        %v4918 = vld [vmem:[%s307 + $0x92c] sm:$0xf]
        %v4919 = vld [vmem:[%s307 + $0x930] sm:$0xf]
        %v4920 = vld [vmem:[%s307 + $0x934] sm:$0xf]
        %v4921 = vld [vmem:[%s307 + $0x938] sm:$0xf]
        %v4922 = vld [vmem:[%s307 + $0x93c] sm:$0xf]
        %v4923 = vld [vmem:[%s307 + $0x940] sm:$0xf]
        %v4924 = vld [vmem:[%s307 + $0x944] sm:$0xf]
        %v4925 = vld [vmem:[%s307 + $0x948] sm:$0xf]
        %v4926 = vld [vmem:[%s307 + $0x94c] sm:$0xf]
        %v4927 = vld [vmem:[%s307 + $0x950] sm:$0xf]
        %v4928 = vld [vmem:[%s307 + $0x954] sm:$0xf]
        %v4929 = vld [vmem:[%s307 + $0x958] sm:$0xf]
        %v4930 = vld [vmem:[%s307 + $0x95c] sm:$0xf]
        %v4931 = vld [vmem:[%s307 + $0x960] sm:$0xf]
        %v4932 = vld [vmem:[%s307 + $0x964] sm:$0xf]
        %v4933 = vld [vmem:[%s307 + $0x968] sm:$0xf]
        %v4934 = vld [vmem:[%s307 + $0x96c] sm:$0xf]
        %v4935 = vld [vmem:[%s307 + $0x970] sm:$0xf]
        %v4936 = vld [vmem:[%s307 + $0x974] sm:$0xf]
        %v4937 = vld [vmem:[%s307 + $0x978] sm:$0xf]
        %v4938 = vld [vmem:[%s307 + $0x97c] sm:$0xf]
        %v4939 = vld [vmem:[%s307 + $0x980] sm:$0xf]
        %v4940 = vld [vmem:[%s307 + $0x984] sm:$0xf]
        %v4941 = vld [vmem:[%s307 + $0x988] sm:$0xf]
        %v4942 = vld [vmem:[%s307 + $0x98c] sm:$0xf]
        %v4943 = vld [vmem:[%s307 + $0x990] sm:$0xf]
        %v4944 = vld [vmem:[%s307 + $0x994] sm:$0xf]
        %v4945 = vld [vmem:[%s307 + $0x998] sm:$0xf]
        %v4946 = vld [vmem:[%s307 + $0x99c] sm:$0xf]
        %v4947 = vld [vmem:[%s307 + $0x9a0] sm:$0xf]
        %v4948 = vld [vmem:[%s307 + $0x9a4] sm:$0xf]
        %v4949 = vld [vmem:[%s307 + $0x9a8] sm:$0xf]
        %v4950 = vld [vmem:[%s307 + $0x9ac] sm:$0xf]
        %v4951 = vld [vmem:[%s307 + $0x9b0] sm:$0xf]
        %v4952 = vld [vmem:[%s307 + $0x9b4] sm:$0xf]
        %v4953 = vld [vmem:[%s307 + $0x9b8] sm:$0xf]
        %v4954 = vld [vmem:[%s307 + $0x9bc] sm:$0xf]
        %v4955 = vld [vmem:[%s307 + $0x9c0] sm:$0xf]
        %v4956 = vld [vmem:[%s307 + $0x9c4] sm:$0xf]
        %v4957 = vld [vmem:[%s307 + $0x9c8] sm:$0xf]
        %v4958 = vld [vmem:[%s307 + $0x9cc] sm:$0xf]
        %v4959 = vld [vmem:[%s307 + $0x9d0] sm:$0xf]
        %v4960 = vld [vmem:[%s307 + $0x9d4] sm:$0xf]
        %v4961 = vld [vmem:[%s307 + $0x9d8] sm:$0xf]
        %v4962 = vld [vmem:[%s307 + $0x9dc] sm:$0xf]
        %v4963 = vld [vmem:[%s307 + $0x9e0] sm:$0xf]
        %v4964 = vld [vmem:[%s307 + $0x9e4] sm:$0xf]
        %v4965 = vld [vmem:[%s307 + $0x9e8] sm:$0xf]
        %v4966 = vld [vmem:[%s307 + $0x9ec] sm:$0xf]
        %v4967 = vld [vmem:[%s307 + $0x9f0] sm:$0xf]
        %v4968 = vld [vmem:[%s307 + $0x9f4] sm:$0xf]
        %v4969 = vld [vmem:[%s307 + $0x9f8] sm:$0xf]
        %v4970 = vld [vmem:[%s307 + $0x9fc] sm:$0xf]
        %v4971 = vld [vmem:[%s307 + $0xa00] sm:$0xf]
        %v4972 = vld [vmem:[%s307 + $0xa04] sm:$0xf]
        %v4973 = vld [vmem:[%s307 + $0xa08] sm:$0xf]
        %v4974 = vld [vmem:[%s307 + $0xa0c] sm:$0xf]
        %v4975 = vld [vmem:[%s307 + $0xa10] sm:$0xf]
        %v4976 = vld [vmem:[%s307 + $0xa14] sm:$0xf]
        %v4977 = vld [vmem:[%s307 + $0xa18] sm:$0xf]
        %v4978 = vld [vmem:[%s307 + $0xa1c] sm:$0xf]
        %v4979 = vld [vmem:[%s307 + $0xa20] sm:$0xf]
        %v4980 = vld [vmem:[%s307 + $0xa24] sm:$0xf]
        %v4981 = vld [vmem:[%s307 + $0xa28] sm:$0xf]
        %v4982 = vld [vmem:[%s307 + $0xa2c] sm:$0xf]
        %v4983 = vld [vmem:[%s307 + $0xa30] sm:$0xf]
        %v4984 = vld [vmem:[%s307 + $0xa34] sm:$0xf]
        %v4985 = vld [vmem:[%s307 + $0xa38] sm:$0xf]
        %v4986 = vld [vmem:[%s307 + $0xa3c] sm:$0xf]
        %v4987 = vld [vmem:[%s307 + $0xa40] sm:$0xf]
        %v4988 = vld [vmem:[%s307 + $0xa44] sm:$0xf]
        %v4989 = vld [vmem:[%s307 + $0xa48] sm:$0xf]
        %v4990 = vld [vmem:[%s307 + $0xa4c] sm:$0xf]
        %v4991 = vld [vmem:[%s307 + $0xa50] sm:$0xf]
        %v4992 = vld [vmem:[%s307 + $0xa54] sm:$0xf]
        %v4993 = vld [vmem:[%s307 + $0xa58] sm:$0xf]
        %v4994 = vld [vmem:[%s307 + $0xa5c] sm:$0xf]
        %v4995 = vld [vmem:[%s307 + $0xa60] sm:$0xf]
        %v4996 = vld [vmem:[%s307 + $0xa64] sm:$0xf]
        %v4997 = vld [vmem:[%s307 + $0xa68] sm:$0xf]
        %v4998 = vld [vmem:[%s307 + $0xa6c] sm:$0xf]
        %v4999 = vld [vmem:[%s307 + $0xa70] sm:$0xf]
        %v5000 = vld [vmem:[%s307 + $0xa74] sm:$0xf]
        %v5001 = vld [vmem:[%s307 + $0xa78] sm:$0xf]
        %v5002 = vld [vmem:[%s307 + $0xa7c] sm:$0xf]
        %v5003 = vld [vmem:[%s307 + $0xa80] sm:$0xf]
        %v5004 = vld [vmem:[%s307 + $0xa84] sm:$0xf]
        %v5005 = vld [vmem:[%s307 + $0xa88] sm:$0xf]
        %v5006 = vld [vmem:[%s307 + $0xa8c] sm:$0xf]
        %v5007 = vld [vmem:[%s307 + $0xa90] sm:$0xf]
        %v5008 = vld [vmem:[%s307 + $0xa94] sm:$0xf]
        %v5009 = vld [vmem:[%s307 + $0xa98] sm:$0xf]
        %v5010 = vld [vmem:[%s307 + $0xa9c] sm:$0xf]
        %v5011 = vld [vmem:[%s307 + $0xaa0] sm:$0xf]
        %v5012 = vld [vmem:[%s307 + $0xaa4] sm:$0xf]
        %v5013 = vld [vmem:[%s307 + $0xaa8] sm:$0xf]
        %v5014 = vld [vmem:[%s307 + $0xaac] sm:$0xf]
        %v5015 = vld [vmem:[%s307 + $0xab0] sm:$0xf]
        %v5016 = vld [vmem:[%s307 + $0xab4] sm:$0xf]
        %v5017 = vld [vmem:[%s307 + $0xab8] sm:$0xf]
        %v5018 = vld [vmem:[%s307 + $0xabc] sm:$0xf]
        %v5019 = vld [vmem:[%s307 + $0xac0] sm:$0xf]
        %v5020 = vld [vmem:[%s307 + $0xac4] sm:$0xf]
        %v5021 = vld [vmem:[%s307 + $0xac8] sm:$0xf]
        %v5022 = vld [vmem:[%s307 + $0xacc] sm:$0xf]
        %v5023 = vld [vmem:[%s307 + $0xad0] sm:$0xf]
        %v5024 = vld [vmem:[%s307 + $0xad4] sm:$0xf]
        %v5025 = vld [vmem:[%s307 + $0xad8] sm:$0xf]
        %v5026 = vld [vmem:[%s307 + $0xadc] sm:$0xf]
        %v5027 = vld [vmem:[%s307 + $0xae0] sm:$0xf]
        %v5028 = vld [vmem:[%s307 + $0xae4] sm:$0xf]
        %v5029 = vld [vmem:[%s307 + $0xae8] sm:$0xf]
        %v5030 = vld [vmem:[%s307 + $0xaec] sm:$0xf]
        %v5031 = vld [vmem:[%s307 + $0xaf0] sm:$0xf]
        %v5032 = vld [vmem:[%s307 + $0xaf4] sm:$0xf]
        %v5033 = vld [vmem:[%s307 + $0xaf8] sm:$0xf]
        %v5034 = vld [vmem:[%s307 + $0xafc] sm:$0xf]
        %v5035 = vld [vmem:[%s307 + $0xb00] sm:$0xf]
        %v5036 = vld [vmem:[%s307 + $0xb04] sm:$0xf]
        %v5037 = vld [vmem:[%s307 + $0xb08] sm:$0xf]
        %v5038 = vld [vmem:[%s307 + $0xb0c] sm:$0xf]
        %v5039 = vld [vmem:[%s307 + $0xb10] sm:$0xf]
        %v5040 = vld [vmem:[%s307 + $0xb14] sm:$0xf]
        %v5041 = vld [vmem:[%s307 + $0xb18] sm:$0xf]
        %v5042 = vld [vmem:[%s307 + $0xb1c] sm:$0xf]
        %v5043 = vld [vmem:[%s307 + $0xb20] sm:$0xf]
        %v5044 = vld [vmem:[%s307 + $0xb24] sm:$0xf]
        %v5045 = vld [vmem:[%s307 + $0xb28] sm:$0xf]
        %v5046 = vld [vmem:[%s307 + $0xb2c] sm:$0xf]
        %v5047 = vld [vmem:[%s307 + $0xb30] sm:$0xf]
        %v5048 = vld [vmem:[%s307 + $0xb34] sm:$0xf]
        %v5049 = vld [vmem:[%s307 + $0xb38] sm:$0xf]
        %v5050 = vld [vmem:[%s307 + $0xb3c] sm:$0xf]
        %v5051 = vld [vmem:[%s307 + $0xb40] sm:$0xf]
        %v5052 = vld [vmem:[%s307 + $0xb44] sm:$0xf]
        %v5053 = vld [vmem:[%s307 + $0xb48] sm:$0xf]
        %v5054 = vld [vmem:[%s307 + $0xb4c] sm:$0xf]
        %v5055 = vld [vmem:[%s307 + $0xb50] sm:$0xf]
        %v5056 = vld [vmem:[%s307 + $0xb54] sm:$0xf]
        %v5057 = vld [vmem:[%s307 + $0xb58] sm:$0xf]
        %v5058 = vld [vmem:[%s307 + $0xb5c] sm:$0xf]
        %v5059 = vld [vmem:[%s307 + $0xb60] sm:$0xf]
        %v5060 = vld [vmem:[%s307 + $0xb64] sm:$0xf]
        %v5061 = vld [vmem:[%s307 + $0xb68] sm:$0xf]
        %v5062 = vld [vmem:[%s307 + $0xb6c] sm:$0xf]
        %v5063 = vld [vmem:[%s307 + $0xb70] sm:$0xf]
        %v5064 = vld [vmem:[%s307 + $0xb74] sm:$0xf]
        %v5065 = vld [vmem:[%s307 + $0xb78] sm:$0xf]
        %v5066 = vld [vmem:[%s307 + $0xb7c] sm:$0xf]
        %v5067 = vld [vmem:[%s307 + $0xb80] sm:$0xf]
        %v5068 = vld [vmem:[%s307 + $0xb84] sm:$0xf]
        %v5069 = vld [vmem:[%s307 + $0xb88] sm:$0xf]
        %v5070 = vld [vmem:[%s307 + $0xb8c] sm:$0xf]
        %v5071 = vld [vmem:[%s307 + $0xb90] sm:$0xf]
        %v5072 = vld [vmem:[%s307 + $0xb94] sm:$0xf]
        %v5073 = vld [vmem:[%s307 + $0xb98] sm:$0xf]
        %v5074 = vld [vmem:[%s307 + $0xb9c] sm:$0xf]
        %v5075 = vld [vmem:[%s307 + $0xba0] sm:$0xf]
        %v5076 = vld [vmem:[%s307 + $0xba4] sm:$0xf]
        %v5077 = vld [vmem:[%s307 + $0xba8] sm:$0xf]
        %v5078 = vld [vmem:[%s307 + $0xbac] sm:$0xf]
        %v5079 = vld [vmem:[%s307 + $0xbb0] sm:$0xf]
        %v5080 = vld [vmem:[%s307 + $0xbb4] sm:$0xf]
        %v5081 = vld [vmem:[%s307 + $0xbb8] sm:$0xf]
        %v5082 = vld [vmem:[%s307 + $0xbbc] sm:$0xf]
        %v5083 = vld [vmem:[%s307 + $0xbc0] sm:$0xf]
        %v5084 = vld [vmem:[%s307 + $0xbc4] sm:$0xf]
        %v5085 = vld [vmem:[%s307 + $0xbc8] sm:$0xf]
        %v5086 = vld [vmem:[%s307 + $0xbcc] sm:$0xf]
        %v5087 = vld [vmem:[%s307 + $0xbd0] sm:$0xf]
        %v5088 = vld [vmem:[%s307 + $0xbd4] sm:$0xf]
        %v5089 = vld [vmem:[%s307 + $0xbd8] sm:$0xf]
        %v5090 = vld [vmem:[%s307 + $0xbdc] sm:$0xf]
        %v5091 = vld [vmem:[%s307 + $0xbe0] sm:$0xf]
        %v5092 = vld [vmem:[%s307 + $0xbe4] sm:$0xf]
        %v5093 = vld [vmem:[%s307 + $0xbe8] sm:$0xf]
        %v5094 = vld [vmem:[%s307 + $0xbec] sm:$0xf]
        %v5095 = vld [vmem:[%s307 + $0xbf0] sm:$0xf]
        %v5096 = vld [vmem:[%s307 + $0xbf4] sm:$0xf]
        %v5097 = vld [vmem:[%s307 + $0xbf8] sm:$0xf]
        %v5098 = vld [vmem:[%s307 + $0xbfc] sm:$0xf]
        %v5099 = vld [vmem:[%s307 + $0xc00] sm:$0xf]
        %v5100 = vld [vmem:[%s307 + $0xc04] sm:$0xf]
        %v5101 = vld [vmem:[%s307 + $0xc08] sm:$0xf]
        %v5102 = vld [vmem:[%s307 + $0xc0c] sm:$0xf]
        %v5103 = vld [vmem:[%s307 + $0xc10] sm:$0xf]
        %v5104 = vld [vmem:[%s307 + $0xc14] sm:$0xf]
        %v5105 = vld [vmem:[%s307 + $0xc18] sm:$0xf]
        %v5106 = vld [vmem:[%s307 + $0xc1c] sm:$0xf]
        %v5107 = vld [vmem:[%s307 + $0xc20] sm:$0xf]
        %v5108 = vld [vmem:[%s307 + $0xc24] sm:$0xf]
        %v5109 = vld [vmem:[%s307 + $0xc28] sm:$0xf]
        %v5110 = vld [vmem:[%s307 + $0xc2c] sm:$0xf]
        %v5111 = vld [vmem:[%s307 + $0xc30] sm:$0xf]
        %v5112 = vld [vmem:[%s307 + $0xc34] sm:$0xf]
        %v5113 = vld [vmem:[%s307 + $0xc38] sm:$0xf]
        %v5114 = vld [vmem:[%s307 + $0xc3c] sm:$0xf]
        %v5115 = vld [vmem:[%s307 + $0xc40] sm:$0xf]
        %v5116 = vld [vmem:[%s307 + $0xc44] sm:$0xf]
        %v5117 = vld [vmem:[%s307 + $0xc48] sm:$0xf]
        %v5118 = vld [vmem:[%s307 + $0xc4c] sm:$0xf]
        %v5119 = vld [vmem:[%s307 + $0xc50] sm:$0xf]
        %v5120 = vld [vmem:[%s307 + $0xc54] sm:$0xf]
        %v5121 = vld [vmem:[%s307 + $0xc58] sm:$0xf]
        %v5122 = vld [vmem:[%s307 + $0xc5c] sm:$0xf]
        %v5123 = vld [vmem:[%s307 + $0xc60] sm:$0xf]
        %v5124 = vld [vmem:[%s307 + $0xc64] sm:$0xf]
        %v5125 = vld [vmem:[%s307 + $0xc68] sm:$0xf]
        %v5126 = vld [vmem:[%s307 + $0xc6c] sm:$0xf]
        %v5127 = vld [vmem:[%s307 + $0xc70] sm:$0xf]
        %v5128 = vld [vmem:[%s307 + $0xc74] sm:$0xf]
        %v5129 = vld [vmem:[%s307 + $0xc78] sm:$0xf]
        %v5130 = vld [vmem:[%s307 + $0xc7c] sm:$0xf]
        %v5131 = vld [vmem:[%s307 + $0xc80] sm:$0xf]
        %v5132 = vld [vmem:[%s307 + $0xc84] sm:$0xf]
        %v5133 = vld [vmem:[%s307 + $0xc88] sm:$0xf]
        %v5134 = vld [vmem:[%s307 + $0xc8c] sm:$0xf]
        %v5135 = vld [vmem:[%s307 + $0xc90] sm:$0xf]
        %v5136 = vld [vmem:[%s307 + $0xc94] sm:$0xf]
        %v5137 = vld [vmem:[%s307 + $0xc98] sm:$0xf]
        %v5138 = vld [vmem:[%s307 + $0xc9c] sm:$0xf]
        %v5139 = vld [vmem:[%s307 + $0xca0] sm:$0xf]
        %v5140 = vld [vmem:[%s307 + $0xca4] sm:$0xf]
        %v5141 = vld [vmem:[%s307 + $0xca8] sm:$0xf]
        %v5142 = vld [vmem:[%s307 + $0xcac] sm:$0xf]
        %v5143 = vld [vmem:[%s307 + $0xcb0] sm:$0xf]
        %v5144 = vld [vmem:[%s307 + $0xcb4] sm:$0xf]
        %v5145 = vld [vmem:[%s307 + $0xcb8] sm:$0xf]
        %v5146 = vld [vmem:[%s307 + $0xcbc] sm:$0xf]
        %v5147 = vld [vmem:[%s307 + $0xcc0] sm:$0xf]
        %v5148 = vld [vmem:[%s307 + $0xcc4] sm:$0xf]
        %v5149 = vld [vmem:[%s307 + $0xcc8] sm:$0xf]
        %v5150 = vld [vmem:[%s307 + $0xccc] sm:$0xf]
        %v5151 = vld [vmem:[%s307 + $0xcd0] sm:$0xf]
        %v5152 = vld [vmem:[%s307 + $0xcd4] sm:$0xf]
        %v5153 = vld [vmem:[%s307 + $0xcd8] sm:$0xf]
        %v5154 = vld [vmem:[%s307 + $0xcdc] sm:$0xf]
        %v5155 = vld [vmem:[%s307 + $0xce0] sm:$0xf]
        %v5156 = vld [vmem:[%s307 + $0xce4] sm:$0xf]
        %v5157 = vld [vmem:[%s307 + $0xce8] sm:$0xf]
        %v5158 = vld [vmem:[%s307 + $0xcec] sm:$0xf]
        %v5159 = vld [vmem:[%s307 + $0xcf0] sm:$0xf]
        %v5160 = vld [vmem:[%s307 + $0xcf4] sm:$0xf]
        %v5161 = vld [vmem:[%s307 + $0xcf8] sm:$0xf]
        %v5162 = vld [vmem:[%s307 + $0xcfc] sm:$0xf]
        %v5163 = vld [vmem:[%s307 + $0xd00] sm:$0xf]
        %v5164 = vld [vmem:[%s307 + $0xd04] sm:$0xf]
        %v5165 = vld [vmem:[%s307 + $0xd08] sm:$0xf]
        %v5166 = vld [vmem:[%s307 + $0xd0c] sm:$0xf]
        %v5167 = vld [vmem:[%s307 + $0xd10] sm:$0xf]
        %v5168 = vld [vmem:[%s307 + $0xd14] sm:$0xf]
        %v5169 = vld [vmem:[%s307 + $0xd18] sm:$0xf]
        %v5170 = vld [vmem:[%s307 + $0xd1c] sm:$0xf]
        %v5171 = vld [vmem:[%s307 + $0xd20] sm:$0xf]
        %v5172 = vld [vmem:[%s307 + $0xd24] sm:$0xf]
        %v5173 = vld [vmem:[%s307 + $0xd28] sm:$0xf]
        %v5174 = vld [vmem:[%s307 + $0xd2c] sm:$0xf]
        %v5175 = vld [vmem:[%s307 + $0xd30] sm:$0xf]
        %v5176 = vld [vmem:[%s307 + $0xd34] sm:$0xf]
        %v5177 = vld [vmem:[%s307 + $0xd38] sm:$0xf]
        %v5178 = vld [vmem:[%s307 + $0xd3c] sm:$0xf]
        %v5179 = vld [vmem:[%s307 + $0xd40] sm:$0xf]
        %v5180 = vld [vmem:[%s307 + $0xd44] sm:$0xf]
        %v5181 = vld [vmem:[%s307 + $0xd48] sm:$0xf]
        %v5182 = vld [vmem:[%s307 + $0xd4c] sm:$0xf]
        %v5183 = vld [vmem:[%s307 + $0xd50] sm:$0xf]
        %v5184 = vld [vmem:[%s307 + $0xd54] sm:$0xf]
        %v5185 = vld [vmem:[%s307 + $0xd58] sm:$0xf]
        %v5186 = vld [vmem:[%s307 + $0xd5c] sm:$0xf]
        %v5187 = vld [vmem:[%s307 + $0xd60] sm:$0xf]
        %v5188 = vld [vmem:[%s307 + $0xd64] sm:$0xf]
        %v5189 = vld [vmem:[%s307 + $0xd68] sm:$0xf]
        %v5190 = vld [vmem:[%s307 + $0xd6c] sm:$0xf]
        %v5191 = vld [vmem:[%s307 + $0xd70] sm:$0xf]
        %v5192 = vld [vmem:[%s307 + $0xd74] sm:$0xf]
        %v5193 = vld [vmem:[%s307 + $0xd78] sm:$0xf]
        %v5194 = vld [vmem:[%s307 + $0xd7c] sm:$0xf]
        %v5195 = vld [vmem:[%s307 + $0xd80] sm:$0xf]
        %v5196 = vld [vmem:[%s307 + $0xd84] sm:$0xf]
        %v5197 = vld [vmem:[%s307 + $0xd88] sm:$0xf]
        %v5198 = vld [vmem:[%s307 + $0xd8c] sm:$0xf]
        %v5199 = vld [vmem:[%s307 + $0xd90] sm:$0xf]
        %v5200 = vld [vmem:[%s307 + $0xd94] sm:$0xf]
        %v5201 = vld [vmem:[%s307 + $0xd98] sm:$0xf]
        %v5202 = vld [vmem:[%s307 + $0xd9c] sm:$0xf]
        %v5203 = vld [vmem:[%s307 + $0xda0] sm:$0xf]
        %v5204 = vld [vmem:[%s307 + $0xda4] sm:$0xf]
        %v5205 = vld [vmem:[%s307 + $0xda8] sm:$0xf]
        %v5206 = vld [vmem:[%s307 + $0xdac] sm:$0xf]
        %v5207 = vld [vmem:[%s307 + $0xdb0] sm:$0xf]
        %v5208 = vld [vmem:[%s307 + $0xdb4] sm:$0xf]
        %v5209 = vld [vmem:[%s307 + $0xdb8] sm:$0xf]
        %v5210 = vld [vmem:[%s307 + $0xdbc] sm:$0xf]
        %v5211 = vld [vmem:[%s307 + $0xdc0] sm:$0xf]
        %v5212 = vld [vmem:[%s307 + $0xdc4] sm:$0xf]
        %v5213 = vld [vmem:[%s307 + $0xdc8] sm:$0xf]
        %v5214 = vld [vmem:[%s307 + $0xdcc] sm:$0xf]
        %v5215 = vld [vmem:[%s307 + $0xdd0] sm:$0xf]
        %v5216 = vld [vmem:[%s307 + $0xdd4] sm:$0xf]
        %v5217 = vld [vmem:[%s307 + $0xdd8] sm:$0xf]
        %v5218 = vld [vmem:[%s307 + $0xddc] sm:$0xf]
        %v5219 = vld [vmem:[%s307 + $0xde0] sm:$0xf]
        %v5220 = vld [vmem:[%s307 + $0xde4] sm:$0xf]
        %v5221 = vld [vmem:[%s307 + $0xde8] sm:$0xf]
        %v5222 = vld [vmem:[%s307 + $0xdec] sm:$0xf]
        %v5223 = vld [vmem:[%s307 + $0xdf0] sm:$0xf]
        %v5224 = vld [vmem:[%s307 + $0xdf4] sm:$0xf]
        %v5225 = vld [vmem:[%s307 + $0xdf8] sm:$0xf]
        %v5226 = vld [vmem:[%s307 + $0xdfc] sm:$0xf]
        %v5227 = vld [vmem:[%s307 + $0xe00] sm:$0xf]
        %v5228 = vld [vmem:[%s307 + $0xe04] sm:$0xf]
        %v5229 = vld [vmem:[%s307 + $0xe08] sm:$0xf]
        %v5230 = vld [vmem:[%s307 + $0xe0c] sm:$0xf]
        %v5231 = vld [vmem:[%s307 + $0xe10] sm:$0xf]
        %v5232 = vld [vmem:[%s307 + $0xe14] sm:$0xf]
        %v5233 = vld [vmem:[%s307 + $0xe18] sm:$0xf]
        %v5234 = vld [vmem:[%s307 + $0xe1c] sm:$0xf]
        %v5235 = vld [vmem:[%s307 + $0xe20] sm:$0xf]
        %v5236 = vld [vmem:[%s307 + $0xe24] sm:$0xf]
        %v5237 = vld [vmem:[%s307 + $0xe28] sm:$0xf]
        %v5238 = vld [vmem:[%s307 + $0xe2c] sm:$0xf]
        %v5239 = vld [vmem:[%s307 + $0xe30] sm:$0xf]
        %v5240 = vld [vmem:[%s307 + $0xe34] sm:$0xf]
        %v5241 = vld [vmem:[%s307 + $0xe38] sm:$0xf]
        %v5242 = vld [vmem:[%s307 + $0xe3c] sm:$0xf]
        %v5243 = vld [vmem:[%s307 + $0xe40] sm:$0xf]
        %v5244 = vld [vmem:[%s307 + $0xe44] sm:$0xf]
        %v5245 = vld [vmem:[%s307 + $0xe48] sm:$0xf]
        %v5246 = vld [vmem:[%s307 + $0xe4c] sm:$0xf]
        %v5247 = vld [vmem:[%s307 + $0xe50] sm:$0xf]
        %v5248 = vld [vmem:[%s307 + $0xe54] sm:$0xf]
        %v5249 = vld [vmem:[%s307 + $0xe58] sm:$0xf]
        %v5250 = vld [vmem:[%s307 + $0xe5c] sm:$0xf]
        %v5251 = vld [vmem:[%s307 + $0xe60] sm:$0xf]
        %v5252 = vld [vmem:[%s307 + $0xe64] sm:$0xf]
        %v5253 = vld [vmem:[%s307 + $0xe68] sm:$0xf]
        %v5254 = vld [vmem:[%s307 + $0xe6c] sm:$0xf]
        %v5255 = vld [vmem:[%s307 + $0xe70] sm:$0xf]
        %v5256 = vld [vmem:[%s307 + $0xe74] sm:$0xf]
        %v5257 = vld [vmem:[%s307 + $0xe78] sm:$0xf]
        %v5258 = vld [vmem:[%s307 + $0xe7c] sm:$0xf]
        %v5259 = vld [vmem:[%s307 + $0xe80] sm:$0xf]
        %v5260 = vld [vmem:[%s307 + $0xe84] sm:$0xf]
        %v5261 = vld [vmem:[%s307 + $0xe88] sm:$0xf]
        %v5262 = vld [vmem:[%s307 + $0xe8c] sm:$0xf]
        %v5263 = vld [vmem:[%s307 + $0xe90] sm:$0xf]
        %v5264 = vld [vmem:[%s307 + $0xe94] sm:$0xf]
        %v5265 = vld [vmem:[%s307 + $0xe98] sm:$0xf]
        %v5266 = vld [vmem:[%s307 + $0xe9c] sm:$0xf]
        %v5267 = vld [vmem:[%s307 + $0xea0] sm:$0xf]
        %v5268 = vld [vmem:[%s307 + $0xea4] sm:$0xf]
        %v5269 = vld [vmem:[%s307 + $0xea8] sm:$0xf]
        %v5270 = vld [vmem:[%s307 + $0xeac] sm:$0xf]
        %v5271 = vld [vmem:[%s307 + $0xeb0] sm:$0xf]
        %v5272 = vld [vmem:[%s307 + $0xeb4] sm:$0xf]
        %v5273 = vld [vmem:[%s307 + $0xeb8] sm:$0xf]
        %v5274 = vld [vmem:[%s307 + $0xebc] sm:$0xf]
        %v5275 = vld [vmem:[%s307 + $0xec0] sm:$0xf]
        %v5276 = vld [vmem:[%s307 + $0xec4] sm:$0xf]
        %v5277 = vld [vmem:[%s307 + $0xec8] sm:$0xf]
        %v5278 = vld [vmem:[%s307 + $0xecc] sm:$0xf]
        %v5279 = vld [vmem:[%s307 + $0xed0] sm:$0xf]
        %v5280 = vld [vmem:[%s307 + $0xed4] sm:$0xf]
        %v5281 = vld [vmem:[%s307 + $0xed8] sm:$0xf]
        %v5282 = vld [vmem:[%s307 + $0xedc] sm:$0xf]
        %v5283 = vld [vmem:[%s307 + $0xee0] sm:$0xf]
        %v5284 = vld [vmem:[%s307 + $0xee4] sm:$0xf]
        %v5285 = vld [vmem:[%s307 + $0xee8] sm:$0xf]
        %v5286 = vld [vmem:[%s307 + $0xeec] sm:$0xf]
        %v5287 = vld [vmem:[%s307 + $0xef0] sm:$0xf]
        %v5288 = vld [vmem:[%s307 + $0xef4] sm:$0xf]
        %v5289 = vld [vmem:[%s307 + $0xef8] sm:$0xf]
        %v5290 = vld [vmem:[%s307 + $0xefc] sm:$0xf]
        %v5291 = vld [vmem:[%s307 + $0xf00] sm:$0xf]
        %v5292 = vld [vmem:[%s307 + $0xf04] sm:$0xf]
        %v5293 = vld [vmem:[%s307 + $0xf08] sm:$0xf]
        %v5294 = vld [vmem:[%s307 + $0xf0c] sm:$0xf]
        %v5295 = vld [vmem:[%s307 + $0xf10] sm:$0xf]
        %v5296 = vld [vmem:[%s307 + $0xf14] sm:$0xf]
        %v5297 = vld [vmem:[%s307 + $0xf18] sm:$0xf]
        %v5298 = vld [vmem:[%s307 + $0xf1c] sm:$0xf]
        %v5299 = vld [vmem:[%s307 + $0xf20] sm:$0xf]
        %v5300 = vld [vmem:[%s307 + $0xf24] sm:$0xf]
        %v5301 = vld [vmem:[%s307 + $0xf28] sm:$0xf]
        %v5302 = vld [vmem:[%s307 + $0xf2c] sm:$0xf]
        %v5303 = vld [vmem:[%s307 + $0xf30] sm:$0xf]
        %v5304 = vld [vmem:[%s307 + $0xf34] sm:$0xf]
        %v5305 = vld [vmem:[%s307 + $0xf38] sm:$0xf]
        %v5306 = vld [vmem:[%s307 + $0xf3c] sm:$0xf]
        %v5307 = vld [vmem:[%s307 + $0xf40] sm:$0xf]
        %v5308 = vld [vmem:[%s307 + $0xf44] sm:$0xf]
        %v5309 = vld [vmem:[%s307 + $0xf48] sm:$0xf]
        %v5310 = vld [vmem:[%s307 + $0xf4c] sm:$0xf]
        %v5311 = vld [vmem:[%s307 + $0xf50] sm:$0xf]
        %v5312 = vld [vmem:[%s307 + $0xf54] sm:$0xf]
        %v5313 = vld [vmem:[%s307 + $0xf58] sm:$0xf]
        %v5314 = vld [vmem:[%s307 + $0xf5c] sm:$0xf]
        %v5315 = vld [vmem:[%s307 + $0xf60] sm:$0xf]
        %v5316 = vld [vmem:[%s307 + $0xf64] sm:$0xf]
        %v5317 = vld [vmem:[%s307 + $0xf68] sm:$0xf]
        %v5318 = vld [vmem:[%s307 + $0xf6c] sm:$0xf]
        %v5319 = vld [vmem:[%s307 + $0xf70] sm:$0xf]
        %v5320 = vld [vmem:[%s307 + $0xf74] sm:$0xf]
        %v5321 = vld [vmem:[%s307 + $0xf78] sm:$0xf]
        %v5322 = vld [vmem:[%s307 + $0xf7c] sm:$0xf]
        %v5323 = vld [vmem:[%s307 + $0xf80] sm:$0xf]
        %v5324 = vld [vmem:[%s307 + $0xf84] sm:$0xf]
        %v5325 = vld [vmem:[%s307 + $0xf88] sm:$0xf]
        %v5326 = vld [vmem:[%s307 + $0xf8c] sm:$0xf]
        %v5327 = vld [vmem:[%s307 + $0xf90] sm:$0xf]
        %v5328 = vld [vmem:[%s307 + $0xf94] sm:$0xf]
        %v5329 = vld [vmem:[%s307 + $0xf98] sm:$0xf]
        %v5330 = vld [vmem:[%s307 + $0xf9c] sm:$0xf]
        %v5331 = vld [vmem:[%s307 + $0xfa0] sm:$0xf]
        %v5332 = vld [vmem:[%s307 + $0xfa4] sm:$0xf]
        %v5333 = vld [vmem:[%s307 + $0xfa8] sm:$0xf]
        %v5334 = vld [vmem:[%s307 + $0xfac] sm:$0xf]
        %v5335 = vld [vmem:[%s307 + $0xfb0] sm:$0xf]
        %v5336 = vld [vmem:[%s307 + $0xfb4] sm:$0xf]
        %v5337 = vld [vmem:[%s307 + $0xfb8] sm:$0xf]
        %v5338 = vld [vmem:[%s307 + $0xfbc] sm:$0xf]
        %v5339 = vld [vmem:[%s307 + $0xfc0] sm:$0xf]
        %v5340 = vld [vmem:[%s307 + $0xfc4] sm:$0xf]
        %v5341 = vld [vmem:[%s307 + $0xfc8] sm:$0xf]
        %v5342 = vld [vmem:[%s307 + $0xfcc] sm:$0xf]
        %v5343 = vld [vmem:[%s307 + $0xfd0] sm:$0xf]
        %v5344 = vld [vmem:[%s307 + $0xfd4] sm:$0xf]
        %v5345 = vld [vmem:[%s307 + $0xfd8] sm:$0xf]
        %v5346 = vld [vmem:[%s307 + $0xfdc] sm:$0xf]
        %v5347 = vld [vmem:[%s307 + $0xfe0] sm:$0xf]
        %v5348 = vld [vmem:[%s307 + $0xfe4] sm:$0xf]
        %v5349 = vld [vmem:[%s307 + $0xfe8] sm:$0xf]
        %v5350 = vld [vmem:[%s307 + $0xfec] sm:$0xf]
        %v5351 = vld [vmem:[%s307 + $0xff0] sm:$0xf]
        %v5352 = vld [vmem:[%s307 + $0xff4] sm:$0xf]
        %v5353 = vld [vmem:[%s307 + $0xff8] sm:$0xf]
        %v5354 = vld [vmem:[%s307 + $0xffc] sm:$0xf]
        %v5483 = vunpack.c.l.b16 %v4331
        %v5484 = vunpack.c.l.b16 %v4332
        %v5485 = vunpack.c.l.b16 %v4333
        %v5486 = vunpack.c.l.b16 %v4334
        %v5487 = vunpack.c.l.b16 %v4335
        %v5488 = vunpack.c.l.b16 %v4336
        %v5489 = vunpack.c.l.b16 %v4337
        %v5490 = vunpack.c.l.b16 %v4338
        %v5491 = vunpack.c.l.b16 %v4339
        %v5492 = vunpack.c.l.b16 %v4340
        %v5493 = vunpack.c.l.b16 %v4341
        %v5494 = vunpack.c.l.b16 %v4342
        %v5495 = vunpack.c.l.b16 %v4343
        %v5496 = vunpack.c.l.b16 %v4344
        %v5497 = vunpack.c.l.b16 %v4345
        %v5498 = vunpack.c.l.b16 %v4346
        %v5499 = vunpack.c.l.b16 %v4347
        %v5500 = vunpack.c.l.b16 %v4348
        %v5501 = vunpack.c.l.b16 %v4349
        %v5502 = vunpack.c.l.b16 %v4350
        %v5503 = vunpack.c.l.b16 %v4351
        %v5504 = vunpack.c.l.b16 %v4352
        %v5505 = vunpack.c.l.b16 %v4353
        %v5506 = vunpack.c.l.b16 %v4354
        %v5507 = vunpack.c.l.b16 %v4355
        %v5508 = vunpack.c.l.b16 %v4356
        %v5509 = vunpack.c.l.b16 %v4357
        %v5510 = vunpack.c.l.b16 %v4358
        %v5511 = vunpack.c.l.b16 %v4359
        %v5512 = vunpack.c.l.b16 %v4360
        %v5513 = vunpack.c.l.b16 %v4361
        %v5514 = vunpack.c.l.b16 %v4362
        %v5515 = vunpack.c.l.b16 %v4363
        %v5516 = vunpack.c.l.b16 %v4364
        %v5517 = vunpack.c.l.b16 %v4365
        %v5518 = vunpack.c.l.b16 %v4366
        %v5519 = vunpack.c.l.b16 %v4367
        %v5520 = vunpack.c.l.b16 %v4368
        %v5521 = vunpack.c.l.b16 %v4369
        %v5522 = vunpack.c.l.b16 %v4370
        %v5523 = vunpack.c.l.b16 %v4371
        %v5524 = vunpack.c.l.b16 %v4372
        %v5525 = vunpack.c.l.b16 %v4373
        %v5526 = vunpack.c.l.b16 %v4374
        %v5527 = vunpack.c.l.b16 %v4375
        %v5528 = vunpack.c.l.b16 %v4376
        %v5529 = vunpack.c.l.b16 %v4377
        %v5530 = vunpack.c.l.b16 %v4378
        %v5531 = vunpack.c.l.b16 %v4379
        %v5532 = vunpack.c.l.b16 %v4380
        %v5533 = vunpack.c.l.b16 %v4381
        %v5534 = vunpack.c.l.b16 %v4382
        %v5535 = vunpack.c.l.b16 %v4383
        %v5536 = vunpack.c.l.b16 %v4384
        %v5537 = vunpack.c.l.b16 %v4385
        %v5538 = vunpack.c.l.b16 %v4386
        %v5539 = vunpack.c.l.b16 %v4387
        %v5540 = vunpack.c.l.b16 %v4388
        %v5541 = vunpack.c.l.b16 %v4389
        %v5542 = vunpack.c.l.b16 %v4390
        %v5543 = vunpack.c.l.b16 %v4391
        %v5544 = vunpack.c.l.b16 %v4392
        %v5545 = vunpack.c.l.b16 %v4393
        %v5546 = vunpack.c.l.b16 %v4394
        %v5547 = vunpack.c.l.b16 %v4395
        %v5548 = vunpack.c.l.b16 %v4396
        %v5549 = vunpack.c.l.b16 %v4397
        %v5550 = vunpack.c.l.b16 %v4398
        %v5551 = vunpack.c.l.b16 %v4399
        %v5552 = vunpack.c.l.b16 %v4400
        %v5553 = vunpack.c.l.b16 %v4401
        %v5554 = vunpack.c.l.b16 %v4402
        %v5555 = vunpack.c.l.b16 %v4403
        %v5556 = vunpack.c.l.b16 %v4404
        %v5557 = vunpack.c.l.b16 %v4405
        %v5558 = vunpack.c.l.b16 %v4406
        %v5559 = vunpack.c.l.b16 %v4407
        %v5560 = vunpack.c.l.b16 %v4408
        %v5561 = vunpack.c.l.b16 %v4409
        %v5562 = vunpack.c.l.b16 %v4410
        %v5563 = vunpack.c.l.b16 %v4411
        %v5564 = vunpack.c.l.b16 %v4412
        %v5565 = vunpack.c.l.b16 %v4413
        %v5566 = vunpack.c.l.b16 %v4414
        %v5567 = vunpack.c.l.b16 %v4415
        %v5568 = vunpack.c.l.b16 %v4416
        %v5569 = vunpack.c.l.b16 %v4417
        %v5570 = vunpack.c.l.b16 %v4418
        %v5571 = vunpack.c.l.b16 %v4419
        %v5572 = vunpack.c.l.b16 %v4420
        %v5573 = vunpack.c.l.b16 %v4421
        %v5574 = vunpack.c.l.b16 %v4422
        %v5575 = vunpack.c.l.b16 %v4423
        %v5576 = vunpack.c.l.b16 %v4424
        %v5577 = vunpack.c.l.b16 %v4425
        %v5578 = vunpack.c.l.b16 %v4426
        %v5579 = vunpack.c.l.b16 %v4427
        %v5580 = vunpack.c.l.b16 %v4428
        %v5581 = vunpack.c.l.b16 %v4429
        %v5582 = vunpack.c.l.b16 %v4430
        %v5583 = vunpack.c.l.b16 %v4431
        %v5584 = vunpack.c.l.b16 %v4432
        %v5585 = vunpack.c.l.b16 %v4433
        %v5586 = vunpack.c.l.b16 %v4434
        %v5587 = vunpack.c.l.b16 %v4435
        %v5588 = vunpack.c.l.b16 %v4436
        %v5589 = vunpack.c.l.b16 %v4437
        %v5590 = vunpack.c.l.b16 %v4438
        %v5591 = vunpack.c.l.b16 %v4439
        %v5592 = vunpack.c.l.b16 %v4440
        %v5593 = vunpack.c.l.b16 %v4441
        %v5594 = vunpack.c.l.b16 %v4442
        %v5595 = vunpack.c.l.b16 %v4443
        %v5596 = vunpack.c.l.b16 %v4444
        %v5597 = vunpack.c.l.b16 %v4445
        %v5598 = vunpack.c.l.b16 %v4446
        %v5599 = vunpack.c.l.b16 %v4447
        %v5600 = vunpack.c.l.b16 %v4448
        %v5601 = vunpack.c.l.b16 %v4449
        %v5602 = vunpack.c.l.b16 %v4450
        %v5603 = vunpack.c.l.b16 %v4451
        %v5604 = vunpack.c.l.b16 %v4452
        %v5605 = vunpack.c.l.b16 %v4453
        %v5606 = vunpack.c.l.b16 %v4454
        %v5607 = vunpack.c.l.b16 %v4455
        %v5608 = vunpack.c.l.b16 %v4456
        %v5609 = vunpack.c.l.b16 %v4457
        %v5610 = vunpack.c.l.b16 %v4458
        %v5611 = vpack.c.b16 %v5484, %v5483
        %v5612 = vpack.c.b16 %v5486, %v5485
        %v5613 = vpack.c.b16 %v5488, %v5487
        %v5614 = vpack.c.b16 %v5490, %v5489
        %v5615 = vpack.c.b16 %v5492, %v5491
        %v5616 = vpack.c.b16 %v5494, %v5493
        %v5617 = vpack.c.b16 %v5496, %v5495
        %v5618 = vpack.c.b16 %v5498, %v5497
        %v5619 = vpack.c.b16 %v5500, %v5499
        %v5620 = vpack.c.b16 %v5502, %v5501
        %v5621 = vpack.c.b16 %v5504, %v5503
        %v5622 = vpack.c.b16 %v5506, %v5505
        %v5623 = vpack.c.b16 %v5508, %v5507
        %v5624 = vpack.c.b16 %v5510, %v5509
        %v5625 = vpack.c.b16 %v5512, %v5511
        %v5626 = vpack.c.b16 %v5514, %v5513
        %v5627 = vpack.c.b16 %v5516, %v5515
        %v5628 = vpack.c.b16 %v5518, %v5517
        %v5629 = vpack.c.b16 %v5520, %v5519
        %v5630 = vpack.c.b16 %v5522, %v5521
        %v5631 = vpack.c.b16 %v5524, %v5523
        %v5632 = vpack.c.b16 %v5526, %v5525
        %v5633 = vpack.c.b16 %v5528, %v5527
        %v5634 = vpack.c.b16 %v5530, %v5529
        %v5635 = vpack.c.b16 %v5532, %v5531
        %v5636 = vpack.c.b16 %v5534, %v5533
        %v5637 = vpack.c.b16 %v5536, %v5535
        %v5638 = vpack.c.b16 %v5538, %v5537
        %v5639 = vpack.c.b16 %v5540, %v5539
        %v5640 = vpack.c.b16 %v5542, %v5541
        %v5641 = vpack.c.b16 %v5544, %v5543
        %v5642 = vpack.c.b16 %v5546, %v5545
        %v5643 = vpack.c.b16 %v5548, %v5547
        %v5644 = vpack.c.b16 %v5550, %v5549
        %v5645 = vpack.c.b16 %v5552, %v5551
        %v5646 = vpack.c.b16 %v5554, %v5553
        %v5647 = vpack.c.b16 %v5556, %v5555
        %v5648 = vpack.c.b16 %v5558, %v5557
        %v5649 = vpack.c.b16 %v5560, %v5559
        %v5650 = vpack.c.b16 %v5562, %v5561
        %v5651 = vpack.c.b16 %v5564, %v5563
        %v5652 = vpack.c.b16 %v5566, %v5565
        %v5653 = vpack.c.b16 %v5568, %v5567
        %v5654 = vpack.c.b16 %v5570, %v5569
        %v5655 = vpack.c.b16 %v5572, %v5571
        %v5656 = vpack.c.b16 %v5574, %v5573
        %v5657 = vpack.c.b16 %v5576, %v5575
        %v5658 = vpack.c.b16 %v5578, %v5577
        %v5659 = vpack.c.b16 %v5580, %v5579
        %v5660 = vpack.c.b16 %v5582, %v5581
        %v5661 = vpack.c.b16 %v5584, %v5583
        %v5662 = vpack.c.b16 %v5586, %v5585
        %v5663 = vpack.c.b16 %v5588, %v5587
        %v5664 = vpack.c.b16 %v5590, %v5589
        %v5665 = vpack.c.b16 %v5592, %v5591
        %v5666 = vpack.c.b16 %v5594, %v5593
        %v5667 = vpack.c.b16 %v5596, %v5595
        %v5668 = vpack.c.b16 %v5598, %v5597
        %v5669 = vpack.c.b16 %v5600, %v5599
        %v5670 = vpack.c.b16 %v5602, %v5601
        %v5671 = vpack.c.b16 %v5604, %v5603
        %v5672 = vpack.c.b16 %v5606, %v5605
        %v5673 = vpack.c.b16 %v5608, %v5607
        %v5674 = vpack.c.b16 %v5610, %v5609
        %5739 = vmatprep.subr.bf16.mxu0 0
        %5740 = vmatpush1.bf16.msra.mxu0 %v5611
        %5741 = vmatprep.subr.bf16.mxu0 0
        %5742 = vmatpush1.bf16.msra.mxu0 %v5612
        %5743 = vmatprep.subr.bf16.mxu0 0
        %5744 = vmatpush1.bf16.msra.mxu0 %v5613
        %5745 = vmatprep.subr.bf16.mxu0 0
        %5746 = vmatpush1.bf16.msra.mxu0 %v5614
        %5747 = vmatprep.subr.bf16.mxu0 0
        %5748 = vmatpush1.bf16.msra.mxu0 %v5615
        %5749 = vmatprep.subr.bf16.mxu0 0
        %5750 = vmatpush1.bf16.msra.mxu0 %v5616
        %5751 = vmatprep.subr.bf16.mxu0 0
        %5752 = vmatpush1.bf16.msra.mxu0 %v5617
        %5753 = vmatprep.subr.bf16.mxu0 0
        %5754 = vmatpush1.bf16.msra.mxu0 %v5618
        %5755 = vmatprep.subr.bf16.mxu0 0
        %5756 = vmatpush1.bf16.msra.mxu0 %v5619
        %5757 = vmatprep.subr.bf16.mxu0 0
        %5758 = vmatpush1.bf16.msra.mxu0 %v5620
        %5759 = vmatprep.subr.bf16.mxu0 0
        %5760 = vmatpush1.bf16.msra.mxu0 %v5621
        %5761 = vmatprep.subr.bf16.mxu0 0
        %5762 = vmatpush1.bf16.msra.mxu0 %v5622
        %5763 = vmatprep.subr.bf16.mxu0 0
        %5764 = vmatpush1.bf16.msra.mxu0 %v5623
        %5765 = vmatprep.subr.bf16.mxu0 0
        %5766 = vmatpush1.bf16.msra.mxu0 %v5624
        %5767 = vmatprep.subr.bf16.mxu0 0
        %5768 = vmatpush1.bf16.msra.mxu0 %v5625
        %5769 = vmatprep.subr.bf16.mxu0 0
        %5770 = vmatpush1.bf16.msra.mxu0 %v5626
        %5771 = vmatprep.mubr.bf16.mxu0 %v4268
        %5772 = vmatmul.mubr.bf16.gmra.mrb[0].mxu0 %v4267
        %v5773 = vpop.f32.mrb[0].mxu0
        %v5774 = vadd.f32 0.0, %v5773
        %v5775 = vpop.f32.mrb[0].mxu0
        %v5776 = vpop.f32.mrb[0].mxu0
        %v5777 = vpop.f32.mrb[0].mxu0
        %5778 = vdwg.mxu0
        %5779 = vmatprep.subr.bf16.mxu0 0
        %5780 = vmatpush1.bf16.msra.mxu0 %v5627
        %5781 = vmatprep.subr.bf16.mxu0 0
        %5782 = vmatpush1.bf16.msra.mxu0 %v5628
        %5783 = vmatprep.subr.bf16.mxu0 0
        %5784 = vmatpush1.bf16.msra.mxu0 %v5629
        %5785 = vmatprep.subr.bf16.mxu0 0
        %5786 = vmatpush1.bf16.msra.mxu0 %v5630
        %5787 = vmatprep.subr.bf16.mxu0 0
        %5788 = vmatpush1.bf16.msra.mxu0 %v5631
        %5789 = vmatprep.subr.bf16.mxu0 0
        %5790 = vmatpush1.bf16.msra.mxu0 %v5632
        %5791 = vmatprep.subr.bf16.mxu0 0
        %5792 = vmatpush1.bf16.msra.mxu0 %v5633
        %5793 = vmatprep.subr.bf16.mxu0 0
        %5794 = vmatpush1.bf16.msra.mxu0 %v5634
        %5795 = vmatprep.subr.bf16.mxu0 0
        %5796 = vmatpush1.bf16.msra.mxu0 %v5635
        %5797 = vmatprep.subr.bf16.mxu0 0
        %5798 = vmatpush1.bf16.msra.mxu0 %v5636
        %5799 = vmatprep.subr.bf16.mxu0 0
        %5800 = vmatpush1.bf16.msra.mxu0 %v5637
        %5801 = vmatprep.subr.bf16.mxu0 0
        %5802 = vmatpush1.bf16.msra.mxu0 %v5638
        %5803 = vmatprep.subr.bf16.mxu0 0
        %5804 = vmatpush1.bf16.msra.mxu0 %v5639
        %5805 = vmatprep.subr.bf16.mxu0 0
        %5806 = vmatpush1.bf16.msra.mxu0 %v5640
        %5807 = vmatprep.subr.bf16.mxu0 0
        %5808 = vmatpush1.bf16.msra.mxu0 %v5641
        %5809 = vmatprep.subr.bf16.mxu0 0
        %5810 = vmatpush1.bf16.msra.mxu0 %v5642
        %5811 = vmatprep.mubr.bf16.mxu0 %v4270
        %5812 = vmatmul.mubr.bf16.gmra.mrb[0].mxu0 %v4269
        %v5813 = vpop.f32.mrb[0].mxu0
        %v5814 = vadd.f32 %v5774, %v5813
        %v5815 = vpop.f32.mrb[0].mxu0
        %v5816 = vpop.f32.mrb[0].mxu0
        %v5817 = vpop.f32.mrb[0].mxu0
        %5818 = vdwg.mxu0
        %5819 = vmatprep.subr.bf16.mxu0 0
        %5820 = vmatpush1.bf16.msra.mxu0 %v5643
        %5821 = vmatprep.subr.bf16.mxu0 0
        %5822 = vmatpush1.bf16.msra.mxu0 %v5644
        %5823 = vmatprep.subr.bf16.mxu0 0
        %5824 = vmatpush1.bf16.msra.mxu0 %v5645
        %5825 = vmatprep.subr.bf16.mxu0 0
        %5826 = vmatpush1.bf16.msra.mxu0 %v5646
        %5827 = vmatprep.subr.bf16.mxu0 0
        %5828 = vmatpush1.bf16.msra.mxu0 %v5647
        %5829 = vmatprep.subr.bf16.mxu0 0
        %5830 = vmatpush1.bf16.msra.mxu0 %v5648
        %5831 = vmatprep.subr.bf16.mxu0 0
        %5832 = vmatpush1.bf16.msra.mxu0 %v5649
        %5833 = vmatprep.subr.bf16.mxu0 0
        %5834 = vmatpush1.bf16.msra.mxu0 %v5650
        %5835 = vmatprep.subr.bf16.mxu0 0
        %5836 = vmatpush1.bf16.msra.mxu0 %v5651
        %5837 = vmatprep.subr.bf16.mxu0 0
        %5838 = vmatpush1.bf16.msra.mxu0 %v5652
        %5839 = vmatprep.subr.bf16.mxu0 0
        %5840 = vmatpush1.bf16.msra.mxu0 %v5653
        %5841 = vmatprep.subr.bf16.mxu0 0
        %5842 = vmatpush1.bf16.msra.mxu0 %v5654
        %5843 = vmatprep.subr.bf16.mxu0 0
        %5844 = vmatpush1.bf16.msra.mxu0 %v5655
        %5845 = vmatprep.subr.bf16.mxu0 0
        %5846 = vmatpush1.bf16.msra.mxu0 %v5656
        %5847 = vmatprep.subr.bf16.mxu0 0
        %5848 = vmatpush1.bf16.msra.mxu0 %v5657
        %5849 = vmatprep.subr.bf16.mxu0 0
        %5850 = vmatpush1.bf16.msra.mxu0 %v5658
        %5851 = vmatprep.mubr.bf16.mxu0 %v4272
        %5852 = vmatmul.mubr.bf16.gmra.mrb[0].mxu0 %v4271
        %v5853 = vpop.f32.mrb[0].mxu0
        %v5854 = vadd.f32 %v5814, %v5853
        %v5855 = vpop.f32.mrb[0].mxu0
        %v5856 = vpop.f32.mrb[0].mxu0
        %v5857 = vpop.f32.mrb[0].mxu0
        %5858 = vdwg.mxu0
        %5859 = vmatprep.subr.bf16.mxu0 0
        %5860 = vmatpush1.bf16.msra.mxu0 %v5659
        %5861 = vmatprep.subr.bf16.mxu0 0
        %5862 = vmatpush1.bf16.msra.mxu0 %v5660
        %5863 = vmatprep.subr.bf16.mxu0 0
        %5864 = vmatpush1.bf16.msra.mxu0 %v5661
        %5865 = vmatprep.subr.bf16.mxu0 0
        %5866 = vmatpush1.bf16.msra.mxu0 %v5662
        %5867 = vmatprep.subr.bf16.mxu0 0
        %5868 = vmatpush1.bf16.msra.mxu0 %v5663
        %5869 = vmatprep.subr.bf16.mxu0 0
        %5870 = vmatpush1.bf16.msra.mxu0 %v5664
        %5871 = vmatprep.subr.bf16.mxu0 0
        %5872 = vmatpush1.bf16.msra.mxu0 %v5665
        %5873 = vmatprep.subr.bf16.mxu0 0
        %5874 = vmatpush1.bf16.msra.mxu0 %v5666
        %5875 = vmatprep.subr.bf16.mxu0 0
        %5876 = vmatpush1.bf16.msra.mxu0 %v5667
        %5877 = vmatprep.subr.bf16.mxu0 0
        %5878 = vmatpush1.bf16.msra.mxu0 %v5668
        %5879 = vmatprep.subr.bf16.mxu0 0
        %5880 = vmatpush1.bf16.msra.mxu0 %v5669
        %5881 = vmatprep.subr.bf16.mxu0 0
        %5882 = vmatpush1.bf16.msra.mxu0 %v5670
        %5883 = vmatprep.subr.bf16.mxu0 0
        %5884 = vmatpush1.bf16.msra.mxu0 %v5671
        %5885 = vmatprep.subr.bf16.mxu0 0
        %5886 = vmatpush1.bf16.msra.mxu0 %v5672
        %5887 = vmatprep.subr.bf16.mxu0 0
        %5888 = vmatpush1.bf16.msra.mxu0 %v5673
        %5889 = vmatprep.subr.bf16.mxu0 0
        %5890 = vmatpush1.bf16.msra.mxu0 %v5674
        %5891 = vmatprep.mubr.bf16.mxu0 %v4274
        %5892 = vmatmul.mubr.bf16.gmra.mrb[0].mxu0 %v4273
        %v5893 = vpop.f32.mrb[0].mxu0
        %v5894 = vadd.f32 %v5854, %v5893
        %v5895 = vpop.f32.mrb[0].mxu0
        %v5896 = vpop.f32.mrb[0].mxu0
        %v5897 = vpop.f32.mrb[0].mxu0
        %5898 = vdwg.mxu0
        %v6027 = vunpack.c.l.b16 %v4459
        %v6028 = vunpack.c.l.b16 %v4460
        %v6029 = vunpack.c.l.b16 %v4461
        %v6030 = vunpack.c.l.b16 %v4462
        %v6031 = vunpack.c.l.b16 %v4463
        %v6032 = vunpack.c.l.b16 %v4464
        %v6033 = vunpack.c.l.b16 %v4465
        %v6034 = vunpack.c.l.b16 %v4466
        %v6035 = vunpack.c.l.b16 %v4467
        %v6036 = vunpack.c.l.b16 %v4468
        %v6037 = vunpack.c.l.b16 %v4469
        %v6038 = vunpack.c.l.b16 %v4470
        %v6039 = vunpack.c.l.b16 %v4471
        %v6040 = vunpack.c.l.b16 %v4472
        %v6041 = vunpack.c.l.b16 %v4473
        %v6042 = vunpack.c.l.b16 %v4474
        %v6043 = vunpack.c.l.b16 %v4475
        %v6044 = vunpack.c.l.b16 %v4476
        %v6045 = vunpack.c.l.b16 %v4477
        %v6046 = vunpack.c.l.b16 %v4478
        %v6047 = vunpack.c.l.b16 %v4479
        %v6048 = vunpack.c.l.b16 %v4480
        %v6049 = vunpack.c.l.b16 %v4481
        %v6050 = vunpack.c.l.b16 %v4482
        %v6051 = vunpack.c.l.b16 %v4483
        %v6052 = vunpack.c.l.b16 %v4484
        %v6053 = vunpack.c.l.b16 %v4485
        %v6054 = vunpack.c.l.b16 %v4486
        %v6055 = vunpack.c.l.b16 %v4487
        %v6056 = vunpack.c.l.b16 %v4488
        %v6057 = vunpack.c.l.b16 %v4489
        %v6058 = vunpack.c.l.b16 %v4490
        %v6059 = vunpack.c.l.b16 %v4491
        %v6060 = vunpack.c.l.b16 %v4492
        %v6061 = vunpack.c.l.b16 %v4493
        %v6062 = vunpack.c.l.b16 %v4494
        %v6063 = vunpack.c.l.b16 %v4495
        %v6064 = vunpack.c.l.b16 %v4496
        %v6065 = vunpack.c.l.b16 %v4497
        %v6066 = vunpack.c.l.b16 %v4498
        %v6067 = vunpack.c.l.b16 %v4499
        %v6068 = vunpack.c.l.b16 %v4500
        %v6069 = vunpack.c.l.b16 %v4501
        %v6070 = vunpack.c.l.b16 %v4502
        %v6071 = vunpack.c.l.b16 %v4503
        %v6072 = vunpack.c.l.b16 %v4504
        %v6073 = vunpack.c.l.b16 %v4505
        %v6074 = vunpack.c.l.b16 %v4506
        %v6075 = vunpack.c.l.b16 %v4507
        %v6076 = vunpack.c.l.b16 %v4508
        %v6077 = vunpack.c.l.b16 %v4509
        %v6078 = vunpack.c.l.b16 %v4510
        %v6079 = vunpack.c.l.b16 %v4511
        %v6080 = vunpack.c.l.b16 %v4512
        %v6081 = vunpack.c.l.b16 %v4513
        %v6082 = vunpack.c.l.b16 %v4514
        %v6083 = vunpack.c.l.b16 %v4515
        %v6084 = vunpack.c.l.b16 %v4516
        %v6085 = vunpack.c.l.b16 %v4517
        %v6086 = vunpack.c.l.b16 %v4518
        %v6087 = vunpack.c.l.b16 %v4519
        %v6088 = vunpack.c.l.b16 %v4520
        %v6089 = vunpack.c.l.b16 %v4521
        %v6090 = vunpack.c.l.b16 %v4522
        %v6091 = vunpack.c.l.b16 %v4523
        %v6092 = vunpack.c.l.b16 %v4524
        %v6093 = vunpack.c.l.b16 %v4525
        %v6094 = vunpack.c.l.b16 %v4526
        %v6095 = vunpack.c.l.b16 %v4527
        %v6096 = vunpack.c.l.b16 %v4528
        %v6097 = vunpack.c.l.b16 %v4529
        %v6098 = vunpack.c.l.b16 %v4530
        %v6099 = vunpack.c.l.b16 %v4531
        %v6100 = vunpack.c.l.b16 %v4532
        %v6101 = vunpack.c.l.b16 %v4533
        %v6102 = vunpack.c.l.b16 %v4534
        %v6103 = vunpack.c.l.b16 %v4535
        %v6104 = vunpack.c.l.b16 %v4536
        %v6105 = vunpack.c.l.b16 %v4537
        %v6106 = vunpack.c.l.b16 %v4538
        %v6107 = vunpack.c.l.b16 %v4539
        %v6108 = vunpack.c.l.b16 %v4540
        %v6109 = vunpack.c.l.b16 %v4541
        %v6110 = vunpack.c.l.b16 %v4542
        %v6111 = vunpack.c.l.b16 %v4543
        %v6112 = vunpack.c.l.b16 %v4544
        %v6113 = vunpack.c.l.b16 %v4545
        %v6114 = vunpack.c.l.b16 %v4546
        %v6115 = vunpack.c.l.b16 %v4547
        %v6116 = vunpack.c.l.b16 %v4548
        %v6117 = vunpack.c.l.b16 %v4549
        %v6118 = vunpack.c.l.b16 %v4550
        %v6119 = vunpack.c.l.b16 %v4551
        %v6120 = vunpack.c.l.b16 %v4552
        %v6121 = vunpack.c.l.b16 %v4553
        %v6122 = vunpack.c.l.b16 %v4554
        %v6123 = vunpack.c.l.b16 %v4555
        %v6124 = vunpack.c.l.b16 %v4556
        %v6125 = vunpack.c.l.b16 %v4557
        %v6126 = vunpack.c.l.b16 %v4558
        %v6127 = vunpack.c.l.b16 %v4559
        %v6128 = vunpack.c.l.b16 %v4560
        %v6129 = vunpack.c.l.b16 %v4561
        %v6130 = vunpack.c.l.b16 %v4562
        %v6131 = vunpack.c.l.b16 %v4563
        %v6132 = vunpack.c.l.b16 %v4564
        %v6133 = vunpack.c.l.b16 %v4565
        %v6134 = vunpack.c.l.b16 %v4566
        %v6135 = vunpack.c.l.b16 %v4567
        %v6136 = vunpack.c.l.b16 %v4568
        %v6137 = vunpack.c.l.b16 %v4569
        %v6138 = vunpack.c.l.b16 %v4570
        %v6139 = vunpack.c.l.b16 %v4571
        %v6140 = vunpack.c.l.b16 %v4572
        %v6141 = vunpack.c.l.b16 %v4573
        %v6142 = vunpack.c.l.b16 %v4574
        %v6143 = vunpack.c.l.b16 %v4575
        %v6144 = vunpack.c.l.b16 %v4576
        %v6145 = vunpack.c.l.b16 %v4577
        %v6146 = vunpack.c.l.b16 %v4578
        %v6147 = vunpack.c.l.b16 %v4579
        %v6148 = vunpack.c.l.b16 %v4580
        %v6149 = vunpack.c.l.b16 %v4581
        %v6150 = vunpack.c.l.b16 %v4582
        %v6151 = vunpack.c.l.b16 %v4583
        %v6152 = vunpack.c.l.b16 %v4584
        %v6153 = vunpack.c.l.b16 %v4585
        %v6154 = vunpack.c.l.b16 %v4586
        %v6155 = vpack.c.b16 %v6028, %v6027
        %v6156 = vpack.c.b16 %v6030, %v6029
        %v6157 = vpack.c.b16 %v6032, %v6031
        %v6158 = vpack.c.b16 %v6034, %v6033
        %v6159 = vpack.c.b16 %v6036, %v6035
        %v6160 = vpack.c.b16 %v6038, %v6037
        %v6161 = vpack.c.b16 %v6040, %v6039
        %v6162 = vpack.c.b16 %v6042, %v6041
        %v6163 = vpack.c.b16 %v6044, %v6043
        %v6164 = vpack.c.b16 %v6046, %v6045
        %v6165 = vpack.c.b16 %v6048, %v6047
        %v6166 = vpack.c.b16 %v6050, %v6049
        %v6167 = vpack.c.b16 %v6052, %v6051
        %v6168 = vpack.c.b16 %v6054, %v6053
        %v6169 = vpack.c.b16 %v6056, %v6055
        %v6170 = vpack.c.b16 %v6058, %v6057
        %v6171 = vpack.c.b16 %v6060, %v6059
        %v6172 = vpack.c.b16 %v6062, %v6061
        %v6173 = vpack.c.b16 %v6064, %v6063
        %v6174 = vpack.c.b16 %v6066, %v6065
        %v6175 = vpack.c.b16 %v6068, %v6067
        %v6176 = vpack.c.b16 %v6070, %v6069
        %v6177 = vpack.c.b16 %v6072, %v6071
        %v6178 = vpack.c.b16 %v6074, %v6073
        %v6179 = vpack.c.b16 %v6076, %v6075
        %v6180 = vpack.c.b16 %v6078, %v6077
        %v6181 = vpack.c.b16 %v6080, %v6079
        %v6182 = vpack.c.b16 %v6082, %v6081
        %v6183 = vpack.c.b16 %v6084, %v6083
        %v6184 = vpack.c.b16 %v6086, %v6085
        %v6185 = vpack.c.b16 %v6088, %v6087
        %v6186 = vpack.c.b16 %v6090, %v6089
        %v6187 = vpack.c.b16 %v6092, %v6091
        %v6188 = vpack.c.b16 %v6094, %v6093
        %v6189 = vpack.c.b16 %v6096, %v6095
        %v6190 = vpack.c.b16 %v6098, %v6097
        %v6191 = vpack.c.b16 %v6100, %v6099
        %v6192 = vpack.c.b16 %v6102, %v6101
        %v6193 = vpack.c.b16 %v6104, %v6103
        %v6194 = vpack.c.b16 %v6106, %v6105
        %v6195 = vpack.c.b16 %v6108, %v6107
        %v6196 = vpack.c.b16 %v6110, %v6109
        %v6197 = vpack.c.b16 %v6112, %v6111
        %v6198 = vpack.c.b16 %v6114, %v6113
        %v6199 = vpack.c.b16 %v6116, %v6115
        %v6200 = vpack.c.b16 %v6118, %v6117
        %v6201 = vpack.c.b16 %v6120, %v6119
        %v6202 = vpack.c.b16 %v6122, %v6121
        %v6203 = vpack.c.b16 %v6124, %v6123
        %v6204 = vpack.c.b16 %v6126, %v6125
        %v6205 = vpack.c.b16 %v6128, %v6127
        %v6206 = vpack.c.b16 %v6130, %v6129
        %v6207 = vpack.c.b16 %v6132, %v6131
        %v6208 = vpack.c.b16 %v6134, %v6133
        %v6209 = vpack.c.b16 %v6136, %v6135
        %v6210 = vpack.c.b16 %v6138, %v6137
        %v6211 = vpack.c.b16 %v6140, %v6139
        %v6212 = vpack.c.b16 %v6142, %v6141
        %v6213 = vpack.c.b16 %v6144, %v6143
        %v6214 = vpack.c.b16 %v6146, %v6145
        %v6215 = vpack.c.b16 %v6148, %v6147
        %v6216 = vpack.c.b16 %v6150, %v6149
        %v6217 = vpack.c.b16 %v6152, %v6151
        %v6218 = vpack.c.b16 %v6154, %v6153
        %6283 = vmatprep.subr.bf16.mxu0 0
        %6284 = vmatpush1.bf16.msra.mxu0 %v6155
        %6285 = vmatprep.subr.bf16.mxu0 0
        %6286 = vmatpush1.bf16.msra.mxu0 %v6156
        %6287 = vmatprep.subr.bf16.mxu0 0
        %6288 = vmatpush1.bf16.msra.mxu0 %v6157
        %6289 = vmatprep.subr.bf16.mxu0 0
        %6290 = vmatpush1.bf16.msra.mxu0 %v6158
        %6291 = vmatprep.subr.bf16.mxu0 0
        %6292 = vmatpush1.bf16.msra.mxu0 %v6159
        %6293 = vmatprep.subr.bf16.mxu0 0
        %6294 = vmatpush1.bf16.msra.mxu0 %v6160
        %6295 = vmatprep.subr.bf16.mxu0 0
        %6296 = vmatpush1.bf16.msra.mxu0 %v6161
        %6297 = vmatprep.subr.bf16.mxu0 0
        %6298 = vmatpush1.bf16.msra.mxu0 %v6162
        %6299 = vmatprep.subr.bf16.mxu0 0
        %6300 = vmatpush1.bf16.msra.mxu0 %v6163
        %6301 = vmatprep.subr.bf16.mxu0 0
        %6302 = vmatpush1.bf16.msra.mxu0 %v6164
        %6303 = vmatprep.subr.bf16.mxu0 0
        %6304 = vmatpush1.bf16.msra.mxu0 %v6165
        %6305 = vmatprep.subr.bf16.mxu0 0
        %6306 = vmatpush1.bf16.msra.mxu0 %v6166
        %6307 = vmatprep.subr.bf16.mxu0 0
        %6308 = vmatpush1.bf16.msra.mxu0 %v6167
        %6309 = vmatprep.subr.bf16.mxu0 0
        %6310 = vmatpush1.bf16.msra.mxu0 %v6168
        %6311 = vmatprep.subr.bf16.mxu0 0
        %6312 = vmatpush1.bf16.msra.mxu0 %v6169
        %6313 = vmatprep.subr.bf16.mxu0 0
        %6314 = vmatpush1.bf16.msra.mxu0 %v6170
        %6315 = vmatprep.mubr.bf16.mxu0 %v4276
        %6316 = vmatmul.mubr.bf16.gmra.mrb[0].mxu0 %v4275
        %v6317 = vpop.f32.mrb[0].mxu0
        %v6318 = vadd.f32 0.0, %v6317
        %v6319 = vpop.f32.mrb[0].mxu0
        %v6320 = vpop.f32.mrb[0].mxu0
        %v6321 = vpop.f32.mrb[0].mxu0
        %6322 = vdwg.mxu0
        %6323 = vmatprep.subr.bf16.mxu0 0
        %6324 = vmatpush1.bf16.msra.mxu0 %v6171
        %6325 = vmatprep.subr.bf16.mxu0 0
        %6326 = vmatpush1.bf16.msra.mxu0 %v6172
        %6327 = vmatprep.subr.bf16.mxu0 0
        %6328 = vmatpush1.bf16.msra.mxu0 %v6173
        %6329 = vmatprep.subr.bf16.mxu0 0
        %6330 = vmatpush1.bf16.msra.mxu0 %v6174
        %6331 = vmatprep.subr.bf16.mxu0 0
        %6332 = vmatpush1.bf16.msra.mxu0 %v6175
        %6333 = vmatprep.subr.bf16.mxu0 0
        %6334 = vmatpush1.bf16.msra.mxu0 %v6176
        %6335 = vmatprep.subr.bf16.mxu0 0
        %6336 = vmatpush1.bf16.msra.mxu0 %v6177
        %6337 = vmatprep.subr.bf16.mxu0 0
        %6338 = vmatpush1.bf16.msra.mxu0 %v6178
        %6339 = vmatprep.subr.bf16.mxu0 0
        %6340 = vmatpush1.bf16.msra.mxu0 %v6179
        %6341 = vmatprep.subr.bf16.mxu0 0
        %6342 = vmatpush1.bf16.msra.mxu0 %v6180
        %6343 = vmatprep.subr.bf16.mxu0 0
        %6344 = vmatpush1.bf16.msra.mxu0 %v6181
        %6345 = vmatprep.subr.bf16.mxu0 0
        %6346 = vmatpush1.bf16.msra.mxu0 %v6182
        %6347 = vmatprep.subr.bf16.mxu0 0
        %6348 = vmatpush1.bf16.msra.mxu0 %v6183
        %6349 = vmatprep.subr.bf16.mxu0 0
        %6350 = vmatpush1.bf16.msra.mxu0 %v6184
        %6351 = vmatprep.subr.bf16.mxu0 0
        %6352 = vmatpush1.bf16.msra.mxu0 %v6185
        %6353 = vmatprep.subr.bf16.mxu0 0
        %6354 = vmatpush1.bf16.msra.mxu0 %v6186
        %6355 = vmatprep.mubr.bf16.mxu0 %v4278
        %6356 = vmatmul.mubr.bf16.gmra.mrb[0].mxu0 %v4277
        %v6357 = vpop.f32.mrb[0].mxu0
        %v6358 = vadd.f32 %v6318, %v6357
        %v6359 = vpop.f32.mrb[0].mxu0
        %v6360 = vpop.f32.mrb[0].mxu0
        %v6361 = vpop.f32.mrb[0].mxu0
        %6362 = vdwg.mxu0
        %6363 = vmatprep.subr.bf16.mxu0 0
        %6364 = vmatpush1.bf16.msra.mxu0 %v6187
        %6365 = vmatprep.subr.bf16.mxu0 0
        %6366 = vmatpush1.bf16.msra.mxu0 %v6188
        %6367 = vmatprep.subr.bf16.mxu0 0
        %6368 = vmatpush1.bf16.msra.mxu0 %v6189
        %6369 = vmatprep.subr.bf16.mxu0 0
        %6370 = vmatpush1.bf16.msra.mxu0 %v6190
        %6371 = vmatprep.subr.bf16.mxu0 0
        %6372 = vmatpush1.bf16.msra.mxu0 %v6191
        %6373 = vmatprep.subr.bf16.mxu0 0
        %6374 = vmatpush1.bf16.msra.mxu0 %v6192
        %6375 = vmatprep.subr.bf16.mxu0 0
        %6376 = vmatpush1.bf16.msra.mxu0 %v6193
        %6377 = vmatprep.subr.bf16.mxu0 0
        %6378 = vmatpush1.bf16.msra.mxu0 %v6194
        %6379 = vmatprep.subr.bf16.mxu0 0
        %6380 = vmatpush1.bf16.msra.mxu0 %v6195
        %6381 = vmatprep.subr.bf16.mxu0 0
        %6382 = vmatpush1.bf16.msra.mxu0 %v6196
        %6383 = vmatprep.subr.bf16.mxu0 0
        %6384 = vmatpush1.bf16.msra.mxu0 %v6197
        %6385 = vmatprep.subr.bf16.mxu0 0
        %6386 = vmatpush1.bf16.msra.mxu0 %v6198
        %6387 = vmatprep.subr.bf16.mxu0 0
        %6388 = vmatpush1.bf16.msra.mxu0 %v6199
        %6389 = vmatprep.subr.bf16.mxu0 0
        %6390 = vmatpush1.bf16.msra.mxu0 %v6200
        %6391 = vmatprep.subr.bf16.mxu0 0
        %6392 = vmatpush1.bf16.msra.mxu0 %v6201
        %6393 = vmatprep.subr.bf16.mxu0 0
        %6394 = vmatpush1.bf16.msra.mxu0 %v6202
        %6395 = vmatprep.mubr.bf16.mxu0 %v4280
        %6396 = vmatmul.mubr.bf16.gmra.mrb[0].mxu0 %v4279
        %v6397 = vpop.f32.mrb[0].mxu0
        %v6398 = vadd.f32 %v6358, %v6397
        %v6399 = vpop.f32.mrb[0].mxu0
        %v6400 = vpop.f32.mrb[0].mxu0
        %v6401 = vpop.f32.mrb[0].mxu0
        %6402 = vdwg.mxu0
        %6403 = vmatprep.subr.bf16.mxu0 0
        %6404 = vmatpush1.bf16.msra.mxu0 %v6203
        %6405 = vmatprep.subr.bf16.mxu0 0
        %6406 = vmatpush1.bf16.msra.mxu0 %v6204
        %6407 = vmatprep.subr.bf16.mxu0 0
        %6408 = vmatpush1.bf16.msra.mxu0 %v6205
        %6409 = vmatprep.subr.bf16.mxu0 0
        %6410 = vmatpush1.bf16.msra.mxu0 %v6206
        %6411 = vmatprep.subr.bf16.mxu0 0
        %6412 = vmatpush1.bf16.msra.mxu0 %v6207
        %6413 = vmatprep.subr.bf16.mxu0 0
        %6414 = vmatpush1.bf16.msra.mxu0 %v6208
        %6415 = vmatprep.subr.bf16.mxu0 0
        %6416 = vmatpush1.bf16.msra.mxu0 %v6209
        %6417 = vmatprep.subr.bf16.mxu0 0
        %6418 = vmatpush1.bf16.msra.mxu0 %v6210
        %6419 = vmatprep.subr.bf16.mxu0 0
        %6420 = vmatpush1.bf16.msra.mxu0 %v6211
        %6421 = vmatprep.subr.bf16.mxu0 0
        %6422 = vmatpush1.bf16.msra.mxu0 %v6212
        %6423 = vmatprep.subr.bf16.mxu0 0
        %6424 = vmatpush1.bf16.msra.mxu0 %v6213
        %6425 = vmatprep.subr.bf16.mxu0 0
        %6426 = vmatpush1.bf16.msra.mxu0 %v6214
        %6427 = vmatprep.subr.bf16.mxu0 0
        %6428 = vmatpush1.bf16.msra.mxu0 %v6215
        %6429 = vmatprep.subr.bf16.mxu0 0
        %6430 = vmatpush1.bf16.msra.mxu0 %v6216
        %6431 = vmatprep.subr.bf16.mxu0 0
        %6432 = vmatpush1.bf16.msra.mxu0 %v6217
        %6433 = vmatprep.subr.bf16.mxu0 0
        %6434 = vmatpush1.bf16.msra.mxu0 %v6218
        %6435 = vmatprep.mubr.bf16.mxu0 %v4282
        %6436 = vmatmul.mubr.bf16.gmra.mrb[0].mxu0 %v4281
        %v6437 = vpop.f32.mrb[0].mxu0
        %v6438 = vadd.f32 %v6398, %v6437
        %v6439 = vpop.f32.mrb[0].mxu0
        %v6440 = vpop.f32.mrb[0].mxu0
        %v6441 = vpop.f32.mrb[0].mxu0
        %6442 = vdwg.mxu0
        %v6571 = vunpack.c.l.b16 %v4587
        %v6572 = vunpack.c.l.b16 %v4588
        %v6573 = vunpack.c.l.b16 %v4589
        %v6574 = vunpack.c.l.b16 %v4590
        %v6575 = vunpack.c.l.b16 %v4591
        %v6576 = vunpack.c.l.b16 %v4592
        %v6577 = vunpack.c.l.b16 %v4593
        %v6578 = vunpack.c.l.b16 %v4594
        %v6579 = vunpack.c.l.b16 %v4595
        %v6580 = vunpack.c.l.b16 %v4596
        %v6581 = vunpack.c.l.b16 %v4597
        %v6582 = vunpack.c.l.b16 %v4598
        %v6583 = vunpack.c.l.b16 %v4599
        %v6584 = vunpack.c.l.b16 %v4600
        %v6585 = vunpack.c.l.b16 %v4601
        %v6586 = vunpack.c.l.b16 %v4602
        %v6587 = vunpack.c.l.b16 %v4603
        %v6588 = vunpack.c.l.b16 %v4604
        %v6589 = vunpack.c.l.b16 %v4605
        %v6590 = vunpack.c.l.b16 %v4606
        %v6591 = vunpack.c.l.b16 %v4607
        %v6592 = vunpack.c.l.b16 %v4608
        %v6593 = vunpack.c.l.b16 %v4609
        %v6594 = vunpack.c.l.b16 %v4610
        %v6595 = vunpack.c.l.b16 %v4611
        %v6596 = vunpack.c.l.b16 %v4612
        %v6597 = vunpack.c.l.b16 %v4613
        %v6598 = vunpack.c.l.b16 %v4614
        %v6599 = vunpack.c.l.b16 %v4615
        %v6600 = vunpack.c.l.b16 %v4616
        %v6601 = vunpack.c.l.b16 %v4617
        %v6602 = vunpack.c.l.b16 %v4618
        %v6603 = vunpack.c.l.b16 %v4619
        %v6604 = vunpack.c.l.b16 %v4620
        %v6605 = vunpack.c.l.b16 %v4621
        %v6606 = vunpack.c.l.b16 %v4622
        %v6607 = vunpack.c.l.b16 %v4623
        %v6608 = vunpack.c.l.b16 %v4624
        %v6609 = vunpack.c.l.b16 %v4625
        %v6610 = vunpack.c.l.b16 %v4626
        %v6611 = vunpack.c.l.b16 %v4627
        %v6612 = vunpack.c.l.b16 %v4628
        %v6613 = vunpack.c.l.b16 %v4629
        %v6614 = vunpack.c.l.b16 %v4630
        %v6615 = vunpack.c.l.b16 %v4631
        %v6616 = vunpack.c.l.b16 %v4632
        %v6617 = vunpack.c.l.b16 %v4633
        %v6618 = vunpack.c.l.b16 %v4634
        %v6619 = vunpack.c.l.b16 %v4635
        %v6620 = vunpack.c.l.b16 %v4636
        %v6621 = vunpack.c.l.b16 %v4637
        %v6622 = vunpack.c.l.b16 %v4638
        %v6623 = vunpack.c.l.b16 %v4639
        %v6624 = vunpack.c.l.b16 %v4640
        %v6625 = vunpack.c.l.b16 %v4641
        %v6626 = vunpack.c.l.b16 %v4642
        %v6627 = vunpack.c.l.b16 %v4643
        %v6628 = vunpack.c.l.b16 %v4644
        %v6629 = vunpack.c.l.b16 %v4645
        %v6630 = vunpack.c.l.b16 %v4646
        %v6631 = vunpack.c.l.b16 %v4647
        %v6632 = vunpack.c.l.b16 %v4648
        %v6633 = vunpack.c.l.b16 %v4649
        %v6634 = vunpack.c.l.b16 %v4650
        %v6635 = vunpack.c.l.b16 %v4651
        %v6636 = vunpack.c.l.b16 %v4652
        %v6637 = vunpack.c.l.b16 %v4653
        %v6638 = vunpack.c.l.b16 %v4654
        %v6639 = vunpack.c.l.b16 %v4655
        %v6640 = vunpack.c.l.b16 %v4656
        %v6641 = vunpack.c.l.b16 %v4657
        %v6642 = vunpack.c.l.b16 %v4658
        %v6643 = vunpack.c.l.b16 %v4659
        %v6644 = vunpack.c.l.b16 %v4660
        %v6645 = vunpack.c.l.b16 %v4661
        %v6646 = vunpack.c.l.b16 %v4662
        %v6647 = vunpack.c.l.b16 %v4663
        %v6648 = vunpack.c.l.b16 %v4664
        %v6649 = vunpack.c.l.b16 %v4665
        %v6650 = vunpack.c.l.b16 %v4666
        %v6651 = vunpack.c.l.b16 %v4667
        %v6652 = vunpack.c.l.b16 %v4668
        %v6653 = vunpack.c.l.b16 %v4669
        %v6654 = vunpack.c.l.b16 %v4670
        %v6655 = vunpack.c.l.b16 %v4671
        %v6656 = vunpack.c.l.b16 %v4672
        %v6657 = vunpack.c.l.b16 %v4673
        %v6658 = vunpack.c.l.b16 %v4674
        %v6659 = vunpack.c.l.b16 %v4675
        %v6660 = vunpack.c.l.b16 %v4676
        %v6661 = vunpack.c.l.b16 %v4677
        %v6662 = vunpack.c.l.b16 %v4678
        %v6663 = vunpack.c.l.b16 %v4679
        %v6664 = vunpack.c.l.b16 %v4680
        %v6665 = vunpack.c.l.b16 %v4681
        %v6666 = vunpack.c.l.b16 %v4682
        %v6667 = vunpack.c.l.b16 %v4683
        %v6668 = vunpack.c.l.b16 %v4684
        %v6669 = vunpack.c.l.b16 %v4685
        %v6670 = vunpack.c.l.b16 %v4686
        %v6671 = vunpack.c.l.b16 %v4687
        %v6672 = vunpack.c.l.b16 %v4688
        %v6673 = vunpack.c.l.b16 %v4689
        %v6674 = vunpack.c.l.b16 %v4690
        %v6675 = vunpack.c.l.b16 %v4691
        %v6676 = vunpack.c.l.b16 %v4692
        %v6677 = vunpack.c.l.b16 %v4693
        %v6678 = vunpack.c.l.b16 %v4694
        %v6679 = vunpack.c.l.b16 %v4695
        %v6680 = vunpack.c.l.b16 %v4696
        %v6681 = vunpack.c.l.b16 %v4697
        %v6682 = vunpack.c.l.b16 %v4698
        %v6683 = vunpack.c.l.b16 %v4699
        %v6684 = vunpack.c.l.b16 %v4700
        %v6685 = vunpack.c.l.b16 %v4701
        %v6686 = vunpack.c.l.b16 %v4702
        %v6687 = vunpack.c.l.b16 %v4703
        %v6688 = vunpack.c.l.b16 %v4704
        %v6689 = vunpack.c.l.b16 %v4705
        %v6690 = vunpack.c.l.b16 %v4706
        %v6691 = vunpack.c.l.b16 %v4707
        %v6692 = vunpack.c.l.b16 %v4708
        %v6693 = vunpack.c.l.b16 %v4709
        %v6694 = vunpack.c.l.b16 %v4710
        %v6695 = vunpack.c.l.b16 %v4711
        %v6696 = vunpack.c.l.b16 %v4712
        %v6697 = vunpack.c.l.b16 %v4713
        %v6698 = vunpack.c.l.b16 %v4714
        %v6699 = vpack.c.b16 %v6572, %v6571
        %v6700 = vpack.c.b16 %v6574, %v6573
        %v6701 = vpack.c.b16 %v6576, %v6575
        %v6702 = vpack.c.b16 %v6578, %v6577
        %v6703 = vpack.c.b16 %v6580, %v6579
        %v6704 = vpack.c.b16 %v6582, %v6581
        %v6705 = vpack.c.b16 %v6584, %v6583
        %v6706 = vpack.c.b16 %v6586, %v6585
        %v6707 = vpack.c.b16 %v6588, %v6587
        %v6708 = vpack.c.b16 %v6590, %v6589
        %v6709 = vpack.c.b16 %v6592, %v6591
        %v6710 = vpack.c.b16 %v6594, %v6593
        %v6711 = vpack.c.b16 %v6596, %v6595
        %v6712 = vpack.c.b16 %v6598, %v6597
        %v6713 = vpack.c.b16 %v6600, %v6599
        %v6714 = vpack.c.b16 %v6602, %v6601
        %v6715 = vpack.c.b16 %v6604, %v6603
        %v6716 = vpack.c.b16 %v6606, %v6605
        %v6717 = vpack.c.b16 %v6608, %v6607
        %v6718 = vpack.c.b16 %v6610, %v6609
        %v6719 = vpack.c.b16 %v6612, %v6611
        %v6720 = vpack.c.b16 %v6614, %v6613
        %v6721 = vpack.c.b16 %v6616, %v6615
        %v6722 = vpack.c.b16 %v6618, %v6617
        %v6723 = vpack.c.b16 %v6620, %v6619
        %v6724 = vpack.c.b16 %v6622, %v6621
        %v6725 = vpack.c.b16 %v6624, %v6623
        %v6726 = vpack.c.b16 %v6626, %v6625
        %v6727 = vpack.c.b16 %v6628, %v6627
        %v6728 = vpack.c.b16 %v6630, %v6629
        %v6729 = vpack.c.b16 %v6632, %v6631
        %v6730 = vpack.c.b16 %v6634, %v6633
        %v6731 = vpack.c.b16 %v6636, %v6635
        %v6732 = vpack.c.b16 %v6638, %v6637
        %v6733 = vpack.c.b16 %v6640, %v6639
        %v6734 = vpack.c.b16 %v6642, %v6641
        %v6735 = vpack.c.b16 %v6644, %v6643
        %v6736 = vpack.c.b16 %v6646, %v6645
        %v6737 = vpack.c.b16 %v6648, %v6647
        %v6738 = vpack.c.b16 %v6650, %v6649
        %v6739 = vpack.c.b16 %v6652, %v6651
        %v6740 = vpack.c.b16 %v6654, %v6653
        %v6741 = vpack.c.b16 %v6656, %v6655
        %v6742 = vpack.c.b16 %v6658, %v6657
        %v6743 = vpack.c.b16 %v6660, %v6659
        %v6744 = vpack.c.b16 %v6662, %v6661
        %v6745 = vpack.c.b16 %v6664, %v6663
        %v6746 = vpack.c.b16 %v6666, %v6665
        %v6747 = vpack.c.b16 %v6668, %v6667
        %v6748 = vpack.c.b16 %v6670, %v6669
        %v6749 = vpack.c.b16 %v6672, %v6671
        %v6750 = vpack.c.b16 %v6674, %v6673
        %v6751 = vpack.c.b16 %v6676, %v6675
        %v6752 = vpack.c.b16 %v6678, %v6677
        %v6753 = vpack.c.b16 %v6680, %v6679
        %v6754 = vpack.c.b16 %v6682, %v6681
        %v6755 = vpack.c.b16 %v6684, %v6683
        %v6756 = vpack.c.b16 %v6686, %v6685
        %v6757 = vpack.c.b16 %v6688, %v6687
        %v6758 = vpack.c.b16 %v6690, %v6689
        %v6759 = vpack.c.b16 %v6692, %v6691
        %v6760 = vpack.c.b16 %v6694, %v6693
        %v6761 = vpack.c.b16 %v6696, %v6695
        %v6762 = vpack.c.b16 %v6698, %v6697
        %6827 = vmatprep.subr.bf16.mxu0 0
        %6828 = vmatpush1.bf16.msra.mxu0 %v6699
        %6829 = vmatprep.subr.bf16.mxu0 0
        %6830 = vmatpush1.bf16.msra.mxu0 %v6700
        %6831 = vmatprep.subr.bf16.mxu0 0
        %6832 = vmatpush1.bf16.msra.mxu0 %v6701
        %6833 = vmatprep.subr.bf16.mxu0 0
        %6834 = vmatpush1.bf16.msra.mxu0 %v6702
        %6835 = vmatprep.subr.bf16.mxu0 0
        %6836 = vmatpush1.bf16.msra.mxu0 %v6703
        %6837 = vmatprep.subr.bf16.mxu0 0
        %6838 = vmatpush1.bf16.msra.mxu0 %v6704
        %6839 = vmatprep.subr.bf16.mxu0 0
        %6840 = vmatpush1.bf16.msra.mxu0 %v6705
        %6841 = vmatprep.subr.bf16.mxu0 0
        %6842 = vmatpush1.bf16.msra.mxu0 %v6706
        %6843 = vmatprep.subr.bf16.mxu0 0
        %6844 = vmatpush1.bf16.msra.mxu0 %v6707
        %6845 = vmatprep.subr.bf16.mxu0 0
        %6846 = vmatpush1.bf16.msra.mxu0 %v6708
        %6847 = vmatprep.subr.bf16.mxu0 0
        %6848 = vmatpush1.bf16.msra.mxu0 %v6709
        %6849 = vmatprep.subr.bf16.mxu0 0
        %6850 = vmatpush1.bf16.msra.mxu0 %v6710
        %6851 = vmatprep.subr.bf16.mxu0 0
        %6852 = vmatpush1.bf16.msra.mxu0 %v6711
        %6853 = vmatprep.subr.bf16.mxu0 0
        %6854 = vmatpush1.bf16.msra.mxu0 %v6712
        %6855 = vmatprep.subr.bf16.mxu0 0
        %6856 = vmatpush1.bf16.msra.mxu0 %v6713
        %6857 = vmatprep.subr.bf16.mxu0 0
        %6858 = vmatpush1.bf16.msra.mxu0 %v6714
        %6859 = vmatprep.mubr.bf16.mxu0 %v4284
        %6860 = vmatmul.mubr.bf16.gmra.mrb[0].mxu0 %v4283
        %v6861 = vpop.f32.mrb[0].mxu0
        %v6862 = vadd.f32 0.0, %v6861
        %v6863 = vpop.f32.mrb[0].mxu0
        %v6864 = vpop.f32.mrb[0].mxu0
        %v6865 = vpop.f32.mrb[0].mxu0
        %6866 = vdwg.mxu0
        %6867 = vmatprep.subr.bf16.mxu0 0
        %6868 = vmatpush1.bf16.msra.mxu0 %v6715
        %6869 = vmatprep.subr.bf16.mxu0 0
        %6870 = vmatpush1.bf16.msra.mxu0 %v6716
        %6871 = vmatprep.subr.bf16.mxu0 0
        %6872 = vmatpush1.bf16.msra.mxu0 %v6717
        %6873 = vmatprep.subr.bf16.mxu0 0
        %6874 = vmatpush1.bf16.msra.mxu0 %v6718
        %6875 = vmatprep.subr.bf16.mxu0 0
        %6876 = vmatpush1.bf16.msra.mxu0 %v6719
        %6877 = vmatprep.subr.bf16.mxu0 0
        %6878 = vmatpush1.bf16.msra.mxu0 %v6720
        %6879 = vmatprep.subr.bf16.mxu0 0
        %6880 = vmatpush1.bf16.msra.mxu0 %v6721
        %6881 = vmatprep.subr.bf16.mxu0 0
        %6882 = vmatpush1.bf16.msra.mxu0 %v6722
        %6883 = vmatprep.subr.bf16.mxu0 0
        %6884 = vmatpush1.bf16.msra.mxu0 %v6723
        %6885 = vmatprep.subr.bf16.mxu0 0
        %6886 = vmatpush1.bf16.msra.mxu0 %v6724
        %6887 = vmatprep.subr.bf16.mxu0 0
        %6888 = vmatpush1.bf16.msra.mxu0 %v6725
        %6889 = vmatprep.subr.bf16.mxu0 0
        %6890 = vmatpush1.bf16.msra.mxu0 %v6726
        %6891 = vmatprep.subr.bf16.mxu0 0
        %6892 = vmatpush1.bf16.msra.mxu0 %v6727
        %6893 = vmatprep.subr.bf16.mxu0 0
        %6894 = vmatpush1.bf16.msra.mxu0 %v6728
        %6895 = vmatprep.subr.bf16.mxu0 0
        %6896 = vmatpush1.bf16.msra.mxu0 %v6729
        %6897 = vmatprep.subr.bf16.mxu0 0
        %6898 = vmatpush1.bf16.msra.mxu0 %v6730
        %6899 = vmatprep.mubr.bf16.mxu0 %v4286
        %6900 = vmatmul.mubr.bf16.gmra.mrb[0].mxu0 %v4285
        %v6901 = vpop.f32.mrb[0].mxu0
        %v6902 = vadd.f32 %v6862, %v6901
        %v6903 = vpop.f32.mrb[0].mxu0
        %v6904 = vpop.f32.mrb[0].mxu0
        %v6905 = vpop.f32.mrb[0].mxu0
        %6906 = vdwg.mxu0
        %6907 = vmatprep.subr.bf16.mxu0 0
        %6908 = vmatpush1.bf16.msra.mxu0 %v6731
        %6909 = vmatprep.subr.bf16.mxu0 0
        %6910 = vmatpush1.bf16.msra.mxu0 %v6732
        %6911 = vmatprep.subr.bf16.mxu0 0
        %6912 = vmatpush1.bf16.msra.mxu0 %v6733
        %6913 = vmatprep.subr.bf16.mxu0 0
        %6914 = vmatpush1.bf16.msra.mxu0 %v6734
        %6915 = vmatprep.subr.bf16.mxu0 0
        %6916 = vmatpush1.bf16.msra.mxu0 %v6735
        %6917 = vmatprep.subr.bf16.mxu0 0
        %6918 = vmatpush1.bf16.msra.mxu0 %v6736
        %6919 = vmatprep.subr.bf16.mxu0 0
        %6920 = vmatpush1.bf16.msra.mxu0 %v6737
        %6921 = vmatprep.subr.bf16.mxu0 0
        %6922 = vmatpush1.bf16.msra.mxu0 %v6738
        %6923 = vmatprep.subr.bf16.mxu0 0
        %6924 = vmatpush1.bf16.msra.mxu0 %v6739
        %6925 = vmatprep.subr.bf16.mxu0 0
        %6926 = vmatpush1.bf16.msra.mxu0 %v6740
        %6927 = vmatprep.subr.bf16.mxu0 0
        %6928 = vmatpush1.bf16.msra.mxu0 %v6741
        %6929 = vmatprep.subr.bf16.mxu0 0
        %6930 = vmatpush1.bf16.msra.mxu0 %v6742
        %6931 = vmatprep.subr.bf16.mxu0 0
        %6932 = vmatpush1.bf16.msra.mxu0 %v6743
        %6933 = vmatprep.subr.bf16.mxu0 0
        %6934 = vmatpush1.bf16.msra.mxu0 %v6744
        %6935 = vmatprep.subr.bf16.mxu0 0
        %6936 = vmatpush1.bf16.msra.mxu0 %v6745
        %6937 = vmatprep.subr.bf16.mxu0 0
        %6938 = vmatpush1.bf16.msra.mxu0 %v6746
        %6939 = vmatprep.mubr.bf16.mxu0 %v4288
        %6940 = vmatmul.mubr.bf16.gmra.mrb[0].mxu0 %v4287
        %v6941 = vpop.f32.mrb[0].mxu0
        %v6942 = vadd.f32 %v6902, %v6941
        %v6943 = vpop.f32.mrb[0].mxu0
        %v6944 = vpop.f32.mrb[0].mxu0
        %v6945 = vpop.f32.mrb[0].mxu0
        %6946 = vdwg.mxu0
        %6947 = vmatprep.subr.bf16.mxu0 0
        %6948 = vmatpush1.bf16.msra.mxu0 %v6747
        %6949 = vmatprep.subr.bf16.mxu0 0
        %6950 = vmatpush1.bf16.msra.mxu0 %v6748
        %6951 = vmatprep.subr.bf16.mxu0 0
        %6952 = vmatpush1.bf16.msra.mxu0 %v6749
        %6953 = vmatprep.subr.bf16.mxu0 0
        %6954 = vmatpush1.bf16.msra.mxu0 %v6750
        %6955 = vmatprep.subr.bf16.mxu0 0
        %6956 = vmatpush1.bf16.msra.mxu0 %v6751
        %6957 = vmatprep.subr.bf16.mxu0 0
        %6958 = vmatpush1.bf16.msra.mxu0 %v6752
        %6959 = vmatprep.subr.bf16.mxu0 0
        %6960 = vmatpush1.bf16.msra.mxu0 %v6753
        %6961 = vmatprep.subr.bf16.mxu0 0
        %6962 = vmatpush1.bf16.msra.mxu0 %v6754
        %6963 = vmatprep.subr.bf16.mxu0 0
        %6964 = vmatpush1.bf16.msra.mxu0 %v6755
        %6965 = vmatprep.subr.bf16.mxu0 0
        %6966 = vmatpush1.bf16.msra.mxu0 %v6756
        %6967 = vmatprep.subr.bf16.mxu0 0
        %6968 = vmatpush1.bf16.msra.mxu0 %v6757
        %6969 = vmatprep.subr.bf16.mxu0 0
        %6970 = vmatpush1.bf16.msra.mxu0 %v6758
        %6971 = vmatprep.subr.bf16.mxu0 0
        %6972 = vmatpush1.bf16.msra.mxu0 %v6759
        %6973 = vmatprep.subr.bf16.mxu0 0
        %6974 = vmatpush1.bf16.msra.mxu0 %v6760
        %6975 = vmatprep.subr.bf16.mxu0 0
        %6976 = vmatpush1.bf16.msra.mxu0 %v6761
        %6977 = vmatprep.subr.bf16.mxu0 0
        %6978 = vmatpush1.bf16.msra.mxu0 %v6762
        %6979 = vmatprep.mubr.bf16.mxu0 %v4290
        %6980 = vmatmul.mubr.bf16.gmra.mrb[0].mxu0 %v4289
        %v6981 = vpop.f32.mrb[0].mxu0
        %v6982 = vadd.f32 %v6942, %v6981
        %v6983 = vpop.f32.mrb[0].mxu0
        %v6984 = vpop.f32.mrb[0].mxu0
        %v6985 = vpop.f32.mrb[0].mxu0
        %6986 = vdwg.mxu0
        %v7115 = vunpack.c.l.b16 %v4715
        %v7116 = vunpack.c.l.b16 %v4716
        %v7117 = vunpack.c.l.b16 %v4717
        %v7118 = vunpack.c.l.b16 %v4718
        %v7119 = vunpack.c.l.b16 %v4719
        %v7120 = vunpack.c.l.b16 %v4720
        %v7121 = vunpack.c.l.b16 %v4721
        %v7122 = vunpack.c.l.b16 %v4722
        %v7123 = vunpack.c.l.b16 %v4723
        %v7124 = vunpack.c.l.b16 %v4724
        %v7125 = vunpack.c.l.b16 %v4725
        %v7126 = vunpack.c.l.b16 %v4726
        %v7127 = vunpack.c.l.b16 %v4727
        %v7128 = vunpack.c.l.b16 %v4728
        %v7129 = vunpack.c.l.b16 %v4729
        %v7130 = vunpack.c.l.b16 %v4730
        %v7131 = vunpack.c.l.b16 %v4731
        %v7132 = vunpack.c.l.b16 %v4732
        %v7133 = vunpack.c.l.b16 %v4733
        %v7134 = vunpack.c.l.b16 %v4734
        %v7135 = vunpack.c.l.b16 %v4735
        %v7136 = vunpack.c.l.b16 %v4736
        %v7137 = vunpack.c.l.b16 %v4737
        %v7138 = vunpack.c.l.b16 %v4738
        %v7139 = vunpack.c.l.b16 %v4739
        %v7140 = vunpack.c.l.b16 %v4740
        %v7141 = vunpack.c.l.b16 %v4741
        %v7142 = vunpack.c.l.b16 %v4742
        %v7143 = vunpack.c.l.b16 %v4743
        %v7144 = vunpack.c.l.b16 %v4744
        %v7145 = vunpack.c.l.b16 %v4745
        %v7146 = vunpack.c.l.b16 %v4746
        %v7147 = vunpack.c.l.b16 %v4747
        %v7148 = vunpack.c.l.b16 %v4748
        %v7149 = vunpack.c.l.b16 %v4749
        %v7150 = vunpack.c.l.b16 %v4750
        %v7151 = vunpack.c.l.b16 %v4751
        %v7152 = vunpack.c.l.b16 %v4752
        %v7153 = vunpack.c.l.b16 %v4753
        %v7154 = vunpack.c.l.b16 %v4754
        %v7155 = vunpack.c.l.b16 %v4755
        %v7156 = vunpack.c.l.b16 %v4756
        %v7157 = vunpack.c.l.b16 %v4757
        %v7158 = vunpack.c.l.b16 %v4758
        %v7159 = vunpack.c.l.b16 %v4759
        %v7160 = vunpack.c.l.b16 %v4760
        %v7161 = vunpack.c.l.b16 %v4761
        %v7162 = vunpack.c.l.b16 %v4762
        %v7163 = vunpack.c.l.b16 %v4763
        %v7164 = vunpack.c.l.b16 %v4764
        %v7165 = vunpack.c.l.b16 %v4765
        %v7166 = vunpack.c.l.b16 %v4766
        %v7167 = vunpack.c.l.b16 %v4767
        %v7168 = vunpack.c.l.b16 %v4768
        %v7169 = vunpack.c.l.b16 %v4769
        %v7170 = vunpack.c.l.b16 %v4770
        %v7171 = vunpack.c.l.b16 %v4771
        %v7172 = vunpack.c.l.b16 %v4772
        %v7173 = vunpack.c.l.b16 %v4773
        %v7174 = vunpack.c.l.b16 %v4774
        %v7175 = vunpack.c.l.b16 %v4775
        %v7176 = vunpack.c.l.b16 %v4776
        %v7177 = vunpack.c.l.b16 %v4777
        %v7178 = vunpack.c.l.b16 %v4778
        %v7179 = vunpack.c.l.b16 %v4779
        %v7180 = vunpack.c.l.b16 %v4780
        %v7181 = vunpack.c.l.b16 %v4781
        %v7182 = vunpack.c.l.b16 %v4782
        %v7183 = vunpack.c.l.b16 %v4783
        %v7184 = vunpack.c.l.b16 %v4784
        %v7185 = vunpack.c.l.b16 %v4785
        %v7186 = vunpack.c.l.b16 %v4786
        %v7187 = vunpack.c.l.b16 %v4787
        %v7188 = vunpack.c.l.b16 %v4788
        %v7189 = vunpack.c.l.b16 %v4789
        %v7190 = vunpack.c.l.b16 %v4790
        %v7191 = vunpack.c.l.b16 %v4791
        %v7192 = vunpack.c.l.b16 %v4792
        %v7193 = vunpack.c.l.b16 %v4793
        %v7194 = vunpack.c.l.b16 %v4794
        %v7195 = vunpack.c.l.b16 %v4795
        %v7196 = vunpack.c.l.b16 %v4796
        %v7197 = vunpack.c.l.b16 %v4797
        %v7198 = vunpack.c.l.b16 %v4798
        %v7199 = vunpack.c.l.b16 %v4799
        %v7200 = vunpack.c.l.b16 %v4800
        %v7201 = vunpack.c.l.b16 %v4801
        %v7202 = vunpack.c.l.b16 %v4802
        %v7203 = vunpack.c.l.b16 %v4803
        %v7204 = vunpack.c.l.b16 %v4804
        %v7205 = vunpack.c.l.b16 %v4805
        %v7206 = vunpack.c.l.b16 %v4806
        %v7207 = vunpack.c.l.b16 %v4807
        %v7208 = vunpack.c.l.b16 %v4808
        %v7209 = vunpack.c.l.b16 %v4809
        %v7210 = vunpack.c.l.b16 %v4810
        %v7211 = vunpack.c.l.b16 %v4811
        %v7212 = vunpack.c.l.b16 %v4812
        %v7213 = vunpack.c.l.b16 %v4813
        %v7214 = vunpack.c.l.b16 %v4814
        %v7215 = vunpack.c.l.b16 %v4815
        %v7216 = vunpack.c.l.b16 %v4816
        %v7217 = vunpack.c.l.b16 %v4817
        %v7218 = vunpack.c.l.b16 %v4818
        %v7219 = vunpack.c.l.b16 %v4819
        %v7220 = vunpack.c.l.b16 %v4820
        %v7221 = vunpack.c.l.b16 %v4821
        %v7222 = vunpack.c.l.b16 %v4822
        %v7223 = vunpack.c.l.b16 %v4823
        %v7224 = vunpack.c.l.b16 %v4824
        %v7225 = vunpack.c.l.b16 %v4825
        %v7226 = vunpack.c.l.b16 %v4826
        %v7227 = vunpack.c.l.b16 %v4827
        %v7228 = vunpack.c.l.b16 %v4828
        %v7229 = vunpack.c.l.b16 %v4829
        %v7230 = vunpack.c.l.b16 %v4830
        %v7231 = vunpack.c.l.b16 %v4831
        %v7232 = vunpack.c.l.b16 %v4832
        %v7233 = vunpack.c.l.b16 %v4833
        %v7234 = vunpack.c.l.b16 %v4834
        %v7235 = vunpack.c.l.b16 %v4835
        %v7236 = vunpack.c.l.b16 %v4836
        %v7237 = vunpack.c.l.b16 %v4837
        %v7238 = vunpack.c.l.b16 %v4838
        %v7239 = vunpack.c.l.b16 %v4839
        %v7240 = vunpack.c.l.b16 %v4840
        %v7241 = vunpack.c.l.b16 %v4841
        %v7242 = vunpack.c.l.b16 %v4842
        %v7243 = vpack.c.b16 %v7116, %v7115
        %v7244 = vpack.c.b16 %v7118, %v7117
        %v7245 = vpack.c.b16 %v7120, %v7119
        %v7246 = vpack.c.b16 %v7122, %v7121
        %v7247 = vpack.c.b16 %v7124, %v7123
        %v7248 = vpack.c.b16 %v7126, %v7125
        %v7249 = vpack.c.b16 %v7128, %v7127
        %v7250 = vpack.c.b16 %v7130, %v7129
        %v7251 = vpack.c.b16 %v7132, %v7131
        %v7252 = vpack.c.b16 %v7134, %v7133
        %v7253 = vpack.c.b16 %v7136, %v7135
        %v7254 = vpack.c.b16 %v7138, %v7137
        %v7255 = vpack.c.b16 %v7140, %v7139
        %v7256 = vpack.c.b16 %v7142, %v7141
        %v7257 = vpack.c.b16 %v7144, %v7143
        %v7258 = vpack.c.b16 %v7146, %v7145
        %v7259 = vpack.c.b16 %v7148, %v7147
        %v7260 = vpack.c.b16 %v7150, %v7149
        %v7261 = vpack.c.b16 %v7152, %v7151
        %v7262 = vpack.c.b16 %v7154, %v7153
        %v7263 = vpack.c.b16 %v7156, %v7155
        %v7264 = vpack.c.b16 %v7158, %v7157
        %v7265 = vpack.c.b16 %v7160, %v7159
        %v7266 = vpack.c.b16 %v7162, %v7161
        %v7267 = vpack.c.b16 %v7164, %v7163
        %v7268 = vpack.c.b16 %v7166, %v7165
        %v7269 = vpack.c.b16 %v7168, %v7167
        %v7270 = vpack.c.b16 %v7170, %v7169
        %v7271 = vpack.c.b16 %v7172, %v7171
        %v7272 = vpack.c.b16 %v7174, %v7173
        %v7273 = vpack.c.b16 %v7176, %v7175
        %v7274 = vpack.c.b16 %v7178, %v7177
        %v7275 = vpack.c.b16 %v7180, %v7179
        %v7276 = vpack.c.b16 %v7182, %v7181
        %v7277 = vpack.c.b16 %v7184, %v7183
        %v7278 = vpack.c.b16 %v7186, %v7185
        %v7279 = vpack.c.b16 %v7188, %v7187
        %v7280 = vpack.c.b16 %v7190, %v7189
        %v7281 = vpack.c.b16 %v7192, %v7191
        %v7282 = vpack.c.b16 %v7194, %v7193
        %v7283 = vpack.c.b16 %v7196, %v7195
        %v7284 = vpack.c.b16 %v7198, %v7197
        %v7285 = vpack.c.b16 %v7200, %v7199
        %v7286 = vpack.c.b16 %v7202, %v7201
        %v7287 = vpack.c.b16 %v7204, %v7203
        %v7288 = vpack.c.b16 %v7206, %v7205
        %v7289 = vpack.c.b16 %v7208, %v7207
        %v7290 = vpack.c.b16 %v7210, %v7209
        %v7291 = vpack.c.b16 %v7212, %v7211
        %v7292 = vpack.c.b16 %v7214, %v7213
        %v7293 = vpack.c.b16 %v7216, %v7215
        %v7294 = vpack.c.b16 %v7218, %v7217
        %v7295 = vpack.c.b16 %v7220, %v7219
        %v7296 = vpack.c.b16 %v7222, %v7221
        %v7297 = vpack.c.b16 %v7224, %v7223
        %v7298 = vpack.c.b16 %v7226, %v7225
        %v7299 = vpack.c.b16 %v7228, %v7227
        %v7300 = vpack.c.b16 %v7230, %v7229
        %v7301 = vpack.c.b16 %v7232, %v7231
        %v7302 = vpack.c.b16 %v7234, %v7233
        %v7303 = vpack.c.b16 %v7236, %v7235
        %v7304 = vpack.c.b16 %v7238, %v7237
        %v7305 = vpack.c.b16 %v7240, %v7239
        %v7306 = vpack.c.b16 %v7242, %v7241
        %7371 = vmatprep.subr.bf16.mxu0 0
        %7372 = vmatpush1.bf16.msra.mxu0 %v7243
        %7373 = vmatprep.subr.bf16.mxu0 0
        %7374 = vmatpush1.bf16.msra.mxu0 %v7244
        %7375 = vmatprep.subr.bf16.mxu0 0
        %7376 = vmatpush1.bf16.msra.mxu0 %v7245
        %7377 = vmatprep.subr.bf16.mxu0 0
        %7378 = vmatpush1.bf16.msra.mxu0 %v7246
        %7379 = vmatprep.subr.bf16.mxu0 0
        %7380 = vmatpush1.bf16.msra.mxu0 %v7247
        %7381 = vmatprep.subr.bf16.mxu0 0
        %7382 = vmatpush1.bf16.msra.mxu0 %v7248
        %7383 = vmatprep.subr.bf16.mxu0 0
        %7384 = vmatpush1.bf16.msra.mxu0 %v7249
        %7385 = vmatprep.subr.bf16.mxu0 0
        %7386 = vmatpush1.bf16.msra.mxu0 %v7250
        %7387 = vmatprep.subr.bf16.mxu0 0
        %7388 = vmatpush1.bf16.msra.mxu0 %v7251
        %7389 = vmatprep.subr.bf16.mxu0 0
        %7390 = vmatpush1.bf16.msra.mxu0 %v7252
        %7391 = vmatprep.subr.bf16.mxu0 0
        %7392 = vmatpush1.bf16.msra.mxu0 %v7253
        %7393 = vmatprep.subr.bf16.mxu0 0
        %7394 = vmatpush1.bf16.msra.mxu0 %v7254
        %7395 = vmatprep.subr.bf16.mxu0 0
        %7396 = vmatpush1.bf16.msra.mxu0 %v7255
        %7397 = vmatprep.subr.bf16.mxu0 0
        %7398 = vmatpush1.bf16.msra.mxu0 %v7256
        %7399 = vmatprep.subr.bf16.mxu0 0
        %7400 = vmatpush1.bf16.msra.mxu0 %v7257
        %7401 = vmatprep.subr.bf16.mxu0 0
        %7402 = vmatpush1.bf16.msra.mxu0 %v7258
        %7403 = vmatprep.mubr.bf16.mxu0 %v4292
        %7404 = vmatmul.mubr.bf16.gmra.mrb[0].mxu0 %v4291
        %v7405 = vpop.f32.mrb[0].mxu0
        %v7406 = vadd.f32 0.0, %v7405
        %v7407 = vpop.f32.mrb[0].mxu0
        %v7408 = vpop.f32.mrb[0].mxu0
        %v7409 = vpop.f32.mrb[0].mxu0
        %7410 = vdwg.mxu0
        %7411 = vmatprep.subr.bf16.mxu0 0
        %7412 = vmatpush1.bf16.msra.mxu0 %v7259
        %7413 = vmatprep.subr.bf16.mxu0 0
        %7414 = vmatpush1.bf16.msra.mxu0 %v7260
        %7415 = vmatprep.subr.bf16.mxu0 0
        %7416 = vmatpush1.bf16.msra.mxu0 %v7261
        %7417 = vmatprep.subr.bf16.mxu0 0
        %7418 = vmatpush1.bf16.msra.mxu0 %v7262
        %7419 = vmatprep.subr.bf16.mxu0 0
        %7420 = vmatpush1.bf16.msra.mxu0 %v7263
        %7421 = vmatprep.subr.bf16.mxu0 0
        %7422 = vmatpush1.bf16.msra.mxu0 %v7264
        %7423 = vmatprep.subr.bf16.mxu0 0
        %7424 = vmatpush1.bf16.msra.mxu0 %v7265
        %7425 = vmatprep.subr.bf16.mxu0 0
        %7426 = vmatpush1.bf16.msra.mxu0 %v7266
        %7427 = vmatprep.subr.bf16.mxu0 0
        %7428 = vmatpush1.bf16.msra.mxu0 %v7267
        %7429 = vmatprep.subr.bf16.mxu0 0
        %7430 = vmatpush1.bf16.msra.mxu0 %v7268
        %7431 = vmatprep.subr.bf16.mxu0 0
        %7432 = vmatpush1.bf16.msra.mxu0 %v7269
        %7433 = vmatprep.subr.bf16.mxu0 0
        %7434 = vmatpush1.bf16.msra.mxu0 %v7270
        %7435 = vmatprep.subr.bf16.mxu0 0
        %7436 = vmatpush1.bf16.msra.mxu0 %v7271
        %7437 = vmatprep.subr.bf16.mxu0 0
        %7438 = vmatpush1.bf16.msra.mxu0 %v7272
        %7439 = vmatprep.subr.bf16.mxu0 0
        %7440 = vmatpush1.bf16.msra.mxu0 %v7273
        %7441 = vmatprep.subr.bf16.mxu0 0
        %7442 = vmatpush1.bf16.msra.mxu0 %v7274
        %7443 = vmatprep.mubr.bf16.mxu0 %v4294
        %7444 = vmatmul.mubr.bf16.gmra.mrb[0].mxu0 %v4293
        %v7445 = vpop.f32.mrb[0].mxu0
        %v7446 = vadd.f32 %v7406, %v7445
        %v7447 = vpop.f32.mrb[0].mxu0
        %v7448 = vpop.f32.mrb[0].mxu0
        %v7449 = vpop.f32.mrb[0].mxu0
        %7450 = vdwg.mxu0
        %7451 = vmatprep.subr.bf16.mxu0 0
        %7452 = vmatpush1.bf16.msra.mxu0 %v7275
        %7453 = vmatprep.subr.bf16.mxu0 0
        %7454 = vmatpush1.bf16.msra.mxu0 %v7276
        %7455 = vmatprep.subr.bf16.mxu0 0
        %7456 = vmatpush1.bf16.msra.mxu0 %v7277
        %7457 = vmatprep.subr.bf16.mxu0 0
        %7458 = vmatpush1.bf16.msra.mxu0 %v7278
        %7459 = vmatprep.subr.bf16.mxu0 0
        %7460 = vmatpush1.bf16.msra.mxu0 %v7279
        %7461 = vmatprep.subr.bf16.mxu0 0
        %7462 = vmatpush1.bf16.msra.mxu0 %v7280
        %7463 = vmatprep.subr.bf16.mxu0 0
        %7464 = vmatpush1.bf16.msra.mxu0 %v7281
        %7465 = vmatprep.subr.bf16.mxu0 0
        %7466 = vmatpush1.bf16.msra.mxu0 %v7282
        %7467 = vmatprep.subr.bf16.mxu0 0
        %7468 = vmatpush1.bf16.msra.mxu0 %v7283
        %7469 = vmatprep.subr.bf16.mxu0 0
        %7470 = vmatpush1.bf16.msra.mxu0 %v7284
        %7471 = vmatprep.subr.bf16.mxu0 0
        %7472 = vmatpush1.bf16.msra.mxu0 %v7285
        %7473 = vmatprep.subr.bf16.mxu0 0
        %7474 = vmatpush1.bf16.msra.mxu0 %v7286
        %7475 = vmatprep.subr.bf16.mxu0 0
        %7476 = vmatpush1.bf16.msra.mxu0 %v7287
        %7477 = vmatprep.subr.bf16.mxu0 0
        %7478 = vmatpush1.bf16.msra.mxu0 %v7288
        %7479 = vmatprep.subr.bf16.mxu0 0
        %7480 = vmatpush1.bf16.msra.mxu0 %v7289
        %7481 = vmatprep.subr.bf16.mxu0 0
        %7482 = vmatpush1.bf16.msra.mxu0 %v7290
        %7483 = vmatprep.mubr.bf16.mxu0 %v4296
        %7484 = vmatmul.mubr.bf16.gmra.mrb[0].mxu0 %v4295
        %v7485 = vpop.f32.mrb[0].mxu0
        %v7486 = vadd.f32 %v7446, %v7485
        %v7487 = vpop.f32.mrb[0].mxu0
        %v7488 = vpop.f32.mrb[0].mxu0
        %v7489 = vpop.f32.mrb[0].mxu0
        %7490 = vdwg.mxu0
        %7491 = vmatprep.subr.bf16.mxu0 0
        %7492 = vmatpush1.bf16.msra.mxu0 %v7291
        %7493 = vmatprep.subr.bf16.mxu0 0
        %7494 = vmatpush1.bf16.msra.mxu0 %v7292
        %7495 = vmatprep.subr.bf16.mxu0 0
        %7496 = vmatpush1.bf16.msra.mxu0 %v7293
        %7497 = vmatprep.subr.bf16.mxu0 0
        %7498 = vmatpush1.bf16.msra.mxu0 %v7294
        %7499 = vmatprep.subr.bf16.mxu0 0
        %7500 = vmatpush1.bf16.msra.mxu0 %v7295
        %7501 = vmatprep.subr.bf16.mxu0 0
        %7502 = vmatpush1.bf16.msra.mxu0 %v7296
        %7503 = vmatprep.subr.bf16.mxu0 0
        %7504 = vmatpush1.bf16.msra.mxu0 %v7297
        %7505 = vmatprep.subr.bf16.mxu0 0
        %7506 = vmatpush1.bf16.msra.mxu0 %v7298
        %7507 = vmatprep.subr.bf16.mxu0 0
        %7508 = vmatpush1.bf16.msra.mxu0 %v7299
        %7509 = vmatprep.subr.bf16.mxu0 0
        %7510 = vmatpush1.bf16.msra.mxu0 %v7300
        %7511 = vmatprep.subr.bf16.mxu0 0
        %7512 = vmatpush1.bf16.msra.mxu0 %v7301
        %7513 = vmatprep.subr.bf16.mxu0 0
        %7514 = vmatpush1.bf16.msra.mxu0 %v7302
        %7515 = vmatprep.subr.bf16.mxu0 0
        %7516 = vmatpush1.bf16.msra.mxu0 %v7303
        %7517 = vmatprep.subr.bf16.mxu0 0
        %7518 = vmatpush1.bf16.msra.mxu0 %v7304
        %7519 = vmatprep.subr.bf16.mxu0 0
        %7520 = vmatpush1.bf16.msra.mxu0 %v7305
        %7521 = vmatprep.subr.bf16.mxu0 0
        %7522 = vmatpush1.bf16.msra.mxu0 %v7306
        %7523 = vmatprep.mubr.bf16.mxu0 %v4298
        %7524 = vmatmul.mubr.bf16.gmra.mrb[0].mxu0 %v4297
        %v7525 = vpop.f32.mrb[0].mxu0
        %v7526 = vadd.f32 %v7486, %v7525
        %v7527 = vpop.f32.mrb[0].mxu0
        %v7528 = vpop.f32.mrb[0].mxu0
        %v7529 = vpop.f32.mrb[0].mxu0
        %7530 = vdwg.mxu0
        %v7659 = vunpack.c.l.b16 %v4843
        %v7660 = vunpack.c.l.b16 %v4844
        %v7661 = vunpack.c.l.b16 %v4845
        %v7662 = vunpack.c.l.b16 %v4846
        %v7663 = vunpack.c.l.b16 %v4847
        %v7664 = vunpack.c.l.b16 %v4848
        %v7665 = vunpack.c.l.b16 %v4849
        %v7666 = vunpack.c.l.b16 %v4850
        %v7667 = vunpack.c.l.b16 %v4851
        %v7668 = vunpack.c.l.b16 %v4852
        %v7669 = vunpack.c.l.b16 %v4853
        %v7670 = vunpack.c.l.b16 %v4854
        %v7671 = vunpack.c.l.b16 %v4855
        %v7672 = vunpack.c.l.b16 %v4856
        %v7673 = vunpack.c.l.b16 %v4857
        %v7674 = vunpack.c.l.b16 %v4858
        %v7675 = vunpack.c.l.b16 %v4859
        %v7676 = vunpack.c.l.b16 %v4860
        %v7677 = vunpack.c.l.b16 %v4861
        %v7678 = vunpack.c.l.b16 %v4862
        %v7679 = vunpack.c.l.b16 %v4863
        %v7680 = vunpack.c.l.b16 %v4864
        %v7681 = vunpack.c.l.b16 %v4865
        %v7682 = vunpack.c.l.b16 %v4866
        %v7683 = vunpack.c.l.b16 %v4867
        %v7684 = vunpack.c.l.b16 %v4868
        %v7685 = vunpack.c.l.b16 %v4869
        %v7686 = vunpack.c.l.b16 %v4870
        %v7687 = vunpack.c.l.b16 %v4871
        %v7688 = vunpack.c.l.b16 %v4872
        %v7689 = vunpack.c.l.b16 %v4873
        %v7690 = vunpack.c.l.b16 %v4874
        %v7691 = vunpack.c.l.b16 %v4875
        %v7692 = vunpack.c.l.b16 %v4876
        %v7693 = vunpack.c.l.b16 %v4877
        %v7694 = vunpack.c.l.b16 %v4878
        %v7695 = vunpack.c.l.b16 %v4879
        %v7696 = vunpack.c.l.b16 %v4880
        %v7697 = vunpack.c.l.b16 %v4881
        %v7698 = vunpack.c.l.b16 %v4882
        %v7699 = vunpack.c.l.b16 %v4883
        %v7700 = vunpack.c.l.b16 %v4884
        %v7701 = vunpack.c.l.b16 %v4885
        %v7702 = vunpack.c.l.b16 %v4886
        %v7703 = vunpack.c.l.b16 %v4887
        %v7704 = vunpack.c.l.b16 %v4888
        %v7705 = vunpack.c.l.b16 %v4889
        %v7706 = vunpack.c.l.b16 %v4890
        %v7707 = vunpack.c.l.b16 %v4891
        %v7708 = vunpack.c.l.b16 %v4892
        %v7709 = vunpack.c.l.b16 %v4893
        %v7710 = vunpack.c.l.b16 %v4894
        %v7711 = vunpack.c.l.b16 %v4895
        %v7712 = vunpack.c.l.b16 %v4896
        %v7713 = vunpack.c.l.b16 %v4897
        %v7714 = vunpack.c.l.b16 %v4898
        %v7715 = vunpack.c.l.b16 %v4899
        %v7716 = vunpack.c.l.b16 %v4900
        %v7717 = vunpack.c.l.b16 %v4901
        %v7718 = vunpack.c.l.b16 %v4902
        %v7719 = vunpack.c.l.b16 %v4903
        %v7720 = vunpack.c.l.b16 %v4904
        %v7721 = vunpack.c.l.b16 %v4905
        %v7722 = vunpack.c.l.b16 %v4906
        %v7723 = vunpack.c.l.b16 %v4907
        %v7724 = vunpack.c.l.b16 %v4908
        %v7725 = vunpack.c.l.b16 %v4909
        %v7726 = vunpack.c.l.b16 %v4910
        %v7727 = vunpack.c.l.b16 %v4911
        %v7728 = vunpack.c.l.b16 %v4912
        %v7729 = vunpack.c.l.b16 %v4913
        %v7730 = vunpack.c.l.b16 %v4914
        %v7731 = vunpack.c.l.b16 %v4915
        %v7732 = vunpack.c.l.b16 %v4916
        %v7733 = vunpack.c.l.b16 %v4917
        %v7734 = vunpack.c.l.b16 %v4918
        %v7735 = vunpack.c.l.b16 %v4919
        %v7736 = vunpack.c.l.b16 %v4920
        %v7737 = vunpack.c.l.b16 %v4921
        %v7738 = vunpack.c.l.b16 %v4922
        %v7739 = vunpack.c.l.b16 %v4923
        %v7740 = vunpack.c.l.b16 %v4924
        %v7741 = vunpack.c.l.b16 %v4925
        %v7742 = vunpack.c.l.b16 %v4926
        %v7743 = vunpack.c.l.b16 %v4927
        %v7744 = vunpack.c.l.b16 %v4928
        %v7745 = vunpack.c.l.b16 %v4929
        %v7746 = vunpack.c.l.b16 %v4930
        %v7747 = vunpack.c.l.b16 %v4931
        %v7748 = vunpack.c.l.b16 %v4932
        %v7749 = vunpack.c.l.b16 %v4933
        %v7750 = vunpack.c.l.b16 %v4934
        %v7751 = vunpack.c.l.b16 %v4935
        %v7752 = vunpack.c.l.b16 %v4936
        %v7753 = vunpack.c.l.b16 %v4937
        %v7754 = vunpack.c.l.b16 %v4938
        %v7755 = vunpack.c.l.b16 %v4939
        %v7756 = vunpack.c.l.b16 %v4940
        %v7757 = vunpack.c.l.b16 %v4941
        %v7758 = vunpack.c.l.b16 %v4942
        %v7759 = vunpack.c.l.b16 %v4943
        %v7760 = vunpack.c.l.b16 %v4944
        %v7761 = vunpack.c.l.b16 %v4945
        %v7762 = vunpack.c.l.b16 %v4946
        %v7763 = vunpack.c.l.b16 %v4947
        %v7764 = vunpack.c.l.b16 %v4948
        %v7765 = vunpack.c.l.b16 %v4949
        %v7766 = vunpack.c.l.b16 %v4950
        %v7767 = vunpack.c.l.b16 %v4951
        %v7768 = vunpack.c.l.b16 %v4952
        %v7769 = vunpack.c.l.b16 %v4953
        %v7770 = vunpack.c.l.b16 %v4954
        %v7771 = vunpack.c.l.b16 %v4955
        %v7772 = vunpack.c.l.b16 %v4956
        %v7773 = vunpack.c.l.b16 %v4957
        %v7774 = vunpack.c.l.b16 %v4958
        %v7775 = vunpack.c.l.b16 %v4959
        %v7776 = vunpack.c.l.b16 %v4960
        %v7777 = vunpack.c.l.b16 %v4961
        %v7778 = vunpack.c.l.b16 %v4962
        %v7779 = vunpack.c.l.b16 %v4963
        %v7780 = vunpack.c.l.b16 %v4964
        %v7781 = vunpack.c.l.b16 %v4965
        %v7782 = vunpack.c.l.b16 %v4966
        %v7783 = vunpack.c.l.b16 %v4967
        %v7784 = vunpack.c.l.b16 %v4968
        %v7785 = vunpack.c.l.b16 %v4969
        %v7786 = vunpack.c.l.b16 %v4970
        %v7787 = vpack.c.b16 %v7660, %v7659
        %v7788 = vpack.c.b16 %v7662, %v7661
        %v7789 = vpack.c.b16 %v7664, %v7663
        %v7790 = vpack.c.b16 %v7666, %v7665
        %v7791 = vpack.c.b16 %v7668, %v7667
        %v7792 = vpack.c.b16 %v7670, %v7669
        %v7793 = vpack.c.b16 %v7672, %v7671
        %v7794 = vpack.c.b16 %v7674, %v7673
        %v7795 = vpack.c.b16 %v7676, %v7675
        %v7796 = vpack.c.b16 %v7678, %v7677
        %v7797 = vpack.c.b16 %v7680, %v7679
        %v7798 = vpack.c.b16 %v7682, %v7681
        %v7799 = vpack.c.b16 %v7684, %v7683
        %v7800 = vpack.c.b16 %v7686, %v7685
        %v7801 = vpack.c.b16 %v7688, %v7687
        %v7802 = vpack.c.b16 %v7690, %v7689
        %v7803 = vpack.c.b16 %v7692, %v7691
        %v7804 = vpack.c.b16 %v7694, %v7693
        %v7805 = vpack.c.b16 %v7696, %v7695
        %v7806 = vpack.c.b16 %v7698, %v7697
        %v7807 = vpack.c.b16 %v7700, %v7699
        %v7808 = vpack.c.b16 %v7702, %v7701
        %v7809 = vpack.c.b16 %v7704, %v7703
        %v7810 = vpack.c.b16 %v7706, %v7705
        %v7811 = vpack.c.b16 %v7708, %v7707
        %v7812 = vpack.c.b16 %v7710, %v7709
        %v7813 = vpack.c.b16 %v7712, %v7711
        %v7814 = vpack.c.b16 %v7714, %v7713
        %v7815 = vpack.c.b16 %v7716, %v7715
        %v7816 = vpack.c.b16 %v7718, %v7717
        %v7817 = vpack.c.b16 %v7720, %v7719
        %v7818 = vpack.c.b16 %v7722, %v7721
        %v7819 = vpack.c.b16 %v7724, %v7723
        %v7820 = vpack.c.b16 %v7726, %v7725
        %v7821 = vpack.c.b16 %v7728, %v7727
        %v7822 = vpack.c.b16 %v7730, %v7729
        %v7823 = vpack.c.b16 %v7732, %v7731
        %v7824 = vpack.c.b16 %v7734, %v7733
        %v7825 = vpack.c.b16 %v7736, %v7735
        %v7826 = vpack.c.b16 %v7738, %v7737
        %v7827 = vpack.c.b16 %v7740, %v7739
        %v7828 = vpack.c.b16 %v7742, %v7741
        %v7829 = vpack.c.b16 %v7744, %v7743
        %v7830 = vpack.c.b16 %v7746, %v7745
        %v7831 = vpack.c.b16 %v7748, %v7747
        %v7832 = vpack.c.b16 %v7750, %v7749
        %v7833 = vpack.c.b16 %v7752, %v7751
        %v7834 = vpack.c.b16 %v7754, %v7753
        %v7835 = vpack.c.b16 %v7756, %v7755
        %v7836 = vpack.c.b16 %v7758, %v7757
        %v7837 = vpack.c.b16 %v7760, %v7759
        %v7838 = vpack.c.b16 %v7762, %v7761
        %v7839 = vpack.c.b16 %v7764, %v7763
        %v7840 = vpack.c.b16 %v7766, %v7765
        %v7841 = vpack.c.b16 %v7768, %v7767
        %v7842 = vpack.c.b16 %v7770, %v7769
        %v7843 = vpack.c.b16 %v7772, %v7771
        %v7844 = vpack.c.b16 %v7774, %v7773
        %v7845 = vpack.c.b16 %v7776, %v7775
        %v7846 = vpack.c.b16 %v7778, %v7777
        %v7847 = vpack.c.b16 %v7780, %v7779
        %v7848 = vpack.c.b16 %v7782, %v7781
        %v7849 = vpack.c.b16 %v7784, %v7783
        %v7850 = vpack.c.b16 %v7786, %v7785
        %7915 = vmatprep.subr.bf16.mxu0 0
        %7916 = vmatpush1.bf16.msra.mxu0 %v7787
        %7917 = vmatprep.subr.bf16.mxu0 0
        %7918 = vmatpush1.bf16.msra.mxu0 %v7788
        %7919 = vmatprep.subr.bf16.mxu0 0
        %7920 = vmatpush1.bf16.msra.mxu0 %v7789
        %7921 = vmatprep.subr.bf16.mxu0 0
        %7922 = vmatpush1.bf16.msra.mxu0 %v7790
        %7923 = vmatprep.subr.bf16.mxu0 0
        %7924 = vmatpush1.bf16.msra.mxu0 %v7791
        %7925 = vmatprep.subr.bf16.mxu0 0
        %7926 = vmatpush1.bf16.msra.mxu0 %v7792
        %7927 = vmatprep.subr.bf16.mxu0 0
        %7928 = vmatpush1.bf16.msra.mxu0 %v7793
        %7929 = vmatprep.subr.bf16.mxu0 0
        %7930 = vmatpush1.bf16.msra.mxu0 %v7794
        %7931 = vmatprep.subr.bf16.mxu0 0
        %7932 = vmatpush1.bf16.msra.mxu0 %v7795
        %7933 = vmatprep.subr.bf16.mxu0 0
        %7934 = vmatpush1.bf16.msra.mxu0 %v7796
        %7935 = vmatprep.subr.bf16.mxu0 0
        %7936 = vmatpush1.bf16.msra.mxu0 %v7797
        %7937 = vmatprep.subr.bf16.mxu0 0
        %7938 = vmatpush1.bf16.msra.mxu0 %v7798
        %7939 = vmatprep.subr.bf16.mxu0 0
        %7940 = vmatpush1.bf16.msra.mxu0 %v7799
        %7941 = vmatprep.subr.bf16.mxu0 0
        %7942 = vmatpush1.bf16.msra.mxu0 %v7800
        %7943 = vmatprep.subr.bf16.mxu0 0
        %7944 = vmatpush1.bf16.msra.mxu0 %v7801
        %7945 = vmatprep.subr.bf16.mxu0 0
        %7946 = vmatpush1.bf16.msra.mxu0 %v7802
        %7947 = vmatprep.mubr.bf16.mxu0 %v4300
        %7948 = vmatmul.mubr.bf16.gmra.mrb[0].mxu0 %v4299
        %v7949 = vpop.f32.mrb[0].mxu0
        %v7950 = vadd.f32 0.0, %v7949
        %v7951 = vpop.f32.mrb[0].mxu0
        %v7952 = vpop.f32.mrb[0].mxu0
        %v7953 = vpop.f32.mrb[0].mxu0
        %7954 = vdwg.mxu0
        %7955 = vmatprep.subr.bf16.mxu0 0
        %7956 = vmatpush1.bf16.msra.mxu0 %v7803
        %7957 = vmatprep.subr.bf16.mxu0 0
        %7958 = vmatpush1.bf16.msra.mxu0 %v7804
        %7959 = vmatprep.subr.bf16.mxu0 0
        %7960 = vmatpush1.bf16.msra.mxu0 %v7805
        %7961 = vmatprep.subr.bf16.mxu0 0
        %7962 = vmatpush1.bf16.msra.mxu0 %v7806
        %7963 = vmatprep.subr.bf16.mxu0 0
        %7964 = vmatpush1.bf16.msra.mxu0 %v7807
        %7965 = vmatprep.subr.bf16.mxu0 0
        %7966 = vmatpush1.bf16.msra.mxu0 %v7808
        %7967 = vmatprep.subr.bf16.mxu0 0
        %7968 = vmatpush1.bf16.msra.mxu0 %v7809
        %7969 = vmatprep.subr.bf16.mxu0 0
        %7970 = vmatpush1.bf16.msra.mxu0 %v7810
        %7971 = vmatprep.subr.bf16.mxu0 0
        %7972 = vmatpush1.bf16.msra.mxu0 %v7811
        %7973 = vmatprep.subr.bf16.mxu0 0
        %7974 = vmatpush1.bf16.msra.mxu0 %v7812
        %7975 = vmatprep.subr.bf16.mxu0 0
        %7976 = vmatpush1.bf16.msra.mxu0 %v7813
        %7977 = vmatprep.subr.bf16.mxu0 0
        %7978 = vmatpush1.bf16.msra.mxu0 %v7814
        %7979 = vmatprep.subr.bf16.mxu0 0
        %7980 = vmatpush1.bf16.msra.mxu0 %v7815
        %7981 = vmatprep.subr.bf16.mxu0 0
        %7982 = vmatpush1.bf16.msra.mxu0 %v7816
        %7983 = vmatprep.subr.bf16.mxu0 0
        %7984 = vmatpush1.bf16.msra.mxu0 %v7817
        %7985 = vmatprep.subr.bf16.mxu0 0
        %7986 = vmatpush1.bf16.msra.mxu0 %v7818
        %7987 = vmatprep.mubr.bf16.mxu0 %v4302
        %7988 = vmatmul.mubr.bf16.gmra.mrb[0].mxu0 %v4301
        %v7989 = vpop.f32.mrb[0].mxu0
        %v7990 = vadd.f32 %v7950, %v7989
        %v7991 = vpop.f32.mrb[0].mxu0
        %v7992 = vpop.f32.mrb[0].mxu0
        %v7993 = vpop.f32.mrb[0].mxu0
        %7994 = vdwg.mxu0
        %7995 = vmatprep.subr.bf16.mxu0 0
        %7996 = vmatpush1.bf16.msra.mxu0 %v7819
        %7997 = vmatprep.subr.bf16.mxu0 0
        %7998 = vmatpush1.bf16.msra.mxu0 %v7820
        %7999 = vmatprep.subr.bf16.mxu0 0
        %8000 = vmatpush1.bf16.msra.mxu0 %v7821
        %8001 = vmatprep.subr.bf16.mxu0 0
        %8002 = vmatpush1.bf16.msra.mxu0 %v7822
        %8003 = vmatprep.subr.bf16.mxu0 0
        %8004 = vmatpush1.bf16.msra.mxu0 %v7823
        %8005 = vmatprep.subr.bf16.mxu0 0
        %8006 = vmatpush1.bf16.msra.mxu0 %v7824
        %8007 = vmatprep.subr.bf16.mxu0 0
        %8008 = vmatpush1.bf16.msra.mxu0 %v7825
        %8009 = vmatprep.subr.bf16.mxu0 0
        %8010 = vmatpush1.bf16.msra.mxu0 %v7826
        %8011 = vmatprep.subr.bf16.mxu0 0
        %8012 = vmatpush1.bf16.msra.mxu0 %v7827
        %8013 = vmatprep.subr.bf16.mxu0 0
        %8014 = vmatpush1.bf16.msra.mxu0 %v7828
        %8015 = vmatprep.subr.bf16.mxu0 0
        %8016 = vmatpush1.bf16.msra.mxu0 %v7829
        %8017 = vmatprep.subr.bf16.mxu0 0
        %8018 = vmatpush1.bf16.msra.mxu0 %v7830
        %8019 = vmatprep.subr.bf16.mxu0 0
        %8020 = vmatpush1.bf16.msra.mxu0 %v7831
        %8021 = vmatprep.subr.bf16.mxu0 0
        %8022 = vmatpush1.bf16.msra.mxu0 %v7832
        %8023 = vmatprep.subr.bf16.mxu0 0
        %8024 = vmatpush1.bf16.msra.mxu0 %v7833
        %8025 = vmatprep.subr.bf16.mxu0 0
        %8026 = vmatpush1.bf16.msra.mxu0 %v7834
        %8027 = vmatprep.mubr.bf16.mxu0 %v4304
        %8028 = vmatmul.mubr.bf16.gmra.mrb[0].mxu0 %v4303
        %v8029 = vpop.f32.mrb[0].mxu0
        %v8030 = vadd.f32 %v7990, %v8029
        %v8031 = vpop.f32.mrb[0].mxu0
        %v8032 = vpop.f32.mrb[0].mxu0
        %v8033 = vpop.f32.mrb[0].mxu0
        %8034 = vdwg.mxu0
        %8035 = vmatprep.subr.bf16.mxu0 0
        %8036 = vmatpush1.bf16.msra.mxu0 %v7835
        %8037 = vmatprep.subr.bf16.mxu0 0
        %8038 = vmatpush1.bf16.msra.mxu0 %v7836
        %8039 = vmatprep.subr.bf16.mxu0 0
        %8040 = vmatpush1.bf16.msra.mxu0 %v7837
        %8041 = vmatprep.subr.bf16.mxu0 0
        %8042 = vmatpush1.bf16.msra.mxu0 %v7838
        %8043 = vmatprep.subr.bf16.mxu0 0
        %8044 = vmatpush1.bf16.msra.mxu0 %v7839
        %8045 = vmatprep.subr.bf16.mxu0 0
        %8046 = vmatpush1.bf16.msra.mxu0 %v7840
        %8047 = vmatprep.subr.bf16.mxu0 0
        %8048 = vmatpush1.bf16.msra.mxu0 %v7841
        %8049 = vmatprep.subr.bf16.mxu0 0
        %8050 = vmatpush1.bf16.msra.mxu0 %v7842
        %8051 = vmatprep.subr.bf16.mxu0 0
        %8052 = vmatpush1.bf16.msra.mxu0 %v7843
        %8053 = vmatprep.subr.bf16.mxu0 0
        %8054 = vmatpush1.bf16.msra.mxu0 %v7844
        %8055 = vmatprep.subr.bf16.mxu0 0
        %8056 = vmatpush1.bf16.msra.mxu0 %v7845
        %8057 = vmatprep.subr.bf16.mxu0 0
        %8058 = vmatpush1.bf16.msra.mxu0 %v7846
        %8059 = vmatprep.subr.bf16.mxu0 0
        %8060 = vmatpush1.bf16.msra.mxu0 %v7847
        %8061 = vmatprep.subr.bf16.mxu0 0
        %8062 = vmatpush1.bf16.msra.mxu0 %v7848
        %8063 = vmatprep.subr.bf16.mxu0 0
        %8064 = vmatpush1.bf16.msra.mxu0 %v7849
        %8065 = vmatprep.subr.bf16.mxu0 0
        %8066 = vmatpush1.bf16.msra.mxu0 %v7850
        %8067 = vmatprep.mubr.bf16.mxu0 %v4306
        %8068 = vmatmul.mubr.bf16.gmra.mrb[0].mxu0 %v4305
        %v8069 = vpop.f32.mrb[0].mxu0
        %v8070 = vadd.f32 %v8030, %v8069
        %v8071 = vpop.f32.mrb[0].mxu0
        %v8072 = vpop.f32.mrb[0].mxu0
        %v8073 = vpop.f32.mrb[0].mxu0
        %8074 = vdwg.mxu0
        %v8203 = vunpack.c.l.b16 %v4971
        %v8204 = vunpack.c.l.b16 %v4972
        %v8205 = vunpack.c.l.b16 %v4973
        %v8206 = vunpack.c.l.b16 %v4974
        %v8207 = vunpack.c.l.b16 %v4975
        %v8208 = vunpack.c.l.b16 %v4976
        %v8209 = vunpack.c.l.b16 %v4977
        %v8210 = vunpack.c.l.b16 %v4978
        %v8211 = vunpack.c.l.b16 %v4979
        %v8212 = vunpack.c.l.b16 %v4980
        %v8213 = vunpack.c.l.b16 %v4981
        %v8214 = vunpack.c.l.b16 %v4982
        %v8215 = vunpack.c.l.b16 %v4983
        %v8216 = vunpack.c.l.b16 %v4984
        %v8217 = vunpack.c.l.b16 %v4985
        %v8218 = vunpack.c.l.b16 %v4986
        %v8219 = vunpack.c.l.b16 %v4987
        %v8220 = vunpack.c.l.b16 %v4988
        %v8221 = vunpack.c.l.b16 %v4989
        %v8222 = vunpack.c.l.b16 %v4990
        %v8223 = vunpack.c.l.b16 %v4991
        %v8224 = vunpack.c.l.b16 %v4992
        %v8225 = vunpack.c.l.b16 %v4993
        %v8226 = vunpack.c.l.b16 %v4994
        %v8227 = vunpack.c.l.b16 %v4995
        %v8228 = vunpack.c.l.b16 %v4996
        %v8229 = vunpack.c.l.b16 %v4997
        %v8230 = vunpack.c.l.b16 %v4998
        %v8231 = vunpack.c.l.b16 %v4999
        %v8232 = vunpack.c.l.b16 %v5000
        %v8233 = vunpack.c.l.b16 %v5001
        %v8234 = vunpack.c.l.b16 %v5002
        %v8235 = vunpack.c.l.b16 %v5003
        %v8236 = vunpack.c.l.b16 %v5004
        %v8237 = vunpack.c.l.b16 %v5005
        %v8238 = vunpack.c.l.b16 %v5006
        %v8239 = vunpack.c.l.b16 %v5007
        %v8240 = vunpack.c.l.b16 %v5008
        %v8241 = vunpack.c.l.b16 %v5009
        %v8242 = vunpack.c.l.b16 %v5010
        %v8243 = vunpack.c.l.b16 %v5011
        %v8244 = vunpack.c.l.b16 %v5012
        %v8245 = vunpack.c.l.b16 %v5013
        %v8246 = vunpack.c.l.b16 %v5014
        %v8247 = vunpack.c.l.b16 %v5015
        %v8248 = vunpack.c.l.b16 %v5016
        %v8249 = vunpack.c.l.b16 %v5017
        %v8250 = vunpack.c.l.b16 %v5018
        %v8251 = vunpack.c.l.b16 %v5019
        %v8252 = vunpack.c.l.b16 %v5020
        %v8253 = vunpack.c.l.b16 %v5021
        %v8254 = vunpack.c.l.b16 %v5022
        %v8255 = vunpack.c.l.b16 %v5023
        %v8256 = vunpack.c.l.b16 %v5024
        %v8257 = vunpack.c.l.b16 %v5025
        %v8258 = vunpack.c.l.b16 %v5026
        %v8259 = vunpack.c.l.b16 %v5027
        %v8260 = vunpack.c.l.b16 %v5028
        %v8261 = vunpack.c.l.b16 %v5029
        %v8262 = vunpack.c.l.b16 %v5030
        %v8263 = vunpack.c.l.b16 %v5031
        %v8264 = vunpack.c.l.b16 %v5032
        %v8265 = vunpack.c.l.b16 %v5033
        %v8266 = vunpack.c.l.b16 %v5034
        %v8267 = vunpack.c.l.b16 %v5035
        %v8268 = vunpack.c.l.b16 %v5036
        %v8269 = vunpack.c.l.b16 %v5037
        %v8270 = vunpack.c.l.b16 %v5038
        %v8271 = vunpack.c.l.b16 %v5039
        %v8272 = vunpack.c.l.b16 %v5040
        %v8273 = vunpack.c.l.b16 %v5041
        %v8274 = vunpack.c.l.b16 %v5042
        %v8275 = vunpack.c.l.b16 %v5043
        %v8276 = vunpack.c.l.b16 %v5044
        %v8277 = vunpack.c.l.b16 %v5045
        %v8278 = vunpack.c.l.b16 %v5046
        %v8279 = vunpack.c.l.b16 %v5047
        %v8280 = vunpack.c.l.b16 %v5048
        %v8281 = vunpack.c.l.b16 %v5049
        %v8282 = vunpack.c.l.b16 %v5050
        %v8283 = vunpack.c.l.b16 %v5051
        %v8284 = vunpack.c.l.b16 %v5052
        %v8285 = vunpack.c.l.b16 %v5053
        %v8286 = vunpack.c.l.b16 %v5054
        %v8287 = vunpack.c.l.b16 %v5055
        %v8288 = vunpack.c.l.b16 %v5056
        %v8289 = vunpack.c.l.b16 %v5057
        %v8290 = vunpack.c.l.b16 %v5058
        %v8291 = vunpack.c.l.b16 %v5059
        %v8292 = vunpack.c.l.b16 %v5060
        %v8293 = vunpack.c.l.b16 %v5061
        %v8294 = vunpack.c.l.b16 %v5062
        %v8295 = vunpack.c.l.b16 %v5063
        %v8296 = vunpack.c.l.b16 %v5064
        %v8297 = vunpack.c.l.b16 %v5065
        %v8298 = vunpack.c.l.b16 %v5066
        %v8299 = vunpack.c.l.b16 %v5067
        %v8300 = vunpack.c.l.b16 %v5068
        %v8301 = vunpack.c.l.b16 %v5069
        %v8302 = vunpack.c.l.b16 %v5070
        %v8303 = vunpack.c.l.b16 %v5071
        %v8304 = vunpack.c.l.b16 %v5072
        %v8305 = vunpack.c.l.b16 %v5073
        %v8306 = vunpack.c.l.b16 %v5074
        %v8307 = vunpack.c.l.b16 %v5075
        %v8308 = vunpack.c.l.b16 %v5076
        %v8309 = vunpack.c.l.b16 %v5077
        %v8310 = vunpack.c.l.b16 %v5078
        %v8311 = vunpack.c.l.b16 %v5079
        %v8312 = vunpack.c.l.b16 %v5080
        %v8313 = vunpack.c.l.b16 %v5081
        %v8314 = vunpack.c.l.b16 %v5082
        %v8315 = vunpack.c.l.b16 %v5083
        %v8316 = vunpack.c.l.b16 %v5084
        %v8317 = vunpack.c.l.b16 %v5085
        %v8318 = vunpack.c.l.b16 %v5086
        %v8319 = vunpack.c.l.b16 %v5087
        %v8320 = vunpack.c.l.b16 %v5088
        %v8321 = vunpack.c.l.b16 %v5089
        %v8322 = vunpack.c.l.b16 %v5090
        %v8323 = vunpack.c.l.b16 %v5091
        %v8324 = vunpack.c.l.b16 %v5092
        %v8325 = vunpack.c.l.b16 %v5093
        %v8326 = vunpack.c.l.b16 %v5094
        %v8327 = vunpack.c.l.b16 %v5095
        %v8328 = vunpack.c.l.b16 %v5096
        %v8329 = vunpack.c.l.b16 %v5097
        %v8330 = vunpack.c.l.b16 %v5098
        %v8331 = vpack.c.b16 %v8204, %v8203
        %v8332 = vpack.c.b16 %v8206, %v8205
        %v8333 = vpack.c.b16 %v8208, %v8207
        %v8334 = vpack.c.b16 %v8210, %v8209
        %v8335 = vpack.c.b16 %v8212, %v8211
        %v8336 = vpack.c.b16 %v8214, %v8213
        %v8337 = vpack.c.b16 %v8216, %v8215
        %v8338 = vpack.c.b16 %v8218, %v8217
        %v8339 = vpack.c.b16 %v8220, %v8219
        %v8340 = vpack.c.b16 %v8222, %v8221
        %v8341 = vpack.c.b16 %v8224, %v8223
        %v8342 = vpack.c.b16 %v8226, %v8225
        %v8343 = vpack.c.b16 %v8228, %v8227
        %v8344 = vpack.c.b16 %v8230, %v8229
        %v8345 = vpack.c.b16 %v8232, %v8231
        %v8346 = vpack.c.b16 %v8234, %v8233
        %v8347 = vpack.c.b16 %v8236, %v8235
        %v8348 = vpack.c.b16 %v8238, %v8237
        %v8349 = vpack.c.b16 %v8240, %v8239
        %v8350 = vpack.c.b16 %v8242, %v8241
        %v8351 = vpack.c.b16 %v8244, %v8243
        %v8352 = vpack.c.b16 %v8246, %v8245
        %v8353 = vpack.c.b16 %v8248, %v8247
        %v8354 = vpack.c.b16 %v8250, %v8249
        %v8355 = vpack.c.b16 %v8252, %v8251
        %v8356 = vpack.c.b16 %v8254, %v8253
        %v8357 = vpack.c.b16 %v8256, %v8255
        %v8358 = vpack.c.b16 %v8258, %v8257
        %v8359 = vpack.c.b16 %v8260, %v8259
        %v8360 = vpack.c.b16 %v8262, %v8261
        %v8361 = vpack.c.b16 %v8264, %v8263
        %v8362 = vpack.c.b16 %v8266, %v8265
        %v8363 = vpack.c.b16 %v8268, %v8267
        %v8364 = vpack.c.b16 %v8270, %v8269
        %v8365 = vpack.c.b16 %v8272, %v8271
        %v8366 = vpack.c.b16 %v8274, %v8273
        %v8367 = vpack.c.b16 %v8276, %v8275
        %v8368 = vpack.c.b16 %v8278, %v8277
        %v8369 = vpack.c.b16 %v8280, %v8279
        %v8370 = vpack.c.b16 %v8282, %v8281
        %v8371 = vpack.c.b16 %v8284, %v8283
        %v8372 = vpack.c.b16 %v8286, %v8285
        %v8373 = vpack.c.b16 %v8288, %v8287
        %v8374 = vpack.c.b16 %v8290, %v8289
        %v8375 = vpack.c.b16 %v8292, %v8291
        %v8376 = vpack.c.b16 %v8294, %v8293
        %v8377 = vpack.c.b16 %v8296, %v8295
        %v8378 = vpack.c.b16 %v8298, %v8297
        %v8379 = vpack.c.b16 %v8300, %v8299
        %v8380 = vpack.c.b16 %v8302, %v8301
        %v8381 = vpack.c.b16 %v8304, %v8303
        %v8382 = vpack.c.b16 %v8306, %v8305
        %v8383 = vpack.c.b16 %v8308, %v8307
        %v8384 = vpack.c.b16 %v8310, %v8309
        %v8385 = vpack.c.b16 %v8312, %v8311
        %v8386 = vpack.c.b16 %v8314, %v8313
        %v8387 = vpack.c.b16 %v8316, %v8315
        %v8388 = vpack.c.b16 %v8318, %v8317
        %v8389 = vpack.c.b16 %v8320, %v8319
        %v8390 = vpack.c.b16 %v8322, %v8321
        %v8391 = vpack.c.b16 %v8324, %v8323
        %v8392 = vpack.c.b16 %v8326, %v8325
        %v8393 = vpack.c.b16 %v8328, %v8327
        %v8394 = vpack.c.b16 %v8330, %v8329
        %8459 = vmatprep.subr.bf16.mxu0 0
        %8460 = vmatpush1.bf16.msra.mxu0 %v8331
        %8461 = vmatprep.subr.bf16.mxu0 0
        %8462 = vmatpush1.bf16.msra.mxu0 %v8332
        %8463 = vmatprep.subr.bf16.mxu0 0
        %8464 = vmatpush1.bf16.msra.mxu0 %v8333
        %8465 = vmatprep.subr.bf16.mxu0 0
        %8466 = vmatpush1.bf16.msra.mxu0 %v8334
        %8467 = vmatprep.subr.bf16.mxu0 0
        %8468 = vmatpush1.bf16.msra.mxu0 %v8335
        %8469 = vmatprep.subr.bf16.mxu0 0
        %8470 = vmatpush1.bf16.msra.mxu0 %v8336
        %8471 = vmatprep.subr.bf16.mxu0 0
        %8472 = vmatpush1.bf16.msra.mxu0 %v8337
        %8473 = vmatprep.subr.bf16.mxu0 0
        %8474 = vmatpush1.bf16.msra.mxu0 %v8338
        %8475 = vmatprep.subr.bf16.mxu0 0
        %8476 = vmatpush1.bf16.msra.mxu0 %v8339
        %8477 = vmatprep.subr.bf16.mxu0 0
        %8478 = vmatpush1.bf16.msra.mxu0 %v8340
        %8479 = vmatprep.subr.bf16.mxu0 0
        %8480 = vmatpush1.bf16.msra.mxu0 %v8341
        %8481 = vmatprep.subr.bf16.mxu0 0
        %8482 = vmatpush1.bf16.msra.mxu0 %v8342
        %8483 = vmatprep.subr.bf16.mxu0 0
        %8484 = vmatpush1.bf16.msra.mxu0 %v8343
        %8485 = vmatprep.subr.bf16.mxu0 0
        %8486 = vmatpush1.bf16.msra.mxu0 %v8344
        %8487 = vmatprep.subr.bf16.mxu0 0
        %8488 = vmatpush1.bf16.msra.mxu0 %v8345
        %8489 = vmatprep.subr.bf16.mxu0 0
        %8490 = vmatpush1.bf16.msra.mxu0 %v8346
        %8491 = vmatprep.mubr.bf16.mxu0 %v4308
        %8492 = vmatmul.mubr.bf16.gmra.mrb[0].mxu0 %v4307
        %v8493 = vpop.f32.mrb[0].mxu0
        %v8494 = vadd.f32 0.0, %v8493
        %v8495 = vpop.f32.mrb[0].mxu0
        %v8496 = vpop.f32.mrb[0].mxu0
        %v8497 = vpop.f32.mrb[0].mxu0
        %8498 = vdwg.mxu0
        %8499 = vmatprep.subr.bf16.mxu0 0
        %8500 = vmatpush1.bf16.msra.mxu0 %v8347
        %8501 = vmatprep.subr.bf16.mxu0 0
        %8502 = vmatpush1.bf16.msra.mxu0 %v8348
        %8503 = vmatprep.subr.bf16.mxu0 0
        %8504 = vmatpush1.bf16.msra.mxu0 %v8349
        %8505 = vmatprep.subr.bf16.mxu0 0
        %8506 = vmatpush1.bf16.msra.mxu0 %v8350
        %8507 = vmatprep.subr.bf16.mxu0 0
        %8508 = vmatpush1.bf16.msra.mxu0 %v8351
        %8509 = vmatprep.subr.bf16.mxu0 0
        %8510 = vmatpush1.bf16.msra.mxu0 %v8352
        %8511 = vmatprep.subr.bf16.mxu0 0
        %8512 = vmatpush1.bf16.msra.mxu0 %v8353
        %8513 = vmatprep.subr.bf16.mxu0 0
        %8514 = vmatpush1.bf16.msra.mxu0 %v8354
        %8515 = vmatprep.subr.bf16.mxu0 0
        %8516 = vmatpush1.bf16.msra.mxu0 %v8355
        %8517 = vmatprep.subr.bf16.mxu0 0
        %8518 = vmatpush1.bf16.msra.mxu0 %v8356
        %8519 = vmatprep.subr.bf16.mxu0 0
        %8520 = vmatpush1.bf16.msra.mxu0 %v8357
        %8521 = vmatprep.subr.bf16.mxu0 0
        %8522 = vmatpush1.bf16.msra.mxu0 %v8358
        %8523 = vmatprep.subr.bf16.mxu0 0
        %8524 = vmatpush1.bf16.msra.mxu0 %v8359
        %8525 = vmatprep.subr.bf16.mxu0 0
        %8526 = vmatpush1.bf16.msra.mxu0 %v8360
        %8527 = vmatprep.subr.bf16.mxu0 0
        %8528 = vmatpush1.bf16.msra.mxu0 %v8361
        %8529 = vmatprep.subr.bf16.mxu0 0
        %8530 = vmatpush1.bf16.msra.mxu0 %v8362
        %8531 = vmatprep.mubr.bf16.mxu0 %v4310
        %8532 = vmatmul.mubr.bf16.gmra.mrb[0].mxu0 %v4309
        %v8533 = vpop.f32.mrb[0].mxu0
        %v8534 = vadd.f32 %v8494, %v8533
        %v8535 = vpop.f32.mrb[0].mxu0
        %v8536 = vpop.f32.mrb[0].mxu0
        %v8537 = vpop.f32.mrb[0].mxu0
        %8538 = vdwg.mxu0
        %8539 = vmatprep.subr.bf16.mxu0 0
        %8540 = vmatpush1.bf16.msra.mxu0 %v8363
        %8541 = vmatprep.subr.bf16.mxu0 0
        %8542 = vmatpush1.bf16.msra.mxu0 %v8364
        %8543 = vmatprep.subr.bf16.mxu0 0
        %8544 = vmatpush1.bf16.msra.mxu0 %v8365
        %8545 = vmatprep.subr.bf16.mxu0 0
        %8546 = vmatpush1.bf16.msra.mxu0 %v8366
        %8547 = vmatprep.subr.bf16.mxu0 0
        %8548 = vmatpush1.bf16.msra.mxu0 %v8367
        %8549 = vmatprep.subr.bf16.mxu0 0
        %8550 = vmatpush1.bf16.msra.mxu0 %v8368
        %8551 = vmatprep.subr.bf16.mxu0 0
        %8552 = vmatpush1.bf16.msra.mxu0 %v8369
        %8553 = vmatprep.subr.bf16.mxu0 0
        %8554 = vmatpush1.bf16.msra.mxu0 %v8370
        %8555 = vmatprep.subr.bf16.mxu0 0
        %8556 = vmatpush1.bf16.msra.mxu0 %v8371
        %8557 = vmatprep.subr.bf16.mxu0 0
        %8558 = vmatpush1.bf16.msra.mxu0 %v8372
        %8559 = vmatprep.subr.bf16.mxu0 0
        %8560 = vmatpush1.bf16.msra.mxu0 %v8373
        %8561 = vmatprep.subr.bf16.mxu0 0
        %8562 = vmatpush1.bf16.msra.mxu0 %v8374
        %8563 = vmatprep.subr.bf16.mxu0 0
        %8564 = vmatpush1.bf16.msra.mxu0 %v8375
        %8565 = vmatprep.subr.bf16.mxu0 0
        %8566 = vmatpush1.bf16.msra.mxu0 %v8376
        %8567 = vmatprep.subr.bf16.mxu0 0
        %8568 = vmatpush1.bf16.msra.mxu0 %v8377
        %8569 = vmatprep.subr.bf16.mxu0 0
        %8570 = vmatpush1.bf16.msra.mxu0 %v8378
        %8571 = vmatprep.mubr.bf16.mxu0 %v4312
        %8572 = vmatmul.mubr.bf16.gmra.mrb[0].mxu0 %v4311
        %v8573 = vpop.f32.mrb[0].mxu0
        %v8574 = vadd.f32 %v8534, %v8573
        %v8575 = vpop.f32.mrb[0].mxu0
        %v8576 = vpop.f32.mrb[0].mxu0
        %v8577 = vpop.f32.mrb[0].mxu0
        %8578 = vdwg.mxu0
        %8579 = vmatprep.subr.bf16.mxu0 0
        %8580 = vmatpush1.bf16.msra.mxu0 %v8379
        %8581 = vmatprep.subr.bf16.mxu0 0
        %8582 = vmatpush1.bf16.msra.mxu0 %v8380
        %8583 = vmatprep.subr.bf16.mxu0 0
        %8584 = vmatpush1.bf16.msra.mxu0 %v8381
        %8585 = vmatprep.subr.bf16.mxu0 0
        %8586 = vmatpush1.bf16.msra.mxu0 %v8382
        %8587 = vmatprep.subr.bf16.mxu0 0
        %8588 = vmatpush1.bf16.msra.mxu0 %v8383
        %8589 = vmatprep.subr.bf16.mxu0 0
        %8590 = vmatpush1.bf16.msra.mxu0 %v8384
        %8591 = vmatprep.subr.bf16.mxu0 0
        %8592 = vmatpush1.bf16.msra.mxu0 %v8385
        %8593 = vmatprep.subr.bf16.mxu0 0
        %8594 = vmatpush1.bf16.msra.mxu0 %v8386
        %8595 = vmatprep.subr.bf16.mxu0 0
        %8596 = vmatpush1.bf16.msra.mxu0 %v8387
        %8597 = vmatprep.subr.bf16.mxu0 0
        %8598 = vmatpush1.bf16.msra.mxu0 %v8388
        %8599 = vmatprep.subr.bf16.mxu0 0
        %8600 = vmatpush1.bf16.msra.mxu0 %v8389
        %8601 = vmatprep.subr.bf16.mxu0 0
        %8602 = vmatpush1.bf16.msra.mxu0 %v8390
        %8603 = vmatprep.subr.bf16.mxu0 0
        %8604 = vmatpush1.bf16.msra.mxu0 %v8391
        %8605 = vmatprep.subr.bf16.mxu0 0
        %8606 = vmatpush1.bf16.msra.mxu0 %v8392
        %8607 = vmatprep.subr.bf16.mxu0 0
        %8608 = vmatpush1.bf16.msra.mxu0 %v8393
        %8609 = vmatprep.subr.bf16.mxu0 0
        %8610 = vmatpush1.bf16.msra.mxu0 %v8394
        %8611 = vmatprep.mubr.bf16.mxu0 %v4314
        %8612 = vmatmul.mubr.bf16.gmra.mrb[0].mxu0 %v4313
        %v8613 = vpop.f32.mrb[0].mxu0
        %v8614 = vadd.f32 %v8574, %v8613
        %v8615 = vpop.f32.mrb[0].mxu0
        %v8616 = vpop.f32.mrb[0].mxu0
        %v8617 = vpop.f32.mrb[0].mxu0
        %8618 = vdwg.mxu0
        %v8747 = vunpack.c.l.b16 %v5099
        %v8748 = vunpack.c.l.b16 %v5100
        %v8749 = vunpack.c.l.b16 %v5101
        %v8750 = vunpack.c.l.b16 %v5102
        %v8751 = vunpack.c.l.b16 %v5103
        %v8752 = vunpack.c.l.b16 %v5104
        %v8753 = vunpack.c.l.b16 %v5105
        %v8754 = vunpack.c.l.b16 %v5106
        %v8755 = vunpack.c.l.b16 %v5107
        %v8756 = vunpack.c.l.b16 %v5108
        %v8757 = vunpack.c.l.b16 %v5109
        %v8758 = vunpack.c.l.b16 %v5110
        %v8759 = vunpack.c.l.b16 %v5111
        %v8760 = vunpack.c.l.b16 %v5112
        %v8761 = vunpack.c.l.b16 %v5113
        %v8762 = vunpack.c.l.b16 %v5114
        %v8763 = vunpack.c.l.b16 %v5115
        %v8764 = vunpack.c.l.b16 %v5116
        %v8765 = vunpack.c.l.b16 %v5117
        %v8766 = vunpack.c.l.b16 %v5118
        %v8767 = vunpack.c.l.b16 %v5119
        %v8768 = vunpack.c.l.b16 %v5120
        %v8769 = vunpack.c.l.b16 %v5121
        %v8770 = vunpack.c.l.b16 %v5122
        %v8771 = vunpack.c.l.b16 %v5123
        %v8772 = vunpack.c.l.b16 %v5124
        %v8773 = vunpack.c.l.b16 %v5125
        %v8774 = vunpack.c.l.b16 %v5126
        %v8775 = vunpack.c.l.b16 %v5127
        %v8776 = vunpack.c.l.b16 %v5128
        %v8777 = vunpack.c.l.b16 %v5129
        %v8778 = vunpack.c.l.b16 %v5130
        %v8779 = vunpack.c.l.b16 %v5131
        %v8780 = vunpack.c.l.b16 %v5132
        %v8781 = vunpack.c.l.b16 %v5133
        %v8782 = vunpack.c.l.b16 %v5134
        %v8783 = vunpack.c.l.b16 %v5135
        %v8784 = vunpack.c.l.b16 %v5136
        %v8785 = vunpack.c.l.b16 %v5137
        %v8786 = vunpack.c.l.b16 %v5138
        %v8787 = vunpack.c.l.b16 %v5139
        %v8788 = vunpack.c.l.b16 %v5140
        %v8789 = vunpack.c.l.b16 %v5141
        %v8790 = vunpack.c.l.b16 %v5142
        %v8791 = vunpack.c.l.b16 %v5143
        %v8792 = vunpack.c.l.b16 %v5144
        %v8793 = vunpack.c.l.b16 %v5145
        %v8794 = vunpack.c.l.b16 %v5146
        %v8795 = vunpack.c.l.b16 %v5147
        %v8796 = vunpack.c.l.b16 %v5148
        %v8797 = vunpack.c.l.b16 %v5149
        %v8798 = vunpack.c.l.b16 %v5150
        %v8799 = vunpack.c.l.b16 %v5151
        %v8800 = vunpack.c.l.b16 %v5152
        %v8801 = vunpack.c.l.b16 %v5153
        %v8802 = vunpack.c.l.b16 %v5154
        %v8803 = vunpack.c.l.b16 %v5155
        %v8804 = vunpack.c.l.b16 %v5156
        %v8805 = vunpack.c.l.b16 %v5157
        %v8806 = vunpack.c.l.b16 %v5158
        %v8807 = vunpack.c.l.b16 %v5159
        %v8808 = vunpack.c.l.b16 %v5160
        %v8809 = vunpack.c.l.b16 %v5161
        %v8810 = vunpack.c.l.b16 %v5162
        %v8811 = vunpack.c.l.b16 %v5163
        %v8812 = vunpack.c.l.b16 %v5164
        %v8813 = vunpack.c.l.b16 %v5165
        %v8814 = vunpack.c.l.b16 %v5166
        %v8815 = vunpack.c.l.b16 %v5167
        %v8816 = vunpack.c.l.b16 %v5168
        %v8817 = vunpack.c.l.b16 %v5169
        %v8818 = vunpack.c.l.b16 %v5170
        %v8819 = vunpack.c.l.b16 %v5171
        %v8820 = vunpack.c.l.b16 %v5172
        %v8821 = vunpack.c.l.b16 %v5173
        %v8822 = vunpack.c.l.b16 %v5174
        %v8823 = vunpack.c.l.b16 %v5175
        %v8824 = vunpack.c.l.b16 %v5176
        %v8825 = vunpack.c.l.b16 %v5177
        %v8826 = vunpack.c.l.b16 %v5178
        %v8827 = vunpack.c.l.b16 %v5179
        %v8828 = vunpack.c.l.b16 %v5180
        %v8829 = vunpack.c.l.b16 %v5181
        %v8830 = vunpack.c.l.b16 %v5182
        %v8831 = vunpack.c.l.b16 %v5183
        %v8832 = vunpack.c.l.b16 %v5184
        %v8833 = vunpack.c.l.b16 %v5185
        %v8834 = vunpack.c.l.b16 %v5186
        %v8835 = vunpack.c.l.b16 %v5187
        %v8836 = vunpack.c.l.b16 %v5188
        %v8837 = vunpack.c.l.b16 %v5189
        %v8838 = vunpack.c.l.b16 %v5190
        %v8839 = vunpack.c.l.b16 %v5191
        %v8840 = vunpack.c.l.b16 %v5192
        %v8841 = vunpack.c.l.b16 %v5193
        %v8842 = vunpack.c.l.b16 %v5194
        %v8843 = vunpack.c.l.b16 %v5195
        %v8844 = vunpack.c.l.b16 %v5196
        %v8845 = vunpack.c.l.b16 %v5197
        %v8846 = vunpack.c.l.b16 %v5198
        %v8847 = vunpack.c.l.b16 %v5199
        %v8848 = vunpack.c.l.b16 %v5200
        %v8849 = vunpack.c.l.b16 %v5201
        %v8850 = vunpack.c.l.b16 %v5202
        %v8851 = vunpack.c.l.b16 %v5203
        %v8852 = vunpack.c.l.b16 %v5204
        %v8853 = vunpack.c.l.b16 %v5205
        %v8854 = vunpack.c.l.b16 %v5206
        %v8855 = vunpack.c.l.b16 %v5207
        %v8856 = vunpack.c.l.b16 %v5208
        %v8857 = vunpack.c.l.b16 %v5209
        %v8858 = vunpack.c.l.b16 %v5210
        %v8859 = vunpack.c.l.b16 %v5211
        %v8860 = vunpack.c.l.b16 %v5212
        %v8861 = vunpack.c.l.b16 %v5213
        %v8862 = vunpack.c.l.b16 %v5214
        %v8863 = vunpack.c.l.b16 %v5215
        %v8864 = vunpack.c.l.b16 %v5216
        %v8865 = vunpack.c.l.b16 %v5217
        %v8866 = vunpack.c.l.b16 %v5218
        %v8867 = vunpack.c.l.b16 %v5219
        %v8868 = vunpack.c.l.b16 %v5220
        %v8869 = vunpack.c.l.b16 %v5221
        %v8870 = vunpack.c.l.b16 %v5222
        %v8871 = vunpack.c.l.b16 %v5223
        %v8872 = vunpack.c.l.b16 %v5224
        %v8873 = vunpack.c.l.b16 %v5225
        %v8874 = vunpack.c.l.b16 %v5226
        %v8875 = vpack.c.b16 %v8748, %v8747
        %v8876 = vpack.c.b16 %v8750, %v8749
        %v8877 = vpack.c.b16 %v8752, %v8751
        %v8878 = vpack.c.b16 %v8754, %v8753
        %v8879 = vpack.c.b16 %v8756, %v8755
        %v8880 = vpack.c.b16 %v8758, %v8757
        %v8881 = vpack.c.b16 %v8760, %v8759
        %v8882 = vpack.c.b16 %v8762, %v8761
        %v8883 = vpack.c.b16 %v8764, %v8763
        %v8884 = vpack.c.b16 %v8766, %v8765
        %v8885 = vpack.c.b16 %v8768, %v8767
        %v8886 = vpack.c.b16 %v8770, %v8769
        %v8887 = vpack.c.b16 %v8772, %v8771
        %v8888 = vpack.c.b16 %v8774, %v8773
        %v8889 = vpack.c.b16 %v8776, %v8775
        %v8890 = vpack.c.b16 %v8778, %v8777
        %v8891 = vpack.c.b16 %v8780, %v8779
        %v8892 = vpack.c.b16 %v8782, %v8781
        %v8893 = vpack.c.b16 %v8784, %v8783
        %v8894 = vpack.c.b16 %v8786, %v8785
        %v8895 = vpack.c.b16 %v8788, %v8787
        %v8896 = vpack.c.b16 %v8790, %v8789
        %v8897 = vpack.c.b16 %v8792, %v8791
        %v8898 = vpack.c.b16 %v8794, %v8793
        %v8899 = vpack.c.b16 %v8796, %v8795
        %v8900 = vpack.c.b16 %v8798, %v8797
        %v8901 = vpack.c.b16 %v8800, %v8799
        %v8902 = vpack.c.b16 %v8802, %v8801
        %v8903 = vpack.c.b16 %v8804, %v8803
        %v8904 = vpack.c.b16 %v8806, %v8805
        %v8905 = vpack.c.b16 %v8808, %v8807
        %v8906 = vpack.c.b16 %v8810, %v8809
        %v8907 = vpack.c.b16 %v8812, %v8811
        %v8908 = vpack.c.b16 %v8814, %v8813
        %v8909 = vpack.c.b16 %v8816, %v8815
        %v8910 = vpack.c.b16 %v8818, %v8817
        %v8911 = vpack.c.b16 %v8820, %v8819
        %v8912 = vpack.c.b16 %v8822, %v8821
        %v8913 = vpack.c.b16 %v8824, %v8823
        %v8914 = vpack.c.b16 %v8826, %v8825
        %v8915 = vpack.c.b16 %v8828, %v8827
        %v8916 = vpack.c.b16 %v8830, %v8829
        %v8917 = vpack.c.b16 %v8832, %v8831
        %v8918 = vpack.c.b16 %v8834, %v8833
        %v8919 = vpack.c.b16 %v8836, %v8835
        %v8920 = vpack.c.b16 %v8838, %v8837
        %v8921 = vpack.c.b16 %v8840, %v8839
        %v8922 = vpack.c.b16 %v8842, %v8841
        %v8923 = vpack.c.b16 %v8844, %v8843
        %v8924 = vpack.c.b16 %v8846, %v8845
        %v8925 = vpack.c.b16 %v8848, %v8847
        %v8926 = vpack.c.b16 %v8850, %v8849
        %v8927 = vpack.c.b16 %v8852, %v8851
        %v8928 = vpack.c.b16 %v8854, %v8853
        %v8929 = vpack.c.b16 %v8856, %v8855
        %v8930 = vpack.c.b16 %v8858, %v8857
        %v8931 = vpack.c.b16 %v8860, %v8859
        %v8932 = vpack.c.b16 %v8862, %v8861
        %v8933 = vpack.c.b16 %v8864, %v8863
        %v8934 = vpack.c.b16 %v8866, %v8865
        %v8935 = vpack.c.b16 %v8868, %v8867
        %v8936 = vpack.c.b16 %v8870, %v8869
        %v8937 = vpack.c.b16 %v8872, %v8871
        %v8938 = vpack.c.b16 %v8874, %v8873
        %9003 = vmatprep.subr.bf16.mxu0 0
        %9004 = vmatpush1.bf16.msra.mxu0 %v8875
        %9005 = vmatprep.subr.bf16.mxu0 0
        %9006 = vmatpush1.bf16.msra.mxu0 %v8876
        %9007 = vmatprep.subr.bf16.mxu0 0
        %9008 = vmatpush1.bf16.msra.mxu0 %v8877
        %9009 = vmatprep.subr.bf16.mxu0 0
        %9010 = vmatpush1.bf16.msra.mxu0 %v8878
        %9011 = vmatprep.subr.bf16.mxu0 0
        %9012 = vmatpush1.bf16.msra.mxu0 %v8879
        %9013 = vmatprep.subr.bf16.mxu0 0
        %9014 = vmatpush1.bf16.msra.mxu0 %v8880
        %9015 = vmatprep.subr.bf16.mxu0 0
        %9016 = vmatpush1.bf16.msra.mxu0 %v8881
        %9017 = vmatprep.subr.bf16.mxu0 0
        %9018 = vmatpush1.bf16.msra.mxu0 %v8882
        %9019 = vmatprep.subr.bf16.mxu0 0
        %9020 = vmatpush1.bf16.msra.mxu0 %v8883
        %9021 = vmatprep.subr.bf16.mxu0 0
        %9022 = vmatpush1.bf16.msra.mxu0 %v8884
        %9023 = vmatprep.subr.bf16.mxu0 0
        %9024 = vmatpush1.bf16.msra.mxu0 %v8885
        %9025 = vmatprep.subr.bf16.mxu0 0
        %9026 = vmatpush1.bf16.msra.mxu0 %v8886
        %9027 = vmatprep.subr.bf16.mxu0 0
        %9028 = vmatpush1.bf16.msra.mxu0 %v8887
        %9029 = vmatprep.subr.bf16.mxu0 0
        %9030 = vmatpush1.bf16.msra.mxu0 %v8888
        %9031 = vmatprep.subr.bf16.mxu0 0
        %9032 = vmatpush1.bf16.msra.mxu0 %v8889
        %9033 = vmatprep.subr.bf16.mxu0 0
        %9034 = vmatpush1.bf16.msra.mxu0 %v8890
        %9035 = vmatprep.mubr.bf16.mxu0 %v4316
        %9036 = vmatmul.mubr.bf16.gmra.mrb[0].mxu0 %v4315
        %v9037 = vpop.f32.mrb[0].mxu0
        %v9038 = vadd.f32 0.0, %v9037
        %v9039 = vpop.f32.mrb[0].mxu0
        %v9040 = vpop.f32.mrb[0].mxu0
        %v9041 = vpop.f32.mrb[0].mxu0
        %9042 = vdwg.mxu0
        %9043 = vmatprep.subr.bf16.mxu0 0
        %9044 = vmatpush1.bf16.msra.mxu0 %v8891
        %9045 = vmatprep.subr.bf16.mxu0 0
        %9046 = vmatpush1.bf16.msra.mxu0 %v8892
        %9047 = vmatprep.subr.bf16.mxu0 0
        %9048 = vmatpush1.bf16.msra.mxu0 %v8893
        %9049 = vmatprep.subr.bf16.mxu0 0
        %9050 = vmatpush1.bf16.msra.mxu0 %v8894
        %9051 = vmatprep.subr.bf16.mxu0 0
        %9052 = vmatpush1.bf16.msra.mxu0 %v8895
        %9053 = vmatprep.subr.bf16.mxu0 0
        %9054 = vmatpush1.bf16.msra.mxu0 %v8896
        %9055 = vmatprep.subr.bf16.mxu0 0
        %9056 = vmatpush1.bf16.msra.mxu0 %v8897
        %9057 = vmatprep.subr.bf16.mxu0 0
        %9058 = vmatpush1.bf16.msra.mxu0 %v8898
        %9059 = vmatprep.subr.bf16.mxu0 0
        %9060 = vmatpush1.bf16.msra.mxu0 %v8899
        %9061 = vmatprep.subr.bf16.mxu0 0
        %9062 = vmatpush1.bf16.msra.mxu0 %v8900
        %9063 = vmatprep.subr.bf16.mxu0 0
        %9064 = vmatpush1.bf16.msra.mxu0 %v8901
        %9065 = vmatprep.subr.bf16.mxu0 0
        %9066 = vmatpush1.bf16.msra.mxu0 %v8902
        %9067 = vmatprep.subr.bf16.mxu0 0
        %9068 = vmatpush1.bf16.msra.mxu0 %v8903
        %9069 = vmatprep.subr.bf16.mxu0 0
        %9070 = vmatpush1.bf16.msra.mxu0 %v8904
        %9071 = vmatprep.subr.bf16.mxu0 0
        %9072 = vmatpush1.bf16.msra.mxu0 %v8905
        %9073 = vmatprep.subr.bf16.mxu0 0
        %9074 = vmatpush1.bf16.msra.mxu0 %v8906
        %9075 = vmatprep.mubr.bf16.mxu0 %v4318
        %9076 = vmatmul.mubr.bf16.gmra.mrb[0].mxu0 %v4317
        %v9077 = vpop.f32.mrb[0].mxu0
        %v9078 = vadd.f32 %v9038, %v9077
        %v9079 = vpop.f32.mrb[0].mxu0
        %v9080 = vpop.f32.mrb[0].mxu0
        %v9081 = vpop.f32.mrb[0].mxu0
        %9082 = vdwg.mxu0
        %9083 = vmatprep.subr.bf16.mxu0 0
        %9084 = vmatpush1.bf16.msra.mxu0 %v8907
        %9085 = vmatprep.subr.bf16.mxu0 0
        %9086 = vmatpush1.bf16.msra.mxu0 %v8908
        %9087 = vmatprep.subr.bf16.mxu0 0
        %9088 = vmatpush1.bf16.msra.mxu0 %v8909
        %9089 = vmatprep.subr.bf16.mxu0 0
        %9090 = vmatpush1.bf16.msra.mxu0 %v8910
        %9091 = vmatprep.subr.bf16.mxu0 0
        %9092 = vmatpush1.bf16.msra.mxu0 %v8911
        %9093 = vmatprep.subr.bf16.mxu0 0
        %9094 = vmatpush1.bf16.msra.mxu0 %v8912
        %9095 = vmatprep.subr.bf16.mxu0 0
        %9096 = vmatpush1.bf16.msra.mxu0 %v8913
        %9097 = vmatprep.subr.bf16.mxu0 0
        %9098 = vmatpush1.bf16.msra.mxu0 %v8914
        %9099 = vmatprep.subr.bf16.mxu0 0
        %9100 = vmatpush1.bf16.msra.mxu0 %v8915
        %9101 = vmatprep.subr.bf16.mxu0 0
        %9102 = vmatpush1.bf16.msra.mxu0 %v8916
        %9103 = vmatprep.subr.bf16.mxu0 0
        %9104 = vmatpush1.bf16.msra.mxu0 %v8917
        %9105 = vmatprep.subr.bf16.mxu0 0
        %9106 = vmatpush1.bf16.msra.mxu0 %v8918
        %9107 = vmatprep.subr.bf16.mxu0 0
        %9108 = vmatpush1.bf16.msra.mxu0 %v8919
        %9109 = vmatprep.subr.bf16.mxu0 0
        %9110 = vmatpush1.bf16.msra.mxu0 %v8920
        %9111 = vmatprep.subr.bf16.mxu0 0
        %9112 = vmatpush1.bf16.msra.mxu0 %v8921
        %9113 = vmatprep.subr.bf16.mxu0 0
        %9114 = vmatpush1.bf16.msra.mxu0 %v8922
        %9115 = vmatprep.mubr.bf16.mxu0 %v4320
        %9116 = vmatmul.mubr.bf16.gmra.mrb[0].mxu0 %v4319
        %v9117 = vpop.f32.mrb[0].mxu0
        %v9118 = vadd.f32 %v9078, %v9117
        %v9119 = vpop.f32.mrb[0].mxu0
        %v9120 = vpop.f32.mrb[0].mxu0
        %v9121 = vpop.f32.mrb[0].mxu0
        %9122 = vdwg.mxu0
        %9123 = vmatprep.subr.bf16.mxu0 0
        %9124 = vmatpush1.bf16.msra.mxu0 %v8923
        %9125 = vmatprep.subr.bf16.mxu0 0
        %9126 = vmatpush1.bf16.msra.mxu0 %v8924
        %9127 = vmatprep.subr.bf16.mxu0 0
        %9128 = vmatpush1.bf16.msra.mxu0 %v8925
        %9129 = vmatprep.subr.bf16.mxu0 0
        %9130 = vmatpush1.bf16.msra.mxu0 %v8926
        %9131 = vmatprep.subr.bf16.mxu0 0
        %9132 = vmatpush1.bf16.msra.mxu0 %v8927
        %9133 = vmatprep.subr.bf16.mxu0 0
        %9134 = vmatpush1.bf16.msra.mxu0 %v8928
        %9135 = vmatprep.subr.bf16.mxu0 0
        %9136 = vmatpush1.bf16.msra.mxu0 %v8929
        %9137 = vmatprep.subr.bf16.mxu0 0
        %9138 = vmatpush1.bf16.msra.mxu0 %v8930
        %9139 = vmatprep.subr.bf16.mxu0 0
        %9140 = vmatpush1.bf16.msra.mxu0 %v8931
        %9141 = vmatprep.subr.bf16.mxu0 0
        %9142 = vmatpush1.bf16.msra.mxu0 %v8932
        %9143 = vmatprep.subr.bf16.mxu0 0
        %9144 = vmatpush1.bf16.msra.mxu0 %v8933
        %9145 = vmatprep.subr.bf16.mxu0 0
        %9146 = vmatpush1.bf16.msra.mxu0 %v8934
        %9147 = vmatprep.subr.bf16.mxu0 0
        %9148 = vmatpush1.bf16.msra.mxu0 %v8935
        %9149 = vmatprep.subr.bf16.mxu0 0
        %9150 = vmatpush1.bf16.msra.mxu0 %v8936
        %9151 = vmatprep.subr.bf16.mxu0 0
        %9152 = vmatpush1.bf16.msra.mxu0 %v8937
        %9153 = vmatprep.subr.bf16.mxu0 0
        %9154 = vmatpush1.bf16.msra.mxu0 %v8938
        %9155 = vmatprep.mubr.bf16.mxu0 %v4322
        %9156 = vmatmul.mubr.bf16.gmra.mrb[0].mxu0 %v4321
        %v9157 = vpop.f32.mrb[0].mxu0
        %v9158 = vadd.f32 %v9118, %v9157
        %v9159 = vpop.f32.mrb[0].mxu0
        %v9160 = vpop.f32.mrb[0].mxu0
        %v9161 = vpop.f32.mrb[0].mxu0
        %9162 = vdwg.mxu0
        %v9291 = vunpack.c.l.b16 %v5227
        %v9292 = vunpack.c.l.b16 %v5228
        %v9293 = vunpack.c.l.b16 %v5229
        %v9294 = vunpack.c.l.b16 %v5230
        %v9295 = vunpack.c.l.b16 %v5231
        %v9296 = vunpack.c.l.b16 %v5232
        %v9297 = vunpack.c.l.b16 %v5233
        %v9298 = vunpack.c.l.b16 %v5234
        %v9299 = vunpack.c.l.b16 %v5235
        %v9300 = vunpack.c.l.b16 %v5236
        %v9301 = vunpack.c.l.b16 %v5237
        %v9302 = vunpack.c.l.b16 %v5238
        %v9303 = vunpack.c.l.b16 %v5239
        %v9304 = vunpack.c.l.b16 %v5240
        %v9305 = vunpack.c.l.b16 %v5241
        %v9306 = vunpack.c.l.b16 %v5242
        %v9307 = vunpack.c.l.b16 %v5243
        %v9308 = vunpack.c.l.b16 %v5244
        %v9309 = vunpack.c.l.b16 %v5245
        %v9310 = vunpack.c.l.b16 %v5246
        %v9311 = vunpack.c.l.b16 %v5247
        %v9312 = vunpack.c.l.b16 %v5248
        %v9313 = vunpack.c.l.b16 %v5249
        %v9314 = vunpack.c.l.b16 %v5250
        %v9315 = vunpack.c.l.b16 %v5251
        %v9316 = vunpack.c.l.b16 %v5252
        %v9317 = vunpack.c.l.b16 %v5253
        %v9318 = vunpack.c.l.b16 %v5254
        %v9319 = vunpack.c.l.b16 %v5255
        %v9320 = vunpack.c.l.b16 %v5256
        %v9321 = vunpack.c.l.b16 %v5257
        %v9322 = vunpack.c.l.b16 %v5258
        %v9323 = vunpack.c.l.b16 %v5259
        %v9324 = vunpack.c.l.b16 %v5260
        %v9325 = vunpack.c.l.b16 %v5261
        %v9326 = vunpack.c.l.b16 %v5262
        %v9327 = vunpack.c.l.b16 %v5263
        %v9328 = vunpack.c.l.b16 %v5264
        %v9329 = vunpack.c.l.b16 %v5265
        %v9330 = vunpack.c.l.b16 %v5266
        %v9331 = vunpack.c.l.b16 %v5267
        %v9332 = vunpack.c.l.b16 %v5268
        %v9333 = vunpack.c.l.b16 %v5269
        %v9334 = vunpack.c.l.b16 %v5270
        %v9335 = vunpack.c.l.b16 %v5271
        %v9336 = vunpack.c.l.b16 %v5272
        %v9337 = vunpack.c.l.b16 %v5273
        %v9338 = vunpack.c.l.b16 %v5274
        %v9339 = vunpack.c.l.b16 %v5275
        %v9340 = vunpack.c.l.b16 %v5276
        %v9341 = vunpack.c.l.b16 %v5277
        %v9342 = vunpack.c.l.b16 %v5278
        %v9343 = vunpack.c.l.b16 %v5279
        %v9344 = vunpack.c.l.b16 %v5280
        %v9345 = vunpack.c.l.b16 %v5281
        %v9346 = vunpack.c.l.b16 %v5282
        %v9347 = vunpack.c.l.b16 %v5283
        %v9348 = vunpack.c.l.b16 %v5284
        %v9349 = vunpack.c.l.b16 %v5285
        %v9350 = vunpack.c.l.b16 %v5286
        %v9351 = vunpack.c.l.b16 %v5287
        %v9352 = vunpack.c.l.b16 %v5288
        %v9353 = vunpack.c.l.b16 %v5289
        %v9354 = vunpack.c.l.b16 %v5290
        %v9355 = vunpack.c.l.b16 %v5291
        %v9356 = vunpack.c.l.b16 %v5292
        %v9357 = vunpack.c.l.b16 %v5293
        %v9358 = vunpack.c.l.b16 %v5294
        %v9359 = vunpack.c.l.b16 %v5295
        %v9360 = vunpack.c.l.b16 %v5296
        %v9361 = vunpack.c.l.b16 %v5297
        %v9362 = vunpack.c.l.b16 %v5298
        %v9363 = vunpack.c.l.b16 %v5299
        %v9364 = vunpack.c.l.b16 %v5300
        %v9365 = vunpack.c.l.b16 %v5301
        %v9366 = vunpack.c.l.b16 %v5302
        %v9367 = vunpack.c.l.b16 %v5303
        %v9368 = vunpack.c.l.b16 %v5304
        %v9369 = vunpack.c.l.b16 %v5305
        %v9370 = vunpack.c.l.b16 %v5306
        %v9371 = vunpack.c.l.b16 %v5307
        %v9372 = vunpack.c.l.b16 %v5308
        %v9373 = vunpack.c.l.b16 %v5309
        %v9374 = vunpack.c.l.b16 %v5310
        %v9375 = vunpack.c.l.b16 %v5311
        %v9376 = vunpack.c.l.b16 %v5312
        %v9377 = vunpack.c.l.b16 %v5313
        %v9378 = vunpack.c.l.b16 %v5314
        %v9379 = vunpack.c.l.b16 %v5315
        %v9380 = vunpack.c.l.b16 %v5316
        %v9381 = vunpack.c.l.b16 %v5317
        %v9382 = vunpack.c.l.b16 %v5318
        %v9383 = vunpack.c.l.b16 %v5319
        %v9384 = vunpack.c.l.b16 %v5320
        %v9385 = vunpack.c.l.b16 %v5321
        %v9386 = vunpack.c.l.b16 %v5322
        %v9387 = vunpack.c.l.b16 %v5323
        %v9388 = vunpack.c.l.b16 %v5324
        %v9389 = vunpack.c.l.b16 %v5325
        %v9390 = vunpack.c.l.b16 %v5326
        %v9391 = vunpack.c.l.b16 %v5327
        %v9392 = vunpack.c.l.b16 %v5328
        %v9393 = vunpack.c.l.b16 %v5329
        %v9394 = vunpack.c.l.b16 %v5330
        %v9395 = vunpack.c.l.b16 %v5331
        %v9396 = vunpack.c.l.b16 %v5332
        %v9397 = vunpack.c.l.b16 %v5333
        %v9398 = vunpack.c.l.b16 %v5334
        %v9399 = vunpack.c.l.b16 %v5335
        %v9400 = vunpack.c.l.b16 %v5336
        %v9401 = vunpack.c.l.b16 %v5337
        %v9402 = vunpack.c.l.b16 %v5338
        %v9403 = vunpack.c.l.b16 %v5339
        %v9404 = vunpack.c.l.b16 %v5340
        %v9405 = vunpack.c.l.b16 %v5341
        %v9406 = vunpack.c.l.b16 %v5342
        %v9407 = vunpack.c.l.b16 %v5343
        %v9408 = vunpack.c.l.b16 %v5344
        %v9409 = vunpack.c.l.b16 %v5345
        %v9410 = vunpack.c.l.b16 %v5346
        %v9411 = vunpack.c.l.b16 %v5347
        %v9412 = vunpack.c.l.b16 %v5348
        %v9413 = vunpack.c.l.b16 %v5349
        %v9414 = vunpack.c.l.b16 %v5350
        %v9415 = vunpack.c.l.b16 %v5351
        %v9416 = vunpack.c.l.b16 %v5352
        %v9417 = vunpack.c.l.b16 %v5353
        %v9418 = vunpack.c.l.b16 %v5354
        %v9419 = vpack.c.b16 %v9292, %v9291
        %v9420 = vpack.c.b16 %v9294, %v9293
        %v9421 = vpack.c.b16 %v9296, %v9295
        %v9422 = vpack.c.b16 %v9298, %v9297
        %v9423 = vpack.c.b16 %v9300, %v9299
        %v9424 = vpack.c.b16 %v9302, %v9301
        %v9425 = vpack.c.b16 %v9304, %v9303
        %v9426 = vpack.c.b16 %v9306, %v9305
        %v9427 = vpack.c.b16 %v9308, %v9307
        %v9428 = vpack.c.b16 %v9310, %v9309
        %v9429 = vpack.c.b16 %v9312, %v9311
        %v9430 = vpack.c.b16 %v9314, %v9313
        %v9431 = vpack.c.b16 %v9316, %v9315
        %v9432 = vpack.c.b16 %v9318, %v9317
        %v9433 = vpack.c.b16 %v9320, %v9319
        %v9434 = vpack.c.b16 %v9322, %v9321
        %v9435 = vpack.c.b16 %v9324, %v9323
        %v9436 = vpack.c.b16 %v9326, %v9325
        %v9437 = vpack.c.b16 %v9328, %v9327
        %v9438 = vpack.c.b16 %v9330, %v9329
        %v9439 = vpack.c.b16 %v9332, %v9331
        %v9440 = vpack.c.b16 %v9334, %v9333
        %v9441 = vpack.c.b16 %v9336, %v9335
        %v9442 = vpack.c.b16 %v9338, %v9337
        %v9443 = vpack.c.b16 %v9340, %v9339
        %v9444 = vpack.c.b16 %v9342, %v9341
        %v9445 = vpack.c.b16 %v9344, %v9343
        %v9446 = vpack.c.b16 %v9346, %v9345
        %v9447 = vpack.c.b16 %v9348, %v9347
        %v9448 = vpack.c.b16 %v9350, %v9349
        %v9449 = vpack.c.b16 %v9352, %v9351
        %v9450 = vpack.c.b16 %v9354, %v9353
        %v9451 = vpack.c.b16 %v9356, %v9355
        %v9452 = vpack.c.b16 %v9358, %v9357
        %v9453 = vpack.c.b16 %v9360, %v9359
        %v9454 = vpack.c.b16 %v9362, %v9361
        %v9455 = vpack.c.b16 %v9364, %v9363
        %v9456 = vpack.c.b16 %v9366, %v9365
        %v9457 = vpack.c.b16 %v9368, %v9367
        %v9458 = vpack.c.b16 %v9370, %v9369
        %v9459 = vpack.c.b16 %v9372, %v9371
        %v9460 = vpack.c.b16 %v9374, %v9373
        %v9461 = vpack.c.b16 %v9376, %v9375
        %v9462 = vpack.c.b16 %v9378, %v9377
        %v9463 = vpack.c.b16 %v9380, %v9379
        %v9464 = vpack.c.b16 %v9382, %v9381
        %v9465 = vpack.c.b16 %v9384, %v9383
        %v9466 = vpack.c.b16 %v9386, %v9385
        %v9467 = vpack.c.b16 %v9388, %v9387
        %v9468 = vpack.c.b16 %v9390, %v9389
        %v9469 = vpack.c.b16 %v9392, %v9391
        %v9470 = vpack.c.b16 %v9394, %v9393
        %v9471 = vpack.c.b16 %v9396, %v9395
        %v9472 = vpack.c.b16 %v9398, %v9397
        %v9473 = vpack.c.b16 %v9400, %v9399
        %v9474 = vpack.c.b16 %v9402, %v9401
        %v9475 = vpack.c.b16 %v9404, %v9403
        %v9476 = vpack.c.b16 %v9406, %v9405
        %v9477 = vpack.c.b16 %v9408, %v9407
        %v9478 = vpack.c.b16 %v9410, %v9409
        %v9479 = vpack.c.b16 %v9412, %v9411
        %v9480 = vpack.c.b16 %v9414, %v9413
        %v9481 = vpack.c.b16 %v9416, %v9415
        %v9482 = vpack.c.b16 %v9418, %v9417
        %9547 = vmatprep.subr.bf16.mxu0 0
        %9548 = vmatpush1.bf16.msra.mxu0 %v9419
        %9549 = vmatprep.subr.bf16.mxu0 0
        %9550 = vmatpush1.bf16.msra.mxu0 %v9420
        %9551 = vmatprep.subr.bf16.mxu0 0
        %9552 = vmatpush1.bf16.msra.mxu0 %v9421
        %9553 = vmatprep.subr.bf16.mxu0 0
        %9554 = vmatpush1.bf16.msra.mxu0 %v9422
        %9555 = vmatprep.subr.bf16.mxu0 0
        %9556 = vmatpush1.bf16.msra.mxu0 %v9423
        %9557 = vmatprep.subr.bf16.mxu0 0
        %9558 = vmatpush1.bf16.msra.mxu0 %v9424
        %9559 = vmatprep.subr.bf16.mxu0 0
        %9560 = vmatpush1.bf16.msra.mxu0 %v9425
        %9561 = vmatprep.subr.bf16.mxu0 0
        %9562 = vmatpush1.bf16.msra.mxu0 %v9426
        %9563 = vmatprep.subr.bf16.mxu0 0
        %9564 = vmatpush1.bf16.msra.mxu0 %v9427
        %9565 = vmatprep.subr.bf16.mxu0 0
        %9566 = vmatpush1.bf16.msra.mxu0 %v9428
        %9567 = vmatprep.subr.bf16.mxu0 0
        %9568 = vmatpush1.bf16.msra.mxu0 %v9429
        %9569 = vmatprep.subr.bf16.mxu0 0
        %9570 = vmatpush1.bf16.msra.mxu0 %v9430
        %9571 = vmatprep.subr.bf16.mxu0 0
        %9572 = vmatpush1.bf16.msra.mxu0 %v9431
        %9573 = vmatprep.subr.bf16.mxu0 0
        %9574 = vmatpush1.bf16.msra.mxu0 %v9432
        %9575 = vmatprep.subr.bf16.mxu0 0
        %9576 = vmatpush1.bf16.msra.mxu0 %v9433
        %9577 = vmatprep.subr.bf16.mxu0 0
        %9578 = vmatpush1.bf16.msra.mxu0 %v9434
        %9579 = vmatprep.mubr.bf16.mxu0 %v4324
        %9580 = vmatmul.mubr.bf16.gmra.mrb[0].mxu0 %v4323
        %v9581 = vpop.f32.mrb[0].mxu0
        %v9582 = vadd.f32 0.0, %v9581
        %v9583 = vpop.f32.mrb[0].mxu0
        %v9584 = vpop.f32.mrb[0].mxu0
        %v9585 = vpop.f32.mrb[0].mxu0
        %9586 = vdwg.mxu0
        %9587 = vmatprep.subr.bf16.mxu0 0
        %9588 = vmatpush1.bf16.msra.mxu0 %v9435
        %9589 = vmatprep.subr.bf16.mxu0 0
        %9590 = vmatpush1.bf16.msra.mxu0 %v9436
        %9591 = vmatprep.subr.bf16.mxu0 0
        %9592 = vmatpush1.bf16.msra.mxu0 %v9437
        %9593 = vmatprep.subr.bf16.mxu0 0
        %9594 = vmatpush1.bf16.msra.mxu0 %v9438
        %9595 = vmatprep.subr.bf16.mxu0 0
        %9596 = vmatpush1.bf16.msra.mxu0 %v9439
        %9597 = vmatprep.subr.bf16.mxu0 0
        %9598 = vmatpush1.bf16.msra.mxu0 %v9440
        %9599 = vmatprep.subr.bf16.mxu0 0
        %9600 = vmatpush1.bf16.msra.mxu0 %v9441
        %9601 = vmatprep.subr.bf16.mxu0 0
        %9602 = vmatpush1.bf16.msra.mxu0 %v9442
        %9603 = vmatprep.subr.bf16.mxu0 0
        %9604 = vmatpush1.bf16.msra.mxu0 %v9443
        %9605 = vmatprep.subr.bf16.mxu0 0
        %9606 = vmatpush1.bf16.msra.mxu0 %v9444
        %9607 = vmatprep.subr.bf16.mxu0 0
        %9608 = vmatpush1.bf16.msra.mxu0 %v9445
        %9609 = vmatprep.subr.bf16.mxu0 0
        %9610 = vmatpush1.bf16.msra.mxu0 %v9446
        %9611 = vmatprep.subr.bf16.mxu0 0
        %9612 = vmatpush1.bf16.msra.mxu0 %v9447
        %9613 = vmatprep.subr.bf16.mxu0 0
        %9614 = vmatpush1.bf16.msra.mxu0 %v9448
        %9615 = vmatprep.subr.bf16.mxu0 0
        %9616 = vmatpush1.bf16.msra.mxu0 %v9449
        %9617 = vmatprep.subr.bf16.mxu0 0
        %9618 = vmatpush1.bf16.msra.mxu0 %v9450
        %9619 = vmatprep.mubr.bf16.mxu0 %v4326
        %9620 = vmatmul.mubr.bf16.gmra.mrb[0].mxu0 %v4325
        %v9621 = vpop.f32.mrb[0].mxu0
        %v9622 = vadd.f32 %v9582, %v9621
        %v9623 = vpop.f32.mrb[0].mxu0
        %v9624 = vpop.f32.mrb[0].mxu0
        %v9625 = vpop.f32.mrb[0].mxu0
        %9626 = vdwg.mxu0
        %9627 = vmatprep.subr.bf16.mxu0 0
        %9628 = vmatpush1.bf16.msra.mxu0 %v9451
        %9629 = vmatprep.subr.bf16.mxu0 0
        %9630 = vmatpush1.bf16.msra.mxu0 %v9452
        %9631 = vmatprep.subr.bf16.mxu0 0
        %9632 = vmatpush1.bf16.msra.mxu0 %v9453
        %9633 = vmatprep.subr.bf16.mxu0 0
        %9634 = vmatpush1.bf16.msra.mxu0 %v9454
        %9635 = vmatprep.subr.bf16.mxu0 0
        %9636 = vmatpush1.bf16.msra.mxu0 %v9455
        %9637 = vmatprep.subr.bf16.mxu0 0
        %9638 = vmatpush1.bf16.msra.mxu0 %v9456
        %9639 = vmatprep.subr.bf16.mxu0 0
        %9640 = vmatpush1.bf16.msra.mxu0 %v9457
        %9641 = vmatprep.subr.bf16.mxu0 0
        %9642 = vmatpush1.bf16.msra.mxu0 %v9458
        %9643 = vmatprep.subr.bf16.mxu0 0
        %9644 = vmatpush1.bf16.msra.mxu0 %v9459
        %9645 = vmatprep.subr.bf16.mxu0 0
        %9646 = vmatpush1.bf16.msra.mxu0 %v9460
        %9647 = vmatprep.subr.bf16.mxu0 0
        %9648 = vmatpush1.bf16.msra.mxu0 %v9461
        %9649 = vmatprep.subr.bf16.mxu0 0
        %9650 = vmatpush1.bf16.msra.mxu0 %v9462
        %9651 = vmatprep.subr.bf16.mxu0 0
        %9652 = vmatpush1.bf16.msra.mxu0 %v9463
        %9653 = vmatprep.subr.bf16.mxu0 0
        %9654 = vmatpush1.bf16.msra.mxu0 %v9464
        %9655 = vmatprep.subr.bf16.mxu0 0
        %9656 = vmatpush1.bf16.msra.mxu0 %v9465
        %9657 = vmatprep.subr.bf16.mxu0 0
        %9658 = vmatpush1.bf16.msra.mxu0 %v9466
        %9659 = vmatprep.mubr.bf16.mxu0 %v4328
        %9660 = vmatmul.mubr.bf16.gmra.mrb[0].mxu0 %v4327
        %v9661 = vpop.f32.mrb[0].mxu0
        %v9662 = vadd.f32 %v9622, %v9661
        %v9663 = vpop.f32.mrb[0].mxu0
        %v9664 = vpop.f32.mrb[0].mxu0
        %v9665 = vpop.f32.mrb[0].mxu0
        %9666 = vdwg.mxu0
        %9667 = vmatprep.subr.bf16.mxu0 0
        %9668 = vmatpush1.bf16.msra.mxu0 %v9467
        %9669 = vmatprep.subr.bf16.mxu0 0
        %9670 = vmatpush1.bf16.msra.mxu0 %v9468
        %9671 = vmatprep.subr.bf16.mxu0 0
        %9672 = vmatpush1.bf16.msra.mxu0 %v9469
        %9673 = vmatprep.subr.bf16.mxu0 0
        %9674 = vmatpush1.bf16.msra.mxu0 %v9470
        %9675 = vmatprep.subr.bf16.mxu0 0
        %9676 = vmatpush1.bf16.msra.mxu0 %v9471
        %9677 = vmatprep.subr.bf16.mxu0 0
        %9678 = vmatpush1.bf16.msra.mxu0 %v9472
        %9679 = vmatprep.subr.bf16.mxu0 0
        %9680 = vmatpush1.bf16.msra.mxu0 %v9473
        %9681 = vmatprep.subr.bf16.mxu0 0
        %9682 = vmatpush1.bf16.msra.mxu0 %v9474
        %9683 = vmatprep.subr.bf16.mxu0 0
        %9684 = vmatpush1.bf16.msra.mxu0 %v9475
        %9685 = vmatprep.subr.bf16.mxu0 0
        %9686 = vmatpush1.bf16.msra.mxu0 %v9476
        %9687 = vmatprep.subr.bf16.mxu0 0
        %9688 = vmatpush1.bf16.msra.mxu0 %v9477
        %9689 = vmatprep.subr.bf16.mxu0 0
        %9690 = vmatpush1.bf16.msra.mxu0 %v9478
        %9691 = vmatprep.subr.bf16.mxu0 0
        %9692 = vmatpush1.bf16.msra.mxu0 %v9479
        %9693 = vmatprep.subr.bf16.mxu0 0
        %9694 = vmatpush1.bf16.msra.mxu0 %v9480
        %9695 = vmatprep.subr.bf16.mxu0 0
        %9696 = vmatpush1.bf16.msra.mxu0 %v9481
        %9697 = vmatprep.subr.bf16.mxu0 0
        %9698 = vmatpush1.bf16.msra.mxu0 %v9482
        %9699 = vmatprep.mubr.bf16.mxu0 %v4330
        %9700 = vmatmul.mubr.bf16.gmra.mrb[0].mxu0 %v4329
        %v9701 = vpop.f32.mrb[0].mxu0
        %v9702 = vadd.f32 %v9662, %v9701
        %v9703 = vpop.f32.mrb[0].mxu0
        %v9704 = vpop.f32.mrb[0].mxu0
        %v9705 = vpop.f32.mrb[0].mxu0
        %9706 = vdwg.mxu0
        %v9707 = vld [vmem:[#allocation2] sm:$0x3]
        %vm9708 = vcmask 1041408
        %v9709 = vsel %vm9708, %v5894, 0.0
        %v9710 = vsel %vm9708, %v6438, 0.0
        %v9711 = vadd.f32 %v9709, %v9710
        %v9712 = vsel %vm9708, %v6982, 0.0
        %v9713 = vadd.f32 %v9711, %v9712
        %v9714 = vsel %vm9708, %v7526, 0.0
        %v9715 = vadd.f32 %v9713, %v9714
        %v9716 = vsel %vm9708, %v8070, 0.0
        %v9717 = vadd.f32 %v9715, %v9716
        %v9718 = vsel %vm9708, %v8614, 0.0
        %v9719 = vadd.f32 %v9717, %v9718
        %v9720 = vsel %vm9708, %v9158, 0.0
        %v9721 = vadd.f32 %v9719, %v9720
        %v9722 = vsel %vm9708, %v9702, 0.0
        %v9723 = vadd.f32 %v9721, %v9722
        %v9724 = vadd.f32 %v9707, %v9723
        %9725 = vst [vmem:[#allocation2] sm:$0x3] %v9724
        %p9726 = scmp.eq.s32.totalorder %s23, 1
        // Predicated region
        $region69: #{net_forward.1} parent=47 // pred_check
          %p9727 = pneg %p9726
        $region70: #{net_forward.1} parent=47 // pred_check_branch
          %9729 = sbr.rel (%p9727) target = $region72
        $region71: #{net_forward.1} parent=47 // pred_region
          %v9730 = vld [vmem:[#allocation2] sm:$0x3]
          %v9731 = vld [vmem:[#allocation5] sm:$0x1]
          %v9733 = vlaneseq
          %v9734 = vshrl.u32 %v9733, 7
          %v9735 = vsub.s32 0, %v9734
          %v9736 = vrot.slane %v9731, %v9735
          %v9738 = vadd.f32 %v9730, %v9736
          %v9739 = vpack.c.bf16 %v9738, %v9738
          %v9740 = vld [vmem:[#allocation7] sm:$0xff]
          %v9741 = vld [vmem:[#allocation7 + $0x8] sm:$0xff]
          %v9742 = vld [vmem:[#allocation7 + $0x10] sm:$0xff]
          %v9743 = vld [vmem:[#allocation7 + $0x18] sm:$0xff]
          %v9744 = vld [vmem:[#allocation7 + $0x20] sm:$0xff]
          %v9745 = vld [vmem:[#allocation7 + $0x28] sm:$0xff]
          %v9746 = vld [vmem:[#allocation7 + $0x30] sm:$0xff]
          %v9747 = vld [vmem:[#allocation7 + $0x38] sm:$0xff]
          %v9748 = vld [vmem:[#allocation7 + $0x40] sm:$0xff]
          %v9749 = vld [vmem:[#allocation7 + $0x48] sm:$0xff]
          %v9750 = vld [vmem:[#allocation7 + $0x50] sm:$0xff]
          %v9751 = vld [vmem:[#allocation7 + $0x58] sm:$0xff]
          %v9752 = vld [vmem:[#allocation7 + $0x60] sm:$0xff]
          %v9753 = vld [vmem:[#allocation7 + $0x68] sm:$0xff]
          %v9754 = vld [vmem:[#allocation7 + $0x70] sm:$0xff]
          %v9755 = vld [vmem:[#allocation7 + $0x78] sm:$0xff]
          %v9756 = vld [vmem:[#allocation7 + $0x80] sm:$0xff]
          %v9757 = vld [vmem:[#allocation7 + $0x88] sm:$0xff]
          %v9758 = vld [vmem:[#allocation7 + $0x90] sm:$0xff]
          %v9759 = vld [vmem:[#allocation7 + $0x98] sm:$0xff]
          %v9760 = vld [vmem:[#allocation7 + $0xa0] sm:$0xff]
          %v9761 = vld [vmem:[#allocation7 + $0xa8] sm:$0xff]
          %v9762 = vld [vmem:[#allocation7 + $0xb0] sm:$0xff]
          %v9763 = vld [vmem:[#allocation7 + $0xb8] sm:$0xff]
          %v9764 = vld [vmem:[#allocation7 + $0xc0] sm:$0xff]
          %v9765 = vld [vmem:[#allocation7 + $0xc8] sm:$0xff]
          %v9766 = vld [vmem:[#allocation7 + $0xd0] sm:$0xff]
          %v9767 = vld [vmem:[#allocation7 + $0xd8] sm:$0xff]
          %v9768 = vld [vmem:[#allocation7 + $0xe0] sm:$0xff]
          %v9769 = vld [vmem:[#allocation7 + $0xe8] sm:$0xff]
          %v9770 = vld [vmem:[#allocation7 + $0xf0] sm:$0xff]
          %v9771 = vld [vmem:[#allocation7 + $0xf8] sm:$0xff]
          %v9772 = vld [vmem:[#allocation7 + $0x100] sm:$0xff]
          %v9773 = vld [vmem:[#allocation7 + $0x108] sm:$0xff]
          %v9774 = vld [vmem:[#allocation7 + $0x110] sm:$0xff]
          %v9775 = vld [vmem:[#allocation7 + $0x118] sm:$0xff]
          %v9776 = vld [vmem:[#allocation7 + $0x120] sm:$0xff]
          %v9777 = vld [vmem:[#allocation7 + $0x128] sm:$0xff]
          %v9778 = vld [vmem:[#allocation7 + $0x130] sm:$0xff]
          %v9779 = vld [vmem:[#allocation7 + $0x138] sm:$0xff]
          %v9780 = vld [vmem:[#allocation7 + $0x140] sm:$0xff]
          %v9781 = vld [vmem:[#allocation7 + $0x148] sm:$0xff]
          %v9782 = vld [vmem:[#allocation7 + $0x150] sm:$0xff]
          %v9783 = vld [vmem:[#allocation7 + $0x158] sm:$0xff]
          %v9784 = vld [vmem:[#allocation7 + $0x160] sm:$0xff]
          %v9785 = vld [vmem:[#allocation7 + $0x168] sm:$0xff]
          %v9786 = vld [vmem:[#allocation7 + $0x170] sm:$0xff]
          %v9787 = vld [vmem:[#allocation7 + $0x178] sm:$0xff]
          %v9788 = vld [vmem:[#allocation7 + $0x180] sm:$0xff]
          %v9789 = vld [vmem:[#allocation7 + $0x188] sm:$0xff]
          %v9790 = vld [vmem:[#allocation7 + $0x190] sm:$0xff]
          %v9791 = vld [vmem:[#allocation7 + $0x198] sm:$0xff]
          %v9792 = vld [vmem:[#allocation7 + $0x1a0] sm:$0xff]
          %v9793 = vld [vmem:[#allocation7 + $0x1a8] sm:$0xff]
          %v9794 = vld [vmem:[#allocation7 + $0x1b0] sm:$0xff]
          %v9795 = vld [vmem:[#allocation7 + $0x1b8] sm:$0xff]
          %v9796 = vld [vmem:[#allocation7 + $0x1c0] sm:$0xff]
          %v9797 = vld [vmem:[#allocation7 + $0x1c8] sm:$0xff]
          %v9798 = vld [vmem:[#allocation7 + $0x1d0] sm:$0xff]
          %v9799 = vld [vmem:[#allocation7 + $0x1d8] sm:$0xff]
          %v9800 = vld [vmem:[#allocation7 + $0x1e0] sm:$0xff]
          %v9801 = vld [vmem:[#allocation7 + $0x1e8] sm:$0xff]
          %v9802 = vld [vmem:[#allocation7 + $0x1f0] sm:$0xff]
          %v9803 = vld [vmem:[#allocation7 + $0x1f8] sm:$0xff]
          %v9804 = vld [vmem:[#allocation8] sm:$0xff]
          %v9806 = vlaneseq
          %v9807 = vshrl.u32 %v9806, 7
          %v9808 = vsub.s32 0, %v9807
          %v9809 = vrot.slane %v9804, %v9808
          %v9810 = vlaneseq
          %v9811 = vshrl.u32 %v9810, 7
          %v9812 = vsub.s32 1, %v9811
          %v9813 = vrot.slane %v9804, %v9812
          %v9814 = vlaneseq
          %v9815 = vshrl.u32 %v9814, 7
          %v9816 = vsub.s32 2, %v9815
          %v9817 = vrot.slane %v9804, %v9816
          %v9818 = vlaneseq
          %v9819 = vshrl.u32 %v9818, 7
          %v9820 = vsub.s32 3, %v9819
          %v9821 = vrot.slane %v9804, %v9820
          %v9822 = vlaneseq
          %v9823 = vshrl.u32 %v9822, 7
          %v9824 = vsub.s32 4, %v9823
          %v9825 = vrot.slane %v9804, %v9824
          %v9826 = vlaneseq
          %v9827 = vshrl.u32 %v9826, 7
          %v9828 = vsub.s32 5, %v9827
          %v9829 = vrot.slane %v9804, %v9828
          %v9830 = vlaneseq
          %v9831 = vshrl.u32 %v9830, 7
          %v9832 = vsub.s32 6, %v9831
          %v9833 = vrot.slane %v9804, %v9832
          %v9834 = vlaneseq
          %v9835 = vshrl.u32 %v9834, 7
          %v9836 = vsub.s32 7, %v9835
          %v9837 = vrot.slane %v9804, %v9836
          %v9910 = vunpack.c.l.b16 %v9740
          %v9911 = vunpack.c.h.b16 %v9740
          %v9912 = vunpack.c.l.b16 %v9741
          %v9913 = vunpack.c.h.b16 %v9741
          %v9914 = vunpack.c.l.b16 %v9742
          %v9915 = vunpack.c.h.b16 %v9742
          %v9916 = vunpack.c.l.b16 %v9743
          %v9917 = vunpack.c.h.b16 %v9743
          %v9918 = vunpack.c.l.b16 %v9744
          %v9919 = vunpack.c.h.b16 %v9744
          %v9920 = vunpack.c.l.b16 %v9745
          %v9921 = vunpack.c.h.b16 %v9745
          %v9922 = vunpack.c.l.b16 %v9746
          %v9923 = vunpack.c.h.b16 %v9746
          %v9924 = vunpack.c.l.b16 %v9747
          %v9925 = vunpack.c.h.b16 %v9747
          %v9926 = vunpack.c.l.b16 %v9748
          %v9927 = vunpack.c.h.b16 %v9748
          %v9928 = vunpack.c.l.b16 %v9749
          %v9929 = vunpack.c.h.b16 %v9749
          %v9930 = vunpack.c.l.b16 %v9750
          %v9931 = vunpack.c.h.b16 %v9750
          %v9932 = vunpack.c.l.b16 %v9751
          %v9933 = vunpack.c.h.b16 %v9751
          %v9934 = vunpack.c.l.b16 %v9752
          %v9935 = vunpack.c.h.b16 %v9752
          %v9936 = vunpack.c.l.b16 %v9753
          %v9937 = vunpack.c.h.b16 %v9753
          %v9938 = vunpack.c.l.b16 %v9754
          %v9939 = vunpack.c.h.b16 %v9754
          %v9940 = vunpack.c.l.b16 %v9755
          %v9941 = vunpack.c.h.b16 %v9755
          %v9942 = vunpack.c.l.b16 %v9756
          %v9943 = vunpack.c.h.b16 %v9756
          %v9944 = vunpack.c.l.b16 %v9757
          %v9945 = vunpack.c.h.b16 %v9757
          %v9946 = vunpack.c.l.b16 %v9758
          %v9947 = vunpack.c.h.b16 %v9758
          %v9948 = vunpack.c.l.b16 %v9759
          %v9949 = vunpack.c.h.b16 %v9759
          %v9950 = vunpack.c.l.b16 %v9760
          %v9951 = vunpack.c.h.b16 %v9760
          %v9952 = vunpack.c.l.b16 %v9761
          %v9953 = vunpack.c.h.b16 %v9761
          %v9954 = vunpack.c.l.b16 %v9762
          %v9955 = vunpack.c.h.b16 %v9762
          %v9956 = vunpack.c.l.b16 %v9763
          %v9957 = vunpack.c.h.b16 %v9763
          %v9958 = vunpack.c.l.b16 %v9764
          %v9959 = vunpack.c.h.b16 %v9764
          %v9960 = vunpack.c.l.b16 %v9765
          %v9961 = vunpack.c.h.b16 %v9765
          %v9962 = vunpack.c.l.b16 %v9766
          %v9963 = vunpack.c.h.b16 %v9766
          %v9964 = vunpack.c.l.b16 %v9767
          %v9965 = vunpack.c.h.b16 %v9767
          %v9966 = vunpack.c.l.b16 %v9768
          %v9967 = vunpack.c.h.b16 %v9768
          %v9968 = vunpack.c.l.b16 %v9769
          %v9969 = vunpack.c.h.b16 %v9769
          %v9970 = vunpack.c.l.b16 %v9770
          %v9971 = vunpack.c.h.b16 %v9770
          %v9972 = vunpack.c.l.b16 %v9771
          %v9973 = vunpack.c.h.b16 %v9771
          %v9974 = vunpack.c.l.b16 %v9772
          %v9975 = vunpack.c.h.b16 %v9772
          %v9976 = vunpack.c.l.b16 %v9773
          %v9977 = vunpack.c.h.b16 %v9773
          %v9978 = vunpack.c.l.b16 %v9774
          %v9979 = vunpack.c.h.b16 %v9774
          %v9980 = vunpack.c.l.b16 %v9775
          %v9981 = vunpack.c.h.b16 %v9775
          %v9982 = vunpack.c.l.b16 %v9776
          %v9983 = vunpack.c.h.b16 %v9776
          %v9984 = vunpack.c.l.b16 %v9777
          %v9985 = vunpack.c.h.b16 %v9777
          %v9986 = vunpack.c.l.b16 %v9778
          %v9987 = vunpack.c.h.b16 %v9778
          %v9988 = vunpack.c.l.b16 %v9779
          %v9989 = vunpack.c.h.b16 %v9779
          %v9990 = vunpack.c.l.b16 %v9780
          %v9991 = vunpack.c.h.b16 %v9780
          %v9992 = vunpack.c.l.b16 %v9781
          %v9993 = vunpack.c.h.b16 %v9781
          %v9994 = vunpack.c.l.b16 %v9782
          %v9995 = vunpack.c.h.b16 %v9782
          %v9996 = vunpack.c.l.b16 %v9783
          %v9997 = vunpack.c.h.b16 %v9783
          %v9998 = vunpack.c.l.b16 %v9784
          %v9999 = vunpack.c.h.b16 %v9784
          %v10000 = vunpack.c.l.b16 %v9785
          %v10001 = vunpack.c.h.b16 %v9785
          %v10002 = vunpack.c.l.b16 %v9786
          %v10003 = vunpack.c.h.b16 %v9786
          %v10004 = vunpack.c.l.b16 %v9787
          %v10005 = vunpack.c.h.b16 %v9787
          %v10006 = vunpack.c.l.b16 %v9788
          %v10007 = vunpack.c.h.b16 %v9788
          %v10008 = vunpack.c.l.b16 %v9789
          %v10009 = vunpack.c.h.b16 %v9789
          %v10010 = vunpack.c.l.b16 %v9790
          %v10011 = vunpack.c.h.b16 %v9790
          %v10012 = vunpack.c.l.b16 %v9791
          %v10013 = vunpack.c.h.b16 %v9791
          %v10014 = vunpack.c.l.b16 %v9792
          %v10015 = vunpack.c.h.b16 %v9792
          %v10016 = vunpack.c.l.b16 %v9793
          %v10017 = vunpack.c.h.b16 %v9793
          %v10018 = vunpack.c.l.b16 %v9794
          %v10019 = vunpack.c.h.b16 %v9794
          %v10020 = vunpack.c.l.b16 %v9795
          %v10021 = vunpack.c.h.b16 %v9795
          %v10022 = vunpack.c.l.b16 %v9796
          %v10023 = vunpack.c.h.b16 %v9796
          %v10024 = vunpack.c.l.b16 %v9797
          %v10025 = vunpack.c.h.b16 %v9797
          %v10026 = vunpack.c.l.b16 %v9798
          %v10027 = vunpack.c.h.b16 %v9798
          %v10028 = vunpack.c.l.b16 %v9799
          %v10029 = vunpack.c.h.b16 %v9799
          %v10030 = vunpack.c.l.b16 %v9800
          %v10031 = vunpack.c.h.b16 %v9800
          %v10032 = vunpack.c.l.b16 %v9801
          %v10033 = vunpack.c.h.b16 %v9801
          %v10034 = vunpack.c.l.b16 %v9802
          %v10035 = vunpack.c.h.b16 %v9802
          %v10036 = vunpack.c.l.b16 %v9803
          %v10037 = vunpack.c.h.b16 %v9803
          %v10038 = vpack.c.b16 %v9918, %v9910
          %v10039 = vpack.c.b16 %v9919, %v9911
          %v10040 = vpack.c.b16 %v9920, %v9912
          %v10041 = vpack.c.b16 %v9921, %v9913
          %v10042 = vpack.c.b16 %v9922, %v9914
          %v10043 = vpack.c.b16 %v9923, %v9915
          %v10044 = vpack.c.b16 %v9924, %v9916
          %v10045 = vpack.c.b16 %v9925, %v9917
          %v10046 = vpack.c.b16 %v9934, %v9926
          %v10047 = vpack.c.b16 %v9935, %v9927
          %v10048 = vpack.c.b16 %v9936, %v9928
          %v10049 = vpack.c.b16 %v9937, %v9929
          %v10050 = vpack.c.b16 %v9938, %v9930
          %v10051 = vpack.c.b16 %v9939, %v9931
          %v10052 = vpack.c.b16 %v9940, %v9932
          %v10053 = vpack.c.b16 %v9941, %v9933
          %v10054 = vpack.c.b16 %v9950, %v9942
          %v10055 = vpack.c.b16 %v9951, %v9943
          %v10056 = vpack.c.b16 %v9952, %v9944
          %v10057 = vpack.c.b16 %v9953, %v9945
          %v10058 = vpack.c.b16 %v9954, %v9946
          %v10059 = vpack.c.b16 %v9955, %v9947
          %v10060 = vpack.c.b16 %v9956, %v9948
          %v10061 = vpack.c.b16 %v9957, %v9949
          %v10062 = vpack.c.b16 %v9966, %v9958
          %v10063 = vpack.c.b16 %v9967, %v9959
          %v10064 = vpack.c.b16 %v9968, %v9960
          %v10065 = vpack.c.b16 %v9969, %v9961
          %v10066 = vpack.c.b16 %v9970, %v9962
          %v10067 = vpack.c.b16 %v9971, %v9963
          %v10068 = vpack.c.b16 %v9972, %v9964
          %v10069 = vpack.c.b16 %v9973, %v9965
          %v10070 = vpack.c.b16 %v9982, %v9974
          %v10071 = vpack.c.b16 %v9983, %v9975
          %v10072 = vpack.c.b16 %v9984, %v9976
          %v10073 = vpack.c.b16 %v9985, %v9977
          %v10074 = vpack.c.b16 %v9986, %v9978
          %v10075 = vpack.c.b16 %v9987, %v9979
          %v10076 = vpack.c.b16 %v9988, %v9980
          %v10077 = vpack.c.b16 %v9989, %v9981
          %v10078 = vpack.c.b16 %v9998, %v9990
          %v10079 = vpack.c.b16 %v9999, %v9991
          %v10080 = vpack.c.b16 %v10000, %v9992
          %v10081 = vpack.c.b16 %v10001, %v9993
          %v10082 = vpack.c.b16 %v10002, %v9994
          %v10083 = vpack.c.b16 %v10003, %v9995
          %v10084 = vpack.c.b16 %v10004, %v9996
          %v10085 = vpack.c.b16 %v10005, %v9997
          %v10086 = vpack.c.b16 %v10014, %v10006
          %v10087 = vpack.c.b16 %v10015, %v10007
          %v10088 = vpack.c.b16 %v10016, %v10008
          %v10089 = vpack.c.b16 %v10017, %v10009
          %v10090 = vpack.c.b16 %v10018, %v10010
          %v10091 = vpack.c.b16 %v10019, %v10011
          %v10092 = vpack.c.b16 %v10020, %v10012
          %v10093 = vpack.c.b16 %v10021, %v10013
          %v10094 = vpack.c.b16 %v10030, %v10022
          %v10095 = vpack.c.b16 %v10031, %v10023
          %v10096 = vpack.c.b16 %v10032, %v10024
          %v10097 = vpack.c.b16 %v10033, %v10025
          %v10098 = vpack.c.b16 %v10034, %v10026
          %v10099 = vpack.c.b16 %v10035, %v10027
          %v10100 = vpack.c.b16 %v10036, %v10028
          %v10101 = vpack.c.b16 %v10037, %v10029
          %10166 = vmatprep.subr.bf16.mxu0 %v10039
          %10167 = vmatpush1.bf16.msra.mxu0 %v10038
          %10168 = vmatprep.subr.bf16.mxu0 %v10047
          %10169 = vmatpush1.bf16.msra.mxu0 %v10046
          %10170 = vmatprep.subr.bf16.mxu0 %v10055
          %10171 = vmatpush1.bf16.msra.mxu0 %v10054
          %10172 = vmatprep.subr.bf16.mxu0 %v10063
          %10173 = vmatpush1.bf16.msra.mxu0 %v10062
          %10174 = vmatprep.subr.bf16.mxu0 %v10071
          %10175 = vmatpush1.bf16.msra.mxu0 %v10070
          %10176 = vmatprep.subr.bf16.mxu0 %v10079
          %10177 = vmatpush1.bf16.msra.mxu0 %v10078
          %10178 = vmatprep.subr.bf16.mxu0 %v10087
          %10179 = vmatpush1.bf16.msra.mxu0 %v10086
          %10180 = vmatprep.subr.bf16.mxu0 %v10095
          %10181 = vmatpush1.bf16.msra.mxu0 %v10094
          %10182 = vmatprep.subr.bf16.mxu0 0
          %10183 = vmatpush1.bf16.msra.mxu0 0
          %10184 = vmatprep.subr.bf16.mxu0 0
          %10185 = vmatpush1.bf16.msra.mxu0 0
          %10186 = vmatprep.subr.bf16.mxu0 0
          %10187 = vmatpush1.bf16.msra.mxu0 0
          %10188 = vmatprep.subr.bf16.mxu0 0
          %10189 = vmatpush1.bf16.msra.mxu0 0
          %10190 = vmatprep.subr.bf16.mxu0 0
          %10191 = vmatpush1.bf16.msra.mxu0 0
          %10192 = vmatprep.subr.bf16.mxu0 0
          %10193 = vmatpush1.bf16.msra.mxu0 0
          %10194 = vmatprep.subr.bf16.mxu0 0
          %10195 = vmatpush1.bf16.msra.mxu0 0
          %10196 = vmatprep.subr.bf16.mxu0 0
          %10197 = vmatpush1.bf16.msra.mxu0 0
          %10198 = vmatprep.mubr.bf16.mxu0 0
          %10199 = vmatmul.mubr.bf16.gmra.mrb[0].mxu0 %v9739
          %v10200 = vpop.f32.mrb[0].mxu0
          %v10201 = vadd.f32 %v9809, %v10200
          %v10202 = vpop.f32.mrb[0].mxu0
          %v10203 = vadd.f32 %v9813, %v10202
          %v10204 = vpop.f32.mrb[0].mxu0
          %v10205 = vpop.f32.mrb[0].mxu0
          %10206 = vdwg.mxu0
          %10207 = vmatprep.subr.bf16.mxu0 %v10041
          %10208 = vmatpush1.bf16.msra.mxu0 %v10040
          %10209 = vmatprep.subr.bf16.mxu0 %v10049
          %10210 = vmatpush1.bf16.msra.mxu0 %v10048
          %10211 = vmatprep.subr.bf16.mxu0 %v10057
          %10212 = vmatpush1.bf16.msra.mxu0 %v10056
          %10213 = vmatprep.subr.bf16.mxu0 %v10065
          %10214 = vmatpush1.bf16.msra.mxu0 %v10064
          %10215 = vmatprep.subr.bf16.mxu0 %v10073
          %10216 = vmatpush1.bf16.msra.mxu0 %v10072
          %10217 = vmatprep.subr.bf16.mxu0 %v10081
          %10218 = vmatpush1.bf16.msra.mxu0 %v10080
          %10219 = vmatprep.subr.bf16.mxu0 %v10089
          %10220 = vmatpush1.bf16.msra.mxu0 %v10088
          %10221 = vmatprep.subr.bf16.mxu0 %v10097
          %10222 = vmatpush1.bf16.msra.mxu0 %v10096
          %10223 = vmatprep.subr.bf16.mxu0 0
          %10224 = vmatpush1.bf16.msra.mxu0 0
          %10225 = vmatprep.subr.bf16.mxu0 0
          %10226 = vmatpush1.bf16.msra.mxu0 0
          %10227 = vmatprep.subr.bf16.mxu0 0
          %10228 = vmatpush1.bf16.msra.mxu0 0
          %10229 = vmatprep.subr.bf16.mxu0 0
          %10230 = vmatpush1.bf16.msra.mxu0 0
          %10231 = vmatprep.subr.bf16.mxu0 0
          %10232 = vmatpush1.bf16.msra.mxu0 0
          %10233 = vmatprep.subr.bf16.mxu0 0
          %10234 = vmatpush1.bf16.msra.mxu0 0
          %10235 = vmatprep.subr.bf16.mxu0 0
          %10236 = vmatpush1.bf16.msra.mxu0 0
          %10237 = vmatprep.subr.bf16.mxu0 0
          %10238 = vmatpush1.bf16.msra.mxu0 0
          %10239 = vmatprep.mubr.bf16.mxu0 0
          %10240 = vmatmul.mubr.bf16.gmra.mrb[0].mxu0 %v9739
          %v10241 = vpop.f32.mrb[0].mxu0
          %v10242 = vadd.f32 %v9817, %v10241
          %v10243 = vpop.f32.mrb[0].mxu0
          %v10244 = vadd.f32 %v9821, %v10243
          %v10245 = vpop.f32.mrb[0].mxu0
          %v10246 = vpop.f32.mrb[0].mxu0
          %10247 = vdwg.mxu0
          %10248 = vmatprep.subr.bf16.mxu0 %v10043
          %10249 = vmatpush1.bf16.msra.mxu0 %v10042
          %10250 = vmatprep.subr.bf16.mxu0 %v10051
          %10251 = vmatpush1.bf16.msra.mxu0 %v10050
          %10252 = vmatprep.subr.bf16.mxu0 %v10059
          %10253 = vmatpush1.bf16.msra.mxu0 %v10058
          %10254 = vmatprep.subr.bf16.mxu0 %v10067
          %10255 = vmatpush1.bf16.msra.mxu0 %v10066
          %10256 = vmatprep.subr.bf16.mxu0 %v10075
          %10257 = vmatpush1.bf16.msra.mxu0 %v10074
          %10258 = vmatprep.subr.bf16.mxu0 %v10083
          %10259 = vmatpush1.bf16.msra.mxu0 %v10082
          %10260 = vmatprep.subr.bf16.mxu0 %v10091
          %10261 = vmatpush1.bf16.msra.mxu0 %v10090
          %10262 = vmatprep.subr.bf16.mxu0 %v10099
          %10263 = vmatpush1.bf16.msra.mxu0 %v10098
          %10264 = vmatprep.subr.bf16.mxu0 0
          %10265 = vmatpush1.bf16.msra.mxu0 0
          %10266 = vmatprep.subr.bf16.mxu0 0
          %10267 = vmatpush1.bf16.msra.mxu0 0
          %10268 = vmatprep.subr.bf16.mxu0 0
          %10269 = vmatpush1.bf16.msra.mxu0 0
          %10270 = vmatprep.subr.bf16.mxu0 0
          %10271 = vmatpush1.bf16.msra.mxu0 0
          %10272 = vmatprep.subr.bf16.mxu0 0
          %10273 = vmatpush1.bf16.msra.mxu0 0
          %10274 = vmatprep.subr.bf16.mxu0 0
          %10275 = vmatpush1.bf16.msra.mxu0 0
          %10276 = vmatprep.subr.bf16.mxu0 0
          %10277 = vmatpush1.bf16.msra.mxu0 0
          %10278 = vmatprep.subr.bf16.mxu0 0
          %10279 = vmatpush1.bf16.msra.mxu0 0
          %10280 = vmatprep.mubr.bf16.mxu0 0
          %10281 = vmatmul.mubr.bf16.gmra.mrb[0].mxu0 %v9739
          %v10282 = vpop.f32.mrb[0].mxu0
          %v10283 = vadd.f32 %v9825, %v10282
          %v10284 = vpop.f32.mrb[0].mxu0
          %v10285 = vadd.f32 %v9829, %v10284
          %v10286 = vpop.f32.mrb[0].mxu0
          %v10287 = vpop.f32.mrb[0].mxu0
          %10288 = vdwg.mxu0
          %10289 = vmatprep.subr.bf16.mxu0 %v10045
          %10290 = vmatpush1.bf16.msra.mxu0 %v10044
          %10291 = vmatprep.subr.bf16.mxu0 %v10053
          %10292 = vmatpush1.bf16.msra.mxu0 %v10052
          %10293 = vmatprep.subr.bf16.mxu0 %v10061
          %10294 = vmatpush1.bf16.msra.mxu0 %v10060
          %10295 = vmatprep.subr.bf16.mxu0 %v10069
          %10296 = vmatpush1.bf16.msra.mxu0 %v10068
          %10297 = vmatprep.subr.bf16.mxu0 %v10077
          %10298 = vmatpush1.bf16.msra.mxu0 %v10076
          %10299 = vmatprep.subr.bf16.mxu0 %v10085
          %10300 = vmatpush1.bf16.msra.mxu0 %v10084
          %10301 = vmatprep.subr.bf16.mxu0 %v10093
          %10302 = vmatpush1.bf16.msra.mxu0 %v10092
          %10303 = vmatprep.subr.bf16.mxu0 %v10101
          %10304 = vmatpush1.bf16.msra.mxu0 %v10100
          %10305 = vmatprep.subr.bf16.mxu0 0
          %10306 = vmatpush1.bf16.msra.mxu0 0
          %10307 = vmatprep.subr.bf16.mxu0 0
          %10308 = vmatpush1.bf16.msra.mxu0 0
          %10309 = vmatprep.subr.bf16.mxu0 0
          %10310 = vmatpush1.bf16.msra.mxu0 0
          %10311 = vmatprep.subr.bf16.mxu0 0
          %10312 = vmatpush1.bf16.msra.mxu0 0
          %10313 = vmatprep.subr.bf16.mxu0 0
          %10314 = vmatpush1.bf16.msra.mxu0 0
          %10315 = vmatprep.subr.bf16.mxu0 0
          %10316 = vmatpush1.bf16.msra.mxu0 0
          %10317 = vmatprep.subr.bf16.mxu0 0
          %10318 = vmatpush1.bf16.msra.mxu0 0
          %10319 = vmatprep.subr.bf16.mxu0 0
          %10320 = vmatpush1.bf16.msra.mxu0 0
          %10321 = vmatprep.mubr.bf16.mxu0 0
          %10322 = vmatmul.mubr.bf16.gmra.mrb[0].mxu0 %v9739
          %v10323 = vpop.f32.mrb[0].mxu0
          %v10324 = vadd.f32 %v9833, %v10323
          %v10325 = vpop.f32.mrb[0].mxu0
          %v10326 = vadd.f32 %v9837, %v10325
          %v10327 = vpop.f32.mrb[0].mxu0
          %v10328 = vpop.f32.mrb[0].mxu0
          %10329 = vdwg.mxu0
          %v10338 = vcombine.low %v10201, %v10203
          %v10339 = vcombine.low %v10242, %v10244
          %v10341 = vunpack.c.l.s4 1983009808
          %v10342 = vunpack.c.0.s8 %v10341
          %v10343 = vlaneseq
          %v10344 = vshrl.u32 %v10343, 7
          %v10345 = vsub.s32 %v10342, %v10344
          %v10346 = vrot.slane %v10338, %v10345
          %v10348 = vunpack.c.l.s4 1983009808
          %v10349 = vunpack.c.0.s8 %v10348
          %v10350 = vlaneseq
          %v10351 = vshrl.u32 %v10350, 7
          %v10352 = vsub.s32 %v10349, %v10351
          %v10353 = vrot.slane %v10339, %v10352
          %v10354 = vcombine.low %v10346, %v10353
          %v10355 = vcombine.low %v10283, %v10285
          %v10356 = vcombine.low %v10324, %v10326
          %v10358 = vunpack.c.l.s4 1983009808
          %v10359 = vunpack.c.0.s8 %v10358
          %v10360 = vlaneseq
          %v10361 = vshrl.u32 %v10360, 7
          %v10362 = vsub.s32 %v10359, %v10361
          %v10363 = vrot.slane %v10355, %v10362
          %v10365 = vunpack.c.l.s4 1983009808
          %v10366 = vunpack.c.0.s8 %v10365
          %v10367 = vlaneseq
          %v10368 = vshrl.u32 %v10367, 7
          %v10369 = vsub.s32 %v10366, %v10368
          %v10370 = vrot.slane %v10356, %v10369
          %v10371 = vcombine.low %v10363, %v10370
          %10374 = vst [vmem:[%s7] sm:$0xff] %v10354
          %10375 = vst [vmem:[%s7 + $0x8] sm:$0xff] %v10371
        $region72: #{net_forward.1} parent=47 // pred_fallthru
          _
        // Predicated region
        $region73: #{net_forward.1} parent=47 // pred_check
          %p10376 = pneg %p198
        $region74: #{net_forward.1} parent=47 // pred_check_branch
          %10378 = sbr.rel (%p10376) target = $region76
        $region75: #{net_forward.1} parent=47 // pred_region
          _
        $region76: #{net_forward.1} parent=47 // pred_fallthru
          _
        // Predicated region
        $region77: #{net_forward.1} parent=47 // pred_check
          %p10379 = pneg %p198
        $region78: #{net_forward.1} parent=47 // pred_check_branch
          %10381 = sbr.rel (%p10379) target = $region80
        $region79: #{net_forward.1} parent=47 // pred_region
          _
        $region80: #{net_forward.1} parent=47 // pred_fallthru
          _
      $region48: #{net_forward.1} parent=5 // pred_fallthru
        _
      %p10382 = scmp.le.s32.totalorder 2, %s18
      // Predicated region
      $region81: #{net_forward.1} parent=5 // pred_check
        %p10383 = pneg %p10382
      $region82: #{net_forward.1} parent=5 // pred_check_branch
        %10385 = sbr.rel (%p10383) target = $region84
      $region83: #{net_forward.1} parent=5 // pred_region
        %s10386 = ssub.s32 %s18, 2
      $region84: #{net_forward.1} parent=5 // pred_fallthru
        _
    $region6: #{net_forward.1} parent=1 // loop_footer
      %s22 = sadd.s32 1, %s18
    $region7: #{net_forward.1} parent=1 // loop_footer_branch
      %17 = sbr.rel target = $region3
    $region8: #{net_forward.1} parent=1 // loop_exit
      _
    %10387 = vsyncpa [#allocation4], 1
    %s10388 = scalar_lea.sflag [#allocation4], 1
    %10389 = vsyncpa %s10388, 1
    %10390 = vsyncpa [#allocation6], 1
    %10391 = vsyncpa [#allocation9], 1

</llo_original>
